<compile_context>
chip_gen: v6e
topology: v6e:2x2x1
jax: 0.10.0
libtpu: 0.0.40
codegen_flags: <defaults>
</compile_context>

<pallas_src>
import jax
import jax.numpy as jnp
from jax.experimental import pallas as pl
from jax.experimental.pallas import tpu as pltpu

INPUT_DIM = 600
LATENT_DIM = 20
NEG_SLOPE = 0.01  # F.leaky_relu default negative_slope

# Logical layer widths along the chain and their lane-padded (x128) versions.
_DIMS = [INPUT_DIM, 300, 100, LATENT_DIM, 100, 300, INPUT_DIM]


def _round_up(x, m):
    return (x + m - 1) // m * m


_PDIMS = [_round_up(d, 128) for d in _DIMS]  # [640, 384, 128, 128, 128, 384, 640]


def _leaky_relu(x):
    return jnp.where(x > 0, x, NEG_SLOPE * x)


def autoencoder_kernel(x_ref,
                       w1_ref, b1_ref, w2_ref, b2_ref, w3_ref, b3_ref,
                       w4_ref, b4_ref, w5_ref, b5_ref, w6_ref, b6_ref,
                       o_ref):
    """bf16 MXU operands, f32 accumulation, f32 bias + LeakyReLU epilogue."""
    h = x_ref[...]  # bf16 [bt, 640]
    layers = (
        (w1_ref, b1_ref, True),   # encoder.fc1 + leaky_relu
        (w2_ref, b2_ref, True),   # encoder.fc2 + leaky_relu
        (w3_ref, b3_ref, False),  # encoder.fc3 (latent, no activation)
        (w4_ref, b4_ref, True),   # decoder.fc1 + leaky_relu
        (w5_ref, b5_ref, True),   # decoder.fc2 + leaky_relu
        (w6_ref, b6_ref, False),  # decoder.fc3 (no activation)
    )
    for idx, (w_ref, b_ref, act) in enumerate(layers):
        y = jnp.dot(h, w_ref[...], preferred_element_type=jnp.float32) + b_ref[...]
        if act:
            y = _leaky_relu(y)
        h = y if idx == len(layers) - 1 else y.astype(jnp.bfloat16)
    o_ref[...] = h.astype(o_ref.dtype)


def autoencoder_forward(x, params, *, batch_tile=256):
    """x: [B, INPUT_DIM] float32. params: list of (W[in,out], b[1,out]) f32."""
    B, D = x.shape
    assert D == INPUT_DIM
    assert batch_tile % 8 == 0
    B_pad = _round_up(max(B, 1), batch_tile)

    # Pad batch + lanes and cast the matmul operand to bf16 once (halves DMA).
    x_p = jnp.zeros((B_pad, _PDIMS[0]), jnp.bfloat16)
    x_p = x_p.at[:B, :D].set(x.astype(jnp.bfloat16))

    flat = []
    in_specs = [pl.BlockSpec((batch_tile, _PDIMS[0]), lambda i: (i, 0))]
    for li, (w, b) in enumerate(params):
        in_p, out_p = _PDIMS[li], _PDIMS[li + 1]
        w_p = jnp.zeros((in_p, out_p), jnp.bfloat16)
        w_p = w_p.at[:w.shape[0], :w.shape[1]].set(w.astype(jnp.bfloat16))
        b_p = jnp.zeros((1, out_p), jnp.float32)
        b_p = b_p.at[:, :b.shape[1]].set(b.astype(jnp.float32))
        flat += [w_p, b_p]
        # Constant index_map: weights/biases stay resident, never re-DMA'd.
        in_specs.append(pl.BlockSpec((in_p, out_p), lambda i: (0, 0)))
        in_specs.append(pl.BlockSpec((1, out_p), lambda i: (0, 0)))

    out_specs = pl.BlockSpec((batch_tile, _PDIMS[-1]), lambda i: (i, 0))

    flops = 2 * B_pad * sum(_DIMS[i] * _DIMS[i + 1] for i in range(6))
    bytes_accessed = (B_pad * _PDIMS[0] * 2          # x tile (bf16)
                      + B_pad * _PDIMS[-1] * 4       # output (f32)
                      + sum(a.size * a.dtype.itemsize for a in flat))

    fn = pl.pallas_call(
        autoencoder_kernel,
        out_shape=jax.ShapeDtypeStruct((B_pad, _PDIMS[-1]), jnp.float32),
        grid_spec=pltpu.PrefetchScalarGridSpec(
            num_scalar_prefetch=0,
            grid=(B_pad // batch_tile,),
            in_specs=in_specs,
            out_specs=out_specs,
        ),
        compiler_params=pltpu.CompilerParams(
            dimension_semantics=("parallel",),
            vmem_limit_bytes=48 * 1024 * 1024,  # well under v7x's 64 MiB/TC
        ),
        cost_estimate=pl.CostEstimate(
            flops=flops, transcendentals=0, bytes_accessed=bytes_accessed),
    )
    out_padded = fn(x_p, *flat)
    return out_padded[:B, :INPUT_DIM]


def init_params(key):
    """Deterministic init mirroring nn.Linear's U(-1/sqrt(fan_in), 1/sqrt(fan_in))."""
    dims = [
        (INPUT_DIM, 300),   # encoder.fc1
        (300, 100),         # encoder.fc2
        (100, LATENT_DIM),  # encoder.fc3
        (LATENT_DIM, 100),  # decoder.fc1
        (100, 300),         # decoder.fc2
        (300, INPUT_DIM),   # decoder.fc3
    ]
    params = []
    for (fan_in, fan_out) in dims:
        key, kw, kb = jax.random.split(key, 3)
        bound = 1.0 / jnp.sqrt(fan_in)
        w = jax.random.uniform(kw, (fan_in, fan_out), jnp.float32, -bound, bound)
        b = jax.random.uniform(kb, (1, fan_out), jnp.float32, -bound, bound)
        params.append((w, b))
    return params


def reference_forward(x, params, *, bf16_operands=False):
    """Pure-JAX reference. bf16_operands=True mimics the kernel's cast pattern."""
    h = x
    for i, (w, b) in enumerate(params):
        if bf16_operands:
            h = jnp.dot(h.astype(jnp.bfloat16), w.astype(jnp.bfloat16),
                        preferred_element_type=jnp.float32) + b
        else:
            h = h @ w + b
        if i not in (2, 5):  # no activation after encoder.fc3 / decoder.fc3
            h = jnp.where(h > 0, h, NEG_SLOPE * h)
    return h


if __name__ == "__main__":
    key = jax.random.PRNGKey(0)
    kp, kx = jax.random.split(key)

    params = init_params(kp)
    B = 8
    x = jax.random.normal(kx, (B, INPUT_DIM), jnp.float32)

    out = autoencoder_forward(x, params)
    out = jax.block_until_ready(out)
    assert out.shape == (B, INPUT_DIM)

    # Tight check against a reference that uses the same bf16-operand /
    # f32-accumulate arithmetic as the kernel.
    ref_bf16 = reference_forward(x, params, bf16_operands=True)
    assert jnp.allclose(out, ref_bf16, atol=2e-3, rtol=2e-3), "mismatch vs bf16 reference"

    # Looser sanity check against the full-f32 PyTorch-equivalent math.
    ref_f32 = reference_forward(x, params, bf16_operands=False)
    assert jnp.allclose(out, ref_f32, atol=5e-2, rtol=5e-2), "mismatch vs f32 reference"

    print("KERNEL_OK")
</pallas_src>

<mosaic_0001>
module attributes {stable_mosaic.version = 11 : i64} {
  func.func @autoencoder_kernel(%arg0: i32, %arg1: memref<256x640xbf16, #tpu.memory_space<vmem>>, %arg2: memref<640x384xbf16, #tpu.memory_space<vmem>>, %arg3: memref<1x384xf32, #tpu.memory_space<vmem>>, %arg4: memref<384x128xbf16, #tpu.memory_space<vmem>>, %arg5: memref<1x128xf32, #tpu.memory_space<vmem>>, %arg6: memref<128x128xbf16, #tpu.memory_space<vmem>>, %arg7: memref<1x128xf32, #tpu.memory_space<vmem>>, %arg8: memref<128x128xbf16, #tpu.memory_space<vmem>>, %arg9: memref<1x128xf32, #tpu.memory_space<vmem>>, %arg10: memref<128x384xbf16, #tpu.memory_space<vmem>>, %arg11: memref<1x384xf32, #tpu.memory_space<vmem>>, %arg12: memref<384x640xbf16, #tpu.memory_space<vmem>>, %arg13: memref<1x640xf32, #tpu.memory_space<vmem>>, %arg14: memref<256x640xf32, #tpu.memory_space<vmem>>) attributes {dimension_semantics = [#tpu.dimension_semantics<parallel>], iteration_bounds = array<i64: 1>, scalar_prefetch = 0 : i64, scratch_operands = 0 : i64, tpu.core_type = #tpu.core_type<tc>, window_params = [{transform_indices = @transform_0, window_bounds = array<i64: 256, 640>}, {pipeline_mode = #tpu.pipeline_mode<synchronous>, transform_indices = @transform_1, window_bounds = array<i64: 640, 384>}, {pipeline_mode = #tpu.pipeline_mode<synchronous>, transform_indices = @transform_2, window_bounds = array<i64: 1, 384>}, {pipeline_mode = #tpu.pipeline_mode<synchronous>, transform_indices = @transform_3, window_bounds = array<i64: 384, 128>}, {pipeline_mode = #tpu.pipeline_mode<synchronous>, transform_indices = @transform_4, window_bounds = array<i64: 1, 128>}, {pipeline_mode = #tpu.pipeline_mode<synchronous>, transform_indices = @transform_5, window_bounds = array<i64: 128, 128>}, {pipeline_mode = #tpu.pipeline_mode<synchronous>, transform_indices = @transform_6, window_bounds = array<i64: 1, 128>}, {pipeline_mode = #tpu.pipeline_mode<synchronous>, transform_indices = @transform_7, window_bounds = array<i64: 128, 128>}, {pipeline_mode = #tpu.pipeline_mode<synchronous>, transform_indices = @transform_8, window_bounds = array<i64: 1, 128>}, {pipeline_mode = #tpu.pipeline_mode<synchronous>, transform_indices = @transform_9, window_bounds = array<i64: 128, 384>}, {pipeline_mode = #tpu.pipeline_mode<synchronous>, transform_indices = @transform_10, window_bounds = array<i64: 1, 384>}, {pipeline_mode = #tpu.pipeline_mode<synchronous>, transform_indices = @transform_11, window_bounds = array<i64: 384, 640>}, {pipeline_mode = #tpu.pipeline_mode<synchronous>, transform_indices = @transform_12, window_bounds = array<i64: 1, 640>}, {transform_indices = @transform_13, window_bounds = array<i64: 256, 640>}]} {
    %c0 = arith.constant 0 : index
    %c0_0 = arith.constant 0 : index
    %0 = vector.load %arg1[%c0, %c0_0] : memref<256x640xbf16, #tpu.memory_space<vmem>>, vector<256x640xbf16>
    %c0_1 = arith.constant 0 : index
    %c0_2 = arith.constant 0 : index
    %1 = vector.load %arg2[%c0_1, %c0_2] : memref<640x384xbf16, #tpu.memory_space<vmem>>, vector<640x384xbf16>
    %cst = arith.constant dense<0.000000e+00> : vector<256x384xf32>
    %2 = tpu.matmul %0, %1, %cst {dimension_numbers = #tpu.dot_dimension_numbers<[1], [0], [0], [1], [0, 0, 1, 1], [], []>} : vector<256x640xbf16>, vector<640x384xbf16>, vector<256x384xf32> -> vector<256x384xf32>
    %c0_3 = arith.constant 0 : index
    %c0_4 = arith.constant 0 : index
    %3 = vector.load %arg3[%c0_3, %c0_4] : memref<1x384xf32, #tpu.memory_space<vmem>>, vector<1x384xf32>
    %4 = vector.broadcast %3 : vector<1x384xf32> to vector<256x384xf32>
    %5 = arith.addf %2, %4 : vector<256x384xf32>
    %cst_5 = arith.constant 0.000000e+00 : f32
    %6 = vector.broadcast %cst_5 : f32 to vector<256x384xf32>
    %7 = arith.cmpf ogt, %5, %6 : vector<256x384xf32>
    %cst_6 = arith.constant 0.00999999977 : f32
    %8 = vector.broadcast %cst_6 : f32 to vector<256x384xf32>
    %9 = arith.mulf %8, %5 : vector<256x384xf32>
    %10 = arith.select %7, %5, %9 : vector<256x384xi1>, vector<256x384xf32>
    %11 = arith.truncf %10 : vector<256x384xf32> to vector<256x384xbf16>
    %c0_7 = arith.constant 0 : index
    %c0_8 = arith.constant 0 : index
    %12 = vector.load %arg4[%c0_7, %c0_8] : memref<384x128xbf16, #tpu.memory_space<vmem>>, vector<384x128xbf16>
    %cst_9 = arith.constant dense<0.000000e+00> : vector<256x128xf32>
    %13 = tpu.matmul %11, %12, %cst_9 {dimension_numbers = #tpu.dot_dimension_numbers<[1], [0], [0], [1], [0, 0, 1, 1], [], []>} : vector<256x384xbf16>, vector<384x128xbf16>, vector<256x128xf32> -> vector<256x128xf32>
    %c0_10 = arith.constant 0 : index
    %c0_11 = arith.constant 0 : index
    %14 = vector.load %arg5[%c0_10, %c0_11] : memref<1x128xf32, #tpu.memory_space<vmem>>, vector<1x128xf32>
    %15 = vector.broadcast %14 : vector<1x128xf32> to vector<256x128xf32>
    %16 = arith.addf %13, %15 : vector<256x128xf32>
    %cst_12 = arith.constant 0.000000e+00 : f32
    %17 = vector.broadcast %cst_12 : f32 to vector<256x128xf32>
    %18 = arith.cmpf ogt, %16, %17 : vector<256x128xf32>
    %cst_13 = arith.constant 0.00999999977 : f32
    %19 = vector.broadcast %cst_13 : f32 to vector<256x128xf32>
    %20 = arith.mulf %19, %16 : vector<256x128xf32>
    %21 = arith.select %18, %16, %20 : vector<256x128xi1>, vector<256x128xf32>
    %22 = arith.truncf %21 : vector<256x128xf32> to vector<256x128xbf16>
    %c0_14 = arith.constant 0 : index
    %c0_15 = arith.constant 0 : index
    %23 = vector.load %arg6[%c0_14, %c0_15] : memref<128x128xbf16, #tpu.memory_space<vmem>>, vector<128x128xbf16>
    %cst_16 = arith.constant dense<0.000000e+00> : vector<256x128xf32>
    %24 = tpu.matmul %22, %23, %cst_16 {dimension_numbers = #tpu.dot_dimension_numbers<[1], [0], [0], [1], [0, 0, 1, 1], [], []>} : vector<256x128xbf16>, vector<128x128xbf16>, vector<256x128xf32> -> vector<256x128xf32>
    %c0_17 = arith.constant 0 : index
    %c0_18 = arith.constant 0 : index
    %25 = vector.load %arg7[%c0_17, %c0_18] : memref<1x128xf32, #tpu.memory_space<vmem>>, vector<1x128xf32>
    %26 = vector.broadcast %25 : vector<1x128xf32> to vector<256x128xf32>
    %27 = arith.addf %24, %26 : vector<256x128xf32>
    %28 = arith.truncf %27 : vector<256x128xf32> to vector<256x128xbf16>
    %c0_19 = arith.constant 0 : index
    %c0_20 = arith.constant 0 : index
    %29 = vector.load %arg8[%c0_19, %c0_20] : memref<128x128xbf16, #tpu.memory_space<vmem>>, vector<128x128xbf16>
    %cst_21 = arith.constant dense<0.000000e+00> : vector<256x128xf32>
    %30 = tpu.matmul %28, %29, %cst_21 {dimension_numbers = #tpu.dot_dimension_numbers<[1], [0], [0], [1], [0, 0, 1, 1], [], []>} : vector<256x128xbf16>, vector<128x128xbf16>, vector<256x128xf32> -> vector<256x128xf32>
    %c0_22 = arith.constant 0 : index
    %c0_23 = arith.constant 0 : index
    %31 = vector.load %arg9[%c0_22, %c0_23] : memref<1x128xf32, #tpu.memory_space<vmem>>, vector<1x128xf32>
    %32 = vector.broadcast %31 : vector<1x128xf32> to vector<256x128xf32>
    %33 = arith.addf %30, %32 : vector<256x128xf32>
    %cst_24 = arith.constant 0.000000e+00 : f32
    %34 = vector.broadcast %cst_24 : f32 to vector<256x128xf32>
    %35 = arith.cmpf ogt, %33, %34 : vector<256x128xf32>
    %cst_25 = arith.constant 0.00999999977 : f32
    %36 = vector.broadcast %cst_25 : f32 to vector<256x128xf32>
    %37 = arith.mulf %36, %33 : vector<256x128xf32>
    %38 = arith.select %35, %33, %37 : vector<256x128xi1>, vector<256x128xf32>
    %39 = arith.truncf %38 : vector<256x128xf32> to vector<256x128xbf16>
    %c0_26 = arith.constant 0 : index
    %c0_27 = arith.constant 0 : index
    %40 = vector.load %arg10[%c0_26, %c0_27] : memref<128x384xbf16, #tpu.memory_space<vmem>>, vector<128x384xbf16>
    %cst_28 = arith.constant dense<0.000000e+00> : vector<256x384xf32>
    %41 = tpu.matmul %39, %40, %cst_28 {dimension_numbers = #tpu.dot_dimension_numbers<[1], [0], [0], [1], [0, 0, 1, 1], [], []>} : vector<256x128xbf16>, vector<128x384xbf16>, vector<256x384xf32> -> vector<256x384xf32>
    %c0_29 = arith.constant 0 : index
    %c0_30 = arith.constant 0 : index
    %42 = vector.load %arg11[%c0_29, %c0_30] : memref<1x384xf32, #tpu.memory_space<vmem>>, vector<1x384xf32>
    %43 = vector.broadcast %42 : vector<1x384xf32> to vector<256x384xf32>
    %44 = arith.addf %41, %43 : vector<256x384xf32>
    %cst_31 = arith.constant 0.000000e+00 : f32
    %45 = vector.broadcast %cst_31 : f32 to vector<256x384xf32>
    %46 = arith.cmpf ogt, %44, %45 : vector<256x384xf32>
    %cst_32 = arith.constant 0.00999999977 : f32
    %47 = vector.broadcast %cst_32 : f32 to vector<256x384xf32>
    %48 = arith.mulf %47, %44 : vector<256x384xf32>
    %49 = arith.select %46, %44, %48 : vector<256x384xi1>, vector<256x384xf32>
    %50 = arith.truncf %49 : vector<256x384xf32> to vector<256x384xbf16>
    %c0_33 = arith.constant 0 : index
    %c0_34 = arith.constant 0 : index
    %51 = vector.load %arg12[%c0_33, %c0_34] : memref<384x640xbf16, #tpu.memory_space<vmem>>, vector<384x640xbf16>
    %cst_35 = arith.constant dense<0.000000e+00> : vector<256x640xf32>
    %52 = tpu.matmul %50, %51, %cst_35 {dimension_numbers = #tpu.dot_dimension_numbers<[1], [0], [0], [1], [0, 0, 1, 1], [], []>} : vector<256x384xbf16>, vector<384x640xbf16>, vector<256x640xf32> -> vector<256x640xf32>
    %c0_36 = arith.constant 0 : index
    %c0_37 = arith.constant 0 : index
    %53 = vector.load %arg13[%c0_36, %c0_37] : memref<1x640xf32, #tpu.memory_space<vmem>>, vector<1x640xf32>
    %54 = vector.broadcast %53 : vector<1x640xf32> to vector<256x640xf32>
    %55 = arith.addf %52, %54 : vector<256x640xf32>
    %c0_38 = arith.constant 0 : index
    %c0_39 = arith.constant 0 : index
    %56 = vector.load %arg14[%c0_38, %c0_39] : memref<256x640xf32, #tpu.memory_space<vmem>>, vector<256x640xf32>
    tpu.vector_store %arg14[%c0_38, %c0_39], %55 {strides = array<i32>} : memref<256x640xf32, #tpu.memory_space<vmem>>, vector<256x640xf32>,
    return
  }
  func.func @transform_0(%arg0: i32) -> (i32, i32) {
    %c0_i32 = arith.constant 0 : i32
    %c0_i32_0 = arith.constant 0 : i32
    return %arg0, %c0_i32 : i32, i32
  }
  func.func @transform_1(%arg0: i32) -> (i32, i32) {
    %c0_i32 = arith.constant 0 : i32
    %c0_i32_0 = arith.constant 0 : i32
    %c0_i32_1 = arith.constant 0 : i32
    return %c0_i32, %c0_i32_0 : i32, i32
  }
  func.func @transform_2(%arg0: i32) -> (i32, i32) {
    %c0_i32 = arith.constant 0 : i32
    %c0_i32_0 = arith.constant 0 : i32
    %c0_i32_1 = arith.constant 0 : i32
    return %c0_i32, %c0_i32_0 : i32, i32
  }
  func.func @transform_3(%arg0: i32) -> (i32, i32) {
    %c0_i32 = arith.constant 0 : i32
    %c0_i32_0 = arith.constant 0 : i32
    %c0_i32_1 = arith.constant 0 : i32
    return %c0_i32, %c0_i32_0 : i32, i32
  }
  func.func @transform_4(%arg0: i32) -> (i32, i32) {
    %c0_i32 = arith.constant 0 : i32
    %c0_i32_0 = arith.constant 0 : i32
    %c0_i32_1 = arith.constant 0 : i32
    return %c0_i32, %c0_i32_0 : i32, i32
  }
  func.func @transform_5(%arg0: i32) -> (i32, i32) {
    %c0_i32 = arith.constant 0 : i32
    %c0_i32_0 = arith.constant 0 : i32
    %c0_i32_1 = arith.constant 0 : i32
    return %c0_i32, %c0_i32_0 : i32, i32
  }
  func.func @transform_6(%arg0: i32) -> (i32, i32) {
    %c0_i32 = arith.constant 0 : i32
    %c0_i32_0 = arith.constant 0 : i32
    %c0_i32_1 = arith.constant 0 : i32
    return %c0_i32, %c0_i32_0 : i32, i32
  }
  func.func @transform_7(%arg0: i32) -> (i32, i32) {
    %c0_i32 = arith.constant 0 : i32
    %c0_i32_0 = arith.constant 0 : i32
    %c0_i32_1 = arith.constant 0 : i32
    return %c0_i32, %c0_i32_0 : i32, i32
  }
  func.func @transform_8(%arg0: i32) -> (i32, i32) {
    %c0_i32 = arith.constant 0 : i32
    %c0_i32_0 = arith.constant 0 : i32
    %c0_i32_1 = arith.constant 0 : i32
    return %c0_i32, %c0_i32_0 : i32, i32
  }
  func.func @transform_9(%arg0: i32) -> (i32, i32) {
    %c0_i32 = arith.constant 0 : i32
    %c0_i32_0 = arith.constant 0 : i32
    %c0_i32_1 = arith.constant 0 : i32
    return %c0_i32, %c0_i32_0 : i32, i32
  }
  func.func @transform_10(%arg0: i32) -> (i32, i32) {
    %c0_i32 = arith.constant 0 : i32
    %c0_i32_0 = arith.constant 0 : i32
    %c0_i32_1 = arith.constant 0 : i32
    return %c0_i32, %c0_i32_0 : i32, i32
  }
  func.func @transform_11(%arg0: i32) -> (i32, i32) {
    %c0_i32 = arith.constant 0 : i32
    %c0_i32_0 = arith.constant 0 : i32
    %c0_i32_1 = arith.constant 0 : i32
    return %c0_i32, %c0_i32_0 : i32, i32
  }
  func.func @transform_12(%arg0: i32) -> (i32, i32) {
    %c0_i32 = arith.constant 0 : i32
    %c0_i32_0 = arith.constant 0 : i32
    %c0_i32_1 = arith.constant 0 : i32
    return %c0_i32, %c0_i32_0 : i32, i32
  }
  func.func @transform_13(%arg0: i32) -> (i32, i32) {
    %c0_i32 = arith.constant 0 : i32
    %c0_i32_0 = arith.constant 0 : i32
    return %arg0, %c0_i32 : i32, i32
  }
}

</mosaic_0001>

<llo_original>
// kernel: tpu_custom_call.1
$region0: #{tpu_custom_call.1}
  #allocation0 [shape = 'u32[]', space=smem, size = 0x4, offset = 0x4, fixed_abs, tag = 'smem constant byte address 0x4 - core index']
  #allocation1 [shape = 'u32[144,128]{1,0:T(1,128)}', space=vmem, size = 0x12000, scoped, tag = 'internal scratch']
  %s0 = inlined_call_operand.hbm [shape: bf16[256,640], index: 0, kind: input, shape index: {}]
  %s1 = inlined_call_operand.hbm [shape: bf16[640,384], index: 1, kind: input, shape index: {}]
  %s2 = inlined_call_operand.vmem [shape: f32[1,384], index: 2, kind: input, shape index: {}]
  %s3 = inlined_call_operand.hbm [shape: bf16[384,128], index: 3, kind: input, shape index: {}]
  %s4 = inlined_call_operand.vmem [shape: f32[1,128], index: 4, kind: input, shape index: {}]
  %s5 = inlined_call_operand.hbm [shape: bf16[128,128], index: 5, kind: input, shape index: {}]
  %s6 = inlined_call_operand.hbm [shape: f32[1,128], index: 6, kind: input, shape index: {}]
  %s7 = inlined_call_operand.hbm [shape: bf16[128,128], index: 7, kind: input, shape index: {}]
  %s8 = inlined_call_operand.vmem [shape: f32[1,128], index: 8, kind: input, shape index: {}]
  %s9 = inlined_call_operand.hbm [shape: bf16[128,384], index: 9, kind: input, shape index: {}]
  %s10 = inlined_call_operand.vmem [shape: f32[1,384], index: 10, kind: input, shape index: {}]
  %s11 = inlined_call_operand.hbm [shape: bf16[384,640], index: 11, kind: input, shape index: {}]
  %s12 = inlined_call_operand.vmem [shape: f32[1,640], index: 12, kind: input, shape index: {}]
  %s13 = inlined_call_operand.hbm [shape: f32[256,640], index: 13, kind: output, shape index: {}]
  %s14 = sld [smem:[#allocation0]]
  $region94: #{tpu_custom_call.1} parent=0
    _
  %s16 = ssub.s32 1, %s14
  %s17 = scalar_select 0, %s16, %s14
  $region1: #{tpu_custom_call.1} parent=0
    #allocation2 [shape = 'u8[327680]{0}', space=vmem, size = 0x50000, scoped, tag = 'input window, operand 0, single buffered']
    #allocation3 [shape = 's32[1]{0}', space=sflag, size = 0x4, scoped, tag = 'scoped memory for tpu_custom_call.1']
    #allocation4 [shape = 's32[1]{0}', space=sflag, size = 0x4, scoped, tag = 'scoped memory for tpu_custom_call.1']
    #allocation5 [shape = 'u8[491520]{0}', space=vmem, size = 0x78000, scoped, tag = 'input window, operand 1, single buffered']
    #allocation6 [shape = 's32[1]{0}', space=sflag, size = 0x4, scoped, tag = 'scoped memory for tpu_custom_call.1']
    #allocation7 [shape = 'u8[98304]{0}', space=vmem, size = 0x18000, scoped, tag = 'input window, operand 3, single buffered']
    #allocation8 [shape = 'u8[32768]{0}', space=vmem, size = 0x8000, scoped, tag = 'input window, operand 5, single buffered']
    #allocation9 [shape = 's32[1]{0}', space=sflag, size = 0x4, scoped, tag = 'scoped memory for tpu_custom_call.1']
    #allocation10 [shape = 'u8[512]{0}', space=vmem, size = 0x400, scoped, tag = 'input window, operand 6, single buffered']
    #allocation11 [shape = 'u8[32768]{0}', space=vmem, size = 0x8000, scoped, tag = 'input window, operand 7, single buffered']
    #allocation12 [shape = 's32[1]{0}', space=sflag, size = 0x4, scoped, tag = 'scoped memory for tpu_custom_call.1']
    #allocation13 [shape = 'u8[98304]{0}', space=vmem, size = 0x18000, scoped, tag = 'input window, operand 9, single buffered']
    #allocation14 [shape = 'u8[491520]{0}', space=vmem, size = 0x78000, scoped, tag = 'input window, operand 11, single buffered']
    #allocation15 [shape = 's32[1]{0}', space=sflag, size = 0x4, scoped, tag = 'scoped memory for tpu_custom_call.1']
    #allocation16 [shape = 'u8[655360]{0}', space=vmem, size = 0xa0000, scoped, tag = 'output window, operand 0, single buffered']
    %18 = vsyncpa [#allocation3], 0
    %19 = vsyncpa [#allocation6], 0
    %20 = vsyncpa [#allocation9], 0
    %21 = vsyncpa [#allocation12], 0
    %22 = vsyncpa [#allocation15], 0
    %23 = vsyncpa [#allocation4], 0
    // Predicated region
    $region2: #{tpu_custom_call.1} parent=1 // pred_check
      _
    $region3: #{tpu_custom_call.1} parent=1 // pred_check_branch
      %25 = sbr.rel (0) target = $region5
    $region4: #{tpu_custom_call.1} parent=1 // pred_region
      %s27 = ssub.s32 10240, 10240
      %28 = vsyncadd [#allocation3], %s27
      %s29 = sshll.u32 [#allocation2], 4
      %s30 = int_to_ptr.vmem [resolvable:$true] %s29
      %35 = dma.hbm_to_vmem [thread:$0]  %s0, 10240, %s30, [#allocation3], 320, 320, 20
    $region5: #{tpu_custom_call.1} parent=1 // pred_fallthru
      _
    // Predicated region
    $region6: #{tpu_custom_call.1} parent=1 // pred_check
      _
    $region7: #{tpu_custom_call.1} parent=1 // pred_check_branch
      %37 = sbr.rel (0) target = $region9
    $region8: #{tpu_custom_call.1} parent=1 // pred_region
      %s39 = ssub.s32 15360, 15360
      %40 = vsyncadd [#allocation6], %s39
      %s41 = sshll.u32 [#allocation5], 4
      %s42 = int_to_ptr.vmem [resolvable:$true] %s41
      %47 = dma.hbm_to_vmem [thread:$0]  %s1, 15360, %s42, [#allocation6], 192, 192, 12
    $region9: #{tpu_custom_call.1} parent=1 // pred_fallthru
      _
    // Predicated region
    $region10: #{tpu_custom_call.1} parent=1 // pred_check
      _
    $region11: #{tpu_custom_call.1} parent=1 // pred_check_branch
      %49 = sbr.rel (0) target = $region13
    $region12: #{tpu_custom_call.1} parent=1 // pred_region
      _
    $region13: #{tpu_custom_call.1} parent=1 // pred_fallthru
      _
    // Predicated region
    $region14: #{tpu_custom_call.1} parent=1 // pred_check
      _
    $region15: #{tpu_custom_call.1} parent=1 // pred_check_branch
      %51 = sbr.rel (0) target = $region17
    $region16: #{tpu_custom_call.1} parent=1 // pred_region
      %s53 = ssub.s32 3072, 3072
      %54 = vsyncadd [#allocation6], %s53
      %s55 = sshll.u32 [#allocation7], 4
      %s56 = int_to_ptr.vmem [resolvable:$true] %s55
      %61 = dma.hbm_to_vmem [thread:$0]  %s3, 3072, %s56, [#allocation6], 64, 64, 4
    $region17: #{tpu_custom_call.1} parent=1 // pred_fallthru
      _
    // Predicated region
    $region18: #{tpu_custom_call.1} parent=1 // pred_check
      _
    $region19: #{tpu_custom_call.1} parent=1 // pred_check_branch
      %63 = sbr.rel (0) target = $region21
    $region20: #{tpu_custom_call.1} parent=1 // pred_region
      _
    $region21: #{tpu_custom_call.1} parent=1 // pred_fallthru
      _
    // Predicated region
    $region22: #{tpu_custom_call.1} parent=1 // pred_check
      _
    $region23: #{tpu_custom_call.1} parent=1 // pred_check_branch
      %65 = sbr.rel (0) target = $region25
    $region24: #{tpu_custom_call.1} parent=1 // pred_region
      %s67 = ssub.s32 1024, 1024
      %68 = vsyncadd [#allocation9], %s67
      %s69 = sshll.u32 [#allocation8], 4
      %s70 = int_to_ptr.vmem [resolvable:$true] %s69
      %75 = dma.hbm_to_vmem [thread:$0]  %s5, 1024, %s70, [#allocation9], 64, 64, 4
    $region25: #{tpu_custom_call.1} parent=1 // pred_fallthru
      _
    // Predicated region
    $region26: #{tpu_custom_call.1} parent=1 // pred_check
      _
    $region27: #{tpu_custom_call.1} parent=1 // pred_check_branch
      %77 = sbr.rel (0) target = $region29
    $region28: #{tpu_custom_call.1} parent=1 // pred_region
      %s79 = ssub.s32 16, 16
      %80 = vsyncadd [#allocation9], %s79
      %s82 = sshll.u32 [#allocation10], 4
      %s83 = int_to_ptr.vmem [resolvable:$true] %s82
      %85 = dma.hbm_to_vmem [thread:$0]  %s6, 16, %s83, [#allocation9]
    $region29: #{tpu_custom_call.1} parent=1 // pred_fallthru
      _
    // Predicated region
    $region30: #{tpu_custom_call.1} parent=1 // pred_check
      _
    $region31: #{tpu_custom_call.1} parent=1 // pred_check_branch
      %87 = sbr.rel (0) target = $region33
    $region32: #{tpu_custom_call.1} parent=1 // pred_region
      %s89 = ssub.s32 1024, 1024
      %90 = vsyncadd [#allocation12], %s89
      %s91 = sshll.u32 [#allocation11], 4
      %s92 = int_to_ptr.vmem [resolvable:$true] %s91
      %97 = dma.hbm_to_vmem [thread:$0]  %s7, 1024, %s92, [#allocation12], 64, 64, 4
    $region33: #{tpu_custom_call.1} parent=1 // pred_fallthru
      _
    // Predicated region
    $region34: #{tpu_custom_call.1} parent=1 // pred_check
      _
    $region35: #{tpu_custom_call.1} parent=1 // pred_check_branch
      %99 = sbr.rel (0) target = $region37
    $region36: #{tpu_custom_call.1} parent=1 // pred_region
      _
    $region37: #{tpu_custom_call.1} parent=1 // pred_fallthru
      _
    // Predicated region
    $region38: #{tpu_custom_call.1} parent=1 // pred_check
      _
    $region39: #{tpu_custom_call.1} parent=1 // pred_check_branch
      %101 = sbr.rel (0) target = $region41
    $region40: #{tpu_custom_call.1} parent=1 // pred_region
      %s103 = ssub.s32 3072, 3072
      %104 = vsyncadd [#allocation12], %s103
      %s105 = sshll.u32 [#allocation13], 4
      %s106 = int_to_ptr.vmem [resolvable:$true] %s105
      %111 = dma.hbm_to_vmem [thread:$0]  %s9, 3072, %s106, [#allocation12], 192, 192, 12
    $region41: #{tpu_custom_call.1} parent=1 // pred_fallthru
      _
    // Predicated region
    $region42: #{tpu_custom_call.1} parent=1 // pred_check
      _
    $region43: #{tpu_custom_call.1} parent=1 // pred_check_branch
      %113 = sbr.rel (0) target = $region45
    $region44: #{tpu_custom_call.1} parent=1 // pred_region
      _
    $region45: #{tpu_custom_call.1} parent=1 // pred_fallthru
      _
    // Predicated region
    $region46: #{tpu_custom_call.1} parent=1 // pred_check
      _
    $region47: #{tpu_custom_call.1} parent=1 // pred_check_branch
      %115 = sbr.rel (0) target = $region49
    $region48: #{tpu_custom_call.1} parent=1 // pred_region
      %s117 = ssub.s32 15360, 15360
      %118 = vsyncadd [#allocation15], %s117
      %s119 = sshll.u32 [#allocation14], 4
      %s120 = int_to_ptr.vmem [resolvable:$true] %s119
      %125 = dma.hbm_to_vmem [thread:$0]  %s11, 15360, %s120, [#allocation15], 320, 320, 20
    $region49: #{tpu_custom_call.1} parent=1 // pred_fallthru
      _
    // Predicated region
    $region50: #{tpu_custom_call.1} parent=1 // pred_check
      _
    $region51: #{tpu_custom_call.1} parent=1 // pred_check_branch
      %127 = sbr.rel (0) target = $region53
    $region52: #{tpu_custom_call.1} parent=1 // pred_region
      _
    $region53: #{tpu_custom_call.1} parent=1 // pred_fallthru
      _
    // Predicated region
    $region54: #{tpu_custom_call.1} parent=1 // pred_check
      _
    $region55: #{tpu_custom_call.1} parent=1 // pred_check_branch
      %129 = sbr.rel (0) target = $region57
    $region56: #{tpu_custom_call.1} parent=1 // pred_region
      %130 = dma.done [#allocation3], 10240
    $region57: #{tpu_custom_call.1} parent=1 // pred_fallthru
      _
    // Predicated region
    $region58: #{tpu_custom_call.1} parent=1 // pred_check
      _
    $region59: #{tpu_custom_call.1} parent=1 // pred_check_branch
      %132 = sbr.rel (0) target = $region61
    $region60: #{tpu_custom_call.1} parent=1 // pred_region
      %133 = dma.done [#allocation6], 15360
    $region61: #{tpu_custom_call.1} parent=1 // pred_fallthru
      _
    // Predicated region
    $region62: #{tpu_custom_call.1} parent=1 // pred_check
      _
    $region63: #{tpu_custom_call.1} parent=1 // pred_check_branch
      %135 = sbr.rel (0) target = $region65
    $region64: #{tpu_custom_call.1} parent=1 // pred_region
      %136 = dma.done [#allocation6], 3072
    $region65: #{tpu_custom_call.1} parent=1 // pred_fallthru
      _
    // Predicated region
    $region66: #{tpu_custom_call.1} parent=1 // pred_check
      _
    $region67: #{tpu_custom_call.1} parent=1 // pred_check_branch
      %138 = sbr.rel (0) target = $region69
    $region68: #{tpu_custom_call.1} parent=1 // pred_region
      %139 = dma.done [#allocation9], 1024
    $region69: #{tpu_custom_call.1} parent=1 // pred_fallthru
      _
    // Predicated region
    $region70: #{tpu_custom_call.1} parent=1 // pred_check
      _
    $region71: #{tpu_custom_call.1} parent=1 // pred_check_branch
      %141 = sbr.rel (0) target = $region73
    $region72: #{tpu_custom_call.1} parent=1 // pred_region
      %142 = dma.done [#allocation9], 16
    $region73: #{tpu_custom_call.1} parent=1 // pred_fallthru
      _
    // Predicated region
    $region74: #{tpu_custom_call.1} parent=1 // pred_check
      _
    $region75: #{tpu_custom_call.1} parent=1 // pred_check_branch
      %144 = sbr.rel (0) target = $region77
    $region76: #{tpu_custom_call.1} parent=1 // pred_region
      %145 = dma.done [#allocation12], 1024
    $region77: #{tpu_custom_call.1} parent=1 // pred_fallthru
      _
    // Predicated region
    $region78: #{tpu_custom_call.1} parent=1 // pred_check
      _
    $region79: #{tpu_custom_call.1} parent=1 // pred_check_branch
      %147 = sbr.rel (0) target = $region81
    $region80: #{tpu_custom_call.1} parent=1 // pred_region
      %148 = dma.done [#allocation12], 3072
    $region81: #{tpu_custom_call.1} parent=1 // pred_fallthru
      _
    // Predicated region
    $region82: #{tpu_custom_call.1} parent=1 // pred_check
      _
    $region83: #{tpu_custom_call.1} parent=1 // pred_check_branch
      %150 = sbr.rel (0) target = $region85
    $region84: #{tpu_custom_call.1} parent=1 // pred_region
      %151 = dma.done [#allocation15], 15360
    $region85: #{tpu_custom_call.1} parent=1 // pred_fallthru
      _
    %v153 = vld [vmem:[#allocation2] sm:$0xff]
    %v154 = vld [vmem:[#allocation2 + $0x8] sm:$0xff]
    %v155 = vld [vmem:[#allocation2 + $0x10] sm:$0xf]
    %v156 = vld [vmem:[#allocation2 + $0x14] sm:$0xff]
    %v157 = vld [vmem:[#allocation2 + $0x1c] sm:$0xff]
    %v158 = vld [vmem:[#allocation2 + $0x24] sm:$0xf]
    %v159 = vld [vmem:[#allocation2 + $0x28] sm:$0xff]
    %v160 = vld [vmem:[#allocation2 + $0x30] sm:$0xff]
    %v161 = vld [vmem:[#allocation2 + $0x38] sm:$0xf]
    %v162 = vld [vmem:[#allocation2 + $0x3c] sm:$0xff]
    %v163 = vld [vmem:[#allocation2 + $0x44] sm:$0xff]
    %v164 = vld [vmem:[#allocation2 + $0x4c] sm:$0xf]
    %v165 = vld [vmem:[#allocation2 + $0x50] sm:$0xff]
    %v166 = vld [vmem:[#allocation2 + $0x58] sm:$0xff]
    %v167 = vld [vmem:[#allocation2 + $0x60] sm:$0xf]
    %v168 = vld [vmem:[#allocation2 + $0x64] sm:$0xff]
    %v169 = vld [vmem:[#allocation2 + $0x6c] sm:$0xff]
    %v170 = vld [vmem:[#allocation2 + $0x74] sm:$0xf]
    %v171 = vld [vmem:[#allocation2 + $0x78] sm:$0xff]
    %v172 = vld [vmem:[#allocation2 + $0x80] sm:$0xff]
    %v173 = vld [vmem:[#allocation2 + $0x88] sm:$0xf]
    %v174 = vld [vmem:[#allocation2 + $0x8c] sm:$0xff]
    %v175 = vld [vmem:[#allocation2 + $0x94] sm:$0xff]
    %v176 = vld [vmem:[#allocation2 + $0x9c] sm:$0xf]
    %v177 = vld [vmem:[#allocation2 + $0xa0] sm:$0xff]
    %v178 = vld [vmem:[#allocation2 + $0xa8] sm:$0xff]
    %v179 = vld [vmem:[#allocation2 + $0xb0] sm:$0xf]
    %v180 = vld [vmem:[#allocation2 + $0xb4] sm:$0xff]
    %v181 = vld [vmem:[#allocation2 + $0xbc] sm:$0xff]
    %v182 = vld [vmem:[#allocation2 + $0xc4] sm:$0xf]
    %v183 = vld [vmem:[#allocation2 + $0xc8] sm:$0xff]
    %v184 = vld [vmem:[#allocation2 + $0xd0] sm:$0xff]
    %v185 = vld [vmem:[#allocation2 + $0xd8] sm:$0xf]
    %v186 = vld [vmem:[#allocation2 + $0xdc] sm:$0xff]
    %v187 = vld [vmem:[#allocation2 + $0xe4] sm:$0xff]
    %v188 = vld [vmem:[#allocation2 + $0xec] sm:$0xf]
    %v189 = vld [vmem:[#allocation2 + $0xf0] sm:$0xff]
    %v190 = vld [vmem:[#allocation2 + $0xf8] sm:$0xff]
    %v191 = vld [vmem:[#allocation2 + $0x100] sm:$0xf]
    %v192 = vld [vmem:[#allocation2 + $0x104] sm:$0xff]
    %v193 = vld [vmem:[#allocation2 + $0x10c] sm:$0xff]
    %v194 = vld [vmem:[#allocation2 + $0x114] sm:$0xf]
    %v195 = vld [vmem:[#allocation2 + $0x118] sm:$0xff]
    %v196 = vld [vmem:[#allocation2 + $0x120] sm:$0xff]
    %v197 = vld [vmem:[#allocation2 + $0x128] sm:$0xf]
    %v198 = vld [vmem:[#allocation2 + $0x12c] sm:$0xff]
    %v199 = vld [vmem:[#allocation2 + $0x134] sm:$0xff]
    %v200 = vld [vmem:[#allocation2 + $0x13c] sm:$0xf]
    %v201 = vld [vmem:[#allocation2 + $0x140] sm:$0xff]
    %v202 = vld [vmem:[#allocation2 + $0x148] sm:$0xff]
    %v203 = vld [vmem:[#allocation2 + $0x150] sm:$0xf]
    %v204 = vld [vmem:[#allocation2 + $0x154] sm:$0xff]
    %v205 = vld [vmem:[#allocation2 + $0x15c] sm:$0xff]
    %v206 = vld [vmem:[#allocation2 + $0x164] sm:$0xf]
    %v207 = vld [vmem:[#allocation2 + $0x168] sm:$0xff]
    %v208 = vld [vmem:[#allocation2 + $0x170] sm:$0xff]
    %v209 = vld [vmem:[#allocation2 + $0x178] sm:$0xf]
    %v210 = vld [vmem:[#allocation2 + $0x17c] sm:$0xff]
    %v211 = vld [vmem:[#allocation2 + $0x184] sm:$0xff]
    %v212 = vld [vmem:[#allocation2 + $0x18c] sm:$0xf]
    %v213 = vld [vmem:[#allocation2 + $0x190] sm:$0xff]
    %v214 = vld [vmem:[#allocation2 + $0x198] sm:$0xff]
    %v215 = vld [vmem:[#allocation2 + $0x1a0] sm:$0xf]
    %v216 = vld [vmem:[#allocation2 + $0x1a4] sm:$0xff]
    %v217 = vld [vmem:[#allocation2 + $0x1ac] sm:$0xff]
    %v218 = vld [vmem:[#allocation2 + $0x1b4] sm:$0xf]
    %v219 = vld [vmem:[#allocation2 + $0x1b8] sm:$0xff]
    %v220 = vld [vmem:[#allocation2 + $0x1c0] sm:$0xff]
    %v221 = vld [vmem:[#allocation2 + $0x1c8] sm:$0xf]
    %v222 = vld [vmem:[#allocation2 + $0x1cc] sm:$0xff]
    %v223 = vld [vmem:[#allocation2 + $0x1d4] sm:$0xff]
    %v224 = vld [vmem:[#allocation2 + $0x1dc] sm:$0xf]
    %v225 = vld [vmem:[#allocation2 + $0x1e0] sm:$0xff]
    %v226 = vld [vmem:[#allocation2 + $0x1e8] sm:$0xff]
    %v227 = vld [vmem:[#allocation2 + $0x1f0] sm:$0xf]
    %v228 = vld [vmem:[#allocation2 + $0x1f4] sm:$0xff]
    %v229 = vld [vmem:[#allocation2 + $0x1fc] sm:$0xff]
    %v230 = vld [vmem:[#allocation2 + $0x204] sm:$0xf]
    %v231 = vld [vmem:[#allocation2 + $0x208] sm:$0xff]
    %v232 = vld [vmem:[#allocation2 + $0x210] sm:$0xff]
    %v233 = vld [vmem:[#allocation2 + $0x218] sm:$0xf]
    %v234 = vld [vmem:[#allocation2 + $0x21c] sm:$0xff]
    %v235 = vld [vmem:[#allocation2 + $0x224] sm:$0xff]
    %v236 = vld [vmem:[#allocation2 + $0x22c] sm:$0xf]
    %v237 = vld [vmem:[#allocation2 + $0x230] sm:$0xff]
    %v238 = vld [vmem:[#allocation2 + $0x238] sm:$0xff]
    %v239 = vld [vmem:[#allocation2 + $0x240] sm:$0xf]
    %v240 = vld [vmem:[#allocation2 + $0x244] sm:$0xff]
    %v241 = vld [vmem:[#allocation2 + $0x24c] sm:$0xff]
    %v242 = vld [vmem:[#allocation2 + $0x254] sm:$0xf]
    %v243 = vld [vmem:[#allocation2 + $0x258] sm:$0xff]
    %v244 = vld [vmem:[#allocation2 + $0x260] sm:$0xff]
    %v245 = vld [vmem:[#allocation2 + $0x268] sm:$0xf]
    %v246 = vld [vmem:[#allocation2 + $0x26c] sm:$0xff]
    %v247 = vld [vmem:[#allocation2 + $0x274] sm:$0xff]
    %v248 = vld [vmem:[#allocation2 + $0x27c] sm:$0xf]
    %v249 = vld [vmem:[#allocation5] sm:$0xff]
    %v250 = vld [vmem:[#allocation5 + $0x8] sm:$0xf]
    %v251 = vld [vmem:[#allocation5 + $0xc] sm:$0xff]
    %v252 = vld [vmem:[#allocation5 + $0x14] sm:$0xf]
    %v253 = vld [vmem:[#allocation5 + $0x18] sm:$0xff]
    %v254 = vld [vmem:[#allocation5 + $0x20] sm:$0xf]
    %v255 = vld [vmem:[#allocation5 + $0x24] sm:$0xff]
    %v256 = vld [vmem:[#allocation5 + $0x2c] sm:$0xf]
    %v257 = vld [vmem:[#allocation5 + $0x30] sm:$0xff]
    %v258 = vld [vmem:[#allocation5 + $0x38] sm:$0xf]
    %v259 = vld [vmem:[#allocation5 + $0x3c] sm:$0xff]
    %v260 = vld [vmem:[#allocation5 + $0x44] sm:$0xf]
    %v261 = vld [vmem:[#allocation5 + $0x48] sm:$0xff]
    %v262 = vld [vmem:[#allocation5 + $0x50] sm:$0xf]
    %v263 = vld [vmem:[#allocation5 + $0x54] sm:$0xff]
    %v264 = vld [vmem:[#allocation5 + $0x5c] sm:$0xf]
    %v265 = vld [vmem:[#allocation5 + $0x60] sm:$0xff]
    %v266 = vld [vmem:[#allocation5 + $0x68] sm:$0xf]
    %v267 = vld [vmem:[#allocation5 + $0x6c] sm:$0xff]
    %v268 = vld [vmem:[#allocation5 + $0x74] sm:$0xf]
    %v269 = vld [vmem:[#allocation5 + $0x78] sm:$0xff]
    %v270 = vld [vmem:[#allocation5 + $0x80] sm:$0xf]
    %v271 = vld [vmem:[#allocation5 + $0x84] sm:$0xff]
    %v272 = vld [vmem:[#allocation5 + $0x8c] sm:$0xf]
    %v273 = vld [vmem:[#allocation5 + $0x90] sm:$0xff]
    %v274 = vld [vmem:[#allocation5 + $0x98] sm:$0xf]
    %v275 = vld [vmem:[#allocation5 + $0x9c] sm:$0xff]
    %v276 = vld [vmem:[#allocation5 + $0xa4] sm:$0xf]
    %v277 = vld [vmem:[#allocation5 + $0xa8] sm:$0xff]
    %v278 = vld [vmem:[#allocation5 + $0xb0] sm:$0xf]
    %v279 = vld [vmem:[#allocation5 + $0xb4] sm:$0xff]
    %v280 = vld [vmem:[#allocation5 + $0xbc] sm:$0xf]
    %v281 = vld [vmem:[#allocation5 + $0xc0] sm:$0xff]
    %v282 = vld [vmem:[#allocation5 + $0xc8] sm:$0xf]
    %v283 = vld [vmem:[#allocation5 + $0xcc] sm:$0xff]
    %v284 = vld [vmem:[#allocation5 + $0xd4] sm:$0xf]
    %v285 = vld [vmem:[#allocation5 + $0xd8] sm:$0xff]
    %v286 = vld [vmem:[#allocation5 + $0xe0] sm:$0xf]
    %v287 = vld [vmem:[#allocation5 + $0xe4] sm:$0xff]
    %v288 = vld [vmem:[#allocation5 + $0xec] sm:$0xf]
    %v289 = vld [vmem:[#allocation5 + $0xf0] sm:$0xff]
    %v290 = vld [vmem:[#allocation5 + $0xf8] sm:$0xf]
    %v291 = vld [vmem:[#allocation5 + $0xfc] sm:$0xff]
    %v292 = vld [vmem:[#allocation5 + $0x104] sm:$0xf]
    %v293 = vld [vmem:[#allocation5 + $0x108] sm:$0xff]
    %v294 = vld [vmem:[#allocation5 + $0x110] sm:$0xf]
    %v295 = vld [vmem:[#allocation5 + $0x114] sm:$0xff]
    %v296 = vld [vmem:[#allocation5 + $0x11c] sm:$0xf]
    %v297 = vld [vmem:[#allocation5 + $0x120] sm:$0xff]
    %v298 = vld [vmem:[#allocation5 + $0x128] sm:$0xf]
    %v299 = vld [vmem:[#allocation5 + $0x12c] sm:$0xff]
    %v300 = vld [vmem:[#allocation5 + $0x134] sm:$0xf]
    %v301 = vld [vmem:[#allocation5 + $0x138] sm:$0xff]
    %v302 = vld [vmem:[#allocation5 + $0x140] sm:$0xf]
    %v303 = vld [vmem:[#allocation5 + $0x144] sm:$0xff]
    %v304 = vld [vmem:[#allocation5 + $0x14c] sm:$0xf]
    %v305 = vld [vmem:[#allocation5 + $0x150] sm:$0xff]
    %v306 = vld [vmem:[#allocation5 + $0x158] sm:$0xf]
    %v307 = vld [vmem:[#allocation5 + $0x15c] sm:$0xff]
    %v308 = vld [vmem:[#allocation5 + $0x164] sm:$0xf]
    %v309 = vld [vmem:[#allocation5 + $0x168] sm:$0xff]
    %v310 = vld [vmem:[#allocation5 + $0x170] sm:$0xf]
    %v311 = vld [vmem:[#allocation5 + $0x174] sm:$0xff]
    %v312 = vld [vmem:[#allocation5 + $0x17c] sm:$0xf]
    %v313 = vld [vmem:[#allocation5 + $0x180] sm:$0xff]
    %v314 = vld [vmem:[#allocation5 + $0x188] sm:$0xf]
    %v315 = vld [vmem:[#allocation5 + $0x18c] sm:$0xff]
    %v316 = vld [vmem:[#allocation5 + $0x194] sm:$0xf]
    %v317 = vld [vmem:[#allocation5 + $0x198] sm:$0xff]
    %v318 = vld [vmem:[#allocation5 + $0x1a0] sm:$0xf]
    %v319 = vld [vmem:[#allocation5 + $0x1a4] sm:$0xff]
    %v320 = vld [vmem:[#allocation5 + $0x1ac] sm:$0xf]
    %v321 = vld [vmem:[#allocation5 + $0x1b0] sm:$0xff]
    %v322 = vld [vmem:[#allocation5 + $0x1b8] sm:$0xf]
    %v323 = vld [vmem:[#allocation5 + $0x1bc] sm:$0xff]
    %v324 = vld [vmem:[#allocation5 + $0x1c4] sm:$0xf]
    %v325 = vld [vmem:[#allocation5 + $0x1c8] sm:$0xff]
    %v326 = vld [vmem:[#allocation5 + $0x1d0] sm:$0xf]
    %v327 = vld [vmem:[#allocation5 + $0x1d4] sm:$0xff]
    %v328 = vld [vmem:[#allocation5 + $0x1dc] sm:$0xf]
    %v329 = vld [vmem:[#allocation5 + $0x1e0] sm:$0xff]
    %v330 = vld [vmem:[#allocation5 + $0x1e8] sm:$0xf]
    %v331 = vld [vmem:[#allocation5 + $0x1ec] sm:$0xff]
    %v332 = vld [vmem:[#allocation5 + $0x1f4] sm:$0xf]
    %v333 = vld [vmem:[#allocation5 + $0x1f8] sm:$0xff]
    %v334 = vld [vmem:[#allocation5 + $0x200] sm:$0xf]
    %v335 = vld [vmem:[#allocation5 + $0x204] sm:$0xff]
    %v336 = vld [vmem:[#allocation5 + $0x20c] sm:$0xf]
    %v337 = vld [vmem:[#allocation5 + $0x210] sm:$0xff]
    %v338 = vld [vmem:[#allocation5 + $0x218] sm:$0xf]
    %v339 = vld [vmem:[#allocation5 + $0x21c] sm:$0xff]
    %v340 = vld [vmem:[#allocation5 + $0x224] sm:$0xf]
    %v341 = vld [vmem:[#allocation5 + $0x228] sm:$0xff]
    %v342 = vld [vmem:[#allocation5 + $0x230] sm:$0xf]
    %v343 = vld [vmem:[#allocation5 + $0x234] sm:$0xff]
    %v344 = vld [vmem:[#allocation5 + $0x23c] sm:$0xf]
    %v345 = vld [vmem:[#allocation5 + $0x240] sm:$0xff]
    %v346 = vld [vmem:[#allocation5 + $0x248] sm:$0xf]
    %v347 = vld [vmem:[#allocation5 + $0x24c] sm:$0xff]
    %v348 = vld [vmem:[#allocation5 + $0x254] sm:$0xf]
    %v349 = vld [vmem:[#allocation5 + $0x258] sm:$0xff]
    %v350 = vld [vmem:[#allocation5 + $0x260] sm:$0xf]
    %v351 = vld [vmem:[#allocation5 + $0x264] sm:$0xff]
    %v352 = vld [vmem:[#allocation5 + $0x26c] sm:$0xf]
    %v353 = vld [vmem:[#allocation5 + $0x270] sm:$0xff]
    %v354 = vld [vmem:[#allocation5 + $0x278] sm:$0xf]
    %v355 = vld [vmem:[#allocation5 + $0x27c] sm:$0xff]
    %v356 = vld [vmem:[#allocation5 + $0x284] sm:$0xf]
    %v357 = vld [vmem:[#allocation5 + $0x288] sm:$0xff]
    %v358 = vld [vmem:[#allocation5 + $0x290] sm:$0xf]
    %v359 = vld [vmem:[#allocation5 + $0x294] sm:$0xff]
    %v360 = vld [vmem:[#allocation5 + $0x29c] sm:$0xf]
    %v361 = vld [vmem:[#allocation5 + $0x2a0] sm:$0xff]
    %v362 = vld [vmem:[#allocation5 + $0x2a8] sm:$0xf]
    %v363 = vld [vmem:[#allocation5 + $0x2ac] sm:$0xff]
    %v364 = vld [vmem:[#allocation5 + $0x2b4] sm:$0xf]
    %v365 = vld [vmem:[#allocation5 + $0x2b8] sm:$0xff]
    %v366 = vld [vmem:[#allocation5 + $0x2c0] sm:$0xf]
    %v367 = vld [vmem:[#allocation5 + $0x2c4] sm:$0xff]
    %v368 = vld [vmem:[#allocation5 + $0x2cc] sm:$0xf]
    %v369 = vld [vmem:[#allocation5 + $0x2d0] sm:$0xff]
    %v370 = vld [vmem:[#allocation5 + $0x2d8] sm:$0xf]
    %v371 = vld [vmem:[#allocation5 + $0x2dc] sm:$0xff]
    %v372 = vld [vmem:[#allocation5 + $0x2e4] sm:$0xf]
    %v373 = vld [vmem:[#allocation5 + $0x2e8] sm:$0xff]
    %v374 = vld [vmem:[#allocation5 + $0x2f0] sm:$0xf]
    %v375 = vld [vmem:[#allocation5 + $0x2f4] sm:$0xff]
    %v376 = vld [vmem:[#allocation5 + $0x2fc] sm:$0xf]
    %v377 = vld [vmem:[#allocation5 + $0x300] sm:$0xff]
    %v378 = vld [vmem:[#allocation5 + $0x308] sm:$0xf]
    %v379 = vld [vmem:[#allocation5 + $0x30c] sm:$0xff]
    %v380 = vld [vmem:[#allocation5 + $0x314] sm:$0xf]
    %v381 = vld [vmem:[#allocation5 + $0x318] sm:$0xff]
    %v382 = vld [vmem:[#allocation5 + $0x320] sm:$0xf]
    %v383 = vld [vmem:[#allocation5 + $0x324] sm:$0xff]
    %v384 = vld [vmem:[#allocation5 + $0x32c] sm:$0xf]
    %v385 = vld [vmem:[#allocation5 + $0x330] sm:$0xff]
    %v386 = vld [vmem:[#allocation5 + $0x338] sm:$0xf]
    %v387 = vld [vmem:[#allocation5 + $0x33c] sm:$0xff]
    %v388 = vld [vmem:[#allocation5 + $0x344] sm:$0xf]
    %v389 = vld [vmem:[#allocation5 + $0x348] sm:$0xff]
    %v390 = vld [vmem:[#allocation5 + $0x350] sm:$0xf]
    %v391 = vld [vmem:[#allocation5 + $0x354] sm:$0xff]
    %v392 = vld [vmem:[#allocation5 + $0x35c] sm:$0xf]
    %v393 = vld [vmem:[#allocation5 + $0x360] sm:$0xff]
    %v394 = vld [vmem:[#allocation5 + $0x368] sm:$0xf]
    %v395 = vld [vmem:[#allocation5 + $0x36c] sm:$0xff]
    %v396 = vld [vmem:[#allocation5 + $0x374] sm:$0xf]
    %v397 = vld [vmem:[#allocation5 + $0x378] sm:$0xff]
    %v398 = vld [vmem:[#allocation5 + $0x380] sm:$0xf]
    %v399 = vld [vmem:[#allocation5 + $0x384] sm:$0xff]
    %v400 = vld [vmem:[#allocation5 + $0x38c] sm:$0xf]
    %v401 = vld [vmem:[#allocation5 + $0x390] sm:$0xff]
    %v402 = vld [vmem:[#allocation5 + $0x398] sm:$0xf]
    %v403 = vld [vmem:[#allocation5 + $0x39c] sm:$0xff]
    %v404 = vld [vmem:[#allocation5 + $0x3a4] sm:$0xf]
    %v405 = vld [vmem:[#allocation5 + $0x3a8] sm:$0xff]
    %v406 = vld [vmem:[#allocation5 + $0x3b0] sm:$0xf]
    %v407 = vld [vmem:[#allocation5 + $0x3b4] sm:$0xff]
    %v408 = vld [vmem:[#allocation5 + $0x3bc] sm:$0xf]
    %v409 = vld [vmem:[%s2] sm:$0x7]
    %v411 = vlaneseq
    %v412 = vshrl.u32 %v411, 7
    %v413 = vsub.s32 0, %v412
    %v414 = vrot.slane %v409, %v413
    %v415 = vlaneseq
    %v416 = vshrl.u32 %v415, 7
    %v417 = vsub.s32 1, %v416
    %v418 = vrot.slane %v409, %v417
    %v419 = vlaneseq
    %v420 = vshrl.u32 %v419, 7
    %v421 = vsub.s32 2, %v420
    %v422 = vrot.slane %v409, %v421
    %v522 = vunpack.c.l.b16 %v153
    %v523 = vunpack.c.h.b16 %v153
    %v524 = vunpack.c.l.b16 %v154
    %v525 = vunpack.c.h.b16 %v154
    %v526 = vunpack.c.l.b16 %v155
    %v527 = vunpack.c.l.b16 %v156
    %v528 = vunpack.c.h.b16 %v156
    %v529 = vunpack.c.l.b16 %v157
    %v530 = vunpack.c.h.b16 %v157
    %v531 = vunpack.c.l.b16 %v158
    %v532 = vunpack.c.l.b16 %v159
    %v533 = vunpack.c.h.b16 %v159
    %v534 = vunpack.c.l.b16 %v160
    %v535 = vunpack.c.h.b16 %v160
    %v536 = vunpack.c.l.b16 %v161
    %v537 = vunpack.c.l.b16 %v162
    %v538 = vunpack.c.h.b16 %v162
    %v539 = vunpack.c.l.b16 %v163
    %v540 = vunpack.c.h.b16 %v163
    %v541 = vunpack.c.l.b16 %v164
    %v542 = vunpack.c.l.b16 %v165
    %v543 = vunpack.c.h.b16 %v165
    %v544 = vunpack.c.l.b16 %v166
    %v545 = vunpack.c.h.b16 %v166
    %v546 = vunpack.c.l.b16 %v167
    %v547 = vunpack.c.l.b16 %v168
    %v548 = vunpack.c.h.b16 %v168
    %v549 = vunpack.c.l.b16 %v169
    %v550 = vunpack.c.h.b16 %v169
    %v551 = vunpack.c.l.b16 %v170
    %v552 = vunpack.c.l.b16 %v171
    %v553 = vunpack.c.h.b16 %v171
    %v554 = vunpack.c.l.b16 %v172
    %v555 = vunpack.c.h.b16 %v172
    %v556 = vunpack.c.l.b16 %v173
    %v557 = vunpack.c.l.b16 %v174
    %v558 = vunpack.c.h.b16 %v174
    %v559 = vunpack.c.l.b16 %v175
    %v560 = vunpack.c.h.b16 %v175
    %v561 = vunpack.c.l.b16 %v176
    %v562 = vunpack.c.l.b16 %v177
    %v563 = vunpack.c.h.b16 %v177
    %v564 = vunpack.c.l.b16 %v178
    %v565 = vunpack.c.h.b16 %v178
    %v566 = vunpack.c.l.b16 %v179
    %v567 = vunpack.c.l.b16 %v180
    %v568 = vunpack.c.h.b16 %v180
    %v569 = vunpack.c.l.b16 %v181
    %v570 = vunpack.c.h.b16 %v181
    %v571 = vunpack.c.l.b16 %v182
    %v572 = vunpack.c.l.b16 %v183
    %v573 = vunpack.c.h.b16 %v183
    %v574 = vunpack.c.l.b16 %v184
    %v575 = vunpack.c.h.b16 %v184
    %v576 = vunpack.c.l.b16 %v185
    %v577 = vunpack.c.l.b16 %v186
    %v578 = vunpack.c.h.b16 %v186
    %v579 = vunpack.c.l.b16 %v187
    %v580 = vunpack.c.h.b16 %v187
    %v581 = vunpack.c.l.b16 %v188
    %v582 = vunpack.c.l.b16 %v189
    %v583 = vunpack.c.h.b16 %v189
    %v584 = vunpack.c.l.b16 %v190
    %v585 = vunpack.c.h.b16 %v190
    %v586 = vunpack.c.l.b16 %v191
    %v587 = vunpack.c.l.b16 %v192
    %v588 = vunpack.c.h.b16 %v192
    %v589 = vunpack.c.l.b16 %v193
    %v590 = vunpack.c.h.b16 %v193
    %v591 = vunpack.c.l.b16 %v194
    %v592 = vunpack.c.l.b16 %v195
    %v593 = vunpack.c.h.b16 %v195
    %v594 = vunpack.c.l.b16 %v196
    %v595 = vunpack.c.h.b16 %v196
    %v596 = vunpack.c.l.b16 %v197
    %v597 = vunpack.c.l.b16 %v198
    %v598 = vunpack.c.h.b16 %v198
    %v599 = vunpack.c.l.b16 %v199
    %v600 = vunpack.c.h.b16 %v199
    %v601 = vunpack.c.l.b16 %v200
    %v602 = vunpack.c.l.b16 %v201
    %v603 = vunpack.c.h.b16 %v201
    %v604 = vunpack.c.l.b16 %v202
    %v605 = vunpack.c.h.b16 %v202
    %v606 = vunpack.c.l.b16 %v203
    %v607 = vunpack.c.l.b16 %v204
    %v608 = vunpack.c.h.b16 %v204
    %v609 = vunpack.c.l.b16 %v205
    %v610 = vunpack.c.h.b16 %v205
    %v611 = vunpack.c.l.b16 %v206
    %v612 = vunpack.c.l.b16 %v207
    %v613 = vunpack.c.h.b16 %v207
    %v614 = vunpack.c.l.b16 %v208
    %v615 = vunpack.c.h.b16 %v208
    %v616 = vunpack.c.l.b16 %v209
    %v617 = vunpack.c.l.b16 %v210
    %v618 = vunpack.c.h.b16 %v210
    %v619 = vunpack.c.l.b16 %v211
    %v620 = vunpack.c.h.b16 %v211
    %v621 = vunpack.c.l.b16 %v212
    %v622 = vunpack.c.l.b16 %v213
    %v623 = vunpack.c.h.b16 %v213
    %v624 = vunpack.c.l.b16 %v214
    %v625 = vunpack.c.h.b16 %v214
    %v626 = vunpack.c.l.b16 %v215
    %v627 = vunpack.c.l.b16 %v216
    %v628 = vunpack.c.h.b16 %v216
    %v629 = vunpack.c.l.b16 %v217
    %v630 = vunpack.c.h.b16 %v217
    %v631 = vunpack.c.l.b16 %v218
    %v632 = vunpack.c.l.b16 %v219
    %v633 = vunpack.c.h.b16 %v219
    %v634 = vunpack.c.l.b16 %v220
    %v635 = vunpack.c.h.b16 %v220
    %v636 = vunpack.c.l.b16 %v221
    %v637 = vunpack.c.l.b16 %v222
    %v638 = vunpack.c.h.b16 %v222
    %v639 = vunpack.c.l.b16 %v223
    %v640 = vunpack.c.h.b16 %v223
    %v641 = vunpack.c.l.b16 %v224
    %v642 = vunpack.c.l.b16 %v225
    %v643 = vunpack.c.h.b16 %v225
    %v644 = vunpack.c.l.b16 %v226
    %v645 = vunpack.c.h.b16 %v226
    %v646 = vunpack.c.l.b16 %v227
    %v647 = vunpack.c.l.b16 %v228
    %v648 = vunpack.c.h.b16 %v228
    %v649 = vunpack.c.l.b16 %v229
    %v650 = vunpack.c.h.b16 %v229
    %v651 = vunpack.c.l.b16 %v230
    %v652 = vunpack.c.l.b16 %v231
    %v653 = vunpack.c.h.b16 %v231
    %v654 = vunpack.c.l.b16 %v232
    %v655 = vunpack.c.h.b16 %v232
    %v656 = vunpack.c.l.b16 %v233
    %v657 = vunpack.c.l.b16 %v234
    %v658 = vunpack.c.h.b16 %v234
    %v659 = vunpack.c.l.b16 %v235
    %v660 = vunpack.c.h.b16 %v235
    %v661 = vunpack.c.l.b16 %v236
    %v662 = vunpack.c.l.b16 %v237
    %v663 = vunpack.c.h.b16 %v237
    %v664 = vunpack.c.l.b16 %v238
    %v665 = vunpack.c.h.b16 %v238
    %v666 = vunpack.c.l.b16 %v239
    %v667 = vunpack.c.l.b16 %v240
    %v668 = vunpack.c.h.b16 %v240
    %v669 = vunpack.c.l.b16 %v241
    %v670 = vunpack.c.h.b16 %v241
    %v671 = vunpack.c.l.b16 %v242
    %v672 = vunpack.c.l.b16 %v243
    %v673 = vunpack.c.h.b16 %v243
    %v674 = vunpack.c.l.b16 %v244
    %v675 = vunpack.c.h.b16 %v244
    %v676 = vunpack.c.l.b16 %v245
    %v677 = vunpack.c.l.b16 %v246
    %v678 = vunpack.c.h.b16 %v246
    %v679 = vunpack.c.l.b16 %v247
    %v680 = vunpack.c.h.b16 %v247
    %v681 = vunpack.c.l.b16 %v248
    %v682 = vpack.c.b16 %v527, %v522
    %v683 = vpack.c.b16 %v528, %v523
    %v684 = vpack.c.b16 %v529, %v524
    %v685 = vpack.c.b16 %v530, %v525
    %v686 = vpack.c.b16 %v531, %v526
    %v687 = vpack.c.b16 %v537, %v532
    %v688 = vpack.c.b16 %v538, %v533
    %v689 = vpack.c.b16 %v539, %v534
    %v690 = vpack.c.b16 %v540, %v535
    %v691 = vpack.c.b16 %v541, %v536
    %v692 = vpack.c.b16 %v547, %v542
    %v693 = vpack.c.b16 %v548, %v543
    %v694 = vpack.c.b16 %v549, %v544
    %v695 = vpack.c.b16 %v550, %v545
    %v696 = vpack.c.b16 %v551, %v546
    %v697 = vpack.c.b16 %v557, %v552
    %v698 = vpack.c.b16 %v558, %v553
    %v699 = vpack.c.b16 %v559, %v554
    %v700 = vpack.c.b16 %v560, %v555
    %v701 = vpack.c.b16 %v561, %v556
    %v702 = vpack.c.b16 %v567, %v562
    %v703 = vpack.c.b16 %v568, %v563
    %v704 = vpack.c.b16 %v569, %v564
    %v705 = vpack.c.b16 %v570, %v565
    %v706 = vpack.c.b16 %v571, %v566
    %v707 = vpack.c.b16 %v577, %v572
    %v708 = vpack.c.b16 %v578, %v573
    %v709 = vpack.c.b16 %v579, %v574
    %v710 = vpack.c.b16 %v580, %v575
    %v711 = vpack.c.b16 %v581, %v576
    %v712 = vpack.c.b16 %v587, %v582
    %v713 = vpack.c.b16 %v588, %v583
    %v714 = vpack.c.b16 %v589, %v584
    %v715 = vpack.c.b16 %v590, %v585
    %v716 = vpack.c.b16 %v591, %v586
    %v717 = vpack.c.b16 %v597, %v592
    %v718 = vpack.c.b16 %v598, %v593
    %v719 = vpack.c.b16 %v599, %v594
    %v720 = vpack.c.b16 %v600, %v595
    %v721 = vpack.c.b16 %v601, %v596
    %v722 = vpack.c.b16 %v607, %v602
    %v723 = vpack.c.b16 %v608, %v603
    %v724 = vpack.c.b16 %v609, %v604
    %v725 = vpack.c.b16 %v610, %v605
    %v726 = vpack.c.b16 %v611, %v606
    %v727 = vpack.c.b16 %v617, %v612
    %v728 = vpack.c.b16 %v618, %v613
    %v729 = vpack.c.b16 %v619, %v614
    %v730 = vpack.c.b16 %v620, %v615
    %v731 = vpack.c.b16 %v621, %v616
    %v732 = vpack.c.b16 %v627, %v622
    %v733 = vpack.c.b16 %v628, %v623
    %v734 = vpack.c.b16 %v629, %v624
    %v735 = vpack.c.b16 %v630, %v625
    %v736 = vpack.c.b16 %v631, %v626
    %v737 = vpack.c.b16 %v637, %v632
    %v738 = vpack.c.b16 %v638, %v633
    %v739 = vpack.c.b16 %v639, %v634
    %v740 = vpack.c.b16 %v640, %v635
    %v741 = vpack.c.b16 %v641, %v636
    %v742 = vpack.c.b16 %v647, %v642
    %v743 = vpack.c.b16 %v648, %v643
    %v744 = vpack.c.b16 %v649, %v644
    %v745 = vpack.c.b16 %v650, %v645
    %v746 = vpack.c.b16 %v651, %v646
    %v747 = vpack.c.b16 %v657, %v652
    %v748 = vpack.c.b16 %v658, %v653
    %v749 = vpack.c.b16 %v659, %v654
    %v750 = vpack.c.b16 %v660, %v655
    %v751 = vpack.c.b16 %v661, %v656
    %v752 = vpack.c.b16 %v667, %v662
    %v753 = vpack.c.b16 %v668, %v663
    %v754 = vpack.c.b16 %v669, %v664
    %v755 = vpack.c.b16 %v670, %v665
    %v756 = vpack.c.b16 %v671, %v666
    %v757 = vpack.c.b16 %v677, %v672
    %v758 = vpack.c.b16 %v678, %v673
    %v759 = vpack.c.b16 %v679, %v674
    %v760 = vpack.c.b16 %v680, %v675
    %v761 = vpack.c.b16 %v681, %v676
    %v1002 = vunpack.c.l.b16 %v249
    %v1003 = vunpack.c.h.b16 %v249
    %v1004 = vunpack.c.l.b16 %v250
    %v1005 = vunpack.c.l.b16 %v251
    %v1006 = vunpack.c.h.b16 %v251
    %v1007 = vunpack.c.l.b16 %v252
    %v1008 = vunpack.c.l.b16 %v253
    %v1009 = vunpack.c.h.b16 %v253
    %v1010 = vunpack.c.l.b16 %v254
    %v1011 = vunpack.c.l.b16 %v255
    %v1012 = vunpack.c.h.b16 %v255
    %v1013 = vunpack.c.l.b16 %v256
    %v1014 = vunpack.c.l.b16 %v257
    %v1015 = vunpack.c.h.b16 %v257
    %v1016 = vunpack.c.l.b16 %v258
    %v1017 = vunpack.c.l.b16 %v259
    %v1018 = vunpack.c.h.b16 %v259
    %v1019 = vunpack.c.l.b16 %v260
    %v1020 = vunpack.c.l.b16 %v261
    %v1021 = vunpack.c.h.b16 %v261
    %v1022 = vunpack.c.l.b16 %v262
    %v1023 = vunpack.c.l.b16 %v263
    %v1024 = vunpack.c.h.b16 %v263
    %v1025 = vunpack.c.l.b16 %v264
    %v1026 = vunpack.c.l.b16 %v265
    %v1027 = vunpack.c.h.b16 %v265
    %v1028 = vunpack.c.l.b16 %v266
    %v1029 = vunpack.c.l.b16 %v267
    %v1030 = vunpack.c.h.b16 %v267
    %v1031 = vunpack.c.l.b16 %v268
    %v1032 = vunpack.c.l.b16 %v269
    %v1033 = vunpack.c.h.b16 %v269
    %v1034 = vunpack.c.l.b16 %v270
    %v1035 = vunpack.c.l.b16 %v271
    %v1036 = vunpack.c.h.b16 %v271
    %v1037 = vunpack.c.l.b16 %v272
    %v1038 = vunpack.c.l.b16 %v273
    %v1039 = vunpack.c.h.b16 %v273
    %v1040 = vunpack.c.l.b16 %v274
    %v1041 = vunpack.c.l.b16 %v275
    %v1042 = vunpack.c.h.b16 %v275
    %v1043 = vunpack.c.l.b16 %v276
    %v1044 = vunpack.c.l.b16 %v277
    %v1045 = vunpack.c.h.b16 %v277
    %v1046 = vunpack.c.l.b16 %v278
    %v1047 = vunpack.c.l.b16 %v279
    %v1048 = vunpack.c.h.b16 %v279
    %v1049 = vunpack.c.l.b16 %v280
    %v1050 = vunpack.c.l.b16 %v281
    %v1051 = vunpack.c.h.b16 %v281
    %v1052 = vunpack.c.l.b16 %v282
    %v1053 = vunpack.c.l.b16 %v283
    %v1054 = vunpack.c.h.b16 %v283
    %v1055 = vunpack.c.l.b16 %v284
    %v1056 = vunpack.c.l.b16 %v285
    %v1057 = vunpack.c.h.b16 %v285
    %v1058 = vunpack.c.l.b16 %v286
    %v1059 = vunpack.c.l.b16 %v287
    %v1060 = vunpack.c.h.b16 %v287
    %v1061 = vunpack.c.l.b16 %v288
    %v1062 = vunpack.c.l.b16 %v289
    %v1063 = vunpack.c.h.b16 %v289
    %v1064 = vunpack.c.l.b16 %v290
    %v1065 = vunpack.c.l.b16 %v291
    %v1066 = vunpack.c.h.b16 %v291
    %v1067 = vunpack.c.l.b16 %v292
    %v1068 = vunpack.c.l.b16 %v293
    %v1069 = vunpack.c.h.b16 %v293
    %v1070 = vunpack.c.l.b16 %v294
    %v1071 = vunpack.c.l.b16 %v295
    %v1072 = vunpack.c.h.b16 %v295
    %v1073 = vunpack.c.l.b16 %v296
    %v1074 = vunpack.c.l.b16 %v297
    %v1075 = vunpack.c.h.b16 %v297
    %v1076 = vunpack.c.l.b16 %v298
    %v1077 = vunpack.c.l.b16 %v299
    %v1078 = vunpack.c.h.b16 %v299
    %v1079 = vunpack.c.l.b16 %v300
    %v1080 = vunpack.c.l.b16 %v301
    %v1081 = vunpack.c.h.b16 %v301
    %v1082 = vunpack.c.l.b16 %v302
    %v1083 = vunpack.c.l.b16 %v303
    %v1084 = vunpack.c.h.b16 %v303
    %v1085 = vunpack.c.l.b16 %v304
    %v1086 = vunpack.c.l.b16 %v305
    %v1087 = vunpack.c.h.b16 %v305
    %v1088 = vunpack.c.l.b16 %v306
    %v1089 = vunpack.c.l.b16 %v307
    %v1090 = vunpack.c.h.b16 %v307
    %v1091 = vunpack.c.l.b16 %v308
    %v1092 = vunpack.c.l.b16 %v309
    %v1093 = vunpack.c.h.b16 %v309
    %v1094 = vunpack.c.l.b16 %v310
    %v1095 = vunpack.c.l.b16 %v311
    %v1096 = vunpack.c.h.b16 %v311
    %v1097 = vunpack.c.l.b16 %v312
    %v1098 = vunpack.c.l.b16 %v313
    %v1099 = vunpack.c.h.b16 %v313
    %v1100 = vunpack.c.l.b16 %v314
    %v1101 = vunpack.c.l.b16 %v315
    %v1102 = vunpack.c.h.b16 %v315
    %v1103 = vunpack.c.l.b16 %v316
    %v1104 = vunpack.c.l.b16 %v317
    %v1105 = vunpack.c.h.b16 %v317
    %v1106 = vunpack.c.l.b16 %v318
    %v1107 = vunpack.c.l.b16 %v319
    %v1108 = vunpack.c.h.b16 %v319
    %v1109 = vunpack.c.l.b16 %v320
    %v1110 = vunpack.c.l.b16 %v321
    %v1111 = vunpack.c.h.b16 %v321
    %v1112 = vunpack.c.l.b16 %v322
    %v1113 = vunpack.c.l.b16 %v323
    %v1114 = vunpack.c.h.b16 %v323
    %v1115 = vunpack.c.l.b16 %v324
    %v1116 = vunpack.c.l.b16 %v325
    %v1117 = vunpack.c.h.b16 %v325
    %v1118 = vunpack.c.l.b16 %v326
    %v1119 = vunpack.c.l.b16 %v327
    %v1120 = vunpack.c.h.b16 %v327
    %v1121 = vunpack.c.l.b16 %v328
    %v1122 = vunpack.c.l.b16 %v329
    %v1123 = vunpack.c.h.b16 %v329
    %v1124 = vunpack.c.l.b16 %v330
    %v1125 = vunpack.c.l.b16 %v331
    %v1126 = vunpack.c.h.b16 %v331
    %v1127 = vunpack.c.l.b16 %v332
    %v1128 = vunpack.c.l.b16 %v333
    %v1129 = vunpack.c.h.b16 %v333
    %v1130 = vunpack.c.l.b16 %v334
    %v1131 = vunpack.c.l.b16 %v335
    %v1132 = vunpack.c.h.b16 %v335
    %v1133 = vunpack.c.l.b16 %v336
    %v1134 = vunpack.c.l.b16 %v337
    %v1135 = vunpack.c.h.b16 %v337
    %v1136 = vunpack.c.l.b16 %v338
    %v1137 = vunpack.c.l.b16 %v339
    %v1138 = vunpack.c.h.b16 %v339
    %v1139 = vunpack.c.l.b16 %v340
    %v1140 = vunpack.c.l.b16 %v341
    %v1141 = vunpack.c.h.b16 %v341
    %v1142 = vunpack.c.l.b16 %v342
    %v1143 = vunpack.c.l.b16 %v343
    %v1144 = vunpack.c.h.b16 %v343
    %v1145 = vunpack.c.l.b16 %v344
    %v1146 = vunpack.c.l.b16 %v345
    %v1147 = vunpack.c.h.b16 %v345
    %v1148 = vunpack.c.l.b16 %v346
    %v1149 = vunpack.c.l.b16 %v347
    %v1150 = vunpack.c.h.b16 %v347
    %v1151 = vunpack.c.l.b16 %v348
    %v1152 = vunpack.c.l.b16 %v349
    %v1153 = vunpack.c.h.b16 %v349
    %v1154 = vunpack.c.l.b16 %v350
    %v1155 = vunpack.c.l.b16 %v351
    %v1156 = vunpack.c.h.b16 %v351
    %v1157 = vunpack.c.l.b16 %v352
    %v1158 = vunpack.c.l.b16 %v353
    %v1159 = vunpack.c.h.b16 %v353
    %v1160 = vunpack.c.l.b16 %v354
    %v1161 = vunpack.c.l.b16 %v355
    %v1162 = vunpack.c.h.b16 %v355
    %v1163 = vunpack.c.l.b16 %v356
    %v1164 = vunpack.c.l.b16 %v357
    %v1165 = vunpack.c.h.b16 %v357
    %v1166 = vunpack.c.l.b16 %v358
    %v1167 = vunpack.c.l.b16 %v359
    %v1168 = vunpack.c.h.b16 %v359
    %v1169 = vunpack.c.l.b16 %v360
    %v1170 = vunpack.c.l.b16 %v361
    %v1171 = vunpack.c.h.b16 %v361
    %v1172 = vunpack.c.l.b16 %v362
    %v1173 = vunpack.c.l.b16 %v363
    %v1174 = vunpack.c.h.b16 %v363
    %v1175 = vunpack.c.l.b16 %v364
    %v1176 = vunpack.c.l.b16 %v365
    %v1177 = vunpack.c.h.b16 %v365
    %v1178 = vunpack.c.l.b16 %v366
    %v1179 = vunpack.c.l.b16 %v367
    %v1180 = vunpack.c.h.b16 %v367
    %v1181 = vunpack.c.l.b16 %v368
    %v1182 = vunpack.c.l.b16 %v369
    %v1183 = vunpack.c.h.b16 %v369
    %v1184 = vunpack.c.l.b16 %v370
    %v1185 = vunpack.c.l.b16 %v371
    %v1186 = vunpack.c.h.b16 %v371
    %v1187 = vunpack.c.l.b16 %v372
    %v1188 = vunpack.c.l.b16 %v373
    %v1189 = vunpack.c.h.b16 %v373
    %v1190 = vunpack.c.l.b16 %v374
    %v1191 = vunpack.c.l.b16 %v375
    %v1192 = vunpack.c.h.b16 %v375
    %v1193 = vunpack.c.l.b16 %v376
    %v1194 = vunpack.c.l.b16 %v377
    %v1195 = vunpack.c.h.b16 %v377
    %v1196 = vunpack.c.l.b16 %v378
    %v1197 = vunpack.c.l.b16 %v379
    %v1198 = vunpack.c.h.b16 %v379
    %v1199 = vunpack.c.l.b16 %v380
    %v1200 = vunpack.c.l.b16 %v381
    %v1201 = vunpack.c.h.b16 %v381
    %v1202 = vunpack.c.l.b16 %v382
    %v1203 = vunpack.c.l.b16 %v383
    %v1204 = vunpack.c.h.b16 %v383
    %v1205 = vunpack.c.l.b16 %v384
    %v1206 = vunpack.c.l.b16 %v385
    %v1207 = vunpack.c.h.b16 %v385
    %v1208 = vunpack.c.l.b16 %v386
    %v1209 = vunpack.c.l.b16 %v387
    %v1210 = vunpack.c.h.b16 %v387
    %v1211 = vunpack.c.l.b16 %v388
    %v1212 = vunpack.c.l.b16 %v389
    %v1213 = vunpack.c.h.b16 %v389
    %v1214 = vunpack.c.l.b16 %v390
    %v1215 = vunpack.c.l.b16 %v391
    %v1216 = vunpack.c.h.b16 %v391
    %v1217 = vunpack.c.l.b16 %v392
    %v1218 = vunpack.c.l.b16 %v393
    %v1219 = vunpack.c.h.b16 %v393
    %v1220 = vunpack.c.l.b16 %v394
    %v1221 = vunpack.c.l.b16 %v395
    %v1222 = vunpack.c.h.b16 %v395
    %v1223 = vunpack.c.l.b16 %v396
    %v1224 = vunpack.c.l.b16 %v397
    %v1225 = vunpack.c.h.b16 %v397
    %v1226 = vunpack.c.l.b16 %v398
    %v1227 = vunpack.c.l.b16 %v399
    %v1228 = vunpack.c.h.b16 %v399
    %v1229 = vunpack.c.l.b16 %v400
    %v1230 = vunpack.c.l.b16 %v401
    %v1231 = vunpack.c.h.b16 %v401
    %v1232 = vunpack.c.l.b16 %v402
    %v1233 = vunpack.c.l.b16 %v403
    %v1234 = vunpack.c.h.b16 %v403
    %v1235 = vunpack.c.l.b16 %v404
    %v1236 = vunpack.c.l.b16 %v405
    %v1237 = vunpack.c.h.b16 %v405
    %v1238 = vunpack.c.l.b16 %v406
    %v1239 = vunpack.c.l.b16 %v407
    %v1240 = vunpack.c.h.b16 %v407
    %v1241 = vunpack.c.l.b16 %v408
    %v1242 = vpack.c.b16 %v1005, %v1002
    %v1243 = vpack.c.b16 %v1006, %v1003
    %v1244 = vpack.c.b16 %v1007, %v1004
    %v1245 = vpack.c.b16 %v1011, %v1008
    %v1246 = vpack.c.b16 %v1012, %v1009
    %v1247 = vpack.c.b16 %v1013, %v1010
    %v1248 = vpack.c.b16 %v1017, %v1014
    %v1249 = vpack.c.b16 %v1018, %v1015
    %v1250 = vpack.c.b16 %v1019, %v1016
    %v1251 = vpack.c.b16 %v1023, %v1020
    %v1252 = vpack.c.b16 %v1024, %v1021
    %v1253 = vpack.c.b16 %v1025, %v1022
    %v1254 = vpack.c.b16 %v1029, %v1026
    %v1255 = vpack.c.b16 %v1030, %v1027
    %v1256 = vpack.c.b16 %v1031, %v1028
    %v1257 = vpack.c.b16 %v1035, %v1032
    %v1258 = vpack.c.b16 %v1036, %v1033
    %v1259 = vpack.c.b16 %v1037, %v1034
    %v1260 = vpack.c.b16 %v1041, %v1038
    %v1261 = vpack.c.b16 %v1042, %v1039
    %v1262 = vpack.c.b16 %v1043, %v1040
    %v1263 = vpack.c.b16 %v1047, %v1044
    %v1264 = vpack.c.b16 %v1048, %v1045
    %v1265 = vpack.c.b16 %v1049, %v1046
    %v1266 = vpack.c.b16 %v1053, %v1050
    %v1267 = vpack.c.b16 %v1054, %v1051
    %v1268 = vpack.c.b16 %v1055, %v1052
    %v1269 = vpack.c.b16 %v1059, %v1056
    %v1270 = vpack.c.b16 %v1060, %v1057
    %v1271 = vpack.c.b16 %v1061, %v1058
    %v1272 = vpack.c.b16 %v1065, %v1062
    %v1273 = vpack.c.b16 %v1066, %v1063
    %v1274 = vpack.c.b16 %v1067, %v1064
    %v1275 = vpack.c.b16 %v1071, %v1068
    %v1276 = vpack.c.b16 %v1072, %v1069
    %v1277 = vpack.c.b16 %v1073, %v1070
    %v1278 = vpack.c.b16 %v1077, %v1074
    %v1279 = vpack.c.b16 %v1078, %v1075
    %v1280 = vpack.c.b16 %v1079, %v1076
    %v1281 = vpack.c.b16 %v1083, %v1080
    %v1282 = vpack.c.b16 %v1084, %v1081
    %v1283 = vpack.c.b16 %v1085, %v1082
    %v1284 = vpack.c.b16 %v1089, %v1086
    %v1285 = vpack.c.b16 %v1090, %v1087
    %v1286 = vpack.c.b16 %v1091, %v1088
    %v1287 = vpack.c.b16 %v1095, %v1092
    %v1288 = vpack.c.b16 %v1096, %v1093
    %v1289 = vpack.c.b16 %v1097, %v1094
    %v1290 = vpack.c.b16 %v1101, %v1098
    %v1291 = vpack.c.b16 %v1102, %v1099
    %v1292 = vpack.c.b16 %v1103, %v1100
    %v1293 = vpack.c.b16 %v1107, %v1104
    %v1294 = vpack.c.b16 %v1108, %v1105
    %v1295 = vpack.c.b16 %v1109, %v1106
    %v1296 = vpack.c.b16 %v1113, %v1110
    %v1297 = vpack.c.b16 %v1114, %v1111
    %v1298 = vpack.c.b16 %v1115, %v1112
    %v1299 = vpack.c.b16 %v1119, %v1116
    %v1300 = vpack.c.b16 %v1120, %v1117
    %v1301 = vpack.c.b16 %v1121, %v1118
    %v1302 = vpack.c.b16 %v1125, %v1122
    %v1303 = vpack.c.b16 %v1126, %v1123
    %v1304 = vpack.c.b16 %v1127, %v1124
    %v1305 = vpack.c.b16 %v1131, %v1128
    %v1306 = vpack.c.b16 %v1132, %v1129
    %v1307 = vpack.c.b16 %v1133, %v1130
    %v1308 = vpack.c.b16 %v1137, %v1134
    %v1309 = vpack.c.b16 %v1138, %v1135
    %v1310 = vpack.c.b16 %v1139, %v1136
    %v1311 = vpack.c.b16 %v1143, %v1140
    %v1312 = vpack.c.b16 %v1144, %v1141
    %v1313 = vpack.c.b16 %v1145, %v1142
    %v1314 = vpack.c.b16 %v1149, %v1146
    %v1315 = vpack.c.b16 %v1150, %v1147
    %v1316 = vpack.c.b16 %v1151, %v1148
    %v1317 = vpack.c.b16 %v1155, %v1152
    %v1318 = vpack.c.b16 %v1156, %v1153
    %v1319 = vpack.c.b16 %v1157, %v1154
    %v1320 = vpack.c.b16 %v1161, %v1158
    %v1321 = vpack.c.b16 %v1162, %v1159
    %v1322 = vpack.c.b16 %v1163, %v1160
    %v1323 = vpack.c.b16 %v1167, %v1164
    %v1324 = vpack.c.b16 %v1168, %v1165
    %v1325 = vpack.c.b16 %v1169, %v1166
    %v1326 = vpack.c.b16 %v1173, %v1170
    %v1327 = vpack.c.b16 %v1174, %v1171
    %v1328 = vpack.c.b16 %v1175, %v1172
    %v1329 = vpack.c.b16 %v1179, %v1176
    %v1330 = vpack.c.b16 %v1180, %v1177
    %v1331 = vpack.c.b16 %v1181, %v1178
    %v1332 = vpack.c.b16 %v1185, %v1182
    %v1333 = vpack.c.b16 %v1186, %v1183
    %v1334 = vpack.c.b16 %v1187, %v1184
    %v1335 = vpack.c.b16 %v1191, %v1188
    %v1336 = vpack.c.b16 %v1192, %v1189
    %v1337 = vpack.c.b16 %v1193, %v1190
    %v1338 = vpack.c.b16 %v1197, %v1194
    %v1339 = vpack.c.b16 %v1198, %v1195
    %v1340 = vpack.c.b16 %v1199, %v1196
    %v1341 = vpack.c.b16 %v1203, %v1200
    %v1342 = vpack.c.b16 %v1204, %v1201
    %v1343 = vpack.c.b16 %v1205, %v1202
    %v1344 = vpack.c.b16 %v1209, %v1206
    %v1345 = vpack.c.b16 %v1210, %v1207
    %v1346 = vpack.c.b16 %v1211, %v1208
    %v1347 = vpack.c.b16 %v1215, %v1212
    %v1348 = vpack.c.b16 %v1216, %v1213
    %v1349 = vpack.c.b16 %v1217, %v1214
    %v1350 = vpack.c.b16 %v1221, %v1218
    %v1351 = vpack.c.b16 %v1222, %v1219
    %v1352 = vpack.c.b16 %v1223, %v1220
    %v1353 = vpack.c.b16 %v1227, %v1224
    %v1354 = vpack.c.b16 %v1228, %v1225
    %v1355 = vpack.c.b16 %v1229, %v1226
    %v1356 = vpack.c.b16 %v1233, %v1230
    %v1357 = vpack.c.b16 %v1234, %v1231
    %v1358 = vpack.c.b16 %v1235, %v1232
    %v1359 = vpack.c.b16 %v1239, %v1236
    %v1360 = vpack.c.b16 %v1240, %v1237
    %v1361 = vpack.c.b16 %v1241, %v1238
    %1482 = vmatprep.subr.bf16.mxu0 %v1264
    %1483 = vmatpush1.bf16.msra.mxu0 %v1263
    %1484 = vmatprep.subr.bf16.mxu0 %v1261
    %1485 = vmatpush1.bf16.msra.mxu0 %v1260
    %1486 = vmatprep.subr.bf16.mxu0 %v1258
    %1487 = vmatpush1.bf16.msra.mxu0 %v1257
    %1488 = vmatprep.subr.bf16.mxu0 %v1255
    %1489 = vmatpush1.bf16.msra.mxu0 %v1254
    %1490 = vmatprep.subr.bf16.mxu0 %v1252
    %1491 = vmatpush1.bf16.msra.mxu0 %v1251
    %1492 = vmatprep.subr.bf16.mxu0 %v1249
    %1493 = vmatpush1.bf16.msra.mxu0 %v1248
    %1494 = vmatprep.subr.bf16.mxu0 %v1246
    %1495 = vmatpush1.bf16.msra.mxu0 %v1245
    %1496 = vmatprep.subr.bf16.mxu0 %v1243
    %1497 = vmatpush1.bf16.msra.mxu0 %v1242
    %1498 = vmatprep.subr.bf16.mxu0 %v1288
    %1499 = vmatpush2.bf16.msra.mxu0 %v1287
    %1500 = vmatprep.subr.bf16.mxu0 %v1285
    %1501 = vmatpush2.bf16.msra.mxu0 %v1284
    %1502 = vmatprep.subr.bf16.mxu0 %v1282
    %1503 = vmatpush2.bf16.msra.mxu0 %v1281
    %1504 = vmatprep.subr.bf16.mxu0 %v1279
    %1505 = vmatpush2.bf16.msra.mxu0 %v1278
    %1506 = vmatprep.subr.bf16.mxu0 %v1276
    %1507 = vmatpush2.bf16.msra.mxu0 %v1275
    %1508 = vmatprep.subr.bf16.mxu0 %v1273
    %1509 = vmatpush2.bf16.msra.mxu0 %v1272
    %1510 = vmatprep.subr.bf16.mxu0 %v1270
    %1511 = vmatpush2.bf16.msra.mxu0 %v1269
    %1512 = vmatprep.subr.bf16.mxu0 %v1267
    %1513 = vmatpush2.bf16.msra.mxu0 %v1266
    %1514 = vmatprep.mubr.bf16.mxu0 %v683
    %1515 = vmatmul.mubr.bf16.gmra.mxu0 %v682
    %v1516 = vpop.f32.mrf.mxu0
    %v1517 = vadd.f32 %v414, %v1516
    %v1518 = vpop.f32.mrf.mxu0
    %v1519 = vadd.f32 %v418, %v1518
    %v1520 = vpop.f32.mrf.mxu0
    %v1521 = vadd.f32 %v414, %v1520
    %v1522 = vpop.f32.mrf.mxu0
    %v1523 = vadd.f32 %v418, %v1522
    %1524 = vmatprep.mubr.bf16.mxu0 %v688
    %1525 = vmatmul.mubr.bf16.gmra.mxu0 %v687
    %v1526 = vpop.f32.mrf.mxu0
    %v1527 = vadd.f32 %v414, %v1526
    %v1528 = vpop.f32.mrf.mxu0
    %v1529 = vadd.f32 %v418, %v1528
    %v1530 = vpop.f32.mrf.mxu0
    %v1531 = vadd.f32 %v414, %v1530
    %v1532 = vpop.f32.mrf.mxu0
    %v1533 = vadd.f32 %v418, %v1532
    %1534 = vmatprep.mubr.bf16.mxu0 %v693
    %1535 = vmatmul.mubr.bf16.gmra.mxu0 %v692
    %v1536 = vpop.f32.mrf.mxu0
    %v1537 = vadd.f32 %v414, %v1536
    %v1538 = vpop.f32.mrf.mxu0
    %v1539 = vadd.f32 %v418, %v1538
    %v1540 = vpop.f32.mrf.mxu0
    %v1541 = vadd.f32 %v414, %v1540
    %v1542 = vpop.f32.mrf.mxu0
    %v1543 = vadd.f32 %v418, %v1542
    %1544 = vmatprep.mubr.bf16.mxu0 %v698
    %1545 = vmatmul.mubr.bf16.gmra.mxu0 %v697
    %v1546 = vpop.f32.mrf.mxu0
    %v1547 = vadd.f32 %v414, %v1546
    %v1548 = vpop.f32.mrf.mxu0
    %v1549 = vadd.f32 %v418, %v1548
    %v1550 = vpop.f32.mrf.mxu0
    %v1551 = vadd.f32 %v414, %v1550
    %v1552 = vpop.f32.mrf.mxu0
    %v1553 = vadd.f32 %v418, %v1552
    %1554 = vmatprep.mubr.bf16.mxu0 %v703
    %1555 = vmatmul.mubr.bf16.gmra.mxu0 %v702
    %v1556 = vpop.f32.mrf.mxu0
    %v1557 = vadd.f32 %v414, %v1556
    %v1558 = vpop.f32.mrf.mxu0
    %v1559 = vadd.f32 %v418, %v1558
    %v1560 = vpop.f32.mrf.mxu0
    %v1561 = vadd.f32 %v414, %v1560
    %v1562 = vpop.f32.mrf.mxu0
    %v1563 = vadd.f32 %v418, %v1562
    %1564 = vmatprep.mubr.bf16.mxu0 %v708
    %1565 = vmatmul.mubr.bf16.gmra.mxu0 %v707
    %v1566 = vpop.f32.mrf.mxu0
    %v1567 = vadd.f32 %v414, %v1566
    %v1568 = vpop.f32.mrf.mxu0
    %v1569 = vadd.f32 %v418, %v1568
    %v1570 = vpop.f32.mrf.mxu0
    %v1571 = vadd.f32 %v414, %v1570
    %v1572 = vpop.f32.mrf.mxu0
    %v1573 = vadd.f32 %v418, %v1572
    %1574 = vmatprep.mubr.bf16.mxu0 %v713
    %1575 = vmatmul.mubr.bf16.gmra.mxu0 %v712
    %v1576 = vpop.f32.mrf.mxu0
    %v1577 = vadd.f32 %v414, %v1576
    %v1578 = vpop.f32.mrf.mxu0
    %v1579 = vadd.f32 %v418, %v1578
    %v1580 = vpop.f32.mrf.mxu0
    %v1581 = vadd.f32 %v414, %v1580
    %v1582 = vpop.f32.mrf.mxu0
    %v1583 = vadd.f32 %v418, %v1582
    %1584 = vmatprep.mubr.bf16.mxu0 %v718
    %1585 = vmatmul.mubr.bf16.gmra.mxu0 %v717
    %v1586 = vpop.f32.mrf.mxu0
    %v1587 = vadd.f32 %v414, %v1586
    %v1588 = vpop.f32.mrf.mxu0
    %v1589 = vadd.f32 %v418, %v1588
    %v1590 = vpop.f32.mrf.mxu0
    %v1591 = vadd.f32 %v414, %v1590
    %v1592 = vpop.f32.mrf.mxu0
    %v1593 = vadd.f32 %v418, %v1592
    %1594 = vmatprep.mubr.bf16.mxu0 %v723
    %1595 = vmatmul.mubr.bf16.gmra.mxu0 %v722
    %v1596 = vpop.f32.mrf.mxu0
    %v1597 = vadd.f32 %v414, %v1596
    %v1598 = vpop.f32.mrf.mxu0
    %v1599 = vadd.f32 %v418, %v1598
    %v1600 = vpop.f32.mrf.mxu0
    %v1601 = vadd.f32 %v414, %v1600
    %v1602 = vpop.f32.mrf.mxu0
    %v1603 = vadd.f32 %v418, %v1602
    %1604 = vmatprep.mubr.bf16.mxu0 %v728
    %1605 = vmatmul.mubr.bf16.gmra.mxu0 %v727
    %v1606 = vpop.f32.mrf.mxu0
    %v1607 = vadd.f32 %v414, %v1606
    %v1608 = vpop.f32.mrf.mxu0
    %v1609 = vadd.f32 %v418, %v1608
    %v1610 = vpop.f32.mrf.mxu0
    %v1611 = vadd.f32 %v414, %v1610
    %v1612 = vpop.f32.mrf.mxu0
    %v1613 = vadd.f32 %v418, %v1612
    %1614 = vmatprep.mubr.bf16.mxu0 %v733
    %1615 = vmatmul.mubr.bf16.gmra.mxu0 %v732
    %v1616 = vpop.f32.mrf.mxu0
    %v1617 = vadd.f32 %v414, %v1616
    %v1618 = vpop.f32.mrf.mxu0
    %v1619 = vadd.f32 %v418, %v1618
    %v1620 = vpop.f32.mrf.mxu0
    %v1621 = vadd.f32 %v414, %v1620
    %v1622 = vpop.f32.mrf.mxu0
    %v1623 = vadd.f32 %v418, %v1622
    %1624 = vmatprep.mubr.bf16.mxu0 %v738
    %1625 = vmatmul.mubr.bf16.gmra.mxu0 %v737
    %v1626 = vpop.f32.mrf.mxu0
    %v1627 = vadd.f32 %v414, %v1626
    %v1628 = vpop.f32.mrf.mxu0
    %v1629 = vadd.f32 %v418, %v1628
    %v1630 = vpop.f32.mrf.mxu0
    %v1631 = vadd.f32 %v414, %v1630
    %v1632 = vpop.f32.mrf.mxu0
    %v1633 = vadd.f32 %v418, %v1632
    %1634 = vmatprep.mubr.bf16.mxu0 %v743
    %1635 = vmatmul.mubr.bf16.gmra.mxu0 %v742
    %v1636 = vpop.f32.mrf.mxu0
    %v1637 = vadd.f32 %v414, %v1636
    %v1638 = vpop.f32.mrf.mxu0
    %v1639 = vadd.f32 %v418, %v1638
    %v1640 = vpop.f32.mrf.mxu0
    %v1641 = vadd.f32 %v414, %v1640
    %v1642 = vpop.f32.mrf.mxu0
    %v1643 = vadd.f32 %v418, %v1642
    %1644 = vmatprep.mubr.bf16.mxu0 %v748
    %1645 = vmatmul.mubr.bf16.gmra.mxu0 %v747
    %v1646 = vpop.f32.mrf.mxu0
    %v1647 = vadd.f32 %v414, %v1646
    %v1648 = vpop.f32.mrf.mxu0
    %v1649 = vadd.f32 %v418, %v1648
    %v1650 = vpop.f32.mrf.mxu0
    %v1651 = vadd.f32 %v414, %v1650
    %v1652 = vpop.f32.mrf.mxu0
    %v1653 = vadd.f32 %v418, %v1652
    %1654 = vmatprep.mubr.bf16.mxu0 %v753
    %1655 = vmatmul.mubr.bf16.gmra.mxu0 %v752
    %v1656 = vpop.f32.mrf.mxu0
    %v1657 = vadd.f32 %v414, %v1656
    %v1658 = vpop.f32.mrf.mxu0
    %v1659 = vadd.f32 %v418, %v1658
    %v1660 = vpop.f32.mrf.mxu0
    %v1661 = vadd.f32 %v414, %v1660
    %v1662 = vpop.f32.mrf.mxu0
    %v1663 = vadd.f32 %v418, %v1662
    %1664 = vmatprep.mubr.bf16.mxu0 %v758
    %1665 = vmatmul.mubr.bf16.gmra.mxu0 %v757
    %v1666 = vpop.f32.mrf.mxu0
    %v1667 = vadd.f32 %v414, %v1666
    %v1668 = vpop.f32.mrf.mxu0
    %v1669 = vadd.f32 %v418, %v1668
    %v1670 = vpop.f32.mrf.mxu0
    %v1671 = vadd.f32 %v414, %v1670
    %v1672 = vpop.f32.mrf.mxu0
    %v1673 = vadd.f32 %v418, %v1672
    %1674 = vdwg.mxu0
    %1675 = vmatprep.subr.bf16.mxu0 %v1312
    %1676 = vmatpush1.bf16.msra.mxu0 %v1311
    %1677 = vmatprep.subr.bf16.mxu0 %v1309
    %1678 = vmatpush1.bf16.msra.mxu0 %v1308
    %1679 = vmatprep.subr.bf16.mxu0 %v1306
    %1680 = vmatpush1.bf16.msra.mxu0 %v1305
    %1681 = vmatprep.subr.bf16.mxu0 %v1303
    %1682 = vmatpush1.bf16.msra.mxu0 %v1302
    %1683 = vmatprep.subr.bf16.mxu0 %v1300
    %1684 = vmatpush1.bf16.msra.mxu0 %v1299
    %1685 = vmatprep.subr.bf16.mxu0 %v1297
    %1686 = vmatpush1.bf16.msra.mxu0 %v1296
    %1687 = vmatprep.subr.bf16.mxu0 %v1294
    %1688 = vmatpush1.bf16.msra.mxu0 %v1293
    %1689 = vmatprep.subr.bf16.mxu0 %v1291
    %1690 = vmatpush1.bf16.msra.mxu0 %v1290
    %1691 = vmatprep.subr.bf16.mxu0 %v1336
    %1692 = vmatpush2.bf16.msra.mxu0 %v1335
    %1693 = vmatprep.subr.bf16.mxu0 %v1333
    %1694 = vmatpush2.bf16.msra.mxu0 %v1332
    %1695 = vmatprep.subr.bf16.mxu0 %v1330
    %1696 = vmatpush2.bf16.msra.mxu0 %v1329
    %1697 = vmatprep.subr.bf16.mxu0 %v1327
    %1698 = vmatpush2.bf16.msra.mxu0 %v1326
    %1699 = vmatprep.subr.bf16.mxu0 %v1324
    %1700 = vmatpush2.bf16.msra.mxu0 %v1323
    %1701 = vmatprep.subr.bf16.mxu0 %v1321
    %1702 = vmatpush2.bf16.msra.mxu0 %v1320
    %1703 = vmatprep.subr.bf16.mxu0 %v1318
    %1704 = vmatpush2.bf16.msra.mxu0 %v1317
    %1705 = vmatprep.subr.bf16.mxu0 %v1315
    %1706 = vmatpush2.bf16.msra.mxu0 %v1314
    %1707 = vmatprep.mubr.bf16.mxu0 %v685
    %1708 = vmatmul.mubr.bf16.gmra.mxu0 %v684
    %v1709 = vpop.f32.mrf.mxu0
    %v1710 = vadd.f32 %v1517, %v1709
    %v1711 = vpop.f32.mrf.mxu0
    %v1712 = vadd.f32 %v1519, %v1711
    %v1713 = vpop.f32.mrf.mxu0
    %v1714 = vadd.f32 %v1521, %v1713
    %v1715 = vpop.f32.mrf.mxu0
    %v1716 = vadd.f32 %v1523, %v1715
    %1717 = vmatprep.mubr.bf16.mxu0 %v690
    %1718 = vmatmul.mubr.bf16.gmra.mxu0 %v689
    %v1719 = vpop.f32.mrf.mxu0
    %v1720 = vadd.f32 %v1527, %v1719
    %v1721 = vpop.f32.mrf.mxu0
    %v1722 = vadd.f32 %v1529, %v1721
    %v1723 = vpop.f32.mrf.mxu0
    %v1724 = vadd.f32 %v1531, %v1723
    %v1725 = vpop.f32.mrf.mxu0
    %v1726 = vadd.f32 %v1533, %v1725
    %1727 = vmatprep.mubr.bf16.mxu0 %v695
    %1728 = vmatmul.mubr.bf16.gmra.mxu0 %v694
    %v1729 = vpop.f32.mrf.mxu0
    %v1730 = vadd.f32 %v1537, %v1729
    %v1731 = vpop.f32.mrf.mxu0
    %v1732 = vadd.f32 %v1539, %v1731
    %v1733 = vpop.f32.mrf.mxu0
    %v1734 = vadd.f32 %v1541, %v1733
    %v1735 = vpop.f32.mrf.mxu0
    %v1736 = vadd.f32 %v1543, %v1735
    %1737 = vmatprep.mubr.bf16.mxu0 %v700
    %1738 = vmatmul.mubr.bf16.gmra.mxu0 %v699
    %v1739 = vpop.f32.mrf.mxu0
    %v1740 = vadd.f32 %v1547, %v1739
    %v1741 = vpop.f32.mrf.mxu0
    %v1742 = vadd.f32 %v1549, %v1741
    %v1743 = vpop.f32.mrf.mxu0
    %v1744 = vadd.f32 %v1551, %v1743
    %v1745 = vpop.f32.mrf.mxu0
    %v1746 = vadd.f32 %v1553, %v1745
    %1747 = vmatprep.mubr.bf16.mxu0 %v705
    %1748 = vmatmul.mubr.bf16.gmra.mxu0 %v704
    %v1749 = vpop.f32.mrf.mxu0
    %v1750 = vadd.f32 %v1557, %v1749
    %v1751 = vpop.f32.mrf.mxu0
    %v1752 = vadd.f32 %v1559, %v1751
    %v1753 = vpop.f32.mrf.mxu0
    %v1754 = vadd.f32 %v1561, %v1753
    %v1755 = vpop.f32.mrf.mxu0
    %v1756 = vadd.f32 %v1563, %v1755
    %1757 = vmatprep.mubr.bf16.mxu0 %v710
    %1758 = vmatmul.mubr.bf16.gmra.mxu0 %v709
    %v1759 = vpop.f32.mrf.mxu0
    %v1760 = vadd.f32 %v1567, %v1759
    %v1761 = vpop.f32.mrf.mxu0
    %v1762 = vadd.f32 %v1569, %v1761
    %v1763 = vpop.f32.mrf.mxu0
    %v1764 = vadd.f32 %v1571, %v1763
    %v1765 = vpop.f32.mrf.mxu0
    %v1766 = vadd.f32 %v1573, %v1765
    %1767 = vmatprep.mubr.bf16.mxu0 %v715
    %1768 = vmatmul.mubr.bf16.gmra.mxu0 %v714
    %v1769 = vpop.f32.mrf.mxu0
    %v1770 = vadd.f32 %v1577, %v1769
    %v1771 = vpop.f32.mrf.mxu0
    %v1772 = vadd.f32 %v1579, %v1771
    %v1773 = vpop.f32.mrf.mxu0
    %v1774 = vadd.f32 %v1581, %v1773
    %v1775 = vpop.f32.mrf.mxu0
    %v1776 = vadd.f32 %v1583, %v1775
    %1777 = vmatprep.mubr.bf16.mxu0 %v720
    %1778 = vmatmul.mubr.bf16.gmra.mxu0 %v719
    %v1779 = vpop.f32.mrf.mxu0
    %v1780 = vadd.f32 %v1587, %v1779
    %v1781 = vpop.f32.mrf.mxu0
    %v1782 = vadd.f32 %v1589, %v1781
    %v1783 = vpop.f32.mrf.mxu0
    %v1784 = vadd.f32 %v1591, %v1783
    %v1785 = vpop.f32.mrf.mxu0
    %v1786 = vadd.f32 %v1593, %v1785
    %1787 = vmatprep.mubr.bf16.mxu0 %v725
    %1788 = vmatmul.mubr.bf16.gmra.mxu0 %v724
    %v1789 = vpop.f32.mrf.mxu0
    %v1790 = vadd.f32 %v1597, %v1789
    %v1791 = vpop.f32.mrf.mxu0
    %v1792 = vadd.f32 %v1599, %v1791
    %v1793 = vpop.f32.mrf.mxu0
    %v1794 = vadd.f32 %v1601, %v1793
    %v1795 = vpop.f32.mrf.mxu0
    %v1796 = vadd.f32 %v1603, %v1795
    %1797 = vmatprep.mubr.bf16.mxu0 %v730
    %1798 = vmatmul.mubr.bf16.gmra.mxu0 %v729
    %v1799 = vpop.f32.mrf.mxu0
    %v1800 = vadd.f32 %v1607, %v1799
    %v1801 = vpop.f32.mrf.mxu0
    %v1802 = vadd.f32 %v1609, %v1801
    %v1803 = vpop.f32.mrf.mxu0
    %v1804 = vadd.f32 %v1611, %v1803
    %v1805 = vpop.f32.mrf.mxu0
    %v1806 = vadd.f32 %v1613, %v1805
    %1807 = vmatprep.mubr.bf16.mxu0 %v735
    %1808 = vmatmul.mubr.bf16.gmra.mxu0 %v734
    %v1809 = vpop.f32.mrf.mxu0
    %v1810 = vadd.f32 %v1617, %v1809
    %v1811 = vpop.f32.mrf.mxu0
    %v1812 = vadd.f32 %v1619, %v1811
    %v1813 = vpop.f32.mrf.mxu0
    %v1814 = vadd.f32 %v1621, %v1813
    %v1815 = vpop.f32.mrf.mxu0
    %v1816 = vadd.f32 %v1623, %v1815
    %1817 = vmatprep.mubr.bf16.mxu0 %v740
    %1818 = vmatmul.mubr.bf16.gmra.mxu0 %v739
    %v1819 = vpop.f32.mrf.mxu0
    %v1820 = vadd.f32 %v1627, %v1819
    %v1821 = vpop.f32.mrf.mxu0
    %v1822 = vadd.f32 %v1629, %v1821
    %v1823 = vpop.f32.mrf.mxu0
    %v1824 = vadd.f32 %v1631, %v1823
    %v1825 = vpop.f32.mrf.mxu0
    %v1826 = vadd.f32 %v1633, %v1825
    %1827 = vmatprep.mubr.bf16.mxu0 %v745
    %1828 = vmatmul.mubr.bf16.gmra.mxu0 %v744
    %v1829 = vpop.f32.mrf.mxu0
    %v1830 = vadd.f32 %v1637, %v1829
    %v1831 = vpop.f32.mrf.mxu0
    %v1832 = vadd.f32 %v1639, %v1831
    %v1833 = vpop.f32.mrf.mxu0
    %v1834 = vadd.f32 %v1641, %v1833
    %v1835 = vpop.f32.mrf.mxu0
    %v1836 = vadd.f32 %v1643, %v1835
    %1837 = vmatprep.mubr.bf16.mxu0 %v750
    %1838 = vmatmul.mubr.bf16.gmra.mxu0 %v749
    %v1839 = vpop.f32.mrf.mxu0
    %v1840 = vadd.f32 %v1647, %v1839
    %v1841 = vpop.f32.mrf.mxu0
    %v1842 = vadd.f32 %v1649, %v1841
    %v1843 = vpop.f32.mrf.mxu0
    %v1844 = vadd.f32 %v1651, %v1843
    %v1845 = vpop.f32.mrf.mxu0
    %v1846 = vadd.f32 %v1653, %v1845
    %1847 = vmatprep.mubr.bf16.mxu0 %v755
    %1848 = vmatmul.mubr.bf16.gmra.mxu0 %v754
    %v1849 = vpop.f32.mrf.mxu0
    %v1850 = vadd.f32 %v1657, %v1849
    %v1851 = vpop.f32.mrf.mxu0
    %v1852 = vadd.f32 %v1659, %v1851
    %v1853 = vpop.f32.mrf.mxu0
    %v1854 = vadd.f32 %v1661, %v1853
    %v1855 = vpop.f32.mrf.mxu0
    %v1856 = vadd.f32 %v1663, %v1855
    %1857 = vmatprep.mubr.bf16.mxu0 %v760
    %1858 = vmatmul.mubr.bf16.gmra.mxu0 %v759
    %v1859 = vpop.f32.mrf.mxu0
    %v1860 = vadd.f32 %v1667, %v1859
    %v1861 = vpop.f32.mrf.mxu0
    %v1862 = vadd.f32 %v1669, %v1861
    %v1863 = vpop.f32.mrf.mxu0
    %v1864 = vadd.f32 %v1671, %v1863
    %v1865 = vpop.f32.mrf.mxu0
    %v1866 = vadd.f32 %v1673, %v1865
    %1867 = vdwg.mxu0
    %1868 = vmatprep.subr.bf16.mxu0 %v1360
    %1869 = vmatpush1.bf16.msra.mxu0 %v1359
    %1870 = vmatprep.subr.bf16.mxu0 %v1357
    %1871 = vmatpush1.bf16.msra.mxu0 %v1356
    %1872 = vmatprep.subr.bf16.mxu0 %v1354
    %1873 = vmatpush1.bf16.msra.mxu0 %v1353
    %1874 = vmatprep.subr.bf16.mxu0 %v1351
    %1875 = vmatpush1.bf16.msra.mxu0 %v1350
    %1876 = vmatprep.subr.bf16.mxu0 %v1348
    %1877 = vmatpush1.bf16.msra.mxu0 %v1347
    %1878 = vmatprep.subr.bf16.mxu0 %v1345
    %1879 = vmatpush1.bf16.msra.mxu0 %v1344
    %1880 = vmatprep.subr.bf16.mxu0 %v1342
    %1881 = vmatpush1.bf16.msra.mxu0 %v1341
    %1882 = vmatprep.subr.bf16.mxu0 %v1339
    %1883 = vmatpush1.bf16.msra.mxu0 %v1338
    %1884 = vmatprep.subr.bf16.mxu0 0
    %1885 = vmatpush2.bf16.msra.mxu0 0
    %1886 = vmatprep.subr.bf16.mxu0 0
    %1887 = vmatpush2.bf16.msra.mxu0 0
    %1888 = vmatprep.subr.bf16.mxu0 0
    %1889 = vmatpush2.bf16.msra.mxu0 0
    %1890 = vmatprep.subr.bf16.mxu0 0
    %1891 = vmatpush2.bf16.msra.mxu0 0
    %1892 = vmatprep.subr.bf16.mxu0 0
    %1893 = vmatpush2.bf16.msra.mxu0 0
    %1894 = vmatprep.subr.bf16.mxu0 0
    %1895 = vmatpush2.bf16.msra.mxu0 0
    %1896 = vmatprep.subr.bf16.mxu0 0
    %1897 = vmatpush2.bf16.msra.mxu0 0
    %1898 = vmatprep.subr.bf16.mxu0 0
    %1899 = vmatpush2.bf16.msra.mxu0 0
    %1900 = vmatprep.mubr.bf16.mxu0 0
    %1901 = vmatmul.mubr.bf16.gmra.mxu0 %v686
    %v1902 = vpop.f32.mrf.mxu0
    %v1903 = vadd.f32 %v1710, %v1902
    %v1904 = vpop.f32.mrf.mxu0
    %v1905 = vadd.f32 %v1712, %v1904
    %v1906 = vpop.f32.mrf.mxu0
    %v1907 = vadd.f32 %v1714, %v1906
    %v1908 = vpop.f32.mrf.mxu0
    %v1909 = vadd.f32 %v1716, %v1908
    %1910 = vmatprep.mubr.bf16.mxu0 0
    %1911 = vmatmul.mubr.bf16.gmra.mxu0 %v691
    %v1912 = vpop.f32.mrf.mxu0
    %v1913 = vadd.f32 %v1720, %v1912
    %v1914 = vpop.f32.mrf.mxu0
    %v1915 = vadd.f32 %v1722, %v1914
    %v1916 = vpop.f32.mrf.mxu0
    %v1917 = vadd.f32 %v1724, %v1916
    %v1918 = vpop.f32.mrf.mxu0
    %v1919 = vadd.f32 %v1726, %v1918
    %1920 = vmatprep.mubr.bf16.mxu0 0
    %1921 = vmatmul.mubr.bf16.gmra.mxu0 %v696
    %v1922 = vpop.f32.mrf.mxu0
    %v1923 = vadd.f32 %v1730, %v1922
    %v1924 = vpop.f32.mrf.mxu0
    %v1925 = vadd.f32 %v1732, %v1924
    %v1926 = vpop.f32.mrf.mxu0
    %v1927 = vadd.f32 %v1734, %v1926
    %v1928 = vpop.f32.mrf.mxu0
    %v1929 = vadd.f32 %v1736, %v1928
    %1930 = vmatprep.mubr.bf16.mxu0 0
    %1931 = vmatmul.mubr.bf16.gmra.mxu0 %v701
    %v1932 = vpop.f32.mrf.mxu0
    %v1933 = vadd.f32 %v1740, %v1932
    %v1934 = vpop.f32.mrf.mxu0
    %v1935 = vadd.f32 %v1742, %v1934
    %v1936 = vpop.f32.mrf.mxu0
    %v1937 = vadd.f32 %v1744, %v1936
    %v1938 = vpop.f32.mrf.mxu0
    %v1939 = vadd.f32 %v1746, %v1938
    %1940 = vmatprep.mubr.bf16.mxu0 0
    %1941 = vmatmul.mubr.bf16.gmra.mxu0 %v706
    %v1942 = vpop.f32.mrf.mxu0
    %v1943 = vadd.f32 %v1750, %v1942
    %v1944 = vpop.f32.mrf.mxu0
    %v1945 = vadd.f32 %v1752, %v1944
    %v1946 = vpop.f32.mrf.mxu0
    %v1947 = vadd.f32 %v1754, %v1946
    %v1948 = vpop.f32.mrf.mxu0
    %v1949 = vadd.f32 %v1756, %v1948
    %1950 = vmatprep.mubr.bf16.mxu0 0
    %1951 = vmatmul.mubr.bf16.gmra.mxu0 %v711
    %v1952 = vpop.f32.mrf.mxu0
    %v1953 = vadd.f32 %v1760, %v1952
    %v1954 = vpop.f32.mrf.mxu0
    %v1955 = vadd.f32 %v1762, %v1954
    %v1956 = vpop.f32.mrf.mxu0
    %v1957 = vadd.f32 %v1764, %v1956
    %v1958 = vpop.f32.mrf.mxu0
    %v1959 = vadd.f32 %v1766, %v1958
    %1960 = vmatprep.mubr.bf16.mxu0 0
    %1961 = vmatmul.mubr.bf16.gmra.mxu0 %v716
    %v1962 = vpop.f32.mrf.mxu0
    %v1963 = vadd.f32 %v1770, %v1962
    %v1964 = vpop.f32.mrf.mxu0
    %v1965 = vadd.f32 %v1772, %v1964
    %v1966 = vpop.f32.mrf.mxu0
    %v1967 = vadd.f32 %v1774, %v1966
    %v1968 = vpop.f32.mrf.mxu0
    %v1969 = vadd.f32 %v1776, %v1968
    %1970 = vmatprep.mubr.bf16.mxu0 0
    %1971 = vmatmul.mubr.bf16.gmra.mxu0 %v721
    %v1972 = vpop.f32.mrf.mxu0
    %v1973 = vadd.f32 %v1780, %v1972
    %v1974 = vpop.f32.mrf.mxu0
    %v1975 = vadd.f32 %v1782, %v1974
    %v1976 = vpop.f32.mrf.mxu0
    %v1977 = vadd.f32 %v1784, %v1976
    %v1978 = vpop.f32.mrf.mxu0
    %v1979 = vadd.f32 %v1786, %v1978
    %1980 = vmatprep.mubr.bf16.mxu0 0
    %1981 = vmatmul.mubr.bf16.gmra.mxu0 %v726
    %v1982 = vpop.f32.mrf.mxu0
    %v1983 = vadd.f32 %v1790, %v1982
    %v1984 = vpop.f32.mrf.mxu0
    %v1985 = vadd.f32 %v1792, %v1984
    %v1986 = vpop.f32.mrf.mxu0
    %v1987 = vadd.f32 %v1794, %v1986
    %v1988 = vpop.f32.mrf.mxu0
    %v1989 = vadd.f32 %v1796, %v1988
    %1990 = vmatprep.mubr.bf16.mxu0 0
    %1991 = vmatmul.mubr.bf16.gmra.mxu0 %v731
    %v1992 = vpop.f32.mrf.mxu0
    %v1993 = vadd.f32 %v1800, %v1992
    %v1994 = vpop.f32.mrf.mxu0
    %v1995 = vadd.f32 %v1802, %v1994
    %v1996 = vpop.f32.mrf.mxu0
    %v1997 = vadd.f32 %v1804, %v1996
    %v1998 = vpop.f32.mrf.mxu0
    %v1999 = vadd.f32 %v1806, %v1998
    %2000 = vmatprep.mubr.bf16.mxu0 0
    %2001 = vmatmul.mubr.bf16.gmra.mxu0 %v736
    %v2002 = vpop.f32.mrf.mxu0
    %v2003 = vadd.f32 %v1810, %v2002
    %v2004 = vpop.f32.mrf.mxu0
    %v2005 = vadd.f32 %v1812, %v2004
    %v2006 = vpop.f32.mrf.mxu0
    %v2007 = vadd.f32 %v1814, %v2006
    %v2008 = vpop.f32.mrf.mxu0
    %v2009 = vadd.f32 %v1816, %v2008
    %2010 = vmatprep.mubr.bf16.mxu0 0
    %2011 = vmatmul.mubr.bf16.gmra.mxu0 %v741
    %v2012 = vpop.f32.mrf.mxu0
    %v2013 = vadd.f32 %v1820, %v2012
    %v2014 = vpop.f32.mrf.mxu0
    %v2015 = vadd.f32 %v1822, %v2014
    %v2016 = vpop.f32.mrf.mxu0
    %v2017 = vadd.f32 %v1824, %v2016
    %v2018 = vpop.f32.mrf.mxu0
    %v2019 = vadd.f32 %v1826, %v2018
    %2020 = vmatprep.mubr.bf16.mxu0 0
    %2021 = vmatmul.mubr.bf16.gmra.mxu0 %v746
    %v2022 = vpop.f32.mrf.mxu0
    %v2023 = vadd.f32 %v1830, %v2022
    %v2024 = vpop.f32.mrf.mxu0
    %v2025 = vadd.f32 %v1832, %v2024
    %v2026 = vpop.f32.mrf.mxu0
    %v2027 = vadd.f32 %v1834, %v2026
    %v2028 = vpop.f32.mrf.mxu0
    %v2029 = vadd.f32 %v1836, %v2028
    %2030 = vmatprep.mubr.bf16.mxu0 0
    %2031 = vmatmul.mubr.bf16.gmra.mxu0 %v751
    %v2032 = vpop.f32.mrf.mxu0
    %v2033 = vadd.f32 %v1840, %v2032
    %v2034 = vpop.f32.mrf.mxu0
    %v2035 = vadd.f32 %v1842, %v2034
    %v2036 = vpop.f32.mrf.mxu0
    %v2037 = vadd.f32 %v1844, %v2036
    %v2038 = vpop.f32.mrf.mxu0
    %v2039 = vadd.f32 %v1846, %v2038
    %2040 = vmatprep.mubr.bf16.mxu0 0
    %2041 = vmatmul.mubr.bf16.gmra.mxu0 %v756
    %v2042 = vpop.f32.mrf.mxu0
    %v2043 = vadd.f32 %v1850, %v2042
    %v2044 = vpop.f32.mrf.mxu0
    %v2045 = vadd.f32 %v1852, %v2044
    %v2046 = vpop.f32.mrf.mxu0
    %v2047 = vadd.f32 %v1854, %v2046
    %v2048 = vpop.f32.mrf.mxu0
    %v2049 = vadd.f32 %v1856, %v2048
    %2050 = vmatprep.mubr.bf16.mxu0 0
    %2051 = vmatmul.mubr.bf16.gmra.mxu0 %v761
    %v2052 = vpop.f32.mrf.mxu0
    %v2053 = vadd.f32 %v1860, %v2052
    %v2054 = vpop.f32.mrf.mxu0
    %v2055 = vadd.f32 %v1862, %v2054
    %v2056 = vpop.f32.mrf.mxu0
    %v2057 = vadd.f32 %v1864, %v2056
    %v2058 = vpop.f32.mrf.mxu0
    %v2059 = vadd.f32 %v1866, %v2058
    %2060 = vdwg.mxu0
    %2061 = vmatprep.subr.bf16.mxu0 0
    %2062 = vmatpush1.bf16.msra.mxu0 %v1265
    %2063 = vmatprep.subr.bf16.mxu0 0
    %2064 = vmatpush1.bf16.msra.mxu0 %v1262
    %2065 = vmatprep.subr.bf16.mxu0 0
    %2066 = vmatpush1.bf16.msra.mxu0 %v1259
    %2067 = vmatprep.subr.bf16.mxu0 0
    %2068 = vmatpush1.bf16.msra.mxu0 %v1256
    %2069 = vmatprep.subr.bf16.mxu0 0
    %2070 = vmatpush1.bf16.msra.mxu0 %v1253
    %2071 = vmatprep.subr.bf16.mxu0 0
    %2072 = vmatpush1.bf16.msra.mxu0 %v1250
    %2073 = vmatprep.subr.bf16.mxu0 0
    %2074 = vmatpush1.bf16.msra.mxu0 %v1247
    %2075 = vmatprep.subr.bf16.mxu0 0
    %2076 = vmatpush1.bf16.msra.mxu0 %v1244
    %2077 = vmatprep.subr.bf16.mxu0 0
    %2078 = vmatpush2.bf16.msra.mxu0 %v1289
    %2079 = vmatprep.subr.bf16.mxu0 0
    %2080 = vmatpush2.bf16.msra.mxu0 %v1286
    %2081 = vmatprep.subr.bf16.mxu0 0
    %2082 = vmatpush2.bf16.msra.mxu0 %v1283
    %2083 = vmatprep.subr.bf16.mxu0 0
    %2084 = vmatpush2.bf16.msra.mxu0 %v1280
    %2085 = vmatprep.subr.bf16.mxu0 0
    %2086 = vmatpush2.bf16.msra.mxu0 %v1277
    %2087 = vmatprep.subr.bf16.mxu0 0
    %2088 = vmatpush2.bf16.msra.mxu0 %v1274
    %2089 = vmatprep.subr.bf16.mxu0 0
    %2090 = vmatpush2.bf16.msra.mxu0 %v1271
    %2091 = vmatprep.subr.bf16.mxu0 0
    %2092 = vmatpush2.bf16.msra.mxu0 %v1268
    %2093 = vmatprep.mubr.bf16.mxu0 %v683
    %2094 = vmatmul.mubr.bf16.gmra.mxu0 %v682
    %v2095 = vpop.f32.mrf.mxu0
    %v2096 = vadd.f32 %v422, %v2095
    %v2097 = vpop.f32.mrf.mxu0
    %v2098 = vpop.f32.mrf.mxu0
    %v2099 = vadd.f32 %v422, %v2098
    %v2100 = vpop.f32.mrf.mxu0
    %2101 = vmatprep.mubr.bf16.mxu0 %v688
    %2102 = vmatmul.mubr.bf16.gmra.mxu0 %v687
    %v2103 = vpop.f32.mrf.mxu0
    %v2104 = vadd.f32 %v422, %v2103
    %v2105 = vpop.f32.mrf.mxu0
    %v2106 = vpop.f32.mrf.mxu0
    %v2107 = vadd.f32 %v422, %v2106
    %v2108 = vpop.f32.mrf.mxu0
    %2109 = vmatprep.mubr.bf16.mxu0 %v693
    %2110 = vmatmul.mubr.bf16.gmra.mxu0 %v692
    %v2111 = vpop.f32.mrf.mxu0
    %v2112 = vadd.f32 %v422, %v2111
    %v2113 = vpop.f32.mrf.mxu0
    %v2114 = vpop.f32.mrf.mxu0
    %v2115 = vadd.f32 %v422, %v2114
    %v2116 = vpop.f32.mrf.mxu0
    %2117 = vmatprep.mubr.bf16.mxu0 %v698
    %2118 = vmatmul.mubr.bf16.gmra.mxu0 %v697
    %v2119 = vpop.f32.mrf.mxu0
    %v2120 = vadd.f32 %v422, %v2119
    %v2121 = vpop.f32.mrf.mxu0
    %v2122 = vpop.f32.mrf.mxu0
    %v2123 = vadd.f32 %v422, %v2122
    %v2124 = vpop.f32.mrf.mxu0
    %2125 = vmatprep.mubr.bf16.mxu0 %v703
    %2126 = vmatmul.mubr.bf16.gmra.mxu0 %v702
    %v2127 = vpop.f32.mrf.mxu0
    %v2128 = vadd.f32 %v422, %v2127
    %v2129 = vpop.f32.mrf.mxu0
    %v2130 = vpop.f32.mrf.mxu0
    %v2131 = vadd.f32 %v422, %v2130
    %v2132 = vpop.f32.mrf.mxu0
    %2133 = vmatprep.mubr.bf16.mxu0 %v708
    %2134 = vmatmul.mubr.bf16.gmra.mxu0 %v707
    %v2135 = vpop.f32.mrf.mxu0
    %v2136 = vadd.f32 %v422, %v2135
    %v2137 = vpop.f32.mrf.mxu0
    %v2138 = vpop.f32.mrf.mxu0
    %v2139 = vadd.f32 %v422, %v2138
    %v2140 = vpop.f32.mrf.mxu0
    %2141 = vmatprep.mubr.bf16.mxu0 %v713
    %2142 = vmatmul.mubr.bf16.gmra.mxu0 %v712
    %v2143 = vpop.f32.mrf.mxu0
    %v2144 = vadd.f32 %v422, %v2143
    %v2145 = vpop.f32.mrf.mxu0
    %v2146 = vpop.f32.mrf.mxu0
    %v2147 = vadd.f32 %v422, %v2146
    %v2148 = vpop.f32.mrf.mxu0
    %2149 = vmatprep.mubr.bf16.mxu0 %v718
    %2150 = vmatmul.mubr.bf16.gmra.mxu0 %v717
    %v2151 = vpop.f32.mrf.mxu0
    %v2152 = vadd.f32 %v422, %v2151
    %v2153 = vpop.f32.mrf.mxu0
    %v2154 = vpop.f32.mrf.mxu0
    %v2155 = vadd.f32 %v422, %v2154
    %v2156 = vpop.f32.mrf.mxu0
    %2157 = vmatprep.mubr.bf16.mxu0 %v723
    %2158 = vmatmul.mubr.bf16.gmra.mxu0 %v722
    %v2159 = vpop.f32.mrf.mxu0
    %v2160 = vadd.f32 %v422, %v2159
    %v2161 = vpop.f32.mrf.mxu0
    %v2162 = vpop.f32.mrf.mxu0
    %v2163 = vadd.f32 %v422, %v2162
    %v2164 = vpop.f32.mrf.mxu0
    %2165 = vmatprep.mubr.bf16.mxu0 %v728
    %2166 = vmatmul.mubr.bf16.gmra.mxu0 %v727
    %v2167 = vpop.f32.mrf.mxu0
    %v2168 = vadd.f32 %v422, %v2167
    %v2169 = vpop.f32.mrf.mxu0
    %v2170 = vpop.f32.mrf.mxu0
    %v2171 = vadd.f32 %v422, %v2170
    %v2172 = vpop.f32.mrf.mxu0
    %2173 = vmatprep.mubr.bf16.mxu0 %v733
    %2174 = vmatmul.mubr.bf16.gmra.mxu0 %v732
    %v2175 = vpop.f32.mrf.mxu0
    %v2176 = vadd.f32 %v422, %v2175
    %v2177 = vpop.f32.mrf.mxu0
    %v2178 = vpop.f32.mrf.mxu0
    %v2179 = vadd.f32 %v422, %v2178
    %v2180 = vpop.f32.mrf.mxu0
    %2181 = vmatprep.mubr.bf16.mxu0 %v738
    %2182 = vmatmul.mubr.bf16.gmra.mxu0 %v737
    %v2183 = vpop.f32.mrf.mxu0
    %v2184 = vadd.f32 %v422, %v2183
    %v2185 = vpop.f32.mrf.mxu0
    %v2186 = vpop.f32.mrf.mxu0
    %v2187 = vadd.f32 %v422, %v2186
    %v2188 = vpop.f32.mrf.mxu0
    %2189 = vmatprep.mubr.bf16.mxu0 %v743
    %2190 = vmatmul.mubr.bf16.gmra.mxu0 %v742
    %v2191 = vpop.f32.mrf.mxu0
    %v2192 = vadd.f32 %v422, %v2191
    %v2193 = vpop.f32.mrf.mxu0
    %v2194 = vpop.f32.mrf.mxu0
    %v2195 = vadd.f32 %v422, %v2194
    %v2196 = vpop.f32.mrf.mxu0
    %2197 = vmatprep.mubr.bf16.mxu0 %v748
    %2198 = vmatmul.mubr.bf16.gmra.mxu0 %v747
    %v2199 = vpop.f32.mrf.mxu0
    %v2200 = vadd.f32 %v422, %v2199
    %v2201 = vpop.f32.mrf.mxu0
    %v2202 = vpop.f32.mrf.mxu0
    %v2203 = vadd.f32 %v422, %v2202
    %v2204 = vpop.f32.mrf.mxu0
    %2205 = vmatprep.mubr.bf16.mxu0 %v753
    %2206 = vmatmul.mubr.bf16.gmra.mxu0 %v752
    %v2207 = vpop.f32.mrf.mxu0
    %v2208 = vadd.f32 %v422, %v2207
    %v2209 = vpop.f32.mrf.mxu0
    %v2210 = vpop.f32.mrf.mxu0
    %v2211 = vadd.f32 %v422, %v2210
    %v2212 = vpop.f32.mrf.mxu0
    %2213 = vmatprep.mubr.bf16.mxu0 %v758
    %2214 = vmatmul.mubr.bf16.gmra.mxu0 %v757
    %v2215 = vpop.f32.mrf.mxu0
    %v2216 = vadd.f32 %v422, %v2215
    %v2217 = vpop.f32.mrf.mxu0
    %v2218 = vpop.f32.mrf.mxu0
    %v2219 = vadd.f32 %v422, %v2218
    %v2220 = vpop.f32.mrf.mxu0
    %2221 = vdwg.mxu0
    %2222 = vmatprep.subr.bf16.mxu0 0
    %2223 = vmatpush1.bf16.msra.mxu0 %v1313
    %2224 = vmatprep.subr.bf16.mxu0 0
    %2225 = vmatpush1.bf16.msra.mxu0 %v1310
    %2226 = vmatprep.subr.bf16.mxu0 0
    %2227 = vmatpush1.bf16.msra.mxu0 %v1307
    %2228 = vmatprep.subr.bf16.mxu0 0
    %2229 = vmatpush1.bf16.msra.mxu0 %v1304
    %2230 = vmatprep.subr.bf16.mxu0 0
    %2231 = vmatpush1.bf16.msra.mxu0 %v1301
    %2232 = vmatprep.subr.bf16.mxu0 0
    %2233 = vmatpush1.bf16.msra.mxu0 %v1298
    %2234 = vmatprep.subr.bf16.mxu0 0
    %2235 = vmatpush1.bf16.msra.mxu0 %v1295
    %2236 = vmatprep.subr.bf16.mxu0 0
    %2237 = vmatpush1.bf16.msra.mxu0 %v1292
    %2238 = vmatprep.subr.bf16.mxu0 0
    %2239 = vmatpush2.bf16.msra.mxu0 %v1337
    %2240 = vmatprep.subr.bf16.mxu0 0
    %2241 = vmatpush2.bf16.msra.mxu0 %v1334
    %2242 = vmatprep.subr.bf16.mxu0 0
    %2243 = vmatpush2.bf16.msra.mxu0 %v1331
    %2244 = vmatprep.subr.bf16.mxu0 0
    %2245 = vmatpush2.bf16.msra.mxu0 %v1328
    %2246 = vmatprep.subr.bf16.mxu0 0
    %2247 = vmatpush2.bf16.msra.mxu0 %v1325
    %2248 = vmatprep.subr.bf16.mxu0 0
    %2249 = vmatpush2.bf16.msra.mxu0 %v1322
    %2250 = vmatprep.subr.bf16.mxu0 0
    %2251 = vmatpush2.bf16.msra.mxu0 %v1319
    %2252 = vmatprep.subr.bf16.mxu0 0
    %2253 = vmatpush2.bf16.msra.mxu0 %v1316
    %2254 = vmatprep.mubr.bf16.mxu0 %v685
    %2255 = vmatmul.mubr.bf16.gmra.mxu0 %v684
    %v2256 = vpop.f32.mrf.mxu0
    %v2257 = vadd.f32 %v2096, %v2256
    %v2258 = vpop.f32.mrf.mxu0
    %v2259 = vpop.f32.mrf.mxu0
    %v2260 = vadd.f32 %v2099, %v2259
    %v2261 = vpop.f32.mrf.mxu0
    %2262 = vmatprep.mubr.bf16.mxu0 %v690
    %2263 = vmatmul.mubr.bf16.gmra.mxu0 %v689
    %v2264 = vpop.f32.mrf.mxu0
    %v2265 = vadd.f32 %v2104, %v2264
    %v2266 = vpop.f32.mrf.mxu0
    %v2267 = vpop.f32.mrf.mxu0
    %v2268 = vadd.f32 %v2107, %v2267
    %v2269 = vpop.f32.mrf.mxu0
    %2270 = vmatprep.mubr.bf16.mxu0 %v695
    %2271 = vmatmul.mubr.bf16.gmra.mxu0 %v694
    %v2272 = vpop.f32.mrf.mxu0
    %v2273 = vadd.f32 %v2112, %v2272
    %v2274 = vpop.f32.mrf.mxu0
    %v2275 = vpop.f32.mrf.mxu0
    %v2276 = vadd.f32 %v2115, %v2275
    %v2277 = vpop.f32.mrf.mxu0
    %2278 = vmatprep.mubr.bf16.mxu0 %v700
    %2279 = vmatmul.mubr.bf16.gmra.mxu0 %v699
    %v2280 = vpop.f32.mrf.mxu0
    %v2281 = vadd.f32 %v2120, %v2280
    %v2282 = vpop.f32.mrf.mxu0
    %v2283 = vpop.f32.mrf.mxu0
    %v2284 = vadd.f32 %v2123, %v2283
    %v2285 = vpop.f32.mrf.mxu0
    %2286 = vmatprep.mubr.bf16.mxu0 %v705
    %2287 = vmatmul.mubr.bf16.gmra.mxu0 %v704
    %v2288 = vpop.f32.mrf.mxu0
    %v2289 = vadd.f32 %v2128, %v2288
    %v2290 = vpop.f32.mrf.mxu0
    %v2291 = vpop.f32.mrf.mxu0
    %v2292 = vadd.f32 %v2131, %v2291
    %v2293 = vpop.f32.mrf.mxu0
    %2294 = vmatprep.mubr.bf16.mxu0 %v710
    %2295 = vmatmul.mubr.bf16.gmra.mxu0 %v709
    %v2296 = vpop.f32.mrf.mxu0
    %v2297 = vadd.f32 %v2136, %v2296
    %v2298 = vpop.f32.mrf.mxu0
    %v2299 = vpop.f32.mrf.mxu0
    %v2300 = vadd.f32 %v2139, %v2299
    %v2301 = vpop.f32.mrf.mxu0
    %2302 = vmatprep.mubr.bf16.mxu0 %v715
    %2303 = vmatmul.mubr.bf16.gmra.mxu0 %v714
    %v2304 = vpop.f32.mrf.mxu0
    %v2305 = vadd.f32 %v2144, %v2304
    %v2306 = vpop.f32.mrf.mxu0
    %v2307 = vpop.f32.mrf.mxu0
    %v2308 = vadd.f32 %v2147, %v2307
    %v2309 = vpop.f32.mrf.mxu0
    %2310 = vmatprep.mubr.bf16.mxu0 %v720
    %2311 = vmatmul.mubr.bf16.gmra.mxu0 %v719
    %v2312 = vpop.f32.mrf.mxu0
    %v2313 = vadd.f32 %v2152, %v2312
    %v2314 = vpop.f32.mrf.mxu0
    %v2315 = vpop.f32.mrf.mxu0
    %v2316 = vadd.f32 %v2155, %v2315
    %v2317 = vpop.f32.mrf.mxu0
    %2318 = vmatprep.mubr.bf16.mxu0 %v725
    %2319 = vmatmul.mubr.bf16.gmra.mxu0 %v724
    %v2320 = vpop.f32.mrf.mxu0
    %v2321 = vadd.f32 %v2160, %v2320
    %v2322 = vpop.f32.mrf.mxu0
    %v2323 = vpop.f32.mrf.mxu0
    %v2324 = vadd.f32 %v2163, %v2323
    %v2325 = vpop.f32.mrf.mxu0
    %2326 = vmatprep.mubr.bf16.mxu0 %v730
    %2327 = vmatmul.mubr.bf16.gmra.mxu0 %v729
    %v2328 = vpop.f32.mrf.mxu0
    %v2329 = vadd.f32 %v2168, %v2328
    %v2330 = vpop.f32.mrf.mxu0
    %v2331 = vpop.f32.mrf.mxu0
    %v2332 = vadd.f32 %v2171, %v2331
    %v2333 = vpop.f32.mrf.mxu0
    %2334 = vmatprep.mubr.bf16.mxu0 %v735
    %2335 = vmatmul.mubr.bf16.gmra.mxu0 %v734
    %v2336 = vpop.f32.mrf.mxu0
    %v2337 = vadd.f32 %v2176, %v2336
    %v2338 = vpop.f32.mrf.mxu0
    %v2339 = vpop.f32.mrf.mxu0
    %v2340 = vadd.f32 %v2179, %v2339
    %v2341 = vpop.f32.mrf.mxu0
    %2342 = vmatprep.mubr.bf16.mxu0 %v740
    %2343 = vmatmul.mubr.bf16.gmra.mxu0 %v739
    %v2344 = vpop.f32.mrf.mxu0
    %v2345 = vadd.f32 %v2184, %v2344
    %v2346 = vpop.f32.mrf.mxu0
    %v2347 = vpop.f32.mrf.mxu0
    %v2348 = vadd.f32 %v2187, %v2347
    %v2349 = vpop.f32.mrf.mxu0
    %2350 = vmatprep.mubr.bf16.mxu0 %v745
    %2351 = vmatmul.mubr.bf16.gmra.mxu0 %v744
    %v2352 = vpop.f32.mrf.mxu0
    %v2353 = vadd.f32 %v2192, %v2352
    %v2354 = vpop.f32.mrf.mxu0
    %v2355 = vpop.f32.mrf.mxu0
    %v2356 = vadd.f32 %v2195, %v2355
    %v2357 = vpop.f32.mrf.mxu0
    %2358 = vmatprep.mubr.bf16.mxu0 %v750
    %2359 = vmatmul.mubr.bf16.gmra.mxu0 %v749
    %v2360 = vpop.f32.mrf.mxu0
    %v2361 = vadd.f32 %v2200, %v2360
    %v2362 = vpop.f32.mrf.mxu0
    %v2363 = vpop.f32.mrf.mxu0
    %v2364 = vadd.f32 %v2203, %v2363
    %v2365 = vpop.f32.mrf.mxu0
    %2366 = vmatprep.mubr.bf16.mxu0 %v755
    %2367 = vmatmul.mubr.bf16.gmra.mxu0 %v754
    %v2368 = vpop.f32.mrf.mxu0
    %v2369 = vadd.f32 %v2208, %v2368
    %v2370 = vpop.f32.mrf.mxu0
    %v2371 = vpop.f32.mrf.mxu0
    %v2372 = vadd.f32 %v2211, %v2371
    %v2373 = vpop.f32.mrf.mxu0
    %2374 = vmatprep.mubr.bf16.mxu0 %v760
    %2375 = vmatmul.mubr.bf16.gmra.mxu0 %v759
    %v2376 = vpop.f32.mrf.mxu0
    %v2377 = vadd.f32 %v2216, %v2376
    %v2378 = vpop.f32.mrf.mxu0
    %v2379 = vpop.f32.mrf.mxu0
    %v2380 = vadd.f32 %v2219, %v2379
    %v2381 = vpop.f32.mrf.mxu0
    %2382 = vdwg.mxu0
    %2383 = vmatprep.subr.bf16.mxu0 0
    %2384 = vmatpush1.bf16.msra.mxu0 %v1361
    %2385 = vmatprep.subr.bf16.mxu0 0
    %2386 = vmatpush1.bf16.msra.mxu0 %v1358
    %2387 = vmatprep.subr.bf16.mxu0 0
    %2388 = vmatpush1.bf16.msra.mxu0 %v1355
    %2389 = vmatprep.subr.bf16.mxu0 0
    %2390 = vmatpush1.bf16.msra.mxu0 %v1352
    %2391 = vmatprep.subr.bf16.mxu0 0
    %2392 = vmatpush1.bf16.msra.mxu0 %v1349
    %2393 = vmatprep.subr.bf16.mxu0 0
    %2394 = vmatpush1.bf16.msra.mxu0 %v1346
    %2395 = vmatprep.subr.bf16.mxu0 0
    %2396 = vmatpush1.bf16.msra.mxu0 %v1343
    %2397 = vmatprep.subr.bf16.mxu0 0
    %2398 = vmatpush1.bf16.msra.mxu0 %v1340
    %2399 = vmatprep.subr.bf16.mxu0 0
    %2400 = vmatpush2.bf16.msra.mxu0 0
    %2401 = vmatprep.subr.bf16.mxu0 0
    %2402 = vmatpush2.bf16.msra.mxu0 0
    %2403 = vmatprep.subr.bf16.mxu0 0
    %2404 = vmatpush2.bf16.msra.mxu0 0
    %2405 = vmatprep.subr.bf16.mxu0 0
    %2406 = vmatpush2.bf16.msra.mxu0 0
    %2407 = vmatprep.subr.bf16.mxu0 0
    %2408 = vmatpush2.bf16.msra.mxu0 0
    %2409 = vmatprep.subr.bf16.mxu0 0
    %2410 = vmatpush2.bf16.msra.mxu0 0
    %2411 = vmatprep.subr.bf16.mxu0 0
    %2412 = vmatpush2.bf16.msra.mxu0 0
    %2413 = vmatprep.subr.bf16.mxu0 0
    %2414 = vmatpush2.bf16.msra.mxu0 0
    %2415 = vmatprep.mubr.bf16.mxu0 0
    %2416 = vmatmul.mubr.bf16.gmra.mxu0 %v686
    %v2417 = vpop.f32.mrf.mxu0
    %v2418 = vadd.f32 %v2257, %v2417
    %v2419 = vpop.f32.mrf.mxu0
    %v2420 = vpop.f32.mrf.mxu0
    %v2421 = vadd.f32 %v2260, %v2420
    %v2422 = vpop.f32.mrf.mxu0
    %2423 = vmatprep.mubr.bf16.mxu0 0
    %2424 = vmatmul.mubr.bf16.gmra.mxu0 %v691
    %v2425 = vpop.f32.mrf.mxu0
    %v2426 = vadd.f32 %v2265, %v2425
    %v2427 = vpop.f32.mrf.mxu0
    %v2428 = vpop.f32.mrf.mxu0
    %v2429 = vadd.f32 %v2268, %v2428
    %v2430 = vpop.f32.mrf.mxu0
    %2431 = vmatprep.mubr.bf16.mxu0 0
    %2432 = vmatmul.mubr.bf16.gmra.mxu0 %v696
    %v2433 = vpop.f32.mrf.mxu0
    %v2434 = vadd.f32 %v2273, %v2433
    %v2435 = vpop.f32.mrf.mxu0
    %v2436 = vpop.f32.mrf.mxu0
    %v2437 = vadd.f32 %v2276, %v2436
    %v2438 = vpop.f32.mrf.mxu0
    %2439 = vmatprep.mubr.bf16.mxu0 0
    %2440 = vmatmul.mubr.bf16.gmra.mxu0 %v701
    %v2441 = vpop.f32.mrf.mxu0
    %v2442 = vadd.f32 %v2281, %v2441
    %v2443 = vpop.f32.mrf.mxu0
    %v2444 = vpop.f32.mrf.mxu0
    %v2445 = vadd.f32 %v2284, %v2444
    %v2446 = vpop.f32.mrf.mxu0
    %2447 = vmatprep.mubr.bf16.mxu0 0
    %2448 = vmatmul.mubr.bf16.gmra.mxu0 %v706
    %v2449 = vpop.f32.mrf.mxu0
    %v2450 = vadd.f32 %v2289, %v2449
    %v2451 = vpop.f32.mrf.mxu0
    %v2452 = vpop.f32.mrf.mxu0
    %v2453 = vadd.f32 %v2292, %v2452
    %v2454 = vpop.f32.mrf.mxu0
    %2455 = vmatprep.mubr.bf16.mxu0 0
    %2456 = vmatmul.mubr.bf16.gmra.mxu0 %v711
    %v2457 = vpop.f32.mrf.mxu0
    %v2458 = vadd.f32 %v2297, %v2457
    %v2459 = vpop.f32.mrf.mxu0
    %v2460 = vpop.f32.mrf.mxu0
    %v2461 = vadd.f32 %v2300, %v2460
    %v2462 = vpop.f32.mrf.mxu0
    %2463 = vmatprep.mubr.bf16.mxu0 0
    %2464 = vmatmul.mubr.bf16.gmra.mxu0 %v716
    %v2465 = vpop.f32.mrf.mxu0
    %v2466 = vadd.f32 %v2305, %v2465
    %v2467 = vpop.f32.mrf.mxu0
    %v2468 = vpop.f32.mrf.mxu0
    %v2469 = vadd.f32 %v2308, %v2468
    %v2470 = vpop.f32.mrf.mxu0
    %2471 = vmatprep.mubr.bf16.mxu0 0
    %2472 = vmatmul.mubr.bf16.gmra.mxu0 %v721
    %v2473 = vpop.f32.mrf.mxu0
    %v2474 = vadd.f32 %v2313, %v2473
    %v2475 = vpop.f32.mrf.mxu0
    %v2476 = vpop.f32.mrf.mxu0
    %v2477 = vadd.f32 %v2316, %v2476
    %v2478 = vpop.f32.mrf.mxu0
    %2479 = vmatprep.mubr.bf16.mxu0 0
    %2480 = vmatmul.mubr.bf16.gmra.mxu0 %v726
    %v2481 = vpop.f32.mrf.mxu0
    %v2482 = vadd.f32 %v2321, %v2481
    %v2483 = vpop.f32.mrf.mxu0
    %v2484 = vpop.f32.mrf.mxu0
    %v2485 = vadd.f32 %v2324, %v2484
    %v2486 = vpop.f32.mrf.mxu0
    %2487 = vmatprep.mubr.bf16.mxu0 0
    %2488 = vmatmul.mubr.bf16.gmra.mxu0 %v731
    %v2489 = vpop.f32.mrf.mxu0
    %v2490 = vadd.f32 %v2329, %v2489
    %v2491 = vpop.f32.mrf.mxu0
    %v2492 = vpop.f32.mrf.mxu0
    %v2493 = vadd.f32 %v2332, %v2492
    %v2494 = vpop.f32.mrf.mxu0
    %2495 = vmatprep.mubr.bf16.mxu0 0
    %2496 = vmatmul.mubr.bf16.gmra.mxu0 %v736
    %v2497 = vpop.f32.mrf.mxu0
    %v2498 = vadd.f32 %v2337, %v2497
    %v2499 = vpop.f32.mrf.mxu0
    %v2500 = vpop.f32.mrf.mxu0
    %v2501 = vadd.f32 %v2340, %v2500
    %v2502 = vpop.f32.mrf.mxu0
    %2503 = vmatprep.mubr.bf16.mxu0 0
    %2504 = vmatmul.mubr.bf16.gmra.mxu0 %v741
    %v2505 = vpop.f32.mrf.mxu0
    %v2506 = vadd.f32 %v2345, %v2505
    %v2507 = vpop.f32.mrf.mxu0
    %v2508 = vpop.f32.mrf.mxu0
    %v2509 = vadd.f32 %v2348, %v2508
    %v2510 = vpop.f32.mrf.mxu0
    %2511 = vmatprep.mubr.bf16.mxu0 0
    %2512 = vmatmul.mubr.bf16.gmra.mxu0 %v746
    %v2513 = vpop.f32.mrf.mxu0
    %v2514 = vadd.f32 %v2353, %v2513
    %v2515 = vpop.f32.mrf.mxu0
    %v2516 = vpop.f32.mrf.mxu0
    %v2517 = vadd.f32 %v2356, %v2516
    %v2518 = vpop.f32.mrf.mxu0
    %2519 = vmatprep.mubr.bf16.mxu0 0
    %2520 = vmatmul.mubr.bf16.gmra.mxu0 %v751
    %v2521 = vpop.f32.mrf.mxu0
    %v2522 = vadd.f32 %v2361, %v2521
    %v2523 = vpop.f32.mrf.mxu0
    %v2524 = vpop.f32.mrf.mxu0
    %v2525 = vadd.f32 %v2364, %v2524
    %v2526 = vpop.f32.mrf.mxu0
    %2527 = vmatprep.mubr.bf16.mxu0 0
    %2528 = vmatmul.mubr.bf16.gmra.mxu0 %v756
    %v2529 = vpop.f32.mrf.mxu0
    %v2530 = vadd.f32 %v2369, %v2529
    %v2531 = vpop.f32.mrf.mxu0
    %v2532 = vpop.f32.mrf.mxu0
    %v2533 = vadd.f32 %v2372, %v2532
    %v2534 = vpop.f32.mrf.mxu0
    %2535 = vmatprep.mubr.bf16.mxu0 0
    %2536 = vmatmul.mubr.bf16.gmra.mxu0 %v761
    %v2537 = vpop.f32.mrf.mxu0
    %v2538 = vadd.f32 %v2377, %v2537
    %v2539 = vpop.f32.mrf.mxu0
    %v2540 = vpop.f32.mrf.mxu0
    %v2541 = vadd.f32 %v2380, %v2540
    %v2542 = vpop.f32.mrf.mxu0
    %2543 = vdwg.mxu0
    %vm2544 = vcmp.gt.f32.partialorder %v1903, 0.0
    %vm2545 = vcmp.gt.f32.partialorder %v1905, 0.0
    %vm2546 = vcmp.gt.f32.partialorder %v2418, 0.0
    %vm2547 = vcmp.gt.f32.partialorder %v1907, 0.0
    %vm2548 = vcmp.gt.f32.partialorder %v1909, 0.0
    %vm2549 = vcmp.gt.f32.partialorder %v2421, 0.0
    %vm2550 = vcmp.gt.f32.partialorder %v1913, 0.0
    %vm2551 = vcmp.gt.f32.partialorder %v1915, 0.0
    %vm2552 = vcmp.gt.f32.partialorder %v2426, 0.0
    %vm2553 = vcmp.gt.f32.partialorder %v1917, 0.0
    %vm2554 = vcmp.gt.f32.partialorder %v1919, 0.0
    %vm2555 = vcmp.gt.f32.partialorder %v2429, 0.0
    %vm2556 = vcmp.gt.f32.partialorder %v1923, 0.0
    %vm2557 = vcmp.gt.f32.partialorder %v1925, 0.0
    %vm2558 = vcmp.gt.f32.partialorder %v2434, 0.0
    %vm2559 = vcmp.gt.f32.partialorder %v1927, 0.0
    %vm2560 = vcmp.gt.f32.partialorder %v1929, 0.0
    %vm2561 = vcmp.gt.f32.partialorder %v2437, 0.0
    %vm2562 = vcmp.gt.f32.partialorder %v1933, 0.0
    %vm2563 = vcmp.gt.f32.partialorder %v1935, 0.0
    %vm2564 = vcmp.gt.f32.partialorder %v2442, 0.0
    %vm2565 = vcmp.gt.f32.partialorder %v1937, 0.0
    %vm2566 = vcmp.gt.f32.partialorder %v1939, 0.0
    %vm2567 = vcmp.gt.f32.partialorder %v2445, 0.0
    %vm2568 = vcmp.gt.f32.partialorder %v1943, 0.0
    %vm2569 = vcmp.gt.f32.partialorder %v1945, 0.0
    %vm2570 = vcmp.gt.f32.partialorder %v2450, 0.0
    %vm2571 = vcmp.gt.f32.partialorder %v1947, 0.0
    %vm2572 = vcmp.gt.f32.partialorder %v1949, 0.0
    %vm2573 = vcmp.gt.f32.partialorder %v2453, 0.0
    %vm2574 = vcmp.gt.f32.partialorder %v1953, 0.0
    %vm2575 = vcmp.gt.f32.partialorder %v1955, 0.0
    %vm2576 = vcmp.gt.f32.partialorder %v2458, 0.0
    %vm2577 = vcmp.gt.f32.partialorder %v1957, 0.0
    %vm2578 = vcmp.gt.f32.partialorder %v1959, 0.0
    %vm2579 = vcmp.gt.f32.partialorder %v2461, 0.0
    %vm2580 = vcmp.gt.f32.partialorder %v1963, 0.0
    %vm2581 = vcmp.gt.f32.partialorder %v1965, 0.0
    %vm2582 = vcmp.gt.f32.partialorder %v2466, 0.0
    %vm2583 = vcmp.gt.f32.partialorder %v1967, 0.0
    %vm2584 = vcmp.gt.f32.partialorder %v1969, 0.0
    %vm2585 = vcmp.gt.f32.partialorder %v2469, 0.0
    %vm2586 = vcmp.gt.f32.partialorder %v1973, 0.0
    %vm2587 = vcmp.gt.f32.partialorder %v1975, 0.0
    %vm2588 = vcmp.gt.f32.partialorder %v2474, 0.0
    %vm2589 = vcmp.gt.f32.partialorder %v1977, 0.0
    %vm2590 = vcmp.gt.f32.partialorder %v1979, 0.0
    %vm2591 = vcmp.gt.f32.partialorder %v2477, 0.0
    %vm2592 = vcmp.gt.f32.partialorder %v1983, 0.0
    %vm2593 = vcmp.gt.f32.partialorder %v1985, 0.0
    %vm2594 = vcmp.gt.f32.partialorder %v2482, 0.0
    %vm2595 = vcmp.gt.f32.partialorder %v1987, 0.0
    %vm2596 = vcmp.gt.f32.partialorder %v1989, 0.0
    %vm2597 = vcmp.gt.f32.partialorder %v2485, 0.0
    %vm2598 = vcmp.gt.f32.partialorder %v1993, 0.0
    %vm2599 = vcmp.gt.f32.partialorder %v1995, 0.0
    %vm2600 = vcmp.gt.f32.partialorder %v2490, 0.0
    %vm2601 = vcmp.gt.f32.partialorder %v1997, 0.0
    %vm2602 = vcmp.gt.f32.partialorder %v1999, 0.0
    %vm2603 = vcmp.gt.f32.partialorder %v2493, 0.0
    %vm2604 = vcmp.gt.f32.partialorder %v2003, 0.0
    %vm2605 = vcmp.gt.f32.partialorder %v2005, 0.0
    %vm2606 = vcmp.gt.f32.partialorder %v2498, 0.0
    %vm2607 = vcmp.gt.f32.partialorder %v2007, 0.0
    %vm2608 = vcmp.gt.f32.partialorder %v2009, 0.0
    %vm2609 = vcmp.gt.f32.partialorder %v2501, 0.0
    %vm2610 = vcmp.gt.f32.partialorder %v2013, 0.0
    %vm2611 = vcmp.gt.f32.partialorder %v2015, 0.0
    %vm2612 = vcmp.gt.f32.partialorder %v2506, 0.0
    %vm2613 = vcmp.gt.f32.partialorder %v2017, 0.0
    %vm2614 = vcmp.gt.f32.partialorder %v2019, 0.0
    %vm2615 = vcmp.gt.f32.partialorder %v2509, 0.0
    %vm2616 = vcmp.gt.f32.partialorder %v2023, 0.0
    %vm2617 = vcmp.gt.f32.partialorder %v2025, 0.0
    %vm2618 = vcmp.gt.f32.partialorder %v2514, 0.0
    %vm2619 = vcmp.gt.f32.partialorder %v2027, 0.0
    %vm2620 = vcmp.gt.f32.partialorder %v2029, 0.0
    %vm2621 = vcmp.gt.f32.partialorder %v2517, 0.0
    %vm2622 = vcmp.gt.f32.partialorder %v2033, 0.0
    %vm2623 = vcmp.gt.f32.partialorder %v2035, 0.0
    %vm2624 = vcmp.gt.f32.partialorder %v2522, 0.0
    %vm2625 = vcmp.gt.f32.partialorder %v2037, 0.0
    %vm2626 = vcmp.gt.f32.partialorder %v2039, 0.0
    %vm2627 = vcmp.gt.f32.partialorder %v2525, 0.0
    %vm2628 = vcmp.gt.f32.partialorder %v2043, 0.0
    %vm2629 = vcmp.gt.f32.partialorder %v2045, 0.0
    %vm2630 = vcmp.gt.f32.partialorder %v2530, 0.0
    %vm2631 = vcmp.gt.f32.partialorder %v2047, 0.0
    %vm2632 = vcmp.gt.f32.partialorder %v2049, 0.0
    %vm2633 = vcmp.gt.f32.partialorder %v2533, 0.0
    %vm2634 = vcmp.gt.f32.partialorder %v2053, 0.0
    %vm2635 = vcmp.gt.f32.partialorder %v2055, 0.0
    %vm2636 = vcmp.gt.f32.partialorder %v2538, 0.0
    %vm2637 = vcmp.gt.f32.partialorder %v2057, 0.0
    %vm2638 = vcmp.gt.f32.partialorder %v2059, 0.0
    %vm2639 = vcmp.gt.f32.partialorder %v2541, 0.0
    %v2640 = vmul.f32 %v1903, 0.01
    %v2641 = vmul.f32 %v1905, 0.01
    %v2642 = vmul.f32 %v2418, 0.01
    %v2643 = vmul.f32 %v1907, 0.01
    %v2644 = vmul.f32 %v1909, 0.01
    %v2645 = vmul.f32 %v2421, 0.01
    %v2646 = vmul.f32 %v1913, 0.01
    %v2647 = vmul.f32 %v1915, 0.01
    %v2648 = vmul.f32 %v2426, 0.01
    %v2649 = vmul.f32 %v1917, 0.01
    %v2650 = vmul.f32 %v1919, 0.01
    %v2651 = vmul.f32 %v2429, 0.01
    %v2652 = vmul.f32 %v1923, 0.01
    %v2653 = vmul.f32 %v1925, 0.01
    %v2654 = vmul.f32 %v2434, 0.01
    %v2655 = vmul.f32 %v1927, 0.01
    %v2656 = vmul.f32 %v1929, 0.01
    %v2657 = vmul.f32 %v2437, 0.01
    %v2658 = vmul.f32 %v1933, 0.01
    %v2659 = vmul.f32 %v1935, 0.01
    %v2660 = vmul.f32 %v2442, 0.01
    %v2661 = vmul.f32 %v1937, 0.01
    %v2662 = vmul.f32 %v1939, 0.01
    %v2663 = vmul.f32 %v2445, 0.01
    %v2664 = vmul.f32 %v1943, 0.01
    %v2665 = vmul.f32 %v1945, 0.01
    %v2666 = vmul.f32 %v2450, 0.01
    %v2667 = vmul.f32 %v1947, 0.01
    %v2668 = vmul.f32 %v1949, 0.01
    %v2669 = vmul.f32 %v2453, 0.01
    %v2670 = vmul.f32 %v1953, 0.01
    %v2671 = vmul.f32 %v1955, 0.01
    %v2672 = vmul.f32 %v2458, 0.01
    %v2673 = vmul.f32 %v1957, 0.01
    %v2674 = vmul.f32 %v1959, 0.01
    %v2675 = vmul.f32 %v2461, 0.01
    %v2676 = vmul.f32 %v1963, 0.01
    %v2677 = vmul.f32 %v1965, 0.01
    %v2678 = vmul.f32 %v2466, 0.01
    %v2679 = vmul.f32 %v1967, 0.01
    %v2680 = vmul.f32 %v1969, 0.01
    %v2681 = vmul.f32 %v2469, 0.01
    %v2682 = vmul.f32 %v1973, 0.01
    %v2683 = vmul.f32 %v1975, 0.01
    %v2684 = vmul.f32 %v2474, 0.01
    %v2685 = vmul.f32 %v1977, 0.01
    %v2686 = vmul.f32 %v1979, 0.01
    %v2687 = vmul.f32 %v2477, 0.01
    %v2688 = vmul.f32 %v1983, 0.01
    %v2689 = vmul.f32 %v1985, 0.01
    %v2690 = vmul.f32 %v2482, 0.01
    %v2691 = vmul.f32 %v1987, 0.01
    %v2692 = vmul.f32 %v1989, 0.01
    %v2693 = vmul.f32 %v2485, 0.01
    %v2694 = vmul.f32 %v1993, 0.01
    %v2695 = vmul.f32 %v1995, 0.01
    %v2696 = vmul.f32 %v2490, 0.01
    %v2697 = vmul.f32 %v1997, 0.01
    %v2698 = vmul.f32 %v1999, 0.01
    %v2699 = vmul.f32 %v2493, 0.01
    %v2700 = vmul.f32 %v2003, 0.01
    %v2701 = vmul.f32 %v2005, 0.01
    %v2702 = vmul.f32 %v2498, 0.01
    %v2703 = vmul.f32 %v2007, 0.01
    %v2704 = vmul.f32 %v2009, 0.01
    %v2705 = vmul.f32 %v2501, 0.01
    %v2706 = vmul.f32 %v2013, 0.01
    %v2707 = vmul.f32 %v2015, 0.01
    %v2708 = vmul.f32 %v2506, 0.01
    %v2709 = vmul.f32 %v2017, 0.01
    %v2710 = vmul.f32 %v2019, 0.01
    %v2711 = vmul.f32 %v2509, 0.01
    %v2712 = vmul.f32 %v2023, 0.01
    %v2713 = vmul.f32 %v2025, 0.01
    %v2714 = vmul.f32 %v2514, 0.01
    %v2715 = vmul.f32 %v2027, 0.01
    %v2716 = vmul.f32 %v2029, 0.01
    %v2717 = vmul.f32 %v2517, 0.01
    %v2718 = vmul.f32 %v2033, 0.01
    %v2719 = vmul.f32 %v2035, 0.01
    %v2720 = vmul.f32 %v2522, 0.01
    %v2721 = vmul.f32 %v2037, 0.01
    %v2722 = vmul.f32 %v2039, 0.01
    %v2723 = vmul.f32 %v2525, 0.01
    %v2724 = vmul.f32 %v2043, 0.01
    %v2725 = vmul.f32 %v2045, 0.01
    %v2726 = vmul.f32 %v2530, 0.01
    %v2727 = vmul.f32 %v2047, 0.01
    %v2728 = vmul.f32 %v2049, 0.01
    %v2729 = vmul.f32 %v2533, 0.01
    %v2730 = vmul.f32 %v2053, 0.01
    %v2731 = vmul.f32 %v2055, 0.01
    %v2732 = vmul.f32 %v2538, 0.01
    %v2733 = vmul.f32 %v2057, 0.01
    %v2734 = vmul.f32 %v2059, 0.01
    %v2735 = vmul.f32 %v2541, 0.01
    %v2736 = vsel %vm2544, %v1903, %v2640
    %v2737 = vsel %vm2545, %v1905, %v2641
    %v2738 = vsel %vm2546, %v2418, %v2642
    %v2739 = vsel %vm2547, %v1907, %v2643
    %v2740 = vsel %vm2548, %v1909, %v2644
    %v2741 = vsel %vm2549, %v2421, %v2645
    %v2742 = vsel %vm2550, %v1913, %v2646
    %v2743 = vsel %vm2551, %v1915, %v2647
    %v2744 = vsel %vm2552, %v2426, %v2648
    %v2745 = vsel %vm2553, %v1917, %v2649
    %v2746 = vsel %vm2554, %v1919, %v2650
    %v2747 = vsel %vm2555, %v2429, %v2651
    %v2748 = vsel %vm2556, %v1923, %v2652
    %v2749 = vsel %vm2557, %v1925, %v2653
    %v2750 = vsel %vm2558, %v2434, %v2654
    %v2751 = vsel %vm2559, %v1927, %v2655
    %v2752 = vsel %vm2560, %v1929, %v2656
    %v2753 = vsel %vm2561, %v2437, %v2657
    %v2754 = vsel %vm2562, %v1933, %v2658
    %v2755 = vsel %vm2563, %v1935, %v2659
    %v2756 = vsel %vm2564, %v2442, %v2660
    %v2757 = vsel %vm2565, %v1937, %v2661
    %v2758 = vsel %vm2566, %v1939, %v2662
    %v2759 = vsel %vm2567, %v2445, %v2663
    %v2760 = vsel %vm2568, %v1943, %v2664
    %v2761 = vsel %vm2569, %v1945, %v2665
    %v2762 = vsel %vm2570, %v2450, %v2666
    %v2763 = vsel %vm2571, %v1947, %v2667
    %v2764 = vsel %vm2572, %v1949, %v2668
    %v2765 = vsel %vm2573, %v2453, %v2669
    %v2766 = vsel %vm2574, %v1953, %v2670
    %v2767 = vsel %vm2575, %v1955, %v2671
    %v2768 = vsel %vm2576, %v2458, %v2672
    %v2769 = vsel %vm2577, %v1957, %v2673
    %v2770 = vsel %vm2578, %v1959, %v2674
    %v2771 = vsel %vm2579, %v2461, %v2675
    %v2772 = vsel %vm2580, %v1963, %v2676
    %v2773 = vsel %vm2581, %v1965, %v2677
    %v2774 = vsel %vm2582, %v2466, %v2678
    %v2775 = vsel %vm2583, %v1967, %v2679
    %v2776 = vsel %vm2584, %v1969, %v2680
    %v2777 = vsel %vm2585, %v2469, %v2681
    %v2778 = vsel %vm2586, %v1973, %v2682
    %v2779 = vsel %vm2587, %v1975, %v2683
    %v2780 = vsel %vm2588, %v2474, %v2684
    %v2781 = vsel %vm2589, %v1977, %v2685
    %v2782 = vsel %vm2590, %v1979, %v2686
    %v2783 = vsel %vm2591, %v2477, %v2687
    %v2784 = vsel %vm2592, %v1983, %v2688
    %v2785 = vsel %vm2593, %v1985, %v2689
    %v2786 = vsel %vm2594, %v2482, %v2690
    %v2787 = vsel %vm2595, %v1987, %v2691
    %v2788 = vsel %vm2596, %v1989, %v2692
    %v2789 = vsel %vm2597, %v2485, %v2693
    %v2790 = vsel %vm2598, %v1993, %v2694
    %v2791 = vsel %vm2599, %v1995, %v2695
    %v2792 = vsel %vm2600, %v2490, %v2696
    %v2793 = vsel %vm2601, %v1997, %v2697
    %v2794 = vsel %vm2602, %v1999, %v2698
    %v2795 = vsel %vm2603, %v2493, %v2699
    %v2796 = vsel %vm2604, %v2003, %v2700
    %v2797 = vsel %vm2605, %v2005, %v2701
    %v2798 = vsel %vm2606, %v2498, %v2702
    %v2799 = vsel %vm2607, %v2007, %v2703
    %v2800 = vsel %vm2608, %v2009, %v2704
    %v2801 = vsel %vm2609, %v2501, %v2705
    %v2802 = vsel %vm2610, %v2013, %v2706
    %v2803 = vsel %vm2611, %v2015, %v2707
    %v2804 = vsel %vm2612, %v2506, %v2708
    %v2805 = vsel %vm2613, %v2017, %v2709
    %v2806 = vsel %vm2614, %v2019, %v2710
    %v2807 = vsel %vm2615, %v2509, %v2711
    %v2808 = vsel %vm2616, %v2023, %v2712
    %v2809 = vsel %vm2617, %v2025, %v2713
    %v2810 = vsel %vm2618, %v2514, %v2714
    %v2811 = vsel %vm2619, %v2027, %v2715
    %v2812 = vsel %vm2620, %v2029, %v2716
    %v2813 = vsel %vm2621, %v2517, %v2717
    %v2814 = vsel %vm2622, %v2033, %v2718
    %v2815 = vsel %vm2623, %v2035, %v2719
    %v2816 = vsel %vm2624, %v2522, %v2720
    %v2817 = vsel %vm2625, %v2037, %v2721
    %v2818 = vsel %vm2626, %v2039, %v2722
    %v2819 = vsel %vm2627, %v2525, %v2723
    %v2820 = vsel %vm2628, %v2043, %v2724
    %v2821 = vsel %vm2629, %v2045, %v2725
    %v2822 = vsel %vm2630, %v2530, %v2726
    %v2823 = vsel %vm2631, %v2047, %v2727
    %v2824 = vsel %vm2632, %v2049, %v2728
    %v2825 = vsel %vm2633, %v2533, %v2729
    %v2826 = vsel %vm2634, %v2053, %v2730
    %v2827 = vsel %vm2635, %v2055, %v2731
    %v2828 = vsel %vm2636, %v2538, %v2732
    %v2829 = vsel %vm2637, %v2057, %v2733
    %v2830 = vsel %vm2638, %v2059, %v2734
    %v2831 = vsel %vm2639, %v2541, %v2735
    %v2832 = vpack.c.bf16 %v2739, %v2736
    %v2833 = vpack.c.bf16 %v2740, %v2737
    %v2834 = vpack.c.bf16 %v2741, %v2738
    %v2835 = vpack.c.bf16 %v2745, %v2742
    %v2836 = vpack.c.bf16 %v2746, %v2743
    %v2837 = vpack.c.bf16 %v2747, %v2744
    %v2838 = vpack.c.bf16 %v2751, %v2748
    %v2839 = vpack.c.bf16 %v2752, %v2749
    %v2840 = vpack.c.bf16 %v2753, %v2750
    %v2841 = vpack.c.bf16 %v2757, %v2754
    %v2842 = vpack.c.bf16 %v2758, %v2755
    %v2843 = vpack.c.bf16 %v2759, %v2756
    %v2844 = vpack.c.bf16 %v2763, %v2760
    %v2845 = vpack.c.bf16 %v2764, %v2761
    %v2846 = vpack.c.bf16 %v2765, %v2762
    %v2847 = vpack.c.bf16 %v2769, %v2766
    %v2848 = vpack.c.bf16 %v2770, %v2767
    %v2849 = vpack.c.bf16 %v2771, %v2768
    %v2850 = vpack.c.bf16 %v2775, %v2772
    %v2851 = vpack.c.bf16 %v2776, %v2773
    %v2852 = vpack.c.bf16 %v2777, %v2774
    %v2853 = vpack.c.bf16 %v2781, %v2778
    %v2854 = vpack.c.bf16 %v2782, %v2779
    %v2855 = vpack.c.bf16 %v2783, %v2780
    %v2856 = vpack.c.bf16 %v2787, %v2784
    %v2857 = vpack.c.bf16 %v2788, %v2785
    %v2858 = vpack.c.bf16 %v2789, %v2786
    %v2859 = vpack.c.bf16 %v2793, %v2790
    %v2860 = vpack.c.bf16 %v2794, %v2791
    %v2861 = vpack.c.bf16 %v2795, %v2792
    %v2862 = vpack.c.bf16 %v2799, %v2796
    %v2863 = vpack.c.bf16 %v2800, %v2797
    %v2864 = vpack.c.bf16 %v2801, %v2798
    %v2865 = vpack.c.bf16 %v2805, %v2802
    %v2866 = vpack.c.bf16 %v2806, %v2803
    %v2867 = vpack.c.bf16 %v2807, %v2804
    %v2868 = vpack.c.bf16 %v2811, %v2808
    %v2869 = vpack.c.bf16 %v2812, %v2809
    %v2870 = vpack.c.bf16 %v2813, %v2810
    %v2871 = vpack.c.bf16 %v2817, %v2814
    %v2872 = vpack.c.bf16 %v2818, %v2815
    %v2873 = vpack.c.bf16 %v2819, %v2816
    %v2874 = vpack.c.bf16 %v2823, %v2820
    %v2875 = vpack.c.bf16 %v2824, %v2821
    %v2876 = vpack.c.bf16 %v2825, %v2822
    %v2877 = vpack.c.bf16 %v2829, %v2826
    %v2878 = vpack.c.bf16 %v2830, %v2827
    %v2879 = vpack.c.bf16 %v2831, %v2828
    %v2880 = vld [vmem:[#allocation7] sm:$0xf]
    %v2881 = vld [vmem:[#allocation7 + $0x4] sm:$0xf]
    %v2882 = vld [vmem:[#allocation7 + $0x8] sm:$0xf]
    %v2883 = vld [vmem:[#allocation7 + $0xc] sm:$0xf]
    %v2884 = vld [vmem:[#allocation7 + $0x10] sm:$0xf]
    %v2885 = vld [vmem:[#allocation7 + $0x14] sm:$0xf]
    %v2886 = vld [vmem:[#allocation7 + $0x18] sm:$0xf]
    %v2887 = vld [vmem:[#allocation7 + $0x1c] sm:$0xf]
    %v2888 = vld [vmem:[#allocation7 + $0x20] sm:$0xf]
    %v2889 = vld [vmem:[#allocation7 + $0x24] sm:$0xf]
    %v2890 = vld [vmem:[#allocation7 + $0x28] sm:$0xf]
    %v2891 = vld [vmem:[#allocation7 + $0x2c] sm:$0xf]
    %v2892 = vld [vmem:[#allocation7 + $0x30] sm:$0xf]
    %v2893 = vld [vmem:[#allocation7 + $0x34] sm:$0xf]
    %v2894 = vld [vmem:[#allocation7 + $0x38] sm:$0xf]
    %v2895 = vld [vmem:[#allocation7 + $0x3c] sm:$0xf]
    %v2896 = vld [vmem:[#allocation7 + $0x40] sm:$0xf]
    %v2897 = vld [vmem:[#allocation7 + $0x44] sm:$0xf]
    %v2898 = vld [vmem:[#allocation7 + $0x48] sm:$0xf]
    %v2899 = vld [vmem:[#allocation7 + $0x4c] sm:$0xf]
    %v2900 = vld [vmem:[#allocation7 + $0x50] sm:$0xf]
    %v2901 = vld [vmem:[#allocation7 + $0x54] sm:$0xf]
    %v2902 = vld [vmem:[#allocation7 + $0x58] sm:$0xf]
    %v2903 = vld [vmem:[#allocation7 + $0x5c] sm:$0xf]
    %v2904 = vld [vmem:[#allocation7 + $0x60] sm:$0xf]
    %v2905 = vld [vmem:[#allocation7 + $0x64] sm:$0xf]
    %v2906 = vld [vmem:[#allocation7 + $0x68] sm:$0xf]
    %v2907 = vld [vmem:[#allocation7 + $0x6c] sm:$0xf]
    %v2908 = vld [vmem:[#allocation7 + $0x70] sm:$0xf]
    %v2909 = vld [vmem:[#allocation7 + $0x74] sm:$0xf]
    %v2910 = vld [vmem:[#allocation7 + $0x78] sm:$0xf]
    %v2911 = vld [vmem:[#allocation7 + $0x7c] sm:$0xf]
    %v2912 = vld [vmem:[#allocation7 + $0x80] sm:$0xf]
    %v2913 = vld [vmem:[#allocation7 + $0x84] sm:$0xf]
    %v2914 = vld [vmem:[#allocation7 + $0x88] sm:$0xf]
    %v2915 = vld [vmem:[#allocation7 + $0x8c] sm:$0xf]
    %v2916 = vld [vmem:[#allocation7 + $0x90] sm:$0xf]
    %v2917 = vld [vmem:[#allocation7 + $0x94] sm:$0xf]
    %v2918 = vld [vmem:[#allocation7 + $0x98] sm:$0xf]
    %v2919 = vld [vmem:[#allocation7 + $0x9c] sm:$0xf]
    %v2920 = vld [vmem:[#allocation7 + $0xa0] sm:$0xf]
    %v2921 = vld [vmem:[#allocation7 + $0xa4] sm:$0xf]
    %v2922 = vld [vmem:[#allocation7 + $0xa8] sm:$0xf]
    %v2923 = vld [vmem:[#allocation7 + $0xac] sm:$0xf]
    %v2924 = vld [vmem:[#allocation7 + $0xb0] sm:$0xf]
    %v2925 = vld [vmem:[#allocation7 + $0xb4] sm:$0xf]
    %v2926 = vld [vmem:[#allocation7 + $0xb8] sm:$0xf]
    %v2927 = vld [vmem:[#allocation7 + $0xbc] sm:$0xf]
    %v2928 = vld [vmem:[%s4] sm:$0x1]
    %v2930 = vlaneseq
    %v2931 = vshrl.u32 %v2930, 7
    %v2932 = vsub.s32 0, %v2931
    %v2933 = vrot.slane %v2928, %v2932
    %v2983 = vunpack.c.l.b16 %v2880
    %v2984 = vunpack.c.l.b16 %v2881
    %v2985 = vunpack.c.l.b16 %v2882
    %v2986 = vunpack.c.l.b16 %v2883
    %v2987 = vunpack.c.l.b16 %v2884
    %v2988 = vunpack.c.l.b16 %v2885
    %v2989 = vunpack.c.l.b16 %v2886
    %v2990 = vunpack.c.l.b16 %v2887
    %v2991 = vunpack.c.l.b16 %v2888
    %v2992 = vunpack.c.l.b16 %v2889
    %v2993 = vunpack.c.l.b16 %v2890
    %v2994 = vunpack.c.l.b16 %v2891
    %v2995 = vunpack.c.l.b16 %v2892
    %v2996 = vunpack.c.l.b16 %v2893
    %v2997 = vunpack.c.l.b16 %v2894
    %v2998 = vunpack.c.l.b16 %v2895
    %v2999 = vunpack.c.l.b16 %v2896
    %v3000 = vunpack.c.l.b16 %v2897
    %v3001 = vunpack.c.l.b16 %v2898
    %v3002 = vunpack.c.l.b16 %v2899
    %v3003 = vunpack.c.l.b16 %v2900
    %v3004 = vunpack.c.l.b16 %v2901
    %v3005 = vunpack.c.l.b16 %v2902
    %v3006 = vunpack.c.l.b16 %v2903
    %v3007 = vunpack.c.l.b16 %v2904
    %v3008 = vunpack.c.l.b16 %v2905
    %v3009 = vunpack.c.l.b16 %v2906
    %v3010 = vunpack.c.l.b16 %v2907
    %v3011 = vunpack.c.l.b16 %v2908
    %v3012 = vunpack.c.l.b16 %v2909
    %v3013 = vunpack.c.l.b16 %v2910
    %v3014 = vunpack.c.l.b16 %v2911
    %v3015 = vunpack.c.l.b16 %v2912
    %v3016 = vunpack.c.l.b16 %v2913
    %v3017 = vunpack.c.l.b16 %v2914
    %v3018 = vunpack.c.l.b16 %v2915
    %v3019 = vunpack.c.l.b16 %v2916
    %v3020 = vunpack.c.l.b16 %v2917
    %v3021 = vunpack.c.l.b16 %v2918
    %v3022 = vunpack.c.l.b16 %v2919
    %v3023 = vunpack.c.l.b16 %v2920
    %v3024 = vunpack.c.l.b16 %v2921
    %v3025 = vunpack.c.l.b16 %v2922
    %v3026 = vunpack.c.l.b16 %v2923
    %v3027 = vunpack.c.l.b16 %v2924
    %v3028 = vunpack.c.l.b16 %v2925
    %v3029 = vunpack.c.l.b16 %v2926
    %v3030 = vunpack.c.l.b16 %v2927
    %v3031 = vpack.c.b16 %v2984, %v2983
    %v3032 = vpack.c.b16 %v2986, %v2985
    %v3033 = vpack.c.b16 %v2988, %v2987
    %v3034 = vpack.c.b16 %v2990, %v2989
    %v3035 = vpack.c.b16 %v2992, %v2991
    %v3036 = vpack.c.b16 %v2994, %v2993
    %v3037 = vpack.c.b16 %v2996, %v2995
    %v3038 = vpack.c.b16 %v2998, %v2997
    %v3039 = vpack.c.b16 %v3000, %v2999
    %v3040 = vpack.c.b16 %v3002, %v3001
    %v3041 = vpack.c.b16 %v3004, %v3003
    %v3042 = vpack.c.b16 %v3006, %v3005
    %v3043 = vpack.c.b16 %v3008, %v3007
    %v3044 = vpack.c.b16 %v3010, %v3009
    %v3045 = vpack.c.b16 %v3012, %v3011
    %v3046 = vpack.c.b16 %v3014, %v3013
    %v3047 = vpack.c.b16 %v3016, %v3015
    %v3048 = vpack.c.b16 %v3018, %v3017
    %v3049 = vpack.c.b16 %v3020, %v3019
    %v3050 = vpack.c.b16 %v3022, %v3021
    %v3051 = vpack.c.b16 %v3024, %v3023
    %v3052 = vpack.c.b16 %v3026, %v3025
    %v3053 = vpack.c.b16 %v3028, %v3027
    %v3054 = vpack.c.b16 %v3030, %v3029
    %3079 = vmatprep.subr.bf16.mxu0 0
    %3080 = vmatpush1.bf16.msra.mxu0 %v3038
    %3081 = vmatprep.subr.bf16.mxu0 0
    %3082 = vmatpush1.bf16.msra.mxu0 %v3037
    %3083 = vmatprep.subr.bf16.mxu0 0
    %3084 = vmatpush1.bf16.msra.mxu0 %v3036
    %3085 = vmatprep.subr.bf16.mxu0 0
    %3086 = vmatpush1.bf16.msra.mxu0 %v3035
    %3087 = vmatprep.subr.bf16.mxu0 0
    %3088 = vmatpush1.bf16.msra.mxu0 %v3034
    %3089 = vmatprep.subr.bf16.mxu0 0
    %3090 = vmatpush1.bf16.msra.mxu0 %v3033
    %3091 = vmatprep.subr.bf16.mxu0 0
    %3092 = vmatpush1.bf16.msra.mxu0 %v3032
    %3093 = vmatprep.subr.bf16.mxu0 0
    %3094 = vmatpush1.bf16.msra.mxu0 %v3031
    %3095 = vmatprep.subr.bf16.mxu0 0
    %3096 = vmatpush2.bf16.msra.mxu0 %v3046
    %3097 = vmatprep.subr.bf16.mxu0 0
    %3098 = vmatpush2.bf16.msra.mxu0 %v3045
    %3099 = vmatprep.subr.bf16.mxu0 0
    %3100 = vmatpush2.bf16.msra.mxu0 %v3044
    %3101 = vmatprep.subr.bf16.mxu0 0
    %3102 = vmatpush2.bf16.msra.mxu0 %v3043
    %3103 = vmatprep.subr.bf16.mxu0 0
    %3104 = vmatpush2.bf16.msra.mxu0 %v3042
    %3105 = vmatprep.subr.bf16.mxu0 0
    %3106 = vmatpush2.bf16.msra.mxu0 %v3041
    %3107 = vmatprep.subr.bf16.mxu0 0
    %3108 = vmatpush2.bf16.msra.mxu0 %v3040
    %3109 = vmatprep.subr.bf16.mxu0 0
    %3110 = vmatpush2.bf16.msra.mxu0 %v3039
    %3111 = vmatprep.mubr.bf16.mxu0 %v2833
    %3112 = vmatmul.mubr.bf16.gmra.mxu0 %v2832
    %v3113 = vpop.f32.mrf.mxu0
    %v3114 = vadd.f32 %v2933, %v3113
    %v3115 = vpop.f32.mrf.mxu0
    %v3116 = vpop.f32.mrf.mxu0
    %v3117 = vadd.f32 %v2933, %v3116
    %v3118 = vpop.f32.mrf.mxu0
    %3119 = vmatprep.mubr.bf16.mxu0 %v2836
    %3120 = vmatmul.mubr.bf16.gmra.mxu0 %v2835
    %v3121 = vpop.f32.mrf.mxu0
    %v3122 = vadd.f32 %v2933, %v3121
    %v3123 = vpop.f32.mrf.mxu0
    %v3124 = vpop.f32.mrf.mxu0
    %v3125 = vadd.f32 %v2933, %v3124
    %v3126 = vpop.f32.mrf.mxu0
    %3127 = vmatprep.mubr.bf16.mxu0 %v2839
    %3128 = vmatmul.mubr.bf16.gmra.mxu0 %v2838
    %v3129 = vpop.f32.mrf.mxu0
    %v3130 = vadd.f32 %v2933, %v3129
    %v3131 = vpop.f32.mrf.mxu0
    %v3132 = vpop.f32.mrf.mxu0
    %v3133 = vadd.f32 %v2933, %v3132
    %v3134 = vpop.f32.mrf.mxu0
    %3135 = vmatprep.mubr.bf16.mxu0 %v2842
    %3136 = vmatmul.mubr.bf16.gmra.mxu0 %v2841
    %v3137 = vpop.f32.mrf.mxu0
    %v3138 = vadd.f32 %v2933, %v3137
    %v3139 = vpop.f32.mrf.mxu0
    %v3140 = vpop.f32.mrf.mxu0
    %v3141 = vadd.f32 %v2933, %v3140
    %v3142 = vpop.f32.mrf.mxu0
    %3143 = vmatprep.mubr.bf16.mxu0 %v2845
    %3144 = vmatmul.mubr.bf16.gmra.mxu0 %v2844
    %v3145 = vpop.f32.mrf.mxu0
    %v3146 = vadd.f32 %v2933, %v3145
    %v3147 = vpop.f32.mrf.mxu0
    %v3148 = vpop.f32.mrf.mxu0
    %v3149 = vadd.f32 %v2933, %v3148
    %v3150 = vpop.f32.mrf.mxu0
    %3151 = vmatprep.mubr.bf16.mxu0 %v2848
    %3152 = vmatmul.mubr.bf16.gmra.mxu0 %v2847
    %v3153 = vpop.f32.mrf.mxu0
    %v3154 = vadd.f32 %v2933, %v3153
    %v3155 = vpop.f32.mrf.mxu0
    %v3156 = vpop.f32.mrf.mxu0
    %v3157 = vadd.f32 %v2933, %v3156
    %v3158 = vpop.f32.mrf.mxu0
    %3159 = vmatprep.mubr.bf16.mxu0 %v2851
    %3160 = vmatmul.mubr.bf16.gmra.mxu0 %v2850
    %v3161 = vpop.f32.mrf.mxu0
    %v3162 = vadd.f32 %v2933, %v3161
    %v3163 = vpop.f32.mrf.mxu0
    %v3164 = vpop.f32.mrf.mxu0
    %v3165 = vadd.f32 %v2933, %v3164
    %v3166 = vpop.f32.mrf.mxu0
    %3167 = vmatprep.mubr.bf16.mxu0 %v2854
    %3168 = vmatmul.mubr.bf16.gmra.mxu0 %v2853
    %v3169 = vpop.f32.mrf.mxu0
    %v3170 = vadd.f32 %v2933, %v3169
    %v3171 = vpop.f32.mrf.mxu0
    %v3172 = vpop.f32.mrf.mxu0
    %v3173 = vadd.f32 %v2933, %v3172
    %v3174 = vpop.f32.mrf.mxu0
    %3175 = vmatprep.mubr.bf16.mxu0 %v2857
    %3176 = vmatmul.mubr.bf16.gmra.mxu0 %v2856
    %v3177 = vpop.f32.mrf.mxu0
    %v3178 = vadd.f32 %v2933, %v3177
    %v3179 = vpop.f32.mrf.mxu0
    %v3180 = vpop.f32.mrf.mxu0
    %v3181 = vadd.f32 %v2933, %v3180
    %v3182 = vpop.f32.mrf.mxu0
    %3183 = vmatprep.mubr.bf16.mxu0 %v2860
    %3184 = vmatmul.mubr.bf16.gmra.mxu0 %v2859
    %v3185 = vpop.f32.mrf.mxu0
    %v3186 = vadd.f32 %v2933, %v3185
    %v3187 = vpop.f32.mrf.mxu0
    %v3188 = vpop.f32.mrf.mxu0
    %v3189 = vadd.f32 %v2933, %v3188
    %v3190 = vpop.f32.mrf.mxu0
    %3191 = vmatprep.mubr.bf16.mxu0 %v2863
    %3192 = vmatmul.mubr.bf16.gmra.mxu0 %v2862
    %v3193 = vpop.f32.mrf.mxu0
    %v3194 = vadd.f32 %v2933, %v3193
    %v3195 = vpop.f32.mrf.mxu0
    %v3196 = vpop.f32.mrf.mxu0
    %v3197 = vadd.f32 %v2933, %v3196
    %v3198 = vpop.f32.mrf.mxu0
    %3199 = vmatprep.mubr.bf16.mxu0 %v2866
    %3200 = vmatmul.mubr.bf16.gmra.mxu0 %v2865
    %v3201 = vpop.f32.mrf.mxu0
    %v3202 = vadd.f32 %v2933, %v3201
    %v3203 = vpop.f32.mrf.mxu0
    %v3204 = vpop.f32.mrf.mxu0
    %v3205 = vadd.f32 %v2933, %v3204
    %v3206 = vpop.f32.mrf.mxu0
    %3207 = vmatprep.mubr.bf16.mxu0 %v2869
    %3208 = vmatmul.mubr.bf16.gmra.mxu0 %v2868
    %v3209 = vpop.f32.mrf.mxu0
    %v3210 = vadd.f32 %v2933, %v3209
    %v3211 = vpop.f32.mrf.mxu0
    %v3212 = vpop.f32.mrf.mxu0
    %v3213 = vadd.f32 %v2933, %v3212
    %v3214 = vpop.f32.mrf.mxu0
    %3215 = vmatprep.mubr.bf16.mxu0 %v2872
    %3216 = vmatmul.mubr.bf16.gmra.mxu0 %v2871
    %v3217 = vpop.f32.mrf.mxu0
    %v3218 = vadd.f32 %v2933, %v3217
    %v3219 = vpop.f32.mrf.mxu0
    %v3220 = vpop.f32.mrf.mxu0
    %v3221 = vadd.f32 %v2933, %v3220
    %v3222 = vpop.f32.mrf.mxu0
    %3223 = vmatprep.mubr.bf16.mxu0 %v2875
    %3224 = vmatmul.mubr.bf16.gmra.mxu0 %v2874
    %v3225 = vpop.f32.mrf.mxu0
    %v3226 = vadd.f32 %v2933, %v3225
    %v3227 = vpop.f32.mrf.mxu0
    %v3228 = vpop.f32.mrf.mxu0
    %v3229 = vadd.f32 %v2933, %v3228
    %v3230 = vpop.f32.mrf.mxu0
    %3231 = vmatprep.mubr.bf16.mxu0 %v2878
    %3232 = vmatmul.mubr.bf16.gmra.mxu0 %v2877
    %v3233 = vpop.f32.mrf.mxu0
    %v3234 = vadd.f32 %v2933, %v3233
    %v3235 = vpop.f32.mrf.mxu0
    %v3236 = vpop.f32.mrf.mxu0
    %v3237 = vadd.f32 %v2933, %v3236
    %v3238 = vpop.f32.mrf.mxu0
    %3239 = vdwg.mxu0
    %3240 = vmatprep.subr.bf16.mxu0 0
    %3241 = vmatpush1.bf16.msra.mxu0 %v3054
    %3242 = vmatprep.subr.bf16.mxu0 0
    %3243 = vmatpush1.bf16.msra.mxu0 %v3053
    %3244 = vmatprep.subr.bf16.mxu0 0
    %3245 = vmatpush1.bf16.msra.mxu0 %v3052
    %3246 = vmatprep.subr.bf16.mxu0 0
    %3247 = vmatpush1.bf16.msra.mxu0 %v3051
    %3248 = vmatprep.subr.bf16.mxu0 0
    %3249 = vmatpush1.bf16.msra.mxu0 %v3050
    %3250 = vmatprep.subr.bf16.mxu0 0
    %3251 = vmatpush1.bf16.msra.mxu0 %v3049
    %3252 = vmatprep.subr.bf16.mxu0 0
    %3253 = vmatpush1.bf16.msra.mxu0 %v3048
    %3254 = vmatprep.subr.bf16.mxu0 0
    %3255 = vmatpush1.bf16.msra.mxu0 %v3047
    %3256 = vmatprep.subr.bf16.mxu0 0
    %3257 = vmatpush2.bf16.msra.mxu0 0
    %3258 = vmatprep.subr.bf16.mxu0 0
    %3259 = vmatpush2.bf16.msra.mxu0 0
    %3260 = vmatprep.subr.bf16.mxu0 0
    %3261 = vmatpush2.bf16.msra.mxu0 0
    %3262 = vmatprep.subr.bf16.mxu0 0
    %3263 = vmatpush2.bf16.msra.mxu0 0
    %3264 = vmatprep.subr.bf16.mxu0 0
    %3265 = vmatpush2.bf16.msra.mxu0 0
    %3266 = vmatprep.subr.bf16.mxu0 0
    %3267 = vmatpush2.bf16.msra.mxu0 0
    %3268 = vmatprep.subr.bf16.mxu0 0
    %3269 = vmatpush2.bf16.msra.mxu0 0
    %3270 = vmatprep.subr.bf16.mxu0 0
    %3271 = vmatpush2.bf16.msra.mxu0 0
    %3272 = vmatprep.mubr.bf16.mxu0 0
    %3273 = vmatmul.mubr.bf16.gmra.mxu0 %v2834
    %v3274 = vpop.f32.mrf.mxu0
    %v3275 = vadd.f32 %v3114, %v3274
    %v3276 = vpop.f32.mrf.mxu0
    %v3277 = vpop.f32.mrf.mxu0
    %v3278 = vadd.f32 %v3117, %v3277
    %v3279 = vpop.f32.mrf.mxu0
    %3280 = vmatprep.mubr.bf16.mxu0 0
    %3281 = vmatmul.mubr.bf16.gmra.mxu0 %v2837
    %v3282 = vpop.f32.mrf.mxu0
    %v3283 = vadd.f32 %v3122, %v3282
    %v3284 = vpop.f32.mrf.mxu0
    %v3285 = vpop.f32.mrf.mxu0
    %v3286 = vadd.f32 %v3125, %v3285
    %v3287 = vpop.f32.mrf.mxu0
    %3288 = vmatprep.mubr.bf16.mxu0 0
    %3289 = vmatmul.mubr.bf16.gmra.mxu0 %v2840
    %v3290 = vpop.f32.mrf.mxu0
    %v3291 = vadd.f32 %v3130, %v3290
    %v3292 = vpop.f32.mrf.mxu0
    %v3293 = vpop.f32.mrf.mxu0
    %v3294 = vadd.f32 %v3133, %v3293
    %v3295 = vpop.f32.mrf.mxu0
    %3296 = vmatprep.mubr.bf16.mxu0 0
    %3297 = vmatmul.mubr.bf16.gmra.mxu0 %v2843
    %v3298 = vpop.f32.mrf.mxu0
    %v3299 = vadd.f32 %v3138, %v3298
    %v3300 = vpop.f32.mrf.mxu0
    %v3301 = vpop.f32.mrf.mxu0
    %v3302 = vadd.f32 %v3141, %v3301
    %v3303 = vpop.f32.mrf.mxu0
    %3304 = vmatprep.mubr.bf16.mxu0 0
    %3305 = vmatmul.mubr.bf16.gmra.mxu0 %v2846
    %v3306 = vpop.f32.mrf.mxu0
    %v3307 = vadd.f32 %v3146, %v3306
    %v3308 = vpop.f32.mrf.mxu0
    %v3309 = vpop.f32.mrf.mxu0
    %v3310 = vadd.f32 %v3149, %v3309
    %v3311 = vpop.f32.mrf.mxu0
    %3312 = vmatprep.mubr.bf16.mxu0 0
    %3313 = vmatmul.mubr.bf16.gmra.mxu0 %v2849
    %v3314 = vpop.f32.mrf.mxu0
    %v3315 = vadd.f32 %v3154, %v3314
    %v3316 = vpop.f32.mrf.mxu0
    %v3317 = vpop.f32.mrf.mxu0
    %v3318 = vadd.f32 %v3157, %v3317
    %v3319 = vpop.f32.mrf.mxu0
    %3320 = vmatprep.mubr.bf16.mxu0 0
    %3321 = vmatmul.mubr.bf16.gmra.mxu0 %v2852
    %v3322 = vpop.f32.mrf.mxu0
    %v3323 = vadd.f32 %v3162, %v3322
    %v3324 = vpop.f32.mrf.mxu0
    %v3325 = vpop.f32.mrf.mxu0
    %v3326 = vadd.f32 %v3165, %v3325
    %v3327 = vpop.f32.mrf.mxu0
    %3328 = vmatprep.mubr.bf16.mxu0 0
    %3329 = vmatmul.mubr.bf16.gmra.mxu0 %v2855
    %v3330 = vpop.f32.mrf.mxu0
    %v3331 = vadd.f32 %v3170, %v3330
    %v3332 = vpop.f32.mrf.mxu0
    %v3333 = vpop.f32.mrf.mxu0
    %v3334 = vadd.f32 %v3173, %v3333
    %v3335 = vpop.f32.mrf.mxu0
    %3336 = vmatprep.mubr.bf16.mxu0 0
    %3337 = vmatmul.mubr.bf16.gmra.mxu0 %v2858
    %v3338 = vpop.f32.mrf.mxu0
    %v3339 = vadd.f32 %v3178, %v3338
    %v3340 = vpop.f32.mrf.mxu0
    %v3341 = vpop.f32.mrf.mxu0
    %v3342 = vadd.f32 %v3181, %v3341
    %v3343 = vpop.f32.mrf.mxu0
    %3344 = vmatprep.mubr.bf16.mxu0 0
    %3345 = vmatmul.mubr.bf16.gmra.mxu0 %v2861
    %v3346 = vpop.f32.mrf.mxu0
    %v3347 = vadd.f32 %v3186, %v3346
    %v3348 = vpop.f32.mrf.mxu0
    %v3349 = vpop.f32.mrf.mxu0
    %v3350 = vadd.f32 %v3189, %v3349
    %v3351 = vpop.f32.mrf.mxu0
    %3352 = vmatprep.mubr.bf16.mxu0 0
    %3353 = vmatmul.mubr.bf16.gmra.mxu0 %v2864
    %v3354 = vpop.f32.mrf.mxu0
    %v3355 = vadd.f32 %v3194, %v3354
    %v3356 = vpop.f32.mrf.mxu0
    %v3357 = vpop.f32.mrf.mxu0
    %v3358 = vadd.f32 %v3197, %v3357
    %v3359 = vpop.f32.mrf.mxu0
    %3360 = vmatprep.mubr.bf16.mxu0 0
    %3361 = vmatmul.mubr.bf16.gmra.mxu0 %v2867
    %v3362 = vpop.f32.mrf.mxu0
    %v3363 = vadd.f32 %v3202, %v3362
    %v3364 = vpop.f32.mrf.mxu0
    %v3365 = vpop.f32.mrf.mxu0
    %v3366 = vadd.f32 %v3205, %v3365
    %v3367 = vpop.f32.mrf.mxu0
    %3368 = vmatprep.mubr.bf16.mxu0 0
    %3369 = vmatmul.mubr.bf16.gmra.mxu0 %v2870
    %v3370 = vpop.f32.mrf.mxu0
    %v3371 = vadd.f32 %v3210, %v3370
    %v3372 = vpop.f32.mrf.mxu0
    %v3373 = vpop.f32.mrf.mxu0
    %v3374 = vadd.f32 %v3213, %v3373
    %v3375 = vpop.f32.mrf.mxu0
    %3376 = vmatprep.mubr.bf16.mxu0 0
    %3377 = vmatmul.mubr.bf16.gmra.mxu0 %v2873
    %v3378 = vpop.f32.mrf.mxu0
    %v3379 = vadd.f32 %v3218, %v3378
    %v3380 = vpop.f32.mrf.mxu0
    %v3381 = vpop.f32.mrf.mxu0
    %v3382 = vadd.f32 %v3221, %v3381
    %v3383 = vpop.f32.mrf.mxu0
    %3384 = vmatprep.mubr.bf16.mxu0 0
    %3385 = vmatmul.mubr.bf16.gmra.mxu0 %v2876
    %v3386 = vpop.f32.mrf.mxu0
    %v3387 = vadd.f32 %v3226, %v3386
    %v3388 = vpop.f32.mrf.mxu0
    %v3389 = vpop.f32.mrf.mxu0
    %v3390 = vadd.f32 %v3229, %v3389
    %v3391 = vpop.f32.mrf.mxu0
    %3392 = vmatprep.mubr.bf16.mxu0 0
    %3393 = vmatmul.mubr.bf16.gmra.mxu0 %v2879
    %v3394 = vpop.f32.mrf.mxu0
    %v3395 = vadd.f32 %v3234, %v3394
    %v3396 = vpop.f32.mrf.mxu0
    %v3397 = vpop.f32.mrf.mxu0
    %v3398 = vadd.f32 %v3237, %v3397
    %v3399 = vpop.f32.mrf.mxu0
    %3400 = vdwg.mxu0
    %vm3401 = vcmp.gt.f32.partialorder %v3275, 0.0
    %vm3402 = vcmp.gt.f32.partialorder %v3278, 0.0
    %vm3403 = vcmp.gt.f32.partialorder %v3283, 0.0
    %vm3404 = vcmp.gt.f32.partialorder %v3286, 0.0
    %vm3405 = vcmp.gt.f32.partialorder %v3291, 0.0
    %vm3406 = vcmp.gt.f32.partialorder %v3294, 0.0
    %vm3407 = vcmp.gt.f32.partialorder %v3299, 0.0
    %vm3408 = vcmp.gt.f32.partialorder %v3302, 0.0
    %vm3409 = vcmp.gt.f32.partialorder %v3307, 0.0
    %vm3410 = vcmp.gt.f32.partialorder %v3310, 0.0
    %vm3411 = vcmp.gt.f32.partialorder %v3315, 0.0
    %vm3412 = vcmp.gt.f32.partialorder %v3318, 0.0
    %vm3413 = vcmp.gt.f32.partialorder %v3323, 0.0
    %vm3414 = vcmp.gt.f32.partialorder %v3326, 0.0
    %vm3415 = vcmp.gt.f32.partialorder %v3331, 0.0
    %vm3416 = vcmp.gt.f32.partialorder %v3334, 0.0
    %vm3417 = vcmp.gt.f32.partialorder %v3339, 0.0
    %vm3418 = vcmp.gt.f32.partialorder %v3342, 0.0
    %vm3419 = vcmp.gt.f32.partialorder %v3347, 0.0
    %vm3420 = vcmp.gt.f32.partialorder %v3350, 0.0
    %vm3421 = vcmp.gt.f32.partialorder %v3355, 0.0
    %vm3422 = vcmp.gt.f32.partialorder %v3358, 0.0
    %vm3423 = vcmp.gt.f32.partialorder %v3363, 0.0
    %vm3424 = vcmp.gt.f32.partialorder %v3366, 0.0
    %vm3425 = vcmp.gt.f32.partialorder %v3371, 0.0
    %vm3426 = vcmp.gt.f32.partialorder %v3374, 0.0
    %vm3427 = vcmp.gt.f32.partialorder %v3379, 0.0
    %vm3428 = vcmp.gt.f32.partialorder %v3382, 0.0
    %vm3429 = vcmp.gt.f32.partialorder %v3387, 0.0
    %vm3430 = vcmp.gt.f32.partialorder %v3390, 0.0
    %vm3431 = vcmp.gt.f32.partialorder %v3395, 0.0
    %vm3432 = vcmp.gt.f32.partialorder %v3398, 0.0
    %v3433 = vmul.f32 %v3275, 0.01
    %v3434 = vmul.f32 %v3278, 0.01
    %v3435 = vmul.f32 %v3283, 0.01
    %v3436 = vmul.f32 %v3286, 0.01
    %v3437 = vmul.f32 %v3291, 0.01
    %v3438 = vmul.f32 %v3294, 0.01
    %v3439 = vmul.f32 %v3299, 0.01
    %v3440 = vmul.f32 %v3302, 0.01
    %v3441 = vmul.f32 %v3307, 0.01
    %v3442 = vmul.f32 %v3310, 0.01
    %v3443 = vmul.f32 %v3315, 0.01
    %v3444 = vmul.f32 %v3318, 0.01
    %v3445 = vmul.f32 %v3323, 0.01
    %v3446 = vmul.f32 %v3326, 0.01
    %v3447 = vmul.f32 %v3331, 0.01
    %v3448 = vmul.f32 %v3334, 0.01
    %v3449 = vmul.f32 %v3339, 0.01
    %v3450 = vmul.f32 %v3342, 0.01
    %v3451 = vmul.f32 %v3347, 0.01
    %v3452 = vmul.f32 %v3350, 0.01
    %v3453 = vmul.f32 %v3355, 0.01
    %v3454 = vmul.f32 %v3358, 0.01
    %v3455 = vmul.f32 %v3363, 0.01
    %v3456 = vmul.f32 %v3366, 0.01
    %v3457 = vmul.f32 %v3371, 0.01
    %v3458 = vmul.f32 %v3374, 0.01
    %v3459 = vmul.f32 %v3379, 0.01
    %v3460 = vmul.f32 %v3382, 0.01
    %v3461 = vmul.f32 %v3387, 0.01
    %v3462 = vmul.f32 %v3390, 0.01
    %v3463 = vmul.f32 %v3395, 0.01
    %v3464 = vmul.f32 %v3398, 0.01
    %v3465 = vsel %vm3401, %v3275, %v3433
    %v3466 = vsel %vm3402, %v3278, %v3434
    %v3467 = vsel %vm3403, %v3283, %v3435
    %v3468 = vsel %vm3404, %v3286, %v3436
    %v3469 = vsel %vm3405, %v3291, %v3437
    %v3470 = vsel %vm3406, %v3294, %v3438
    %v3471 = vsel %vm3407, %v3299, %v3439
    %v3472 = vsel %vm3408, %v3302, %v3440
    %v3473 = vsel %vm3409, %v3307, %v3441
    %v3474 = vsel %vm3410, %v3310, %v3442
    %v3475 = vsel %vm3411, %v3315, %v3443
    %v3476 = vsel %vm3412, %v3318, %v3444
    %v3477 = vsel %vm3413, %v3323, %v3445
    %v3478 = vsel %vm3414, %v3326, %v3446
    %v3479 = vsel %vm3415, %v3331, %v3447
    %v3480 = vsel %vm3416, %v3334, %v3448
    %v3481 = vsel %vm3417, %v3339, %v3449
    %v3482 = vsel %vm3418, %v3342, %v3450
    %v3483 = vsel %vm3419, %v3347, %v3451
    %v3484 = vsel %vm3420, %v3350, %v3452
    %v3485 = vsel %vm3421, %v3355, %v3453
    %v3486 = vsel %vm3422, %v3358, %v3454
    %v3487 = vsel %vm3423, %v3363, %v3455
    %v3488 = vsel %vm3424, %v3366, %v3456
    %v3489 = vsel %vm3425, %v3371, %v3457
    %v3490 = vsel %vm3426, %v3374, %v3458
    %v3491 = vsel %vm3427, %v3379, %v3459
    %v3492 = vsel %vm3428, %v3382, %v3460
    %v3493 = vsel %vm3429, %v3387, %v3461
    %v3494 = vsel %vm3430, %v3390, %v3462
    %v3495 = vsel %vm3431, %v3395, %v3463
    %v3496 = vsel %vm3432, %v3398, %v3464
    %v3497 = vpack.c.bf16 %v3466, %v3465
    %v3498 = vpack.c.bf16 %v3468, %v3467
    %v3499 = vpack.c.bf16 %v3470, %v3469
    %v3500 = vpack.c.bf16 %v3472, %v3471
    %v3501 = vpack.c.bf16 %v3474, %v3473
    %v3502 = vpack.c.bf16 %v3476, %v3475
    %v3503 = vpack.c.bf16 %v3478, %v3477
    %v3504 = vpack.c.bf16 %v3480, %v3479
    %v3505 = vpack.c.bf16 %v3482, %v3481
    %v3506 = vpack.c.bf16 %v3484, %v3483
    %v3507 = vpack.c.bf16 %v3486, %v3485
    %v3508 = vpack.c.bf16 %v3488, %v3487
    %v3509 = vpack.c.bf16 %v3490, %v3489
    %v3510 = vpack.c.bf16 %v3492, %v3491
    %v3511 = vpack.c.bf16 %v3494, %v3493
    %v3512 = vpack.c.bf16 %v3496, %v3495
    %v3513 = vld [vmem:[#allocation8] sm:$0xf]
    %v3514 = vld [vmem:[#allocation8 + $0x4] sm:$0xf]
    %v3515 = vld [vmem:[#allocation8 + $0x8] sm:$0xf]
    %v3516 = vld [vmem:[#allocation8 + $0xc] sm:$0xf]
    %v3517 = vld [vmem:[#allocation8 + $0x10] sm:$0xf]
    %v3518 = vld [vmem:[#allocation8 + $0x14] sm:$0xf]
    %v3519 = vld [vmem:[#allocation8 + $0x18] sm:$0xf]
    %v3520 = vld [vmem:[#allocation8 + $0x1c] sm:$0xf]
    %v3521 = vld [vmem:[#allocation8 + $0x20] sm:$0xf]
    %v3522 = vld [vmem:[#allocation8 + $0x24] sm:$0xf]
    %v3523 = vld [vmem:[#allocation8 + $0x28] sm:$0xf]
    %v3524 = vld [vmem:[#allocation8 + $0x2c] sm:$0xf]
    %v3525 = vld [vmem:[#allocation8 + $0x30] sm:$0xf]
    %v3526 = vld [vmem:[#allocation8 + $0x34] sm:$0xf]
    %v3527 = vld [vmem:[#allocation8 + $0x38] sm:$0xf]
    %v3528 = vld [vmem:[#allocation8 + $0x3c] sm:$0xf]
    %v3529 = vld [vmem:[#allocation10] sm:$0x1]
    %v3531 = vlaneseq
    %v3532 = vshrl.u32 %v3531, 7
    %v3533 = vsub.s32 0, %v3532
    %v3534 = vrot.slane %v3529, %v3533
    %v3552 = vunpack.c.l.b16 %v3513
    %v3553 = vunpack.c.l.b16 %v3514
    %v3554 = vunpack.c.l.b16 %v3515
    %v3555 = vunpack.c.l.b16 %v3516
    %v3556 = vunpack.c.l.b16 %v3517
    %v3557 = vunpack.c.l.b16 %v3518
    %v3558 = vunpack.c.l.b16 %v3519
    %v3559 = vunpack.c.l.b16 %v3520
    %v3560 = vunpack.c.l.b16 %v3521
    %v3561 = vunpack.c.l.b16 %v3522
    %v3562 = vunpack.c.l.b16 %v3523
    %v3563 = vunpack.c.l.b16 %v3524
    %v3564 = vunpack.c.l.b16 %v3525
    %v3565 = vunpack.c.l.b16 %v3526
    %v3566 = vunpack.c.l.b16 %v3527
    %v3567 = vunpack.c.l.b16 %v3528
    %v3568 = vpack.c.b16 %v3553, %v3552
    %v3569 = vpack.c.b16 %v3555, %v3554
    %v3570 = vpack.c.b16 %v3557, %v3556
    %v3571 = vpack.c.b16 %v3559, %v3558
    %v3572 = vpack.c.b16 %v3561, %v3560
    %v3573 = vpack.c.b16 %v3563, %v3562
    %v3574 = vpack.c.b16 %v3565, %v3564
    %v3575 = vpack.c.b16 %v3567, %v3566
    %3584 = vmatprep.subr.bf16.mxu0 0
    %3585 = vmatpush1.bf16.msra.mxu0 %v3575
    %3586 = vmatprep.subr.bf16.mxu0 0
    %3587 = vmatpush1.bf16.msra.mxu0 %v3574
    %3588 = vmatprep.subr.bf16.mxu0 0
    %3589 = vmatpush1.bf16.msra.mxu0 %v3573
    %3590 = vmatprep.subr.bf16.mxu0 0
    %3591 = vmatpush1.bf16.msra.mxu0 %v3572
    %3592 = vmatprep.subr.bf16.mxu0 0
    %3593 = vmatpush1.bf16.msra.mxu0 %v3571
    %3594 = vmatprep.subr.bf16.mxu0 0
    %3595 = vmatpush1.bf16.msra.mxu0 %v3570
    %3596 = vmatprep.subr.bf16.mxu0 0
    %3597 = vmatpush1.bf16.msra.mxu0 %v3569
    %3598 = vmatprep.subr.bf16.mxu0 0
    %3599 = vmatpush1.bf16.msra.mxu0 %v3568
    %3600 = vmatprep.subr.bf16.mxu0 0
    %3601 = vmatpush2.bf16.msra.mxu0 0
    %3602 = vmatprep.subr.bf16.mxu0 0
    %3603 = vmatpush2.bf16.msra.mxu0 0
    %3604 = vmatprep.subr.bf16.mxu0 0
    %3605 = vmatpush2.bf16.msra.mxu0 0
    %3606 = vmatprep.subr.bf16.mxu0 0
    %3607 = vmatpush2.bf16.msra.mxu0 0
    %3608 = vmatprep.subr.bf16.mxu0 0
    %3609 = vmatpush2.bf16.msra.mxu0 0
    %3610 = vmatprep.subr.bf16.mxu0 0
    %3611 = vmatpush2.bf16.msra.mxu0 0
    %3612 = vmatprep.subr.bf16.mxu0 0
    %3613 = vmatpush2.bf16.msra.mxu0 0
    %3614 = vmatprep.subr.bf16.mxu0 0
    %3615 = vmatpush2.bf16.msra.mxu0 0
    %3616 = vmatprep.mubr.bf16.mxu0 0
    %3617 = vmatmul.mubr.bf16.gmra.mxu0 %v3497
    %v3618 = vpop.f32.mrf.mxu0
    %v3619 = vadd.f32 %v3534, %v3618
    %v3620 = vpop.f32.mrf.mxu0
    %v3621 = vpop.f32.mrf.mxu0
    %v3622 = vadd.f32 %v3534, %v3621
    %v3623 = vpop.f32.mrf.mxu0
    %3624 = vmatprep.mubr.bf16.mxu0 0
    %3625 = vmatmul.mubr.bf16.gmra.mxu0 %v3498
    %v3626 = vpop.f32.mrf.mxu0
    %v3627 = vadd.f32 %v3534, %v3626
    %v3628 = vpop.f32.mrf.mxu0
    %v3629 = vpop.f32.mrf.mxu0
    %v3630 = vadd.f32 %v3534, %v3629
    %v3631 = vpop.f32.mrf.mxu0
    %3632 = vmatprep.mubr.bf16.mxu0 0
    %3633 = vmatmul.mubr.bf16.gmra.mxu0 %v3499
    %v3634 = vpop.f32.mrf.mxu0
    %v3635 = vadd.f32 %v3534, %v3634
    %v3636 = vpop.f32.mrf.mxu0
    %v3637 = vpop.f32.mrf.mxu0
    %v3638 = vadd.f32 %v3534, %v3637
    %v3639 = vpop.f32.mrf.mxu0
    %3640 = vmatprep.mubr.bf16.mxu0 0
    %3641 = vmatmul.mubr.bf16.gmra.mxu0 %v3500
    %v3642 = vpop.f32.mrf.mxu0
    %v3643 = vadd.f32 %v3534, %v3642
    %v3644 = vpop.f32.mrf.mxu0
    %v3645 = vpop.f32.mrf.mxu0
    %v3646 = vadd.f32 %v3534, %v3645
    %v3647 = vpop.f32.mrf.mxu0
    %3648 = vmatprep.mubr.bf16.mxu0 0
    %3649 = vmatmul.mubr.bf16.gmra.mxu0 %v3501
    %v3650 = vpop.f32.mrf.mxu0
    %v3651 = vadd.f32 %v3534, %v3650
    %v3652 = vpop.f32.mrf.mxu0
    %v3653 = vpop.f32.mrf.mxu0
    %v3654 = vadd.f32 %v3534, %v3653
    %v3655 = vpop.f32.mrf.mxu0
    %3656 = vmatprep.mubr.bf16.mxu0 0
    %3657 = vmatmul.mubr.bf16.gmra.mxu0 %v3502
    %v3658 = vpop.f32.mrf.mxu0
    %v3659 = vadd.f32 %v3534, %v3658
    %v3660 = vpop.f32.mrf.mxu0
    %v3661 = vpop.f32.mrf.mxu0
    %v3662 = vadd.f32 %v3534, %v3661
    %v3663 = vpop.f32.mrf.mxu0
    %3664 = vmatprep.mubr.bf16.mxu0 0
    %3665 = vmatmul.mubr.bf16.gmra.mxu0 %v3503
    %v3666 = vpop.f32.mrf.mxu0
    %v3667 = vadd.f32 %v3534, %v3666
    %v3668 = vpop.f32.mrf.mxu0
    %v3669 = vpop.f32.mrf.mxu0
    %v3670 = vadd.f32 %v3534, %v3669
    %v3671 = vpop.f32.mrf.mxu0
    %3672 = vmatprep.mubr.bf16.mxu0 0
    %3673 = vmatmul.mubr.bf16.gmra.mxu0 %v3504
    %v3674 = vpop.f32.mrf.mxu0
    %v3675 = vadd.f32 %v3534, %v3674
    %v3676 = vpop.f32.mrf.mxu0
    %v3677 = vpop.f32.mrf.mxu0
    %v3678 = vadd.f32 %v3534, %v3677
    %v3679 = vpop.f32.mrf.mxu0
    %3680 = vmatprep.mubr.bf16.mxu0 0
    %3681 = vmatmul.mubr.bf16.gmra.mxu0 %v3505
    %v3682 = vpop.f32.mrf.mxu0
    %v3683 = vadd.f32 %v3534, %v3682
    %v3684 = vpop.f32.mrf.mxu0
    %v3685 = vpop.f32.mrf.mxu0
    %v3686 = vadd.f32 %v3534, %v3685
    %v3687 = vpop.f32.mrf.mxu0
    %3688 = vmatprep.mubr.bf16.mxu0 0
    %3689 = vmatmul.mubr.bf16.gmra.mxu0 %v3506
    %v3690 = vpop.f32.mrf.mxu0
    %v3691 = vadd.f32 %v3534, %v3690
    %v3692 = vpop.f32.mrf.mxu0
    %v3693 = vpop.f32.mrf.mxu0
    %v3694 = vadd.f32 %v3534, %v3693
    %v3695 = vpop.f32.mrf.mxu0
    %3696 = vmatprep.mubr.bf16.mxu0 0
    %3697 = vmatmul.mubr.bf16.gmra.mxu0 %v3507
    %v3698 = vpop.f32.mrf.mxu0
    %v3699 = vadd.f32 %v3534, %v3698
    %v3700 = vpop.f32.mrf.mxu0
    %v3701 = vpop.f32.mrf.mxu0
    %v3702 = vadd.f32 %v3534, %v3701
    %v3703 = vpop.f32.mrf.mxu0
    %3704 = vmatprep.mubr.bf16.mxu0 0
    %3705 = vmatmul.mubr.bf16.gmra.mxu0 %v3508
    %v3706 = vpop.f32.mrf.mxu0
    %v3707 = vadd.f32 %v3534, %v3706
    %v3708 = vpop.f32.mrf.mxu0
    %v3709 = vpop.f32.mrf.mxu0
    %v3710 = vadd.f32 %v3534, %v3709
    %v3711 = vpop.f32.mrf.mxu0
    %3712 = vmatprep.mubr.bf16.mxu0 0
    %3713 = vmatmul.mubr.bf16.gmra.mxu0 %v3509
    %v3714 = vpop.f32.mrf.mxu0
    %v3715 = vadd.f32 %v3534, %v3714
    %v3716 = vpop.f32.mrf.mxu0
    %v3717 = vpop.f32.mrf.mxu0
    %v3718 = vadd.f32 %v3534, %v3717
    %v3719 = vpop.f32.mrf.mxu0
    %3720 = vmatprep.mubr.bf16.mxu0 0
    %3721 = vmatmul.mubr.bf16.gmra.mxu0 %v3510
    %v3722 = vpop.f32.mrf.mxu0
    %v3723 = vadd.f32 %v3534, %v3722
    %v3724 = vpop.f32.mrf.mxu0
    %v3725 = vpop.f32.mrf.mxu0
    %v3726 = vadd.f32 %v3534, %v3725
    %v3727 = vpop.f32.mrf.mxu0
    %3728 = vmatprep.mubr.bf16.mxu0 0
    %3729 = vmatmul.mubr.bf16.gmra.mxu0 %v3511
    %v3730 = vpop.f32.mrf.mxu0
    %v3731 = vadd.f32 %v3534, %v3730
    %v3732 = vpop.f32.mrf.mxu0
    %v3733 = vpop.f32.mrf.mxu0
    %v3734 = vadd.f32 %v3534, %v3733
    %v3735 = vpop.f32.mrf.mxu0
    %3736 = vmatprep.mubr.bf16.mxu0 0
    %3737 = vmatmul.mubr.bf16.gmra.mxu0 %v3512
    %v3738 = vpop.f32.mrf.mxu0
    %v3739 = vadd.f32 %v3534, %v3738
    %v3740 = vpop.f32.mrf.mxu0
    %v3741 = vpop.f32.mrf.mxu0
    %v3742 = vadd.f32 %v3534, %v3741
    %v3743 = vpop.f32.mrf.mxu0
    %3744 = vdwg.mxu0
    %v3745 = vpack.c.bf16 %v3622, %v3619
    %v3746 = vpack.c.bf16 %v3630, %v3627
    %v3747 = vpack.c.bf16 %v3638, %v3635
    %v3748 = vpack.c.bf16 %v3646, %v3643
    %v3749 = vpack.c.bf16 %v3654, %v3651
    %v3750 = vpack.c.bf16 %v3662, %v3659
    %v3751 = vpack.c.bf16 %v3670, %v3667
    %v3752 = vpack.c.bf16 %v3678, %v3675
    %v3753 = vpack.c.bf16 %v3686, %v3683
    %v3754 = vpack.c.bf16 %v3694, %v3691
    %v3755 = vpack.c.bf16 %v3702, %v3699
    %v3756 = vpack.c.bf16 %v3710, %v3707
    %v3757 = vpack.c.bf16 %v3718, %v3715
    %v3758 = vpack.c.bf16 %v3726, %v3723
    %v3759 = vpack.c.bf16 %v3734, %v3731
    %v3760 = vpack.c.bf16 %v3742, %v3739
    %v3761 = vld [vmem:[#allocation11] sm:$0xf]
    %v3762 = vld [vmem:[#allocation11 + $0x4] sm:$0xf]
    %v3763 = vld [vmem:[#allocation11 + $0x8] sm:$0xf]
    %v3764 = vld [vmem:[#allocation11 + $0xc] sm:$0xf]
    %v3765 = vld [vmem:[#allocation11 + $0x10] sm:$0xf]
    %v3766 = vld [vmem:[#allocation11 + $0x14] sm:$0xf]
    %v3767 = vld [vmem:[#allocation11 + $0x18] sm:$0xf]
    %v3768 = vld [vmem:[#allocation11 + $0x1c] sm:$0xf]
    %v3769 = vld [vmem:[#allocation11 + $0x20] sm:$0xf]
    %v3770 = vld [vmem:[#allocation11 + $0x24] sm:$0xf]
    %v3771 = vld [vmem:[#allocation11 + $0x28] sm:$0xf]
    %v3772 = vld [vmem:[#allocation11 + $0x2c] sm:$0xf]
    %v3773 = vld [vmem:[#allocation11 + $0x30] sm:$0xf]
    %v3774 = vld [vmem:[#allocation11 + $0x34] sm:$0xf]
    %v3775 = vld [vmem:[#allocation11 + $0x38] sm:$0xf]
    %v3776 = vld [vmem:[#allocation11 + $0x3c] sm:$0xf]
    %v3777 = vld [vmem:[%s8] sm:$0x1]
    %v3779 = vlaneseq
    %v3780 = vshrl.u32 %v3779, 7
    %v3781 = vsub.s32 0, %v3780
    %v3782 = vrot.slane %v3777, %v3781
    %v3800 = vunpack.c.l.b16 %v3761
    %v3801 = vunpack.c.l.b16 %v3762
    %v3802 = vunpack.c.l.b16 %v3763
    %v3803 = vunpack.c.l.b16 %v3764
    %v3804 = vunpack.c.l.b16 %v3765
    %v3805 = vunpack.c.l.b16 %v3766
    %v3806 = vunpack.c.l.b16 %v3767
    %v3807 = vunpack.c.l.b16 %v3768
    %v3808 = vunpack.c.l.b16 %v3769
    %v3809 = vunpack.c.l.b16 %v3770
    %v3810 = vunpack.c.l.b16 %v3771
    %v3811 = vunpack.c.l.b16 %v3772
    %v3812 = vunpack.c.l.b16 %v3773
    %v3813 = vunpack.c.l.b16 %v3774
    %v3814 = vunpack.c.l.b16 %v3775
    %v3815 = vunpack.c.l.b16 %v3776
    %v3816 = vpack.c.b16 %v3801, %v3800
    %v3817 = vpack.c.b16 %v3803, %v3802
    %v3818 = vpack.c.b16 %v3805, %v3804
    %v3819 = vpack.c.b16 %v3807, %v3806
    %v3820 = vpack.c.b16 %v3809, %v3808
    %v3821 = vpack.c.b16 %v3811, %v3810
    %v3822 = vpack.c.b16 %v3813, %v3812
    %v3823 = vpack.c.b16 %v3815, %v3814
    %3832 = vmatprep.subr.bf16.mxu0 0
    %3833 = vmatpush1.bf16.msra.mxu0 %v3823
    %3834 = vmatprep.subr.bf16.mxu0 0
    %3835 = vmatpush1.bf16.msra.mxu0 %v3822
    %3836 = vmatprep.subr.bf16.mxu0 0
    %3837 = vmatpush1.bf16.msra.mxu0 %v3821
    %3838 = vmatprep.subr.bf16.mxu0 0
    %3839 = vmatpush1.bf16.msra.mxu0 %v3820
    %3840 = vmatprep.subr.bf16.mxu0 0
    %3841 = vmatpush1.bf16.msra.mxu0 %v3819
    %3842 = vmatprep.subr.bf16.mxu0 0
    %3843 = vmatpush1.bf16.msra.mxu0 %v3818
    %3844 = vmatprep.subr.bf16.mxu0 0
    %3845 = vmatpush1.bf16.msra.mxu0 %v3817
    %3846 = vmatprep.subr.bf16.mxu0 0
    %3847 = vmatpush1.bf16.msra.mxu0 %v3816
    %3848 = vmatprep.subr.bf16.mxu0 0
    %3849 = vmatpush2.bf16.msra.mxu0 0
    %3850 = vmatprep.subr.bf16.mxu0 0
    %3851 = vmatpush2.bf16.msra.mxu0 0
    %3852 = vmatprep.subr.bf16.mxu0 0
    %3853 = vmatpush2.bf16.msra.mxu0 0
    %3854 = vmatprep.subr.bf16.mxu0 0
    %3855 = vmatpush2.bf16.msra.mxu0 0
    %3856 = vmatprep.subr.bf16.mxu0 0
    %3857 = vmatpush2.bf16.msra.mxu0 0
    %3858 = vmatprep.subr.bf16.mxu0 0
    %3859 = vmatpush2.bf16.msra.mxu0 0
    %3860 = vmatprep.subr.bf16.mxu0 0
    %3861 = vmatpush2.bf16.msra.mxu0 0
    %3862 = vmatprep.subr.bf16.mxu0 0
    %3863 = vmatpush2.bf16.msra.mxu0 0
    %3864 = vmatprep.mubr.bf16.mxu0 0
    %3865 = vmatmul.mubr.bf16.gmra.mxu0 %v3745
    %v3866 = vpop.f32.mrf.mxu0
    %v3867 = vadd.f32 %v3782, %v3866
    %v3868 = vpop.f32.mrf.mxu0
    %v3869 = vpop.f32.mrf.mxu0
    %v3870 = vadd.f32 %v3782, %v3869
    %v3871 = vpop.f32.mrf.mxu0
    %3872 = vmatprep.mubr.bf16.mxu0 0
    %3873 = vmatmul.mubr.bf16.gmra.mxu0 %v3746
    %v3874 = vpop.f32.mrf.mxu0
    %v3875 = vadd.f32 %v3782, %v3874
    %v3876 = vpop.f32.mrf.mxu0
    %v3877 = vpop.f32.mrf.mxu0
    %v3878 = vadd.f32 %v3782, %v3877
    %v3879 = vpop.f32.mrf.mxu0
    %3880 = vmatprep.mubr.bf16.mxu0 0
    %3881 = vmatmul.mubr.bf16.gmra.mxu0 %v3747
    %v3882 = vpop.f32.mrf.mxu0
    %v3883 = vadd.f32 %v3782, %v3882
    %v3884 = vpop.f32.mrf.mxu0
    %v3885 = vpop.f32.mrf.mxu0
    %v3886 = vadd.f32 %v3782, %v3885
    %v3887 = vpop.f32.mrf.mxu0
    %3888 = vmatprep.mubr.bf16.mxu0 0
    %3889 = vmatmul.mubr.bf16.gmra.mxu0 %v3748
    %v3890 = vpop.f32.mrf.mxu0
    %v3891 = vadd.f32 %v3782, %v3890
    %v3892 = vpop.f32.mrf.mxu0
    %v3893 = vpop.f32.mrf.mxu0
    %v3894 = vadd.f32 %v3782, %v3893
    %v3895 = vpop.f32.mrf.mxu0
    %3896 = vmatprep.mubr.bf16.mxu0 0
    %3897 = vmatmul.mubr.bf16.gmra.mxu0 %v3749
    %v3898 = vpop.f32.mrf.mxu0
    %v3899 = vadd.f32 %v3782, %v3898
    %v3900 = vpop.f32.mrf.mxu0
    %v3901 = vpop.f32.mrf.mxu0
    %v3902 = vadd.f32 %v3782, %v3901
    %v3903 = vpop.f32.mrf.mxu0
    %3904 = vmatprep.mubr.bf16.mxu0 0
    %3905 = vmatmul.mubr.bf16.gmra.mxu0 %v3750
    %v3906 = vpop.f32.mrf.mxu0
    %v3907 = vadd.f32 %v3782, %v3906
    %v3908 = vpop.f32.mrf.mxu0
    %v3909 = vpop.f32.mrf.mxu0
    %v3910 = vadd.f32 %v3782, %v3909
    %v3911 = vpop.f32.mrf.mxu0
    %3912 = vmatprep.mubr.bf16.mxu0 0
    %3913 = vmatmul.mubr.bf16.gmra.mxu0 %v3751
    %v3914 = vpop.f32.mrf.mxu0
    %v3915 = vadd.f32 %v3782, %v3914
    %v3916 = vpop.f32.mrf.mxu0
    %v3917 = vpop.f32.mrf.mxu0
    %v3918 = vadd.f32 %v3782, %v3917
    %v3919 = vpop.f32.mrf.mxu0
    %3920 = vmatprep.mubr.bf16.mxu0 0
    %3921 = vmatmul.mubr.bf16.gmra.mxu0 %v3752
    %v3922 = vpop.f32.mrf.mxu0
    %v3923 = vadd.f32 %v3782, %v3922
    %v3924 = vpop.f32.mrf.mxu0
    %v3925 = vpop.f32.mrf.mxu0
    %v3926 = vadd.f32 %v3782, %v3925
    %v3927 = vpop.f32.mrf.mxu0
    %3928 = vmatprep.mubr.bf16.mxu0 0
    %3929 = vmatmul.mubr.bf16.gmra.mxu0 %v3753
    %v3930 = vpop.f32.mrf.mxu0
    %v3931 = vadd.f32 %v3782, %v3930
    %v3932 = vpop.f32.mrf.mxu0
    %v3933 = vpop.f32.mrf.mxu0
    %v3934 = vadd.f32 %v3782, %v3933
    %v3935 = vpop.f32.mrf.mxu0
    %3936 = vmatprep.mubr.bf16.mxu0 0
    %3937 = vmatmul.mubr.bf16.gmra.mxu0 %v3754
    %v3938 = vpop.f32.mrf.mxu0
    %v3939 = vadd.f32 %v3782, %v3938
    %v3940 = vpop.f32.mrf.mxu0
    %v3941 = vpop.f32.mrf.mxu0
    %v3942 = vadd.f32 %v3782, %v3941
    %v3943 = vpop.f32.mrf.mxu0
    %3944 = vmatprep.mubr.bf16.mxu0 0
    %3945 = vmatmul.mubr.bf16.gmra.mxu0 %v3755
    %v3946 = vpop.f32.mrf.mxu0
    %v3947 = vadd.f32 %v3782, %v3946
    %v3948 = vpop.f32.mrf.mxu0
    %v3949 = vpop.f32.mrf.mxu0
    %v3950 = vadd.f32 %v3782, %v3949
    %v3951 = vpop.f32.mrf.mxu0
    %3952 = vmatprep.mubr.bf16.mxu0 0
    %3953 = vmatmul.mubr.bf16.gmra.mxu0 %v3756
    %v3954 = vpop.f32.mrf.mxu0
    %v3955 = vadd.f32 %v3782, %v3954
    %v3956 = vpop.f32.mrf.mxu0
    %v3957 = vpop.f32.mrf.mxu0
    %v3958 = vadd.f32 %v3782, %v3957
    %v3959 = vpop.f32.mrf.mxu0
    %3960 = vmatprep.mubr.bf16.mxu0 0
    %3961 = vmatmul.mubr.bf16.gmra.mxu0 %v3757
    %v3962 = vpop.f32.mrf.mxu0
    %v3963 = vadd.f32 %v3782, %v3962
    %v3964 = vpop.f32.mrf.mxu0
    %v3965 = vpop.f32.mrf.mxu0
    %v3966 = vadd.f32 %v3782, %v3965
    %v3967 = vpop.f32.mrf.mxu0
    %3968 = vmatprep.mubr.bf16.mxu0 0
    %3969 = vmatmul.mubr.bf16.gmra.mxu0 %v3758
    %v3970 = vpop.f32.mrf.mxu0
    %v3971 = vadd.f32 %v3782, %v3970
    %v3972 = vpop.f32.mrf.mxu0
    %v3973 = vpop.f32.mrf.mxu0
    %v3974 = vadd.f32 %v3782, %v3973
    %v3975 = vpop.f32.mrf.mxu0
    %3976 = vmatprep.mubr.bf16.mxu0 0
    %3977 = vmatmul.mubr.bf16.gmra.mxu0 %v3759
    %v3978 = vpop.f32.mrf.mxu0
    %v3979 = vadd.f32 %v3782, %v3978
    %v3980 = vpop.f32.mrf.mxu0
    %v3981 = vpop.f32.mrf.mxu0
    %v3982 = vadd.f32 %v3782, %v3981
    %v3983 = vpop.f32.mrf.mxu0
    %3984 = vmatprep.mubr.bf16.mxu0 0
    %3985 = vmatmul.mubr.bf16.gmra.mxu0 %v3760
    %v3986 = vpop.f32.mrf.mxu0
    %v3987 = vadd.f32 %v3782, %v3986
    %v3988 = vpop.f32.mrf.mxu0
    %v3989 = vpop.f32.mrf.mxu0
    %v3990 = vadd.f32 %v3782, %v3989
    %v3991 = vpop.f32.mrf.mxu0
    %3992 = vdwg.mxu0
    %vm3993 = vcmp.gt.f32.partialorder %v3867, 0.0
    %vm3994 = vcmp.gt.f32.partialorder %v3870, 0.0
    %vm3995 = vcmp.gt.f32.partialorder %v3875, 0.0
    %vm3996 = vcmp.gt.f32.partialorder %v3878, 0.0
    %vm3997 = vcmp.gt.f32.partialorder %v3883, 0.0
    %vm3998 = vcmp.gt.f32.partialorder %v3886, 0.0
    %vm3999 = vcmp.gt.f32.partialorder %v3891, 0.0
    %vm4000 = vcmp.gt.f32.partialorder %v3894, 0.0
    %vm4001 = vcmp.gt.f32.partialorder %v3899, 0.0
    %vm4002 = vcmp.gt.f32.partialorder %v3902, 0.0
    %vm4003 = vcmp.gt.f32.partialorder %v3907, 0.0
    %vm4004 = vcmp.gt.f32.partialorder %v3910, 0.0
    %vm4005 = vcmp.gt.f32.partialorder %v3915, 0.0
    %vm4006 = vcmp.gt.f32.partialorder %v3918, 0.0
    %vm4007 = vcmp.gt.f32.partialorder %v3923, 0.0
    %vm4008 = vcmp.gt.f32.partialorder %v3926, 0.0
    %vm4009 = vcmp.gt.f32.partialorder %v3931, 0.0
    %vm4010 = vcmp.gt.f32.partialorder %v3934, 0.0
    %vm4011 = vcmp.gt.f32.partialorder %v3939, 0.0
    %vm4012 = vcmp.gt.f32.partialorder %v3942, 0.0
    %vm4013 = vcmp.gt.f32.partialorder %v3947, 0.0
    %vm4014 = vcmp.gt.f32.partialorder %v3950, 0.0
    %vm4015 = vcmp.gt.f32.partialorder %v3955, 0.0
    %vm4016 = vcmp.gt.f32.partialorder %v3958, 0.0
    %vm4017 = vcmp.gt.f32.partialorder %v3963, 0.0
    %vm4018 = vcmp.gt.f32.partialorder %v3966, 0.0
    %vm4019 = vcmp.gt.f32.partialorder %v3971, 0.0
    %vm4020 = vcmp.gt.f32.partialorder %v3974, 0.0
    %vm4021 = vcmp.gt.f32.partialorder %v3979, 0.0
    %vm4022 = vcmp.gt.f32.partialorder %v3982, 0.0
    %vm4023 = vcmp.gt.f32.partialorder %v3987, 0.0
    %vm4024 = vcmp.gt.f32.partialorder %v3990, 0.0
    %v4025 = vmul.f32 %v3867, 0.01
    %v4026 = vmul.f32 %v3870, 0.01
    %v4027 = vmul.f32 %v3875, 0.01
    %v4028 = vmul.f32 %v3878, 0.01
    %v4029 = vmul.f32 %v3883, 0.01
    %v4030 = vmul.f32 %v3886, 0.01
    %v4031 = vmul.f32 %v3891, 0.01
    %v4032 = vmul.f32 %v3894, 0.01
    %v4033 = vmul.f32 %v3899, 0.01
    %v4034 = vmul.f32 %v3902, 0.01
    %v4035 = vmul.f32 %v3907, 0.01
    %v4036 = vmul.f32 %v3910, 0.01
    %v4037 = vmul.f32 %v3915, 0.01
    %v4038 = vmul.f32 %v3918, 0.01
    %v4039 = vmul.f32 %v3923, 0.01
    %v4040 = vmul.f32 %v3926, 0.01
    %v4041 = vmul.f32 %v3931, 0.01
    %v4042 = vmul.f32 %v3934, 0.01
    %v4043 = vmul.f32 %v3939, 0.01
    %v4044 = vmul.f32 %v3942, 0.01
    %v4045 = vmul.f32 %v3947, 0.01
    %v4046 = vmul.f32 %v3950, 0.01
    %v4047 = vmul.f32 %v3955, 0.01
    %v4048 = vmul.f32 %v3958, 0.01
    %v4049 = vmul.f32 %v3963, 0.01
    %v4050 = vmul.f32 %v3966, 0.01
    %v4051 = vmul.f32 %v3971, 0.01
    %v4052 = vmul.f32 %v3974, 0.01
    %v4053 = vmul.f32 %v3979, 0.01
    %v4054 = vmul.f32 %v3982, 0.01
    %v4055 = vmul.f32 %v3987, 0.01
    %v4056 = vmul.f32 %v3990, 0.01
    %v4057 = vsel %vm3993, %v3867, %v4025
    %v4058 = vsel %vm3994, %v3870, %v4026
    %v4059 = vsel %vm3995, %v3875, %v4027
    %v4060 = vsel %vm3996, %v3878, %v4028
    %v4061 = vsel %vm3997, %v3883, %v4029
    %v4062 = vsel %vm3998, %v3886, %v4030
    %v4063 = vsel %vm3999, %v3891, %v4031
    %v4064 = vsel %vm4000, %v3894, %v4032
    %v4065 = vsel %vm4001, %v3899, %v4033
    %v4066 = vsel %vm4002, %v3902, %v4034
    %v4067 = vsel %vm4003, %v3907, %v4035
    %v4068 = vsel %vm4004, %v3910, %v4036
    %v4069 = vsel %vm4005, %v3915, %v4037
    %v4070 = vsel %vm4006, %v3918, %v4038
    %v4071 = vsel %vm4007, %v3923, %v4039
    %v4072 = vsel %vm4008, %v3926, %v4040
    %v4073 = vsel %vm4009, %v3931, %v4041
    %v4074 = vsel %vm4010, %v3934, %v4042
    %v4075 = vsel %vm4011, %v3939, %v4043
    %v4076 = vsel %vm4012, %v3942, %v4044
    %v4077 = vsel %vm4013, %v3947, %v4045
    %v4078 = vsel %vm4014, %v3950, %v4046
    %v4079 = vsel %vm4015, %v3955, %v4047
    %v4080 = vsel %vm4016, %v3958, %v4048
    %v4081 = vsel %vm4017, %v3963, %v4049
    %v4082 = vsel %vm4018, %v3966, %v4050
    %v4083 = vsel %vm4019, %v3971, %v4051
    %v4084 = vsel %vm4020, %v3974, %v4052
    %v4085 = vsel %vm4021, %v3979, %v4053
    %v4086 = vsel %vm4022, %v3982, %v4054
    %v4087 = vsel %vm4023, %v3987, %v4055
    %v4088 = vsel %vm4024, %v3990, %v4056
    %v4089 = vpack.c.bf16 %v4058, %v4057
    %v4090 = vpack.c.bf16 %v4060, %v4059
    %v4091 = vpack.c.bf16 %v4062, %v4061
    %v4092 = vpack.c.bf16 %v4064, %v4063
    %v4093 = vpack.c.bf16 %v4066, %v4065
    %v4094 = vpack.c.bf16 %v4068, %v4067
    %v4095 = vpack.c.bf16 %v4070, %v4069
    %v4096 = vpack.c.bf16 %v4072, %v4071
    %v4097 = vpack.c.bf16 %v4074, %v4073
    %v4098 = vpack.c.bf16 %v4076, %v4075
    %v4099 = vpack.c.bf16 %v4078, %v4077
    %v4100 = vpack.c.bf16 %v4080, %v4079
    %v4101 = vpack.c.bf16 %v4082, %v4081
    %v4102 = vpack.c.bf16 %v4084, %v4083
    %v4103 = vpack.c.bf16 %v4086, %v4085
    %v4104 = vpack.c.bf16 %v4088, %v4087
    %v4105 = vld [vmem:[#allocation13] sm:$0xff]
    %v4106 = vld [vmem:[#allocation13 + $0x8] sm:$0xf]
    %v4107 = vld [vmem:[#allocation13 + $0xc] sm:$0xff]
    %v4108 = vld [vmem:[#allocation13 + $0x14] sm:$0xf]
    %v4109 = vld [vmem:[#allocation13 + $0x18] sm:$0xff]
    %v4110 = vld [vmem:[#allocation13 + $0x20] sm:$0xf]
    %v4111 = vld [vmem:[#allocation13 + $0x24] sm:$0xff]
    %v4112 = vld [vmem:[#allocation13 + $0x2c] sm:$0xf]
    %v4113 = vld [vmem:[#allocation13 + $0x30] sm:$0xff]
    %v4114 = vld [vmem:[#allocation13 + $0x38] sm:$0xf]
    %v4115 = vld [vmem:[#allocation13 + $0x3c] sm:$0xff]
    %v4116 = vld [vmem:[#allocation13 + $0x44] sm:$0xf]
    %v4117 = vld [vmem:[#allocation13 + $0x48] sm:$0xff]
    %v4118 = vld [vmem:[#allocation13 + $0x50] sm:$0xf]
    %v4119 = vld [vmem:[#allocation13 + $0x54] sm:$0xff]
    %v4120 = vld [vmem:[#allocation13 + $0x5c] sm:$0xf]
    %v4121 = vld [vmem:[#allocation13 + $0x60] sm:$0xff]
    %v4122 = vld [vmem:[#allocation13 + $0x68] sm:$0xf]
    %v4123 = vld [vmem:[#allocation13 + $0x6c] sm:$0xff]
    %v4124 = vld [vmem:[#allocation13 + $0x74] sm:$0xf]
    %v4125 = vld [vmem:[#allocation13 + $0x78] sm:$0xff]
    %v4126 = vld [vmem:[#allocation13 + $0x80] sm:$0xf]
    %v4127 = vld [vmem:[#allocation13 + $0x84] sm:$0xff]
    %v4128 = vld [vmem:[#allocation13 + $0x8c] sm:$0xf]
    %v4129 = vld [vmem:[#allocation13 + $0x90] sm:$0xff]
    %v4130 = vld [vmem:[#allocation13 + $0x98] sm:$0xf]
    %v4131 = vld [vmem:[#allocation13 + $0x9c] sm:$0xff]
    %v4132 = vld [vmem:[#allocation13 + $0xa4] sm:$0xf]
    %v4133 = vld [vmem:[#allocation13 + $0xa8] sm:$0xff]
    %v4134 = vld [vmem:[#allocation13 + $0xb0] sm:$0xf]
    %v4135 = vld [vmem:[#allocation13 + $0xb4] sm:$0xff]
    %v4136 = vld [vmem:[#allocation13 + $0xbc] sm:$0xf]
    %v4137 = vld [vmem:[%s10] sm:$0x7]
    %v4139 = vlaneseq
    %v4140 = vshrl.u32 %v4139, 7
    %v4141 = vsub.s32 0, %v4140
    %v4142 = vrot.slane %v4137, %v4141
    %v4143 = vlaneseq
    %v4144 = vshrl.u32 %v4143, 7
    %v4145 = vsub.s32 1, %v4144
    %v4146 = vrot.slane %v4137, %v4145
    %v4147 = vlaneseq
    %v4148 = vshrl.u32 %v4147, 7
    %v4149 = vsub.s32 2, %v4148
    %v4150 = vrot.slane %v4137, %v4149
    %v4186 = vunpack.c.l.b16 %v4105
    %v4187 = vunpack.c.h.b16 %v4105
    %v4188 = vunpack.c.l.b16 %v4106
    %v4189 = vunpack.c.l.b16 %v4107
    %v4190 = vunpack.c.h.b16 %v4107
    %v4191 = vunpack.c.l.b16 %v4108
    %v4192 = vunpack.c.l.b16 %v4109
    %v4193 = vunpack.c.h.b16 %v4109
    %v4194 = vunpack.c.l.b16 %v4110
    %v4195 = vunpack.c.l.b16 %v4111
    %v4196 = vunpack.c.h.b16 %v4111
    %v4197 = vunpack.c.l.b16 %v4112
    %v4198 = vunpack.c.l.b16 %v4113
    %v4199 = vunpack.c.h.b16 %v4113
    %v4200 = vunpack.c.l.b16 %v4114
    %v4201 = vunpack.c.l.b16 %v4115
    %v4202 = vunpack.c.h.b16 %v4115
    %v4203 = vunpack.c.l.b16 %v4116
    %v4204 = vunpack.c.l.b16 %v4117
    %v4205 = vunpack.c.h.b16 %v4117
    %v4206 = vunpack.c.l.b16 %v4118
    %v4207 = vunpack.c.l.b16 %v4119
    %v4208 = vunpack.c.h.b16 %v4119
    %v4209 = vunpack.c.l.b16 %v4120
    %v4210 = vunpack.c.l.b16 %v4121
    %v4211 = vunpack.c.h.b16 %v4121
    %v4212 = vunpack.c.l.b16 %v4122
    %v4213 = vunpack.c.l.b16 %v4123
    %v4214 = vunpack.c.h.b16 %v4123
    %v4215 = vunpack.c.l.b16 %v4124
    %v4216 = vunpack.c.l.b16 %v4125
    %v4217 = vunpack.c.h.b16 %v4125
    %v4218 = vunpack.c.l.b16 %v4126
    %v4219 = vunpack.c.l.b16 %v4127
    %v4220 = vunpack.c.h.b16 %v4127
    %v4221 = vunpack.c.l.b16 %v4128
    %v4222 = vunpack.c.l.b16 %v4129
    %v4223 = vunpack.c.h.b16 %v4129
    %v4224 = vunpack.c.l.b16 %v4130
    %v4225 = vunpack.c.l.b16 %v4131
    %v4226 = vunpack.c.h.b16 %v4131
    %v4227 = vunpack.c.l.b16 %v4132
    %v4228 = vunpack.c.l.b16 %v4133
    %v4229 = vunpack.c.h.b16 %v4133
    %v4230 = vunpack.c.l.b16 %v4134
    %v4231 = vunpack.c.l.b16 %v4135
    %v4232 = vunpack.c.h.b16 %v4135
    %v4233 = vunpack.c.l.b16 %v4136
    %v4234 = vpack.c.b16 %v4189, %v4186
    %v4235 = vpack.c.b16 %v4190, %v4187
    %v4236 = vpack.c.b16 %v4191, %v4188
    %v4237 = vpack.c.b16 %v4195, %v4192
    %v4238 = vpack.c.b16 %v4196, %v4193
    %v4239 = vpack.c.b16 %v4197, %v4194
    %v4240 = vpack.c.b16 %v4201, %v4198
    %v4241 = vpack.c.b16 %v4202, %v4199
    %v4242 = vpack.c.b16 %v4203, %v4200
    %v4243 = vpack.c.b16 %v4207, %v4204
    %v4244 = vpack.c.b16 %v4208, %v4205
    %v4245 = vpack.c.b16 %v4209, %v4206
    %v4246 = vpack.c.b16 %v4213, %v4210
    %v4247 = vpack.c.b16 %v4214, %v4211
    %v4248 = vpack.c.b16 %v4215, %v4212
    %v4249 = vpack.c.b16 %v4219, %v4216
    %v4250 = vpack.c.b16 %v4220, %v4217
    %v4251 = vpack.c.b16 %v4221, %v4218
    %v4252 = vpack.c.b16 %v4225, %v4222
    %v4253 = vpack.c.b16 %v4226, %v4223
    %v4254 = vpack.c.b16 %v4227, %v4224
    %v4255 = vpack.c.b16 %v4231, %v4228
    %v4256 = vpack.c.b16 %v4232, %v4229
    %v4257 = vpack.c.b16 %v4233, %v4230
    %4282 = vmatprep.subr.bf16.mxu0 %v4256
    %4283 = vmatpush1.bf16.msra.mxu0 %v4255
    %4284 = vmatprep.subr.bf16.mxu0 %v4253
    %4285 = vmatpush1.bf16.msra.mxu0 %v4252
    %4286 = vmatprep.subr.bf16.mxu0 %v4250
    %4287 = vmatpush1.bf16.msra.mxu0 %v4249
    %4288 = vmatprep.subr.bf16.mxu0 %v4247
    %4289 = vmatpush1.bf16.msra.mxu0 %v4246
    %4290 = vmatprep.subr.bf16.mxu0 %v4244
    %4291 = vmatpush1.bf16.msra.mxu0 %v4243
    %4292 = vmatprep.subr.bf16.mxu0 %v4241
    %4293 = vmatpush1.bf16.msra.mxu0 %v4240
    %4294 = vmatprep.subr.bf16.mxu0 %v4238
    %4295 = vmatpush1.bf16.msra.mxu0 %v4237
    %4296 = vmatprep.subr.bf16.mxu0 %v4235
    %4297 = vmatpush1.bf16.msra.mxu0 %v4234
    %4298 = vmatprep.subr.bf16.mxu0 0
    %4299 = vmatpush2.bf16.msra.mxu0 0
    %4300 = vmatprep.subr.bf16.mxu0 0
    %4301 = vmatpush2.bf16.msra.mxu0 0
    %4302 = vmatprep.subr.bf16.mxu0 0
    %4303 = vmatpush2.bf16.msra.mxu0 0
    %4304 = vmatprep.subr.bf16.mxu0 0
    %4305 = vmatpush2.bf16.msra.mxu0 0
    %4306 = vmatprep.subr.bf16.mxu0 0
    %4307 = vmatpush2.bf16.msra.mxu0 0
    %4308 = vmatprep.subr.bf16.mxu0 0
    %4309 = vmatpush2.bf16.msra.mxu0 0
    %4310 = vmatprep.subr.bf16.mxu0 0
    %4311 = vmatpush2.bf16.msra.mxu0 0
    %4312 = vmatprep.subr.bf16.mxu0 0
    %4313 = vmatpush2.bf16.msra.mxu0 0
    %4314 = vmatprep.mubr.bf16.mxu0 0
    %4315 = vmatmul.mubr.bf16.gmra.mxu0 %v4089
    %v4316 = vpop.f32.mrf.mxu0
    %v4317 = vadd.f32 %v4142, %v4316
    %v4318 = vpop.f32.mrf.mxu0
    %v4319 = vadd.f32 %v4146, %v4318
    %v4320 = vpop.f32.mrf.mxu0
    %v4321 = vadd.f32 %v4142, %v4320
    %v4322 = vpop.f32.mrf.mxu0
    %v4323 = vadd.f32 %v4146, %v4322
    %4324 = vmatprep.mubr.bf16.mxu0 0
    %4325 = vmatmul.mubr.bf16.gmra.mxu0 %v4090
    %v4326 = vpop.f32.mrf.mxu0
    %v4327 = vadd.f32 %v4142, %v4326
    %v4328 = vpop.f32.mrf.mxu0
    %v4329 = vadd.f32 %v4146, %v4328
    %v4330 = vpop.f32.mrf.mxu0
    %v4331 = vadd.f32 %v4142, %v4330
    %v4332 = vpop.f32.mrf.mxu0
    %v4333 = vadd.f32 %v4146, %v4332
    %4334 = vmatprep.mubr.bf16.mxu0 0
    %4335 = vmatmul.mubr.bf16.gmra.mxu0 %v4091
    %v4336 = vpop.f32.mrf.mxu0
    %v4337 = vadd.f32 %v4142, %v4336
    %v4338 = vpop.f32.mrf.mxu0
    %v4339 = vadd.f32 %v4146, %v4338
    %v4340 = vpop.f32.mrf.mxu0
    %v4341 = vadd.f32 %v4142, %v4340
    %v4342 = vpop.f32.mrf.mxu0
    %v4343 = vadd.f32 %v4146, %v4342
    %4344 = vmatprep.mubr.bf16.mxu0 0
    %4345 = vmatmul.mubr.bf16.gmra.mxu0 %v4092
    %v4346 = vpop.f32.mrf.mxu0
    %v4347 = vadd.f32 %v4142, %v4346
    %v4348 = vpop.f32.mrf.mxu0
    %v4349 = vadd.f32 %v4146, %v4348
    %v4350 = vpop.f32.mrf.mxu0
    %v4351 = vadd.f32 %v4142, %v4350
    %v4352 = vpop.f32.mrf.mxu0
    %v4353 = vadd.f32 %v4146, %v4352
    %4354 = vmatprep.mubr.bf16.mxu0 0
    %4355 = vmatmul.mubr.bf16.gmra.mxu0 %v4093
    %v4356 = vpop.f32.mrf.mxu0
    %v4357 = vadd.f32 %v4142, %v4356
    %v4358 = vpop.f32.mrf.mxu0
    %v4359 = vadd.f32 %v4146, %v4358
    %v4360 = vpop.f32.mrf.mxu0
    %v4361 = vadd.f32 %v4142, %v4360
    %v4362 = vpop.f32.mrf.mxu0
    %v4363 = vadd.f32 %v4146, %v4362
    %4364 = vmatprep.mubr.bf16.mxu0 0
    %4365 = vmatmul.mubr.bf16.gmra.mxu0 %v4094
    %v4366 = vpop.f32.mrf.mxu0
    %v4367 = vadd.f32 %v4142, %v4366
    %v4368 = vpop.f32.mrf.mxu0
    %v4369 = vadd.f32 %v4146, %v4368
    %v4370 = vpop.f32.mrf.mxu0
    %v4371 = vadd.f32 %v4142, %v4370
    %v4372 = vpop.f32.mrf.mxu0
    %v4373 = vadd.f32 %v4146, %v4372
    %4374 = vmatprep.mubr.bf16.mxu0 0
    %4375 = vmatmul.mubr.bf16.gmra.mxu0 %v4095
    %v4376 = vpop.f32.mrf.mxu0
    %v4377 = vadd.f32 %v4142, %v4376
    %v4378 = vpop.f32.mrf.mxu0
    %v4379 = vadd.f32 %v4146, %v4378
    %v4380 = vpop.f32.mrf.mxu0
    %v4381 = vadd.f32 %v4142, %v4380
    %v4382 = vpop.f32.mrf.mxu0
    %v4383 = vadd.f32 %v4146, %v4382
    %4384 = vmatprep.mubr.bf16.mxu0 0
    %4385 = vmatmul.mubr.bf16.gmra.mxu0 %v4096
    %v4386 = vpop.f32.mrf.mxu0
    %v4387 = vadd.f32 %v4142, %v4386
    %v4388 = vpop.f32.mrf.mxu0
    %v4389 = vadd.f32 %v4146, %v4388
    %v4390 = vpop.f32.mrf.mxu0
    %v4391 = vadd.f32 %v4142, %v4390
    %v4392 = vpop.f32.mrf.mxu0
    %v4393 = vadd.f32 %v4146, %v4392
    %4394 = vmatprep.mubr.bf16.mxu0 0
    %4395 = vmatmul.mubr.bf16.gmra.mxu0 %v4097
    %v4396 = vpop.f32.mrf.mxu0
    %v4397 = vadd.f32 %v4142, %v4396
    %v4398 = vpop.f32.mrf.mxu0
    %v4399 = vadd.f32 %v4146, %v4398
    %v4400 = vpop.f32.mrf.mxu0
    %v4401 = vadd.f32 %v4142, %v4400
    %v4402 = vpop.f32.mrf.mxu0
    %v4403 = vadd.f32 %v4146, %v4402
    %4404 = vmatprep.mubr.bf16.mxu0 0
    %4405 = vmatmul.mubr.bf16.gmra.mxu0 %v4098
    %v4406 = vpop.f32.mrf.mxu0
    %v4407 = vadd.f32 %v4142, %v4406
    %v4408 = vpop.f32.mrf.mxu0
    %v4409 = vadd.f32 %v4146, %v4408
    %v4410 = vpop.f32.mrf.mxu0
    %v4411 = vadd.f32 %v4142, %v4410
    %v4412 = vpop.f32.mrf.mxu0
    %v4413 = vadd.f32 %v4146, %v4412
    %4414 = vmatprep.mubr.bf16.mxu0 0
    %4415 = vmatmul.mubr.bf16.gmra.mxu0 %v4099
    %v4416 = vpop.f32.mrf.mxu0
    %v4417 = vadd.f32 %v4142, %v4416
    %v4418 = vpop.f32.mrf.mxu0
    %v4419 = vadd.f32 %v4146, %v4418
    %v4420 = vpop.f32.mrf.mxu0
    %v4421 = vadd.f32 %v4142, %v4420
    %v4422 = vpop.f32.mrf.mxu0
    %v4423 = vadd.f32 %v4146, %v4422
    %4424 = vmatprep.mubr.bf16.mxu0 0
    %4425 = vmatmul.mubr.bf16.gmra.mxu0 %v4100
    %v4426 = vpop.f32.mrf.mxu0
    %v4427 = vadd.f32 %v4142, %v4426
    %v4428 = vpop.f32.mrf.mxu0
    %v4429 = vadd.f32 %v4146, %v4428
    %v4430 = vpop.f32.mrf.mxu0
    %v4431 = vadd.f32 %v4142, %v4430
    %v4432 = vpop.f32.mrf.mxu0
    %v4433 = vadd.f32 %v4146, %v4432
    %4434 = vmatprep.mubr.bf16.mxu0 0
    %4435 = vmatmul.mubr.bf16.gmra.mxu0 %v4101
    %v4436 = vpop.f32.mrf.mxu0
    %v4437 = vadd.f32 %v4142, %v4436
    %v4438 = vpop.f32.mrf.mxu0
    %v4439 = vadd.f32 %v4146, %v4438
    %v4440 = vpop.f32.mrf.mxu0
    %v4441 = vadd.f32 %v4142, %v4440
    %v4442 = vpop.f32.mrf.mxu0
    %v4443 = vadd.f32 %v4146, %v4442
    %4444 = vmatprep.mubr.bf16.mxu0 0
    %4445 = vmatmul.mubr.bf16.gmra.mxu0 %v4102
    %v4446 = vpop.f32.mrf.mxu0
    %v4447 = vadd.f32 %v4142, %v4446
    %v4448 = vpop.f32.mrf.mxu0
    %v4449 = vadd.f32 %v4146, %v4448
    %v4450 = vpop.f32.mrf.mxu0
    %v4451 = vadd.f32 %v4142, %v4450
    %v4452 = vpop.f32.mrf.mxu0
    %v4453 = vadd.f32 %v4146, %v4452
    %4454 = vmatprep.mubr.bf16.mxu0 0
    %4455 = vmatmul.mubr.bf16.gmra.mxu0 %v4103
    %v4456 = vpop.f32.mrf.mxu0
    %v4457 = vadd.f32 %v4142, %v4456
    %v4458 = vpop.f32.mrf.mxu0
    %v4459 = vadd.f32 %v4146, %v4458
    %v4460 = vpop.f32.mrf.mxu0
    %v4461 = vadd.f32 %v4142, %v4460
    %v4462 = vpop.f32.mrf.mxu0
    %v4463 = vadd.f32 %v4146, %v4462
    %4464 = vmatprep.mubr.bf16.mxu0 0
    %4465 = vmatmul.mubr.bf16.gmra.mxu0 %v4104
    %v4466 = vpop.f32.mrf.mxu0
    %v4467 = vadd.f32 %v4142, %v4466
    %v4468 = vpop.f32.mrf.mxu0
    %v4469 = vadd.f32 %v4146, %v4468
    %v4470 = vpop.f32.mrf.mxu0
    %v4471 = vadd.f32 %v4142, %v4470
    %v4472 = vpop.f32.mrf.mxu0
    %v4473 = vadd.f32 %v4146, %v4472
    %4474 = vdwg.mxu0
    %4475 = vmatprep.subr.bf16.mxu0 0
    %4476 = vmatpush1.bf16.msra.mxu0 %v4257
    %4477 = vmatprep.subr.bf16.mxu0 0
    %4478 = vmatpush1.bf16.msra.mxu0 %v4254
    %4479 = vmatprep.subr.bf16.mxu0 0
    %4480 = vmatpush1.bf16.msra.mxu0 %v4251
    %4481 = vmatprep.subr.bf16.mxu0 0
    %4482 = vmatpush1.bf16.msra.mxu0 %v4248
    %4483 = vmatprep.subr.bf16.mxu0 0
    %4484 = vmatpush1.bf16.msra.mxu0 %v4245
    %4485 = vmatprep.subr.bf16.mxu0 0
    %4486 = vmatpush1.bf16.msra.mxu0 %v4242
    %4487 = vmatprep.subr.bf16.mxu0 0
    %4488 = vmatpush1.bf16.msra.mxu0 %v4239
    %4489 = vmatprep.subr.bf16.mxu0 0
    %4490 = vmatpush1.bf16.msra.mxu0 %v4236
    %4491 = vmatprep.subr.bf16.mxu0 0
    %4492 = vmatpush2.bf16.msra.mxu0 0
    %4493 = vmatprep.subr.bf16.mxu0 0
    %4494 = vmatpush2.bf16.msra.mxu0 0
    %4495 = vmatprep.subr.bf16.mxu0 0
    %4496 = vmatpush2.bf16.msra.mxu0 0
    %4497 = vmatprep.subr.bf16.mxu0 0
    %4498 = vmatpush2.bf16.msra.mxu0 0
    %4499 = vmatprep.subr.bf16.mxu0 0
    %4500 = vmatpush2.bf16.msra.mxu0 0
    %4501 = vmatprep.subr.bf16.mxu0 0
    %4502 = vmatpush2.bf16.msra.mxu0 0
    %4503 = vmatprep.subr.bf16.mxu0 0
    %4504 = vmatpush2.bf16.msra.mxu0 0
    %4505 = vmatprep.subr.bf16.mxu0 0
    %4506 = vmatpush2.bf16.msra.mxu0 0
    %4507 = vmatprep.mubr.bf16.mxu0 0
    %4508 = vmatmul.mubr.bf16.gmra.mxu0 %v4089
    %v4509 = vpop.f32.mrf.mxu0
    %v4510 = vadd.f32 %v4150, %v4509
    %v4511 = vpop.f32.mrf.mxu0
    %v4512 = vpop.f32.mrf.mxu0
    %v4513 = vadd.f32 %v4150, %v4512
    %v4514 = vpop.f32.mrf.mxu0
    %4515 = vmatprep.mubr.bf16.mxu0 0
    %4516 = vmatmul.mubr.bf16.gmra.mxu0 %v4090
    %v4517 = vpop.f32.mrf.mxu0
    %v4518 = vadd.f32 %v4150, %v4517
    %v4519 = vpop.f32.mrf.mxu0
    %v4520 = vpop.f32.mrf.mxu0
    %v4521 = vadd.f32 %v4150, %v4520
    %v4522 = vpop.f32.mrf.mxu0
    %4523 = vmatprep.mubr.bf16.mxu0 0
    %4524 = vmatmul.mubr.bf16.gmra.mxu0 %v4091
    %v4525 = vpop.f32.mrf.mxu0
    %v4526 = vadd.f32 %v4150, %v4525
    %v4527 = vpop.f32.mrf.mxu0
    %v4528 = vpop.f32.mrf.mxu0
    %v4529 = vadd.f32 %v4150, %v4528
    %v4530 = vpop.f32.mrf.mxu0
    %4531 = vmatprep.mubr.bf16.mxu0 0
    %4532 = vmatmul.mubr.bf16.gmra.mxu0 %v4092
    %v4533 = vpop.f32.mrf.mxu0
    %v4534 = vadd.f32 %v4150, %v4533
    %v4535 = vpop.f32.mrf.mxu0
    %v4536 = vpop.f32.mrf.mxu0
    %v4537 = vadd.f32 %v4150, %v4536
    %v4538 = vpop.f32.mrf.mxu0
    %4539 = vmatprep.mubr.bf16.mxu0 0
    %4540 = vmatmul.mubr.bf16.gmra.mxu0 %v4093
    %v4541 = vpop.f32.mrf.mxu0
    %v4542 = vadd.f32 %v4150, %v4541
    %v4543 = vpop.f32.mrf.mxu0
    %v4544 = vpop.f32.mrf.mxu0
    %v4545 = vadd.f32 %v4150, %v4544
    %v4546 = vpop.f32.mrf.mxu0
    %4547 = vmatprep.mubr.bf16.mxu0 0
    %4548 = vmatmul.mubr.bf16.gmra.mxu0 %v4094
    %v4549 = vpop.f32.mrf.mxu0
    %v4550 = vadd.f32 %v4150, %v4549
    %v4551 = vpop.f32.mrf.mxu0
    %v4552 = vpop.f32.mrf.mxu0
    %v4553 = vadd.f32 %v4150, %v4552
    %v4554 = vpop.f32.mrf.mxu0
    %4555 = vmatprep.mubr.bf16.mxu0 0
    %4556 = vmatmul.mubr.bf16.gmra.mxu0 %v4095
    %v4557 = vpop.f32.mrf.mxu0
    %v4558 = vadd.f32 %v4150, %v4557
    %v4559 = vpop.f32.mrf.mxu0
    %v4560 = vpop.f32.mrf.mxu0
    %v4561 = vadd.f32 %v4150, %v4560
    %v4562 = vpop.f32.mrf.mxu0
    %4563 = vmatprep.mubr.bf16.mxu0 0
    %4564 = vmatmul.mubr.bf16.gmra.mxu0 %v4096
    %v4565 = vpop.f32.mrf.mxu0
    %v4566 = vadd.f32 %v4150, %v4565
    %v4567 = vpop.f32.mrf.mxu0
    %v4568 = vpop.f32.mrf.mxu0
    %v4569 = vadd.f32 %v4150, %v4568
    %v4570 = vpop.f32.mrf.mxu0
    %4571 = vmatprep.mubr.bf16.mxu0 0
    %4572 = vmatmul.mubr.bf16.gmra.mxu0 %v4097
    %v4573 = vpop.f32.mrf.mxu0
    %v4574 = vadd.f32 %v4150, %v4573
    %v4575 = vpop.f32.mrf.mxu0
    %v4576 = vpop.f32.mrf.mxu0
    %v4577 = vadd.f32 %v4150, %v4576
    %v4578 = vpop.f32.mrf.mxu0
    %4579 = vmatprep.mubr.bf16.mxu0 0
    %4580 = vmatmul.mubr.bf16.gmra.mxu0 %v4098
    %v4581 = vpop.f32.mrf.mxu0
    %v4582 = vadd.f32 %v4150, %v4581
    %v4583 = vpop.f32.mrf.mxu0
    %v4584 = vpop.f32.mrf.mxu0
    %v4585 = vadd.f32 %v4150, %v4584
    %v4586 = vpop.f32.mrf.mxu0
    %4587 = vmatprep.mubr.bf16.mxu0 0
    %4588 = vmatmul.mubr.bf16.gmra.mxu0 %v4099
    %v4589 = vpop.f32.mrf.mxu0
    %v4590 = vadd.f32 %v4150, %v4589
    %v4591 = vpop.f32.mrf.mxu0
    %v4592 = vpop.f32.mrf.mxu0
    %v4593 = vadd.f32 %v4150, %v4592
    %v4594 = vpop.f32.mrf.mxu0
    %4595 = vmatprep.mubr.bf16.mxu0 0
    %4596 = vmatmul.mubr.bf16.gmra.mxu0 %v4100
    %v4597 = vpop.f32.mrf.mxu0
    %v4598 = vadd.f32 %v4150, %v4597
    %v4599 = vpop.f32.mrf.mxu0
    %v4600 = vpop.f32.mrf.mxu0
    %v4601 = vadd.f32 %v4150, %v4600
    %v4602 = vpop.f32.mrf.mxu0
    %4603 = vmatprep.mubr.bf16.mxu0 0
    %4604 = vmatmul.mubr.bf16.gmra.mxu0 %v4101
    %v4605 = vpop.f32.mrf.mxu0
    %v4606 = vadd.f32 %v4150, %v4605
    %v4607 = vpop.f32.mrf.mxu0
    %v4608 = vpop.f32.mrf.mxu0
    %v4609 = vadd.f32 %v4150, %v4608
    %v4610 = vpop.f32.mrf.mxu0
    %4611 = vmatprep.mubr.bf16.mxu0 0
    %4612 = vmatmul.mubr.bf16.gmra.mxu0 %v4102
    %v4613 = vpop.f32.mrf.mxu0
    %v4614 = vadd.f32 %v4150, %v4613
    %v4615 = vpop.f32.mrf.mxu0
    %v4616 = vpop.f32.mrf.mxu0
    %v4617 = vadd.f32 %v4150, %v4616
    %v4618 = vpop.f32.mrf.mxu0
    %4619 = vmatprep.mubr.bf16.mxu0 0
    %4620 = vmatmul.mubr.bf16.gmra.mxu0 %v4103
    %v4621 = vpop.f32.mrf.mxu0
    %v4622 = vadd.f32 %v4150, %v4621
    %v4623 = vpop.f32.mrf.mxu0
    %v4624 = vpop.f32.mrf.mxu0
    %v4625 = vadd.f32 %v4150, %v4624
    %v4626 = vpop.f32.mrf.mxu0
    %4627 = vmatprep.mubr.bf16.mxu0 0
    %4628 = vmatmul.mubr.bf16.gmra.mxu0 %v4104
    %v4629 = vpop.f32.mrf.mxu0
    %v4630 = vadd.f32 %v4150, %v4629
    %v4631 = vpop.f32.mrf.mxu0
    %v4632 = vpop.f32.mrf.mxu0
    %v4633 = vadd.f32 %v4150, %v4632
    %v4634 = vpop.f32.mrf.mxu0
    %4635 = vdwg.mxu0
    %vm4636 = vcmp.gt.f32.partialorder %v4317, 0.0
    %vm4637 = vcmp.gt.f32.partialorder %v4319, 0.0
    %vm4638 = vcmp.gt.f32.partialorder %v4510, 0.0
    %vm4639 = vcmp.gt.f32.partialorder %v4321, 0.0
    %vm4640 = vcmp.gt.f32.partialorder %v4323, 0.0
    %vm4641 = vcmp.gt.f32.partialorder %v4513, 0.0
    %vm4642 = vcmp.gt.f32.partialorder %v4327, 0.0
    %vm4643 = vcmp.gt.f32.partialorder %v4329, 0.0
    %vm4644 = vcmp.gt.f32.partialorder %v4518, 0.0
    %vm4645 = vcmp.gt.f32.partialorder %v4331, 0.0
    %vm4646 = vcmp.gt.f32.partialorder %v4333, 0.0
    %vm4647 = vcmp.gt.f32.partialorder %v4521, 0.0
    %vm4648 = vcmp.gt.f32.partialorder %v4337, 0.0
    %vm4649 = vcmp.gt.f32.partialorder %v4339, 0.0
    %vm4650 = vcmp.gt.f32.partialorder %v4526, 0.0
    %vm4651 = vcmp.gt.f32.partialorder %v4341, 0.0
    %vm4652 = vcmp.gt.f32.partialorder %v4343, 0.0
    %vm4653 = vcmp.gt.f32.partialorder %v4529, 0.0
    %vm4654 = vcmp.gt.f32.partialorder %v4347, 0.0
    %vm4655 = vcmp.gt.f32.partialorder %v4349, 0.0
    %vm4656 = vcmp.gt.f32.partialorder %v4534, 0.0
    %vm4657 = vcmp.gt.f32.partialorder %v4351, 0.0
    %vm4658 = vcmp.gt.f32.partialorder %v4353, 0.0
    %vm4659 = vcmp.gt.f32.partialorder %v4537, 0.0
    %vm4660 = vcmp.gt.f32.partialorder %v4357, 0.0
    %vm4661 = vcmp.gt.f32.partialorder %v4359, 0.0
    %vm4662 = vcmp.gt.f32.partialorder %v4542, 0.0
    %vm4663 = vcmp.gt.f32.partialorder %v4361, 0.0
    %vm4664 = vcmp.gt.f32.partialorder %v4363, 0.0
    %vm4665 = vcmp.gt.f32.partialorder %v4545, 0.0
    %vm4666 = vcmp.gt.f32.partialorder %v4367, 0.0
    %vm4667 = vcmp.gt.f32.partialorder %v4369, 0.0
    %vm4668 = vcmp.gt.f32.partialorder %v4550, 0.0
    %vm4669 = vcmp.gt.f32.partialorder %v4371, 0.0
    %vm4670 = vcmp.gt.f32.partialorder %v4373, 0.0
    %vm4671 = vcmp.gt.f32.partialorder %v4553, 0.0
    %vm4672 = vcmp.gt.f32.partialorder %v4377, 0.0
    %vm4673 = vcmp.gt.f32.partialorder %v4379, 0.0
    %vm4674 = vcmp.gt.f32.partialorder %v4558, 0.0
    %vm4675 = vcmp.gt.f32.partialorder %v4381, 0.0
    %vm4676 = vcmp.gt.f32.partialorder %v4383, 0.0
    %vm4677 = vcmp.gt.f32.partialorder %v4561, 0.0
    %vm4678 = vcmp.gt.f32.partialorder %v4387, 0.0
    %vm4679 = vcmp.gt.f32.partialorder %v4389, 0.0
    %vm4680 = vcmp.gt.f32.partialorder %v4566, 0.0
    %vm4681 = vcmp.gt.f32.partialorder %v4391, 0.0
    %vm4682 = vcmp.gt.f32.partialorder %v4393, 0.0
    %vm4683 = vcmp.gt.f32.partialorder %v4569, 0.0
    %vm4684 = vcmp.gt.f32.partialorder %v4397, 0.0
    %vm4685 = vcmp.gt.f32.partialorder %v4399, 0.0
    %vm4686 = vcmp.gt.f32.partialorder %v4574, 0.0
    %vm4687 = vcmp.gt.f32.partialorder %v4401, 0.0
    %vm4688 = vcmp.gt.f32.partialorder %v4403, 0.0
    %vm4689 = vcmp.gt.f32.partialorder %v4577, 0.0
    %vm4690 = vcmp.gt.f32.partialorder %v4407, 0.0
    %vm4691 = vcmp.gt.f32.partialorder %v4409, 0.0
    %vm4692 = vcmp.gt.f32.partialorder %v4582, 0.0
    %vm4693 = vcmp.gt.f32.partialorder %v4411, 0.0
    %vm4694 = vcmp.gt.f32.partialorder %v4413, 0.0
    %vm4695 = vcmp.gt.f32.partialorder %v4585, 0.0
    %vm4696 = vcmp.gt.f32.partialorder %v4417, 0.0
    %vm4697 = vcmp.gt.f32.partialorder %v4419, 0.0
    %vm4698 = vcmp.gt.f32.partialorder %v4590, 0.0
    %vm4699 = vcmp.gt.f32.partialorder %v4421, 0.0
    %vm4700 = vcmp.gt.f32.partialorder %v4423, 0.0
    %vm4701 = vcmp.gt.f32.partialorder %v4593, 0.0
    %vm4702 = vcmp.gt.f32.partialorder %v4427, 0.0
    %vm4703 = vcmp.gt.f32.partialorder %v4429, 0.0
    %vm4704 = vcmp.gt.f32.partialorder %v4598, 0.0
    %vm4705 = vcmp.gt.f32.partialorder %v4431, 0.0
    %vm4706 = vcmp.gt.f32.partialorder %v4433, 0.0
    %vm4707 = vcmp.gt.f32.partialorder %v4601, 0.0
    %vm4708 = vcmp.gt.f32.partialorder %v4437, 0.0
    %vm4709 = vcmp.gt.f32.partialorder %v4439, 0.0
    %vm4710 = vcmp.gt.f32.partialorder %v4606, 0.0
    %vm4711 = vcmp.gt.f32.partialorder %v4441, 0.0
    %vm4712 = vcmp.gt.f32.partialorder %v4443, 0.0
    %vm4713 = vcmp.gt.f32.partialorder %v4609, 0.0
    %vm4714 = vcmp.gt.f32.partialorder %v4447, 0.0
    %vm4715 = vcmp.gt.f32.partialorder %v4449, 0.0
    %vm4716 = vcmp.gt.f32.partialorder %v4614, 0.0
    %vm4717 = vcmp.gt.f32.partialorder %v4451, 0.0
    %vm4718 = vcmp.gt.f32.partialorder %v4453, 0.0
    %vm4719 = vcmp.gt.f32.partialorder %v4617, 0.0
    %vm4720 = vcmp.gt.f32.partialorder %v4457, 0.0
    %vm4721 = vcmp.gt.f32.partialorder %v4459, 0.0
    %vm4722 = vcmp.gt.f32.partialorder %v4622, 0.0
    %vm4723 = vcmp.gt.f32.partialorder %v4461, 0.0
    %vm4724 = vcmp.gt.f32.partialorder %v4463, 0.0
    %vm4725 = vcmp.gt.f32.partialorder %v4625, 0.0
    %vm4726 = vcmp.gt.f32.partialorder %v4467, 0.0
    %vm4727 = vcmp.gt.f32.partialorder %v4469, 0.0
    %vm4728 = vcmp.gt.f32.partialorder %v4630, 0.0
    %vm4729 = vcmp.gt.f32.partialorder %v4471, 0.0
    %vm4730 = vcmp.gt.f32.partialorder %v4473, 0.0
    %vm4731 = vcmp.gt.f32.partialorder %v4633, 0.0
    %v4732 = vmul.f32 %v4317, 0.01
    %v4733 = vmul.f32 %v4319, 0.01
    %v4734 = vmul.f32 %v4510, 0.01
    %v4735 = vmul.f32 %v4321, 0.01
    %v4736 = vmul.f32 %v4323, 0.01
    %v4737 = vmul.f32 %v4513, 0.01
    %v4738 = vmul.f32 %v4327, 0.01
    %v4739 = vmul.f32 %v4329, 0.01
    %v4740 = vmul.f32 %v4518, 0.01
    %v4741 = vmul.f32 %v4331, 0.01
    %v4742 = vmul.f32 %v4333, 0.01
    %v4743 = vmul.f32 %v4521, 0.01
    %v4744 = vmul.f32 %v4337, 0.01
    %v4745 = vmul.f32 %v4339, 0.01
    %v4746 = vmul.f32 %v4526, 0.01
    %v4747 = vmul.f32 %v4341, 0.01
    %v4748 = vmul.f32 %v4343, 0.01
    %v4749 = vmul.f32 %v4529, 0.01
    %v4750 = vmul.f32 %v4347, 0.01
    %v4751 = vmul.f32 %v4349, 0.01
    %v4752 = vmul.f32 %v4534, 0.01
    %v4753 = vmul.f32 %v4351, 0.01
    %v4754 = vmul.f32 %v4353, 0.01
    %v4755 = vmul.f32 %v4537, 0.01
    %v4756 = vmul.f32 %v4357, 0.01
    %v4757 = vmul.f32 %v4359, 0.01
    %v4758 = vmul.f32 %v4542, 0.01
    %v4759 = vmul.f32 %v4361, 0.01
    %v4760 = vmul.f32 %v4363, 0.01
    %v4761 = vmul.f32 %v4545, 0.01
    %v4762 = vmul.f32 %v4367, 0.01
    %v4763 = vmul.f32 %v4369, 0.01
    %v4764 = vmul.f32 %v4550, 0.01
    %v4765 = vmul.f32 %v4371, 0.01
    %v4766 = vmul.f32 %v4373, 0.01
    %v4767 = vmul.f32 %v4553, 0.01
    %v4768 = vmul.f32 %v4377, 0.01
    %v4769 = vmul.f32 %v4379, 0.01
    %v4770 = vmul.f32 %v4558, 0.01
    %v4771 = vmul.f32 %v4381, 0.01
    %v4772 = vmul.f32 %v4383, 0.01
    %v4773 = vmul.f32 %v4561, 0.01
    %v4774 = vmul.f32 %v4387, 0.01
    %v4775 = vmul.f32 %v4389, 0.01
    %v4776 = vmul.f32 %v4566, 0.01
    %v4777 = vmul.f32 %v4391, 0.01
    %v4778 = vmul.f32 %v4393, 0.01
    %v4779 = vmul.f32 %v4569, 0.01
    %v4780 = vmul.f32 %v4397, 0.01
    %v4781 = vmul.f32 %v4399, 0.01
    %v4782 = vmul.f32 %v4574, 0.01
    %v4783 = vmul.f32 %v4401, 0.01
    %v4784 = vmul.f32 %v4403, 0.01
    %v4785 = vmul.f32 %v4577, 0.01
    %v4786 = vmul.f32 %v4407, 0.01
    %v4787 = vmul.f32 %v4409, 0.01
    %v4788 = vmul.f32 %v4582, 0.01
    %v4789 = vmul.f32 %v4411, 0.01
    %v4790 = vmul.f32 %v4413, 0.01
    %v4791 = vmul.f32 %v4585, 0.01
    %v4792 = vmul.f32 %v4417, 0.01
    %v4793 = vmul.f32 %v4419, 0.01
    %v4794 = vmul.f32 %v4590, 0.01
    %v4795 = vmul.f32 %v4421, 0.01
    %v4796 = vmul.f32 %v4423, 0.01
    %v4797 = vmul.f32 %v4593, 0.01
    %v4798 = vmul.f32 %v4427, 0.01
    %v4799 = vmul.f32 %v4429, 0.01
    %v4800 = vmul.f32 %v4598, 0.01
    %v4801 = vmul.f32 %v4431, 0.01
    %v4802 = vmul.f32 %v4433, 0.01
    %v4803 = vmul.f32 %v4601, 0.01
    %v4804 = vmul.f32 %v4437, 0.01
    %v4805 = vmul.f32 %v4439, 0.01
    %v4806 = vmul.f32 %v4606, 0.01
    %v4807 = vmul.f32 %v4441, 0.01
    %v4808 = vmul.f32 %v4443, 0.01
    %v4809 = vmul.f32 %v4609, 0.01
    %v4810 = vmul.f32 %v4447, 0.01
    %v4811 = vmul.f32 %v4449, 0.01
    %v4812 = vmul.f32 %v4614, 0.01
    %v4813 = vmul.f32 %v4451, 0.01
    %v4814 = vmul.f32 %v4453, 0.01
    %v4815 = vmul.f32 %v4617, 0.01
    %v4816 = vmul.f32 %v4457, 0.01
    %v4817 = vmul.f32 %v4459, 0.01
    %v4818 = vmul.f32 %v4622, 0.01
    %v4819 = vmul.f32 %v4461, 0.01
    %v4820 = vmul.f32 %v4463, 0.01
    %v4821 = vmul.f32 %v4625, 0.01
    %v4822 = vmul.f32 %v4467, 0.01
    %v4823 = vmul.f32 %v4469, 0.01
    %v4824 = vmul.f32 %v4630, 0.01
    %v4825 = vmul.f32 %v4471, 0.01
    %v4826 = vmul.f32 %v4473, 0.01
    %v4827 = vmul.f32 %v4633, 0.01
    %v4828 = vsel %vm4636, %v4317, %v4732
    %v4829 = vsel %vm4637, %v4319, %v4733
    %v4830 = vsel %vm4638, %v4510, %v4734
    %v4831 = vsel %vm4639, %v4321, %v4735
    %v4832 = vsel %vm4640, %v4323, %v4736
    %v4833 = vsel %vm4641, %v4513, %v4737
    %v4834 = vsel %vm4642, %v4327, %v4738
    %v4835 = vsel %vm4643, %v4329, %v4739
    %v4836 = vsel %vm4644, %v4518, %v4740
    %v4837 = vsel %vm4645, %v4331, %v4741
    %v4838 = vsel %vm4646, %v4333, %v4742
    %v4839 = vsel %vm4647, %v4521, %v4743
    %v4840 = vsel %vm4648, %v4337, %v4744
    %v4841 = vsel %vm4649, %v4339, %v4745
    %v4842 = vsel %vm4650, %v4526, %v4746
    %v4843 = vsel %vm4651, %v4341, %v4747
    %v4844 = vsel %vm4652, %v4343, %v4748
    %v4845 = vsel %vm4653, %v4529, %v4749
    %v4846 = vsel %vm4654, %v4347, %v4750
    %v4847 = vsel %vm4655, %v4349, %v4751
    %v4848 = vsel %vm4656, %v4534, %v4752
    %v4849 = vsel %vm4657, %v4351, %v4753
    %v4850 = vsel %vm4658, %v4353, %v4754
    %v4851 = vsel %vm4659, %v4537, %v4755
    %v4852 = vsel %vm4660, %v4357, %v4756
    %v4853 = vsel %vm4661, %v4359, %v4757
    %v4854 = vsel %vm4662, %v4542, %v4758
    %v4855 = vsel %vm4663, %v4361, %v4759
    %v4856 = vsel %vm4664, %v4363, %v4760
    %v4857 = vsel %vm4665, %v4545, %v4761
    %v4858 = vsel %vm4666, %v4367, %v4762
    %v4859 = vsel %vm4667, %v4369, %v4763
    %v4860 = vsel %vm4668, %v4550, %v4764
    %v4861 = vsel %vm4669, %v4371, %v4765
    %v4862 = vsel %vm4670, %v4373, %v4766
    %v4863 = vsel %vm4671, %v4553, %v4767
    %v4864 = vsel %vm4672, %v4377, %v4768
    %v4865 = vsel %vm4673, %v4379, %v4769
    %v4866 = vsel %vm4674, %v4558, %v4770
    %v4867 = vsel %vm4675, %v4381, %v4771
    %v4868 = vsel %vm4676, %v4383, %v4772
    %v4869 = vsel %vm4677, %v4561, %v4773
    %v4870 = vsel %vm4678, %v4387, %v4774
    %v4871 = vsel %vm4679, %v4389, %v4775
    %v4872 = vsel %vm4680, %v4566, %v4776
    %v4873 = vsel %vm4681, %v4391, %v4777
    %v4874 = vsel %vm4682, %v4393, %v4778
    %v4875 = vsel %vm4683, %v4569, %v4779
    %v4876 = vsel %vm4684, %v4397, %v4780
    %v4877 = vsel %vm4685, %v4399, %v4781
    %v4878 = vsel %vm4686, %v4574, %v4782
    %v4879 = vsel %vm4687, %v4401, %v4783
    %v4880 = vsel %vm4688, %v4403, %v4784
    %v4881 = vsel %vm4689, %v4577, %v4785
    %v4882 = vsel %vm4690, %v4407, %v4786
    %v4883 = vsel %vm4691, %v4409, %v4787
    %v4884 = vsel %vm4692, %v4582, %v4788
    %v4885 = vsel %vm4693, %v4411, %v4789
    %v4886 = vsel %vm4694, %v4413, %v4790
    %v4887 = vsel %vm4695, %v4585, %v4791
    %v4888 = vsel %vm4696, %v4417, %v4792
    %v4889 = vsel %vm4697, %v4419, %v4793
    %v4890 = vsel %vm4698, %v4590, %v4794
    %v4891 = vsel %vm4699, %v4421, %v4795
    %v4892 = vsel %vm4700, %v4423, %v4796
    %v4893 = vsel %vm4701, %v4593, %v4797
    %v4894 = vsel %vm4702, %v4427, %v4798
    %v4895 = vsel %vm4703, %v4429, %v4799
    %v4896 = vsel %vm4704, %v4598, %v4800
    %v4897 = vsel %vm4705, %v4431, %v4801
    %v4898 = vsel %vm4706, %v4433, %v4802
    %v4899 = vsel %vm4707, %v4601, %v4803
    %v4900 = vsel %vm4708, %v4437, %v4804
    %v4901 = vsel %vm4709, %v4439, %v4805
    %v4902 = vsel %vm4710, %v4606, %v4806
    %v4903 = vsel %vm4711, %v4441, %v4807
    %v4904 = vsel %vm4712, %v4443, %v4808
    %v4905 = vsel %vm4713, %v4609, %v4809
    %v4906 = vsel %vm4714, %v4447, %v4810
    %v4907 = vsel %vm4715, %v4449, %v4811
    %v4908 = vsel %vm4716, %v4614, %v4812
    %v4909 = vsel %vm4717, %v4451, %v4813
    %v4910 = vsel %vm4718, %v4453, %v4814
    %v4911 = vsel %vm4719, %v4617, %v4815
    %v4912 = vsel %vm4720, %v4457, %v4816
    %v4913 = vsel %vm4721, %v4459, %v4817
    %v4914 = vsel %vm4722, %v4622, %v4818
    %v4915 = vsel %vm4723, %v4461, %v4819
    %v4916 = vsel %vm4724, %v4463, %v4820
    %v4917 = vsel %vm4725, %v4625, %v4821
    %v4918 = vsel %vm4726, %v4467, %v4822
    %v4919 = vsel %vm4727, %v4469, %v4823
    %v4920 = vsel %vm4728, %v4630, %v4824
    %v4921 = vsel %vm4729, %v4471, %v4825
    %v4922 = vsel %vm4730, %v4473, %v4826
    %v4923 = vsel %vm4731, %v4633, %v4827
    %v4924 = vpack.c.bf16 %v4831, %v4828
    %v4925 = vpack.c.bf16 %v4832, %v4829
    %v4926 = vpack.c.bf16 %v4833, %v4830
    %v4927 = vpack.c.bf16 %v4837, %v4834
    %v4928 = vpack.c.bf16 %v4838, %v4835
    %v4929 = vpack.c.bf16 %v4839, %v4836
    %v4930 = vpack.c.bf16 %v4843, %v4840
    %v4931 = vpack.c.bf16 %v4844, %v4841
    %v4932 = vpack.c.bf16 %v4845, %v4842
    %v4933 = vpack.c.bf16 %v4849, %v4846
    %v4934 = vpack.c.bf16 %v4850, %v4847
    %v4935 = vpack.c.bf16 %v4851, %v4848
    %v4936 = vpack.c.bf16 %v4855, %v4852
    %v4937 = vpack.c.bf16 %v4856, %v4853
    %v4938 = vpack.c.bf16 %v4857, %v4854
    %v4939 = vpack.c.bf16 %v4861, %v4858
    %v4940 = vpack.c.bf16 %v4862, %v4859
    %v4941 = vpack.c.bf16 %v4863, %v4860
    %v4942 = vpack.c.bf16 %v4867, %v4864
    %v4943 = vpack.c.bf16 %v4868, %v4865
    %v4944 = vpack.c.bf16 %v4869, %v4866
    %v4945 = vpack.c.bf16 %v4873, %v4870
    %v4946 = vpack.c.bf16 %v4874, %v4871
    %v4947 = vpack.c.bf16 %v4875, %v4872
    %v4948 = vpack.c.bf16 %v4879, %v4876
    %v4949 = vpack.c.bf16 %v4880, %v4877
    %v4950 = vpack.c.bf16 %v4881, %v4878
    %v4951 = vpack.c.bf16 %v4885, %v4882
    %v4952 = vpack.c.bf16 %v4886, %v4883
    %v4953 = vpack.c.bf16 %v4887, %v4884
    %v4954 = vpack.c.bf16 %v4891, %v4888
    %v4955 = vpack.c.bf16 %v4892, %v4889
    %v4956 = vpack.c.bf16 %v4893, %v4890
    %v4957 = vpack.c.bf16 %v4897, %v4894
    %v4958 = vpack.c.bf16 %v4898, %v4895
    %v4959 = vpack.c.bf16 %v4899, %v4896
    %v4960 = vpack.c.bf16 %v4903, %v4900
    %v4961 = vpack.c.bf16 %v4904, %v4901
    %v4962 = vpack.c.bf16 %v4905, %v4902
    %v4963 = vpack.c.bf16 %v4909, %v4906
    %v4964 = vpack.c.bf16 %v4910, %v4907
    %v4965 = vpack.c.bf16 %v4911, %v4908
    %v4966 = vpack.c.bf16 %v4915, %v4912
    %v4967 = vpack.c.bf16 %v4916, %v4913
    %v4968 = vpack.c.bf16 %v4917, %v4914
    %v4969 = vpack.c.bf16 %v4921, %v4918
    %v4970 = vpack.c.bf16 %v4922, %v4919
    %v4971 = vpack.c.bf16 %v4923, %v4920
    %v4972 = vld [vmem:[#allocation14] sm:$0xff]
    %v4973 = vld [vmem:[#allocation14 + $0x8] sm:$0xff]
    %v4974 = vld [vmem:[#allocation14 + $0x10] sm:$0xf]
    %v4975 = vld [vmem:[#allocation14 + $0x14] sm:$0xff]
    %v4976 = vld [vmem:[#allocation14 + $0x1c] sm:$0xff]
    %v4977 = vld [vmem:[#allocation14 + $0x24] sm:$0xf]
    %v4978 = vld [vmem:[#allocation14 + $0x28] sm:$0xff]
    %v4979 = vld [vmem:[#allocation14 + $0x30] sm:$0xff]
    %v4980 = vld [vmem:[#allocation14 + $0x38] sm:$0xf]
    %v4981 = vld [vmem:[#allocation14 + $0x3c] sm:$0xff]
    %v4982 = vld [vmem:[#allocation14 + $0x44] sm:$0xff]
    %v4983 = vld [vmem:[#allocation14 + $0x4c] sm:$0xf]
    %v4984 = vld [vmem:[#allocation14 + $0x50] sm:$0xff]
    %v4985 = vld [vmem:[#allocation14 + $0x58] sm:$0xff]
    %v4986 = vld [vmem:[#allocation14 + $0x60] sm:$0xf]
    %v4987 = vld [vmem:[#allocation14 + $0x64] sm:$0xff]
    %v4988 = vld [vmem:[#allocation14 + $0x6c] sm:$0xff]
    %v4989 = vld [vmem:[#allocation14 + $0x74] sm:$0xf]
    %v4990 = vld [vmem:[#allocation14 + $0x78] sm:$0xff]
    %v4991 = vld [vmem:[#allocation14 + $0x80] sm:$0xff]
    %v4992 = vld [vmem:[#allocation14 + $0x88] sm:$0xf]
    %v4993 = vld [vmem:[#allocation14 + $0x8c] sm:$0xff]
    %v4994 = vld [vmem:[#allocation14 + $0x94] sm:$0xff]
    %v4995 = vld [vmem:[#allocation14 + $0x9c] sm:$0xf]
    %v4996 = vld [vmem:[#allocation14 + $0xa0] sm:$0xff]
    %v4997 = vld [vmem:[#allocation14 + $0xa8] sm:$0xff]
    %v4998 = vld [vmem:[#allocation14 + $0xb0] sm:$0xf]
    %v4999 = vld [vmem:[#allocation14 + $0xb4] sm:$0xff]
    %v5000 = vld [vmem:[#allocation14 + $0xbc] sm:$0xff]
    %v5001 = vld [vmem:[#allocation14 + $0xc4] sm:$0xf]
    %v5002 = vld [vmem:[#allocation14 + $0xc8] sm:$0xff]
    %v5003 = vld [vmem:[#allocation14 + $0xd0] sm:$0xff]
    %v5004 = vld [vmem:[#allocation14 + $0xd8] sm:$0xf]
    %v5005 = vld [vmem:[#allocation14 + $0xdc] sm:$0xff]
    %v5006 = vld [vmem:[#allocation14 + $0xe4] sm:$0xff]
    %v5007 = vld [vmem:[#allocation14 + $0xec] sm:$0xf]
    %v5008 = vld [vmem:[#allocation14 + $0xf0] sm:$0xff]
    %v5009 = vld [vmem:[#allocation14 + $0xf8] sm:$0xff]
    %v5010 = vld [vmem:[#allocation14 + $0x100] sm:$0xf]
    %v5011 = vld [vmem:[#allocation14 + $0x104] sm:$0xff]
    %v5012 = vld [vmem:[#allocation14 + $0x10c] sm:$0xff]
    %v5013 = vld [vmem:[#allocation14 + $0x114] sm:$0xf]
    %v5014 = vld [vmem:[#allocation14 + $0x118] sm:$0xff]
    %v5015 = vld [vmem:[#allocation14 + $0x120] sm:$0xff]
    %v5016 = vld [vmem:[#allocation14 + $0x128] sm:$0xf]
    %v5017 = vld [vmem:[#allocation14 + $0x12c] sm:$0xff]
    %v5018 = vld [vmem:[#allocation14 + $0x134] sm:$0xff]
    %v5019 = vld [vmem:[#allocation14 + $0x13c] sm:$0xf]
    %v5020 = vld [vmem:[#allocation14 + $0x140] sm:$0xff]
    %v5021 = vld [vmem:[#allocation14 + $0x148] sm:$0xff]
    %v5022 = vld [vmem:[#allocation14 + $0x150] sm:$0xf]
    %v5023 = vld [vmem:[#allocation14 + $0x154] sm:$0xff]
    %v5024 = vld [vmem:[#allocation14 + $0x15c] sm:$0xff]
    %v5025 = vld [vmem:[#allocation14 + $0x164] sm:$0xf]
    %v5026 = vld [vmem:[#allocation14 + $0x168] sm:$0xff]
    %v5027 = vld [vmem:[#allocation14 + $0x170] sm:$0xff]
    %v5028 = vld [vmem:[#allocation14 + $0x178] sm:$0xf]
    %v5029 = vld [vmem:[#allocation14 + $0x17c] sm:$0xff]
    %v5030 = vld [vmem:[#allocation14 + $0x184] sm:$0xff]
    %v5031 = vld [vmem:[#allocation14 + $0x18c] sm:$0xf]
    %v5032 = vld [vmem:[#allocation14 + $0x190] sm:$0xff]
    %v5033 = vld [vmem:[#allocation14 + $0x198] sm:$0xff]
    %v5034 = vld [vmem:[#allocation14 + $0x1a0] sm:$0xf]
    %v5035 = vld [vmem:[#allocation14 + $0x1a4] sm:$0xff]
    %v5036 = vld [vmem:[#allocation14 + $0x1ac] sm:$0xff]
    %v5037 = vld [vmem:[#allocation14 + $0x1b4] sm:$0xf]
    %v5038 = vld [vmem:[#allocation14 + $0x1b8] sm:$0xff]
    %v5039 = vld [vmem:[#allocation14 + $0x1c0] sm:$0xff]
    %v5040 = vld [vmem:[#allocation14 + $0x1c8] sm:$0xf]
    %v5041 = vld [vmem:[#allocation14 + $0x1cc] sm:$0xff]
    %v5042 = vld [vmem:[#allocation14 + $0x1d4] sm:$0xff]
    %v5043 = vld [vmem:[#allocation14 + $0x1dc] sm:$0xf]
    %v5044 = vld [vmem:[#allocation14 + $0x1e0] sm:$0xff]
    %v5045 = vld [vmem:[#allocation14 + $0x1e8] sm:$0xff]
    %v5046 = vld [vmem:[#allocation14 + $0x1f0] sm:$0xf]
    %v5047 = vld [vmem:[#allocation14 + $0x1f4] sm:$0xff]
    %v5048 = vld [vmem:[#allocation14 + $0x1fc] sm:$0xff]
    %v5049 = vld [vmem:[#allocation14 + $0x204] sm:$0xf]
    %v5050 = vld [vmem:[#allocation14 + $0x208] sm:$0xff]
    %v5051 = vld [vmem:[#allocation14 + $0x210] sm:$0xff]
    %v5052 = vld [vmem:[#allocation14 + $0x218] sm:$0xf]
    %v5053 = vld [vmem:[#allocation14 + $0x21c] sm:$0xff]
    %v5054 = vld [vmem:[#allocation14 + $0x224] sm:$0xff]
    %v5055 = vld [vmem:[#allocation14 + $0x22c] sm:$0xf]
    %v5056 = vld [vmem:[#allocation14 + $0x230] sm:$0xff]
    %v5057 = vld [vmem:[#allocation14 + $0x238] sm:$0xff]
    %v5058 = vld [vmem:[#allocation14 + $0x240] sm:$0xf]
    %v5059 = vld [vmem:[#allocation14 + $0x244] sm:$0xff]
    %v5060 = vld [vmem:[#allocation14 + $0x24c] sm:$0xff]
    %v5061 = vld [vmem:[#allocation14 + $0x254] sm:$0xf]
    %v5062 = vld [vmem:[#allocation14 + $0x258] sm:$0xff]
    %v5063 = vld [vmem:[#allocation14 + $0x260] sm:$0xff]
    %v5064 = vld [vmem:[#allocation14 + $0x268] sm:$0xf]
    %v5065 = vld [vmem:[#allocation14 + $0x26c] sm:$0xff]
    %v5066 = vld [vmem:[#allocation14 + $0x274] sm:$0xff]
    %v5067 = vld [vmem:[#allocation14 + $0x27c] sm:$0xf]
    %v5068 = vld [vmem:[#allocation14 + $0x280] sm:$0xff]
    %v5069 = vld [vmem:[#allocation14 + $0x288] sm:$0xff]
    %v5070 = vld [vmem:[#allocation14 + $0x290] sm:$0xf]
    %v5071 = vld [vmem:[#allocation14 + $0x294] sm:$0xff]
    %v5072 = vld [vmem:[#allocation14 + $0x29c] sm:$0xff]
    %v5073 = vld [vmem:[#allocation14 + $0x2a4] sm:$0xf]
    %v5074 = vld [vmem:[#allocation14 + $0x2a8] sm:$0xff]
    %v5075 = vld [vmem:[#allocation14 + $0x2b0] sm:$0xff]
    %v5076 = vld [vmem:[#allocation14 + $0x2b8] sm:$0xf]
    %v5077 = vld [vmem:[#allocation14 + $0x2bc] sm:$0xff]
    %v5078 = vld [vmem:[#allocation14 + $0x2c4] sm:$0xff]
    %v5079 = vld [vmem:[#allocation14 + $0x2cc] sm:$0xf]
    %v5080 = vld [vmem:[#allocation14 + $0x2d0] sm:$0xff]
    %v5081 = vld [vmem:[#allocation14 + $0x2d8] sm:$0xff]
    %v5082 = vld [vmem:[#allocation14 + $0x2e0] sm:$0xf]
    %v5083 = vld [vmem:[#allocation14 + $0x2e4] sm:$0xff]
    %v5084 = vld [vmem:[#allocation14 + $0x2ec] sm:$0xff]
    %v5085 = vld [vmem:[#allocation14 + $0x2f4] sm:$0xf]
    %v5086 = vld [vmem:[#allocation14 + $0x2f8] sm:$0xff]
    %v5087 = vld [vmem:[#allocation14 + $0x300] sm:$0xff]
    %v5088 = vld [vmem:[#allocation14 + $0x308] sm:$0xf]
    %v5089 = vld [vmem:[#allocation14 + $0x30c] sm:$0xff]
    %v5090 = vld [vmem:[#allocation14 + $0x314] sm:$0xff]
    %v5091 = vld [vmem:[#allocation14 + $0x31c] sm:$0xf]
    %v5092 = vld [vmem:[#allocation14 + $0x320] sm:$0xff]
    %v5093 = vld [vmem:[#allocation14 + $0x328] sm:$0xff]
    %v5094 = vld [vmem:[#allocation14 + $0x330] sm:$0xf]
    %v5095 = vld [vmem:[#allocation14 + $0x334] sm:$0xff]
    %v5096 = vld [vmem:[#allocation14 + $0x33c] sm:$0xff]
    %v5097 = vld [vmem:[#allocation14 + $0x344] sm:$0xf]
    %v5098 = vld [vmem:[#allocation14 + $0x348] sm:$0xff]
    %v5099 = vld [vmem:[#allocation14 + $0x350] sm:$0xff]
    %v5100 = vld [vmem:[#allocation14 + $0x358] sm:$0xf]
    %v5101 = vld [vmem:[#allocation14 + $0x35c] sm:$0xff]
    %v5102 = vld [vmem:[#allocation14 + $0x364] sm:$0xff]
    %v5103 = vld [vmem:[#allocation14 + $0x36c] sm:$0xf]
    %v5104 = vld [vmem:[#allocation14 + $0x370] sm:$0xff]
    %v5105 = vld [vmem:[#allocation14 + $0x378] sm:$0xff]
    %v5106 = vld [vmem:[#allocation14 + $0x380] sm:$0xf]
    %v5107 = vld [vmem:[#allocation14 + $0x384] sm:$0xff]
    %v5108 = vld [vmem:[#allocation14 + $0x38c] sm:$0xff]
    %v5109 = vld [vmem:[#allocation14 + $0x394] sm:$0xf]
    %v5110 = vld [vmem:[#allocation14 + $0x398] sm:$0xff]
    %v5111 = vld [vmem:[#allocation14 + $0x3a0] sm:$0xff]
    %v5112 = vld [vmem:[#allocation14 + $0x3a8] sm:$0xf]
    %v5113 = vld [vmem:[#allocation14 + $0x3ac] sm:$0xff]
    %v5114 = vld [vmem:[#allocation14 + $0x3b4] sm:$0xff]
    %v5115 = vld [vmem:[#allocation14 + $0x3bc] sm:$0xf]
    %v5116 = vld [vmem:[%s12] sm:$0x1f]
    %v5118 = vlaneseq
    %v5119 = vshrl.u32 %v5118, 7
    %v5120 = vsub.s32 0, %v5119
    %v5121 = vrot.slane %v5116, %v5120
    %v5122 = vlaneseq
    %v5123 = vshrl.u32 %v5122, 7
    %v5124 = vsub.s32 1, %v5123
    %v5125 = vrot.slane %v5116, %v5124
    %v5126 = vlaneseq
    %v5127 = vshrl.u32 %v5126, 7
    %v5128 = vsub.s32 2, %v5127
    %v5129 = vrot.slane %v5116, %v5128
    %v5130 = vlaneseq
    %v5131 = vshrl.u32 %v5130, 7
    %v5132 = vsub.s32 3, %v5131
    %v5133 = vrot.slane %v5116, %v5132
    %v5134 = vlaneseq
    %v5135 = vshrl.u32 %v5134, 7
    %v5136 = vsub.s32 4, %v5135
    %v5137 = vrot.slane %v5116, %v5136
    %v5287 = vunpack.c.l.b16 %v4972
    %v5288 = vunpack.c.h.b16 %v4972
    %v5289 = vunpack.c.l.b16 %v4973
    %v5290 = vunpack.c.h.b16 %v4973
    %v5291 = vunpack.c.l.b16 %v4974
    %v5292 = vunpack.c.l.b16 %v4975
    %v5293 = vunpack.c.h.b16 %v4975
    %v5294 = vunpack.c.l.b16 %v4976
    %v5295 = vunpack.c.h.b16 %v4976
    %v5296 = vunpack.c.l.b16 %v4977
    %v5297 = vunpack.c.l.b16 %v4978
    %v5298 = vunpack.c.h.b16 %v4978
    %v5299 = vunpack.c.l.b16 %v4979
    %v5300 = vunpack.c.h.b16 %v4979
    %v5301 = vunpack.c.l.b16 %v4980
    %v5302 = vunpack.c.l.b16 %v4981
    %v5303 = vunpack.c.h.b16 %v4981
    %v5304 = vunpack.c.l.b16 %v4982
    %v5305 = vunpack.c.h.b16 %v4982
    %v5306 = vunpack.c.l.b16 %v4983
    %v5307 = vunpack.c.l.b16 %v4984
    %v5308 = vunpack.c.h.b16 %v4984
    %v5309 = vunpack.c.l.b16 %v4985
    %v5310 = vunpack.c.h.b16 %v4985
    %v5311 = vunpack.c.l.b16 %v4986
    %v5312 = vunpack.c.l.b16 %v4987
    %v5313 = vunpack.c.h.b16 %v4987
    %v5314 = vunpack.c.l.b16 %v4988
    %v5315 = vunpack.c.h.b16 %v4988
    %v5316 = vunpack.c.l.b16 %v4989
    %v5317 = vunpack.c.l.b16 %v4990
    %v5318 = vunpack.c.h.b16 %v4990
    %v5319 = vunpack.c.l.b16 %v4991
    %v5320 = vunpack.c.h.b16 %v4991
    %v5321 = vunpack.c.l.b16 %v4992
    %v5322 = vunpack.c.l.b16 %v4993
    %v5323 = vunpack.c.h.b16 %v4993
    %v5324 = vunpack.c.l.b16 %v4994
    %v5325 = vunpack.c.h.b16 %v4994
    %v5326 = vunpack.c.l.b16 %v4995
    %v5327 = vunpack.c.l.b16 %v4996
    %v5328 = vunpack.c.h.b16 %v4996
    %v5329 = vunpack.c.l.b16 %v4997
    %v5330 = vunpack.c.h.b16 %v4997
    %v5331 = vunpack.c.l.b16 %v4998
    %v5332 = vunpack.c.l.b16 %v4999
    %v5333 = vunpack.c.h.b16 %v4999
    %v5334 = vunpack.c.l.b16 %v5000
    %v5335 = vunpack.c.h.b16 %v5000
    %v5336 = vunpack.c.l.b16 %v5001
    %v5337 = vunpack.c.l.b16 %v5002
    %v5338 = vunpack.c.h.b16 %v5002
    %v5339 = vunpack.c.l.b16 %v5003
    %v5340 = vunpack.c.h.b16 %v5003
    %v5341 = vunpack.c.l.b16 %v5004
    %v5342 = vunpack.c.l.b16 %v5005
    %v5343 = vunpack.c.h.b16 %v5005
    %v5344 = vunpack.c.l.b16 %v5006
    %v5345 = vunpack.c.h.b16 %v5006
    %v5346 = vunpack.c.l.b16 %v5007
    %v5347 = vunpack.c.l.b16 %v5008
    %v5348 = vunpack.c.h.b16 %v5008
    %v5349 = vunpack.c.l.b16 %v5009
    %v5350 = vunpack.c.h.b16 %v5009
    %v5351 = vunpack.c.l.b16 %v5010
    %v5352 = vunpack.c.l.b16 %v5011
    %v5353 = vunpack.c.h.b16 %v5011
    %v5354 = vunpack.c.l.b16 %v5012
    %v5355 = vunpack.c.h.b16 %v5012
    %v5356 = vunpack.c.l.b16 %v5013
    %v5357 = vunpack.c.l.b16 %v5014
    %v5358 = vunpack.c.h.b16 %v5014
    %v5359 = vunpack.c.l.b16 %v5015
    %v5360 = vunpack.c.h.b16 %v5015
    %v5361 = vunpack.c.l.b16 %v5016
    %v5362 = vunpack.c.l.b16 %v5017
    %v5363 = vunpack.c.h.b16 %v5017
    %v5364 = vunpack.c.l.b16 %v5018
    %v5365 = vunpack.c.h.b16 %v5018
    %v5366 = vunpack.c.l.b16 %v5019
    %v5367 = vunpack.c.l.b16 %v5020
    %v5368 = vunpack.c.h.b16 %v5020
    %v5369 = vunpack.c.l.b16 %v5021
    %v5370 = vunpack.c.h.b16 %v5021
    %v5371 = vunpack.c.l.b16 %v5022
    %v5372 = vunpack.c.l.b16 %v5023
    %v5373 = vunpack.c.h.b16 %v5023
    %v5374 = vunpack.c.l.b16 %v5024
    %v5375 = vunpack.c.h.b16 %v5024
    %v5376 = vunpack.c.l.b16 %v5025
    %v5377 = vunpack.c.l.b16 %v5026
    %v5378 = vunpack.c.h.b16 %v5026
    %v5379 = vunpack.c.l.b16 %v5027
    %v5380 = vunpack.c.h.b16 %v5027
    %v5381 = vunpack.c.l.b16 %v5028
    %v5382 = vunpack.c.l.b16 %v5029
    %v5383 = vunpack.c.h.b16 %v5029
    %v5384 = vunpack.c.l.b16 %v5030
    %v5385 = vunpack.c.h.b16 %v5030
    %v5386 = vunpack.c.l.b16 %v5031
    %v5387 = vunpack.c.l.b16 %v5032
    %v5388 = vunpack.c.h.b16 %v5032
    %v5389 = vunpack.c.l.b16 %v5033
    %v5390 = vunpack.c.h.b16 %v5033
    %v5391 = vunpack.c.l.b16 %v5034
    %v5392 = vunpack.c.l.b16 %v5035
    %v5393 = vunpack.c.h.b16 %v5035
    %v5394 = vunpack.c.l.b16 %v5036
    %v5395 = vunpack.c.h.b16 %v5036
    %v5396 = vunpack.c.l.b16 %v5037
    %v5397 = vunpack.c.l.b16 %v5038
    %v5398 = vunpack.c.h.b16 %v5038
    %v5399 = vunpack.c.l.b16 %v5039
    %v5400 = vunpack.c.h.b16 %v5039
    %v5401 = vunpack.c.l.b16 %v5040
    %v5402 = vunpack.c.l.b16 %v5041
    %v5403 = vunpack.c.h.b16 %v5041
    %v5404 = vunpack.c.l.b16 %v5042
    %v5405 = vunpack.c.h.b16 %v5042
    %v5406 = vunpack.c.l.b16 %v5043
    %v5407 = vunpack.c.l.b16 %v5044
    %v5408 = vunpack.c.h.b16 %v5044
    %v5409 = vunpack.c.l.b16 %v5045
    %v5410 = vunpack.c.h.b16 %v5045
    %v5411 = vunpack.c.l.b16 %v5046
    %v5412 = vunpack.c.l.b16 %v5047
    %v5413 = vunpack.c.h.b16 %v5047
    %v5414 = vunpack.c.l.b16 %v5048
    %v5415 = vunpack.c.h.b16 %v5048
    %v5416 = vunpack.c.l.b16 %v5049
    %v5417 = vunpack.c.l.b16 %v5050
    %v5418 = vunpack.c.h.b16 %v5050
    %v5419 = vunpack.c.l.b16 %v5051
    %v5420 = vunpack.c.h.b16 %v5051
    %v5421 = vunpack.c.l.b16 %v5052
    %v5422 = vunpack.c.l.b16 %v5053
    %v5423 = vunpack.c.h.b16 %v5053
    %v5424 = vunpack.c.l.b16 %v5054
    %v5425 = vunpack.c.h.b16 %v5054
    %v5426 = vunpack.c.l.b16 %v5055
    %v5427 = vunpack.c.l.b16 %v5056
    %v5428 = vunpack.c.h.b16 %v5056
    %v5429 = vunpack.c.l.b16 %v5057
    %v5430 = vunpack.c.h.b16 %v5057
    %v5431 = vunpack.c.l.b16 %v5058
    %v5432 = vunpack.c.l.b16 %v5059
    %v5433 = vunpack.c.h.b16 %v5059
    %v5434 = vunpack.c.l.b16 %v5060
    %v5435 = vunpack.c.h.b16 %v5060
    %v5436 = vunpack.c.l.b16 %v5061
    %v5437 = vunpack.c.l.b16 %v5062
    %v5438 = vunpack.c.h.b16 %v5062
    %v5439 = vunpack.c.l.b16 %v5063
    %v5440 = vunpack.c.h.b16 %v5063
    %v5441 = vunpack.c.l.b16 %v5064
    %v5442 = vunpack.c.l.b16 %v5065
    %v5443 = vunpack.c.h.b16 %v5065
    %v5444 = vunpack.c.l.b16 %v5066
    %v5445 = vunpack.c.h.b16 %v5066
    %v5446 = vunpack.c.l.b16 %v5067
    %v5447 = vunpack.c.l.b16 %v5068
    %v5448 = vunpack.c.h.b16 %v5068
    %v5449 = vunpack.c.l.b16 %v5069
    %v5450 = vunpack.c.h.b16 %v5069
    %v5451 = vunpack.c.l.b16 %v5070
    %v5452 = vunpack.c.l.b16 %v5071
    %v5453 = vunpack.c.h.b16 %v5071
    %v5454 = vunpack.c.l.b16 %v5072
    %v5455 = vunpack.c.h.b16 %v5072
    %v5456 = vunpack.c.l.b16 %v5073
    %v5457 = vunpack.c.l.b16 %v5074
    %v5458 = vunpack.c.h.b16 %v5074
    %v5459 = vunpack.c.l.b16 %v5075
    %v5460 = vunpack.c.h.b16 %v5075
    %v5461 = vunpack.c.l.b16 %v5076
    %v5462 = vunpack.c.l.b16 %v5077
    %v5463 = vunpack.c.h.b16 %v5077
    %v5464 = vunpack.c.l.b16 %v5078
    %v5465 = vunpack.c.h.b16 %v5078
    %v5466 = vunpack.c.l.b16 %v5079
    %v5467 = vunpack.c.l.b16 %v5080
    %v5468 = vunpack.c.h.b16 %v5080
    %v5469 = vunpack.c.l.b16 %v5081
    %v5470 = vunpack.c.h.b16 %v5081
    %v5471 = vunpack.c.l.b16 %v5082
    %v5472 = vunpack.c.l.b16 %v5083
    %v5473 = vunpack.c.h.b16 %v5083
    %v5474 = vunpack.c.l.b16 %v5084
    %v5475 = vunpack.c.h.b16 %v5084
    %v5476 = vunpack.c.l.b16 %v5085
    %v5477 = vunpack.c.l.b16 %v5086
    %v5478 = vunpack.c.h.b16 %v5086
    %v5479 = vunpack.c.l.b16 %v5087
    %v5480 = vunpack.c.h.b16 %v5087
    %v5481 = vunpack.c.l.b16 %v5088
    %v5482 = vunpack.c.l.b16 %v5089
    %v5483 = vunpack.c.h.b16 %v5089
    %v5484 = vunpack.c.l.b16 %v5090
    %v5485 = vunpack.c.h.b16 %v5090
    %v5486 = vunpack.c.l.b16 %v5091
    %v5487 = vunpack.c.l.b16 %v5092
    %v5488 = vunpack.c.h.b16 %v5092
    %v5489 = vunpack.c.l.b16 %v5093
    %v5490 = vunpack.c.h.b16 %v5093
    %v5491 = vunpack.c.l.b16 %v5094
    %v5492 = vunpack.c.l.b16 %v5095
    %v5493 = vunpack.c.h.b16 %v5095
    %v5494 = vunpack.c.l.b16 %v5096
    %v5495 = vunpack.c.h.b16 %v5096
    %v5496 = vunpack.c.l.b16 %v5097
    %v5497 = vunpack.c.l.b16 %v5098
    %v5498 = vunpack.c.h.b16 %v5098
    %v5499 = vunpack.c.l.b16 %v5099
    %v5500 = vunpack.c.h.b16 %v5099
    %v5501 = vunpack.c.l.b16 %v5100
    %v5502 = vunpack.c.l.b16 %v5101
    %v5503 = vunpack.c.h.b16 %v5101
    %v5504 = vunpack.c.l.b16 %v5102
    %v5505 = vunpack.c.h.b16 %v5102
    %v5506 = vunpack.c.l.b16 %v5103
    %v5507 = vunpack.c.l.b16 %v5104
    %v5508 = vunpack.c.h.b16 %v5104
    %v5509 = vunpack.c.l.b16 %v5105
    %v5510 = vunpack.c.h.b16 %v5105
    %v5511 = vunpack.c.l.b16 %v5106
    %v5512 = vunpack.c.l.b16 %v5107
    %v5513 = vunpack.c.h.b16 %v5107
    %v5514 = vunpack.c.l.b16 %v5108
    %v5515 = vunpack.c.h.b16 %v5108
    %v5516 = vunpack.c.l.b16 %v5109
    %v5517 = vunpack.c.l.b16 %v5110
    %v5518 = vunpack.c.h.b16 %v5110
    %v5519 = vunpack.c.l.b16 %v5111
    %v5520 = vunpack.c.h.b16 %v5111
    %v5521 = vunpack.c.l.b16 %v5112
    %v5522 = vunpack.c.l.b16 %v5113
    %v5523 = vunpack.c.h.b16 %v5113
    %v5524 = vunpack.c.l.b16 %v5114
    %v5525 = vunpack.c.h.b16 %v5114
    %v5526 = vunpack.c.l.b16 %v5115
    %v5527 = vpack.c.b16 %v5292, %v5287
    %v5528 = vpack.c.b16 %v5293, %v5288
    %v5529 = vpack.c.b16 %v5294, %v5289
    %v5530 = vpack.c.b16 %v5295, %v5290
    %v5531 = vpack.c.b16 %v5296, %v5291
    %v5532 = vpack.c.b16 %v5302, %v5297
    %v5533 = vpack.c.b16 %v5303, %v5298
    %v5534 = vpack.c.b16 %v5304, %v5299
    %v5535 = vpack.c.b16 %v5305, %v5300
    %v5536 = vpack.c.b16 %v5306, %v5301
    %v5537 = vpack.c.b16 %v5312, %v5307
    %v5538 = vpack.c.b16 %v5313, %v5308
    %v5539 = vpack.c.b16 %v5314, %v5309
    %v5540 = vpack.c.b16 %v5315, %v5310
    %v5541 = vpack.c.b16 %v5316, %v5311
    %v5542 = vpack.c.b16 %v5322, %v5317
    %v5543 = vpack.c.b16 %v5323, %v5318
    %v5544 = vpack.c.b16 %v5324, %v5319
    %v5545 = vpack.c.b16 %v5325, %v5320
    %v5546 = vpack.c.b16 %v5326, %v5321
    %v5547 = vpack.c.b16 %v5332, %v5327
    %v5548 = vpack.c.b16 %v5333, %v5328
    %v5549 = vpack.c.b16 %v5334, %v5329
    %v5550 = vpack.c.b16 %v5335, %v5330
    %v5551 = vpack.c.b16 %v5336, %v5331
    %v5552 = vpack.c.b16 %v5342, %v5337
    %v5553 = vpack.c.b16 %v5343, %v5338
    %v5554 = vpack.c.b16 %v5344, %v5339
    %v5555 = vpack.c.b16 %v5345, %v5340
    %v5556 = vpack.c.b16 %v5346, %v5341
    %v5557 = vpack.c.b16 %v5352, %v5347
    %v5558 = vpack.c.b16 %v5353, %v5348
    %v5559 = vpack.c.b16 %v5354, %v5349
    %v5560 = vpack.c.b16 %v5355, %v5350
    %v5561 = vpack.c.b16 %v5356, %v5351
    %v5562 = vpack.c.b16 %v5362, %v5357
    %v5563 = vpack.c.b16 %v5363, %v5358
    %v5564 = vpack.c.b16 %v5364, %v5359
    %v5565 = vpack.c.b16 %v5365, %v5360
    %v5566 = vpack.c.b16 %v5366, %v5361
    %v5567 = vpack.c.b16 %v5372, %v5367
    %v5568 = vpack.c.b16 %v5373, %v5368
    %v5569 = vpack.c.b16 %v5374, %v5369
    %v5570 = vpack.c.b16 %v5375, %v5370
    %v5571 = vpack.c.b16 %v5376, %v5371
    %v5572 = vpack.c.b16 %v5382, %v5377
    %v5573 = vpack.c.b16 %v5383, %v5378
    %v5574 = vpack.c.b16 %v5384, %v5379
    %v5575 = vpack.c.b16 %v5385, %v5380
    %v5576 = vpack.c.b16 %v5386, %v5381
    %v5577 = vpack.c.b16 %v5392, %v5387
    %v5578 = vpack.c.b16 %v5393, %v5388
    %v5579 = vpack.c.b16 %v5394, %v5389
    %v5580 = vpack.c.b16 %v5395, %v5390
    %v5581 = vpack.c.b16 %v5396, %v5391
    %v5582 = vpack.c.b16 %v5402, %v5397
    %v5583 = vpack.c.b16 %v5403, %v5398
    %v5584 = vpack.c.b16 %v5404, %v5399
    %v5585 = vpack.c.b16 %v5405, %v5400
    %v5586 = vpack.c.b16 %v5406, %v5401
    %v5587 = vpack.c.b16 %v5412, %v5407
    %v5588 = vpack.c.b16 %v5413, %v5408
    %v5589 = vpack.c.b16 %v5414, %v5409
    %v5590 = vpack.c.b16 %v5415, %v5410
    %v5591 = vpack.c.b16 %v5416, %v5411
    %v5592 = vpack.c.b16 %v5422, %v5417
    %v5593 = vpack.c.b16 %v5423, %v5418
    %v5594 = vpack.c.b16 %v5424, %v5419
    %v5595 = vpack.c.b16 %v5425, %v5420
    %v5596 = vpack.c.b16 %v5426, %v5421
    %v5597 = vpack.c.b16 %v5432, %v5427
    %v5598 = vpack.c.b16 %v5433, %v5428
    %v5599 = vpack.c.b16 %v5434, %v5429
    %v5600 = vpack.c.b16 %v5435, %v5430
    %v5601 = vpack.c.b16 %v5436, %v5431
    %v5602 = vpack.c.b16 %v5442, %v5437
    %v5603 = vpack.c.b16 %v5443, %v5438
    %v5604 = vpack.c.b16 %v5444, %v5439
    %v5605 = vpack.c.b16 %v5445, %v5440
    %v5606 = vpack.c.b16 %v5446, %v5441
    %v5607 = vpack.c.b16 %v5452, %v5447
    %v5608 = vpack.c.b16 %v5453, %v5448
    %v5609 = vpack.c.b16 %v5454, %v5449
    %v5610 = vpack.c.b16 %v5455, %v5450
    %v5611 = vpack.c.b16 %v5456, %v5451
    %v5612 = vpack.c.b16 %v5462, %v5457
    %v5613 = vpack.c.b16 %v5463, %v5458
    %v5614 = vpack.c.b16 %v5464, %v5459
    %v5615 = vpack.c.b16 %v5465, %v5460
    %v5616 = vpack.c.b16 %v5466, %v5461
    %v5617 = vpack.c.b16 %v5472, %v5467
    %v5618 = vpack.c.b16 %v5473, %v5468
    %v5619 = vpack.c.b16 %v5474, %v5469
    %v5620 = vpack.c.b16 %v5475, %v5470
    %v5621 = vpack.c.b16 %v5476, %v5471
    %v5622 = vpack.c.b16 %v5482, %v5477
    %v5623 = vpack.c.b16 %v5483, %v5478
    %v5624 = vpack.c.b16 %v5484, %v5479
    %v5625 = vpack.c.b16 %v5485, %v5480
    %v5626 = vpack.c.b16 %v5486, %v5481
    %v5627 = vpack.c.b16 %v5492, %v5487
    %v5628 = vpack.c.b16 %v5493, %v5488
    %v5629 = vpack.c.b16 %v5494, %v5489
    %v5630 = vpack.c.b16 %v5495, %v5490
    %v5631 = vpack.c.b16 %v5496, %v5491
    %v5632 = vpack.c.b16 %v5502, %v5497
    %v5633 = vpack.c.b16 %v5503, %v5498
    %v5634 = vpack.c.b16 %v5504, %v5499
    %v5635 = vpack.c.b16 %v5505, %v5500
    %v5636 = vpack.c.b16 %v5506, %v5501
    %v5637 = vpack.c.b16 %v5512, %v5507
    %v5638 = vpack.c.b16 %v5513, %v5508
    %v5639 = vpack.c.b16 %v5514, %v5509
    %v5640 = vpack.c.b16 %v5515, %v5510
    %v5641 = vpack.c.b16 %v5516, %v5511
    %v5642 = vpack.c.b16 %v5522, %v5517
    %v5643 = vpack.c.b16 %v5523, %v5518
    %v5644 = vpack.c.b16 %v5524, %v5519
    %v5645 = vpack.c.b16 %v5525, %v5520
    %v5646 = vpack.c.b16 %v5526, %v5521
    %5767 = vmatprep.subr.bf16.mxu0 %v5563
    %5768 = vmatpush1.bf16.msra.mxu0 %v5562
    %5769 = vmatprep.subr.bf16.mxu0 %v5558
    %5770 = vmatpush1.bf16.msra.mxu0 %v5557
    %5771 = vmatprep.subr.bf16.mxu0 %v5553
    %5772 = vmatpush1.bf16.msra.mxu0 %v5552
    %5773 = vmatprep.subr.bf16.mxu0 %v5548
    %5774 = vmatpush1.bf16.msra.mxu0 %v5547
    %5775 = vmatprep.subr.bf16.mxu0 %v5543
    %5776 = vmatpush1.bf16.msra.mxu0 %v5542
    %5777 = vmatprep.subr.bf16.mxu0 %v5538
    %5778 = vmatpush1.bf16.msra.mxu0 %v5537
    %5779 = vmatprep.subr.bf16.mxu0 %v5533
    %5780 = vmatpush1.bf16.msra.mxu0 %v5532
    %5781 = vmatprep.subr.bf16.mxu0 %v5528
    %5782 = vmatpush1.bf16.msra.mxu0 %v5527
    %5783 = vmatprep.subr.bf16.mxu0 %v5603
    %5784 = vmatpush2.bf16.msra.mxu0 %v5602
    %5785 = vmatprep.subr.bf16.mxu0 %v5598
    %5786 = vmatpush2.bf16.msra.mxu0 %v5597
    %5787 = vmatprep.subr.bf16.mxu0 %v5593
    %5788 = vmatpush2.bf16.msra.mxu0 %v5592
    %5789 = vmatprep.subr.bf16.mxu0 %v5588
    %5790 = vmatpush2.bf16.msra.mxu0 %v5587
    %5791 = vmatprep.subr.bf16.mxu0 %v5583
    %5792 = vmatpush2.bf16.msra.mxu0 %v5582
    %5793 = vmatprep.subr.bf16.mxu0 %v5578
    %5794 = vmatpush2.bf16.msra.mxu0 %v5577
    %5795 = vmatprep.subr.bf16.mxu0 %v5573
    %5796 = vmatpush2.bf16.msra.mxu0 %v5572
    %5797 = vmatprep.subr.bf16.mxu0 %v5568
    %5798 = vmatpush2.bf16.msra.mxu0 %v5567
    %5799 = vmatprep.mubr.bf16.mxu0 %v4925
    %5800 = vmatmul.mubr.bf16.gmra.mxu0 %v4924
    %v5801 = vpop.f32.mrf.mxu0
    %v5802 = vadd.f32 %v5121, %v5801
    %v5803 = vpop.f32.mrf.mxu0
    %v5804 = vadd.f32 %v5125, %v5803
    %v5805 = vpop.f32.mrf.mxu0
    %v5806 = vadd.f32 %v5121, %v5805
    %v5807 = vpop.f32.mrf.mxu0
    %v5808 = vadd.f32 %v5125, %v5807
    %5809 = vmatprep.mubr.bf16.mxu0 %v4928
    %5810 = vmatmul.mubr.bf16.gmra.mxu0 %v4927
    %v5811 = vpop.f32.mrf.mxu0
    %v5812 = vadd.f32 %v5121, %v5811
    %v5813 = vpop.f32.mrf.mxu0
    %v5814 = vadd.f32 %v5125, %v5813
    %v5815 = vpop.f32.mrf.mxu0
    %v5816 = vadd.f32 %v5121, %v5815
    %v5817 = vpop.f32.mrf.mxu0
    %v5818 = vadd.f32 %v5125, %v5817
    %5819 = vmatprep.mubr.bf16.mxu0 %v4931
    %5820 = vmatmul.mubr.bf16.gmra.mxu0 %v4930
    %v5821 = vpop.f32.mrf.mxu0
    %v5822 = vadd.f32 %v5121, %v5821
    %v5823 = vpop.f32.mrf.mxu0
    %v5824 = vadd.f32 %v5125, %v5823
    %v5825 = vpop.f32.mrf.mxu0
    %v5826 = vadd.f32 %v5121, %v5825
    %v5827 = vpop.f32.mrf.mxu0
    %v5828 = vadd.f32 %v5125, %v5827
    %5829 = vmatprep.mubr.bf16.mxu0 %v4934
    %5830 = vmatmul.mubr.bf16.gmra.mxu0 %v4933
    %v5831 = vpop.f32.mrf.mxu0
    %v5832 = vadd.f32 %v5121, %v5831
    %v5833 = vpop.f32.mrf.mxu0
    %v5834 = vadd.f32 %v5125, %v5833
    %v5835 = vpop.f32.mrf.mxu0
    %v5836 = vadd.f32 %v5121, %v5835
    %v5837 = vpop.f32.mrf.mxu0
    %v5838 = vadd.f32 %v5125, %v5837
    %5839 = vmatprep.mubr.bf16.mxu0 %v4937
    %5840 = vmatmul.mubr.bf16.gmra.mxu0 %v4936
    %v5841 = vpop.f32.mrf.mxu0
    %v5842 = vadd.f32 %v5121, %v5841
    %v5843 = vpop.f32.mrf.mxu0
    %v5844 = vadd.f32 %v5125, %v5843
    %v5845 = vpop.f32.mrf.mxu0
    %v5846 = vadd.f32 %v5121, %v5845
    %v5847 = vpop.f32.mrf.mxu0
    %v5848 = vadd.f32 %v5125, %v5847
    %5849 = vmatprep.mubr.bf16.mxu0 %v4940
    %5850 = vmatmul.mubr.bf16.gmra.mxu0 %v4939
    %v5851 = vpop.f32.mrf.mxu0
    %v5852 = vadd.f32 %v5121, %v5851
    %v5853 = vpop.f32.mrf.mxu0
    %v5854 = vadd.f32 %v5125, %v5853
    %v5855 = vpop.f32.mrf.mxu0
    %v5856 = vadd.f32 %v5121, %v5855
    %v5857 = vpop.f32.mrf.mxu0
    %v5858 = vadd.f32 %v5125, %v5857
    %5859 = vmatprep.mubr.bf16.mxu0 %v4943
    %5860 = vmatmul.mubr.bf16.gmra.mxu0 %v4942
    %v5861 = vpop.f32.mrf.mxu0
    %v5862 = vadd.f32 %v5121, %v5861
    %v5863 = vpop.f32.mrf.mxu0
    %v5864 = vadd.f32 %v5125, %v5863
    %v5865 = vpop.f32.mrf.mxu0
    %v5866 = vadd.f32 %v5121, %v5865
    %v5867 = vpop.f32.mrf.mxu0
    %v5868 = vadd.f32 %v5125, %v5867
    %5869 = vmatprep.mubr.bf16.mxu0 %v4946
    %5870 = vmatmul.mubr.bf16.gmra.mxu0 %v4945
    %v5871 = vpop.f32.mrf.mxu0
    %v5872 = vadd.f32 %v5121, %v5871
    %v5873 = vpop.f32.mrf.mxu0
    %v5874 = vadd.f32 %v5125, %v5873
    %v5875 = vpop.f32.mrf.mxu0
    %v5876 = vadd.f32 %v5121, %v5875
    %v5877 = vpop.f32.mrf.mxu0
    %v5878 = vadd.f32 %v5125, %v5877
    %5879 = vmatprep.mubr.bf16.mxu0 %v4949
    %5880 = vmatmul.mubr.bf16.gmra.mxu0 %v4948
    %v5881 = vpop.f32.mrf.mxu0
    %v5882 = vadd.f32 %v5121, %v5881
    %v5883 = vpop.f32.mrf.mxu0
    %v5884 = vadd.f32 %v5125, %v5883
    %v5885 = vpop.f32.mrf.mxu0
    %v5886 = vadd.f32 %v5121, %v5885
    %v5887 = vpop.f32.mrf.mxu0
    %v5888 = vadd.f32 %v5125, %v5887
    %5889 = vmatprep.mubr.bf16.mxu0 %v4952
    %5890 = vmatmul.mubr.bf16.gmra.mxu0 %v4951
    %v5891 = vpop.f32.mrf.mxu0
    %v5892 = vadd.f32 %v5121, %v5891
    %v5893 = vpop.f32.mrf.mxu0
    %v5894 = vadd.f32 %v5125, %v5893
    %v5895 = vpop.f32.mrf.mxu0
    %v5896 = vadd.f32 %v5121, %v5895
    %v5897 = vpop.f32.mrf.mxu0
    %v5898 = vadd.f32 %v5125, %v5897
    %5899 = vmatprep.mubr.bf16.mxu0 %v4955
    %5900 = vmatmul.mubr.bf16.gmra.mxu0 %v4954
    %v5901 = vpop.f32.mrf.mxu0
    %v5902 = vadd.f32 %v5121, %v5901
    %v5903 = vpop.f32.mrf.mxu0
    %v5904 = vadd.f32 %v5125, %v5903
    %v5905 = vpop.f32.mrf.mxu0
    %v5906 = vadd.f32 %v5121, %v5905
    %v5907 = vpop.f32.mrf.mxu0
    %v5908 = vadd.f32 %v5125, %v5907
    %5909 = vmatprep.mubr.bf16.mxu0 %v4958
    %5910 = vmatmul.mubr.bf16.gmra.mxu0 %v4957
    %v5911 = vpop.f32.mrf.mxu0
    %v5912 = vadd.f32 %v5121, %v5911
    %v5913 = vpop.f32.mrf.mxu0
    %v5914 = vadd.f32 %v5125, %v5913
    %v5915 = vpop.f32.mrf.mxu0
    %v5916 = vadd.f32 %v5121, %v5915
    %v5917 = vpop.f32.mrf.mxu0
    %v5918 = vadd.f32 %v5125, %v5917
    %5919 = vmatprep.mubr.bf16.mxu0 %v4961
    %5920 = vmatmul.mubr.bf16.gmra.mxu0 %v4960
    %v5921 = vpop.f32.mrf.mxu0
    %v5922 = vadd.f32 %v5121, %v5921
    %v5923 = vpop.f32.mrf.mxu0
    %v5924 = vadd.f32 %v5125, %v5923
    %v5925 = vpop.f32.mrf.mxu0
    %v5926 = vadd.f32 %v5121, %v5925
    %v5927 = vpop.f32.mrf.mxu0
    %v5928 = vadd.f32 %v5125, %v5927
    %5929 = vmatprep.mubr.bf16.mxu0 %v4964
    %5930 = vmatmul.mubr.bf16.gmra.mxu0 %v4963
    %v5931 = vpop.f32.mrf.mxu0
    %v5932 = vadd.f32 %v5121, %v5931
    %v5933 = vpop.f32.mrf.mxu0
    %v5934 = vadd.f32 %v5125, %v5933
    %v5935 = vpop.f32.mrf.mxu0
    %v5936 = vadd.f32 %v5121, %v5935
    %v5937 = vpop.f32.mrf.mxu0
    %v5938 = vadd.f32 %v5125, %v5937
    %5939 = vmatprep.mubr.bf16.mxu0 %v4967
    %5940 = vmatmul.mubr.bf16.gmra.mxu0 %v4966
    %v5941 = vpop.f32.mrf.mxu0
    %v5942 = vadd.f32 %v5121, %v5941
    %v5943 = vpop.f32.mrf.mxu0
    %v5944 = vadd.f32 %v5125, %v5943
    %v5945 = vpop.f32.mrf.mxu0
    %v5946 = vadd.f32 %v5121, %v5945
    %v5947 = vpop.f32.mrf.mxu0
    %v5948 = vadd.f32 %v5125, %v5947
    %5949 = vmatprep.mubr.bf16.mxu0 %v4970
    %5950 = vmatmul.mubr.bf16.gmra.mxu0 %v4969
    %v5951 = vpop.f32.mrf.mxu0
    %v5952 = vadd.f32 %v5121, %v5951
    %v5953 = vpop.f32.mrf.mxu0
    %v5954 = vadd.f32 %v5125, %v5953
    %v5955 = vpop.f32.mrf.mxu0
    %v5956 = vadd.f32 %v5121, %v5955
    %v5957 = vpop.f32.mrf.mxu0
    %v5958 = vadd.f32 %v5125, %v5957
    %5959 = vdwg.mxu0
    %5960 = vmatprep.subr.bf16.mxu0 %v5643
    %5961 = vmatpush1.bf16.msra.mxu0 %v5642
    %5962 = vmatprep.subr.bf16.mxu0 %v5638
    %5963 = vmatpush1.bf16.msra.mxu0 %v5637
    %5964 = vmatprep.subr.bf16.mxu0 %v5633
    %5965 = vmatpush1.bf16.msra.mxu0 %v5632
    %5966 = vmatprep.subr.bf16.mxu0 %v5628
    %5967 = vmatpush1.bf16.msra.mxu0 %v5627
    %5968 = vmatprep.subr.bf16.mxu0 %v5623
    %5969 = vmatpush1.bf16.msra.mxu0 %v5622
    %5970 = vmatprep.subr.bf16.mxu0 %v5618
    %5971 = vmatpush1.bf16.msra.mxu0 %v5617
    %5972 = vmatprep.subr.bf16.mxu0 %v5613
    %5973 = vmatpush1.bf16.msra.mxu0 %v5612
    %5974 = vmatprep.subr.bf16.mxu0 %v5608
    %5975 = vmatpush1.bf16.msra.mxu0 %v5607
    %5976 = vmatprep.subr.bf16.mxu0 0
    %5977 = vmatpush2.bf16.msra.mxu0 0
    %5978 = vmatprep.subr.bf16.mxu0 0
    %5979 = vmatpush2.bf16.msra.mxu0 0
    %5980 = vmatprep.subr.bf16.mxu0 0
    %5981 = vmatpush2.bf16.msra.mxu0 0
    %5982 = vmatprep.subr.bf16.mxu0 0
    %5983 = vmatpush2.bf16.msra.mxu0 0
    %5984 = vmatprep.subr.bf16.mxu0 0
    %5985 = vmatpush2.bf16.msra.mxu0 0
    %5986 = vmatprep.subr.bf16.mxu0 0
    %5987 = vmatpush2.bf16.msra.mxu0 0
    %5988 = vmatprep.subr.bf16.mxu0 0
    %5989 = vmatpush2.bf16.msra.mxu0 0
    %5990 = vmatprep.subr.bf16.mxu0 0
    %5991 = vmatpush2.bf16.msra.mxu0 0
    %5992 = vmatprep.mubr.bf16.mxu0 0
    %5993 = vmatmul.mubr.bf16.gmra.mxu0 %v4926
    %v5994 = vpop.f32.mrf.mxu0
    %v5995 = vadd.f32 %v5802, %v5994
    %v5996 = vpop.f32.mrf.mxu0
    %v5997 = vadd.f32 %v5804, %v5996
    %v5998 = vpop.f32.mrf.mxu0
    %v5999 = vadd.f32 %v5806, %v5998
    %v6000 = vpop.f32.mrf.mxu0
    %v6001 = vadd.f32 %v5808, %v6000
    %6002 = vmatprep.mubr.bf16.mxu0 0
    %6003 = vmatmul.mubr.bf16.gmra.mxu0 %v4929
    %v6004 = vpop.f32.mrf.mxu0
    %v6005 = vadd.f32 %v5812, %v6004
    %v6006 = vpop.f32.mrf.mxu0
    %v6007 = vadd.f32 %v5814, %v6006
    %v6008 = vpop.f32.mrf.mxu0
    %v6009 = vadd.f32 %v5816, %v6008
    %v6010 = vpop.f32.mrf.mxu0
    %v6011 = vadd.f32 %v5818, %v6010
    %6012 = vmatprep.mubr.bf16.mxu0 0
    %6013 = vmatmul.mubr.bf16.gmra.mxu0 %v4932
    %v6014 = vpop.f32.mrf.mxu0
    %v6015 = vadd.f32 %v5822, %v6014
    %v6016 = vpop.f32.mrf.mxu0
    %v6017 = vadd.f32 %v5824, %v6016
    %v6018 = vpop.f32.mrf.mxu0
    %v6019 = vadd.f32 %v5826, %v6018
    %v6020 = vpop.f32.mrf.mxu0
    %v6021 = vadd.f32 %v5828, %v6020
    %6022 = vmatprep.mubr.bf16.mxu0 0
    %6023 = vmatmul.mubr.bf16.gmra.mxu0 %v4935
    %v6024 = vpop.f32.mrf.mxu0
    %v6025 = vadd.f32 %v5832, %v6024
    %v6026 = vpop.f32.mrf.mxu0
    %v6027 = vadd.f32 %v5834, %v6026
    %v6028 = vpop.f32.mrf.mxu0
    %v6029 = vadd.f32 %v5836, %v6028
    %v6030 = vpop.f32.mrf.mxu0
    %v6031 = vadd.f32 %v5838, %v6030
    %6032 = vmatprep.mubr.bf16.mxu0 0
    %6033 = vmatmul.mubr.bf16.gmra.mxu0 %v4938
    %v6034 = vpop.f32.mrf.mxu0
    %v6035 = vadd.f32 %v5842, %v6034
    %v6036 = vpop.f32.mrf.mxu0
    %v6037 = vadd.f32 %v5844, %v6036
    %v6038 = vpop.f32.mrf.mxu0
    %v6039 = vadd.f32 %v5846, %v6038
    %v6040 = vpop.f32.mrf.mxu0
    %v6041 = vadd.f32 %v5848, %v6040
    %6042 = vmatprep.mubr.bf16.mxu0 0
    %6043 = vmatmul.mubr.bf16.gmra.mxu0 %v4941
    %v6044 = vpop.f32.mrf.mxu0
    %v6045 = vadd.f32 %v5852, %v6044
    %v6046 = vpop.f32.mrf.mxu0
    %v6047 = vadd.f32 %v5854, %v6046
    %v6048 = vpop.f32.mrf.mxu0
    %v6049 = vadd.f32 %v5856, %v6048
    %v6050 = vpop.f32.mrf.mxu0
    %v6051 = vadd.f32 %v5858, %v6050
    %6052 = vmatprep.mubr.bf16.mxu0 0
    %6053 = vmatmul.mubr.bf16.gmra.mxu0 %v4944
    %v6054 = vpop.f32.mrf.mxu0
    %v6055 = vadd.f32 %v5862, %v6054
    %v6056 = vpop.f32.mrf.mxu0
    %v6057 = vadd.f32 %v5864, %v6056
    %v6058 = vpop.f32.mrf.mxu0
    %v6059 = vadd.f32 %v5866, %v6058
    %v6060 = vpop.f32.mrf.mxu0
    %v6061 = vadd.f32 %v5868, %v6060
    %6062 = vmatprep.mubr.bf16.mxu0 0
    %6063 = vmatmul.mubr.bf16.gmra.mxu0 %v4947
    %v6064 = vpop.f32.mrf.mxu0
    %v6065 = vadd.f32 %v5872, %v6064
    %v6066 = vpop.f32.mrf.mxu0
    %v6067 = vadd.f32 %v5874, %v6066
    %v6068 = vpop.f32.mrf.mxu0
    %v6069 = vadd.f32 %v5876, %v6068
    %v6070 = vpop.f32.mrf.mxu0
    %v6071 = vadd.f32 %v5878, %v6070
    %6072 = vmatprep.mubr.bf16.mxu0 0
    %6073 = vmatmul.mubr.bf16.gmra.mxu0 %v4950
    %v6074 = vpop.f32.mrf.mxu0
    %v6075 = vadd.f32 %v5882, %v6074
    %v6076 = vpop.f32.mrf.mxu0
    %v6077 = vadd.f32 %v5884, %v6076
    %v6078 = vpop.f32.mrf.mxu0
    %v6079 = vadd.f32 %v5886, %v6078
    %v6080 = vpop.f32.mrf.mxu0
    %v6081 = vadd.f32 %v5888, %v6080
    %6082 = vmatprep.mubr.bf16.mxu0 0
    %6083 = vmatmul.mubr.bf16.gmra.mxu0 %v4953
    %v6084 = vpop.f32.mrf.mxu0
    %v6085 = vadd.f32 %v5892, %v6084
    %v6086 = vpop.f32.mrf.mxu0
    %v6087 = vadd.f32 %v5894, %v6086
    %v6088 = vpop.f32.mrf.mxu0
    %v6089 = vadd.f32 %v5896, %v6088
    %v6090 = vpop.f32.mrf.mxu0
    %v6091 = vadd.f32 %v5898, %v6090
    %6092 = vmatprep.mubr.bf16.mxu0 0
    %6093 = vmatmul.mubr.bf16.gmra.mxu0 %v4956
    %v6094 = vpop.f32.mrf.mxu0
    %v6095 = vadd.f32 %v5902, %v6094
    %v6096 = vpop.f32.mrf.mxu0
    %v6097 = vadd.f32 %v5904, %v6096
    %v6098 = vpop.f32.mrf.mxu0
    %v6099 = vadd.f32 %v5906, %v6098
    %v6100 = vpop.f32.mrf.mxu0
    %v6101 = vadd.f32 %v5908, %v6100
    %6102 = vmatprep.mubr.bf16.mxu0 0
    %6103 = vmatmul.mubr.bf16.gmra.mxu0 %v4959
    %v6104 = vpop.f32.mrf.mxu0
    %v6105 = vadd.f32 %v5912, %v6104
    %v6106 = vpop.f32.mrf.mxu0
    %v6107 = vadd.f32 %v5914, %v6106
    %v6108 = vpop.f32.mrf.mxu0
    %v6109 = vadd.f32 %v5916, %v6108
    %v6110 = vpop.f32.mrf.mxu0
    %v6111 = vadd.f32 %v5918, %v6110
    %6112 = vmatprep.mubr.bf16.mxu0 0
    %6113 = vmatmul.mubr.bf16.gmra.mxu0 %v4962
    %v6114 = vpop.f32.mrf.mxu0
    %v6115 = vadd.f32 %v5922, %v6114
    %v6116 = vpop.f32.mrf.mxu0
    %v6117 = vadd.f32 %v5924, %v6116
    %v6118 = vpop.f32.mrf.mxu0
    %v6119 = vadd.f32 %v5926, %v6118
    %v6120 = vpop.f32.mrf.mxu0
    %v6121 = vadd.f32 %v5928, %v6120
    %6122 = vmatprep.mubr.bf16.mxu0 0
    %6123 = vmatmul.mubr.bf16.gmra.mxu0 %v4965
    %v6124 = vpop.f32.mrf.mxu0
    %v6125 = vadd.f32 %v5932, %v6124
    %v6126 = vpop.f32.mrf.mxu0
    %v6127 = vadd.f32 %v5934, %v6126
    %v6128 = vpop.f32.mrf.mxu0
    %v6129 = vadd.f32 %v5936, %v6128
    %v6130 = vpop.f32.mrf.mxu0
    %v6131 = vadd.f32 %v5938, %v6130
    %6132 = vmatprep.mubr.bf16.mxu0 0
    %6133 = vmatmul.mubr.bf16.gmra.mxu0 %v4968
    %v6134 = vpop.f32.mrf.mxu0
    %v6135 = vadd.f32 %v5942, %v6134
    %v6136 = vpop.f32.mrf.mxu0
    %v6137 = vadd.f32 %v5944, %v6136
    %v6138 = vpop.f32.mrf.mxu0
    %v6139 = vadd.f32 %v5946, %v6138
    %v6140 = vpop.f32.mrf.mxu0
    %v6141 = vadd.f32 %v5948, %v6140
    %6142 = vmatprep.mubr.bf16.mxu0 0
    %6143 = vmatmul.mubr.bf16.gmra.mxu0 %v4971
    %v6144 = vpop.f32.mrf.mxu0
    %v6145 = vadd.f32 %v5952, %v6144
    %v6146 = vpop.f32.mrf.mxu0
    %v6147 = vadd.f32 %v5954, %v6146
    %v6148 = vpop.f32.mrf.mxu0
    %v6149 = vadd.f32 %v5956, %v6148
    %v6150 = vpop.f32.mrf.mxu0
    %v6151 = vadd.f32 %v5958, %v6150
    %6152 = vdwg.mxu0
    %6153 = vmatprep.subr.bf16.mxu0 %v5565
    %6154 = vmatpush1.bf16.msra.mxu0 %v5564
    %6155 = vmatprep.subr.bf16.mxu0 %v5560
    %6156 = vmatpush1.bf16.msra.mxu0 %v5559
    %6157 = vmatprep.subr.bf16.mxu0 %v5555
    %6158 = vmatpush1.bf16.msra.mxu0 %v5554
    %6159 = vmatprep.subr.bf16.mxu0 %v5550
    %6160 = vmatpush1.bf16.msra.mxu0 %v5549
    %6161 = vmatprep.subr.bf16.mxu0 %v5545
    %6162 = vmatpush1.bf16.msra.mxu0 %v5544
    %6163 = vmatprep.subr.bf16.mxu0 %v5540
    %6164 = vmatpush1.bf16.msra.mxu0 %v5539
    %6165 = vmatprep.subr.bf16.mxu0 %v5535
    %6166 = vmatpush1.bf16.msra.mxu0 %v5534
    %6167 = vmatprep.subr.bf16.mxu0 %v5530
    %6168 = vmatpush1.bf16.msra.mxu0 %v5529
    %6169 = vmatprep.subr.bf16.mxu0 %v5605
    %6170 = vmatpush2.bf16.msra.mxu0 %v5604
    %6171 = vmatprep.subr.bf16.mxu0 %v5600
    %6172 = vmatpush2.bf16.msra.mxu0 %v5599
    %6173 = vmatprep.subr.bf16.mxu0 %v5595
    %6174 = vmatpush2.bf16.msra.mxu0 %v5594
    %6175 = vmatprep.subr.bf16.mxu0 %v5590
    %6176 = vmatpush2.bf16.msra.mxu0 %v5589
    %6177 = vmatprep.subr.bf16.mxu0 %v5585
    %6178 = vmatpush2.bf16.msra.mxu0 %v5584
    %6179 = vmatprep.subr.bf16.mxu0 %v5580
    %6180 = vmatpush2.bf16.msra.mxu0 %v5579
    %6181 = vmatprep.subr.bf16.mxu0 %v5575
    %6182 = vmatpush2.bf16.msra.mxu0 %v5574
    %6183 = vmatprep.subr.bf16.mxu0 %v5570
    %6184 = vmatpush2.bf16.msra.mxu0 %v5569
    %6185 = vmatprep.mubr.bf16.mxu0 %v4925
    %6186 = vmatmul.mubr.bf16.gmra.mxu0 %v4924
    %v6187 = vpop.f32.mrf.mxu0
    %v6188 = vadd.f32 %v5129, %v6187
    %v6189 = vpop.f32.mrf.mxu0
    %v6190 = vadd.f32 %v5133, %v6189
    %v6191 = vpop.f32.mrf.mxu0
    %v6192 = vadd.f32 %v5129, %v6191
    %v6193 = vpop.f32.mrf.mxu0
    %v6194 = vadd.f32 %v5133, %v6193
    %6195 = vmatprep.mubr.bf16.mxu0 %v4928
    %6196 = vmatmul.mubr.bf16.gmra.mxu0 %v4927
    %v6197 = vpop.f32.mrf.mxu0
    %v6198 = vadd.f32 %v5129, %v6197
    %v6199 = vpop.f32.mrf.mxu0
    %v6200 = vadd.f32 %v5133, %v6199
    %v6201 = vpop.f32.mrf.mxu0
    %v6202 = vadd.f32 %v5129, %v6201
    %v6203 = vpop.f32.mrf.mxu0
    %v6204 = vadd.f32 %v5133, %v6203
    %6205 = vmatprep.mubr.bf16.mxu0 %v4931
    %6206 = vmatmul.mubr.bf16.gmra.mxu0 %v4930
    %v6207 = vpop.f32.mrf.mxu0
    %v6208 = vadd.f32 %v5129, %v6207
    %v6209 = vpop.f32.mrf.mxu0
    %v6210 = vadd.f32 %v5133, %v6209
    %v6211 = vpop.f32.mrf.mxu0
    %v6212 = vadd.f32 %v5129, %v6211
    %v6213 = vpop.f32.mrf.mxu0
    %v6214 = vadd.f32 %v5133, %v6213
    %6215 = vmatprep.mubr.bf16.mxu0 %v4934
    %6216 = vmatmul.mubr.bf16.gmra.mxu0 %v4933
    %v6217 = vpop.f32.mrf.mxu0
    %v6218 = vadd.f32 %v5129, %v6217
    %v6219 = vpop.f32.mrf.mxu0
    %v6220 = vadd.f32 %v5133, %v6219
    %v6221 = vpop.f32.mrf.mxu0
    %v6222 = vadd.f32 %v5129, %v6221
    %v6223 = vpop.f32.mrf.mxu0
    %v6224 = vadd.f32 %v5133, %v6223
    %6225 = vmatprep.mubr.bf16.mxu0 %v4937
    %6226 = vmatmul.mubr.bf16.gmra.mxu0 %v4936
    %v6227 = vpop.f32.mrf.mxu0
    %v6228 = vadd.f32 %v5129, %v6227
    %v6229 = vpop.f32.mrf.mxu0
    %v6230 = vadd.f32 %v5133, %v6229
    %v6231 = vpop.f32.mrf.mxu0
    %v6232 = vadd.f32 %v5129, %v6231
    %v6233 = vpop.f32.mrf.mxu0
    %v6234 = vadd.f32 %v5133, %v6233
    %6235 = vmatprep.mubr.bf16.mxu0 %v4940
    %6236 = vmatmul.mubr.bf16.gmra.mxu0 %v4939
    %v6237 = vpop.f32.mrf.mxu0
    %v6238 = vadd.f32 %v5129, %v6237
    %v6239 = vpop.f32.mrf.mxu0
    %v6240 = vadd.f32 %v5133, %v6239
    %v6241 = vpop.f32.mrf.mxu0
    %v6242 = vadd.f32 %v5129, %v6241
    %v6243 = vpop.f32.mrf.mxu0
    %v6244 = vadd.f32 %v5133, %v6243
    %6245 = vmatprep.mubr.bf16.mxu0 %v4943
    %6246 = vmatmul.mubr.bf16.gmra.mxu0 %v4942
    %v6247 = vpop.f32.mrf.mxu0
    %v6248 = vadd.f32 %v5129, %v6247
    %v6249 = vpop.f32.mrf.mxu0
    %v6250 = vadd.f32 %v5133, %v6249
    %v6251 = vpop.f32.mrf.mxu0
    %v6252 = vadd.f32 %v5129, %v6251
    %v6253 = vpop.f32.mrf.mxu0
    %v6254 = vadd.f32 %v5133, %v6253
    %6255 = vmatprep.mubr.bf16.mxu0 %v4946
    %6256 = vmatmul.mubr.bf16.gmra.mxu0 %v4945
    %v6257 = vpop.f32.mrf.mxu0
    %v6258 = vadd.f32 %v5129, %v6257
    %v6259 = vpop.f32.mrf.mxu0
    %v6260 = vadd.f32 %v5133, %v6259
    %v6261 = vpop.f32.mrf.mxu0
    %v6262 = vadd.f32 %v5129, %v6261
    %v6263 = vpop.f32.mrf.mxu0
    %v6264 = vadd.f32 %v5133, %v6263
    %6265 = vmatprep.mubr.bf16.mxu0 %v4949
    %6266 = vmatmul.mubr.bf16.gmra.mxu0 %v4948
    %v6267 = vpop.f32.mrf.mxu0
    %v6268 = vadd.f32 %v5129, %v6267
    %v6269 = vpop.f32.mrf.mxu0
    %v6270 = vadd.f32 %v5133, %v6269
    %v6271 = vpop.f32.mrf.mxu0
    %v6272 = vadd.f32 %v5129, %v6271
    %v6273 = vpop.f32.mrf.mxu0
    %v6274 = vadd.f32 %v5133, %v6273
    %6275 = vmatprep.mubr.bf16.mxu0 %v4952
    %6276 = vmatmul.mubr.bf16.gmra.mxu0 %v4951
    %v6277 = vpop.f32.mrf.mxu0
    %v6278 = vadd.f32 %v5129, %v6277
    %v6279 = vpop.f32.mrf.mxu0
    %v6280 = vadd.f32 %v5133, %v6279
    %v6281 = vpop.f32.mrf.mxu0
    %v6282 = vadd.f32 %v5129, %v6281
    %v6283 = vpop.f32.mrf.mxu0
    %v6284 = vadd.f32 %v5133, %v6283
    %6285 = vmatprep.mubr.bf16.mxu0 %v4955
    %6286 = vmatmul.mubr.bf16.gmra.mxu0 %v4954
    %v6287 = vpop.f32.mrf.mxu0
    %v6288 = vadd.f32 %v5129, %v6287
    %v6289 = vpop.f32.mrf.mxu0
    %v6290 = vadd.f32 %v5133, %v6289
    %v6291 = vpop.f32.mrf.mxu0
    %v6292 = vadd.f32 %v5129, %v6291
    %v6293 = vpop.f32.mrf.mxu0
    %v6294 = vadd.f32 %v5133, %v6293
    %6295 = vmatprep.mubr.bf16.mxu0 %v4958
    %6296 = vmatmul.mubr.bf16.gmra.mxu0 %v4957
    %v6297 = vpop.f32.mrf.mxu0
    %v6298 = vadd.f32 %v5129, %v6297
    %v6299 = vpop.f32.mrf.mxu0
    %v6300 = vadd.f32 %v5133, %v6299
    %v6301 = vpop.f32.mrf.mxu0
    %v6302 = vadd.f32 %v5129, %v6301
    %v6303 = vpop.f32.mrf.mxu0
    %v6304 = vadd.f32 %v5133, %v6303
    %6305 = vmatprep.mubr.bf16.mxu0 %v4961
    %6306 = vmatmul.mubr.bf16.gmra.mxu0 %v4960
    %v6307 = vpop.f32.mrf.mxu0
    %v6308 = vadd.f32 %v5129, %v6307
    %v6309 = vpop.f32.mrf.mxu0
    %v6310 = vadd.f32 %v5133, %v6309
    %v6311 = vpop.f32.mrf.mxu0
    %v6312 = vadd.f32 %v5129, %v6311
    %v6313 = vpop.f32.mrf.mxu0
    %v6314 = vadd.f32 %v5133, %v6313
    %6315 = vmatprep.mubr.bf16.mxu0 %v4964
    %6316 = vmatmul.mubr.bf16.gmra.mxu0 %v4963
    %v6317 = vpop.f32.mrf.mxu0
    %v6318 = vadd.f32 %v5129, %v6317
    %v6319 = vpop.f32.mrf.mxu0
    %v6320 = vadd.f32 %v5133, %v6319
    %v6321 = vpop.f32.mrf.mxu0
    %v6322 = vadd.f32 %v5129, %v6321
    %v6323 = vpop.f32.mrf.mxu0
    %v6324 = vadd.f32 %v5133, %v6323
    %6325 = vmatprep.mubr.bf16.mxu0 %v4967
    %6326 = vmatmul.mubr.bf16.gmra.mxu0 %v4966
    %v6327 = vpop.f32.mrf.mxu0
    %v6328 = vadd.f32 %v5129, %v6327
    %v6329 = vpop.f32.mrf.mxu0
    %v6330 = vadd.f32 %v5133, %v6329
    %v6331 = vpop.f32.mrf.mxu0
    %v6332 = vadd.f32 %v5129, %v6331
    %v6333 = vpop.f32.mrf.mxu0
    %v6334 = vadd.f32 %v5133, %v6333
    %6335 = vmatprep.mubr.bf16.mxu0 %v4970
    %6336 = vmatmul.mubr.bf16.gmra.mxu0 %v4969
    %v6337 = vpop.f32.mrf.mxu0
    %v6338 = vadd.f32 %v5129, %v6337
    %v6339 = vpop.f32.mrf.mxu0
    %v6340 = vadd.f32 %v5133, %v6339
    %v6341 = vpop.f32.mrf.mxu0
    %v6342 = vadd.f32 %v5129, %v6341
    %v6343 = vpop.f32.mrf.mxu0
    %v6344 = vadd.f32 %v5133, %v6343
    %6345 = vdwg.mxu0
    %6346 = vmatprep.subr.bf16.mxu0 %v5645
    %6347 = vmatpush1.bf16.msra.mxu0 %v5644
    %6348 = vmatprep.subr.bf16.mxu0 %v5640
    %6349 = vmatpush1.bf16.msra.mxu0 %v5639
    %6350 = vmatprep.subr.bf16.mxu0 %v5635
    %6351 = vmatpush1.bf16.msra.mxu0 %v5634
    %6352 = vmatprep.subr.bf16.mxu0 %v5630
    %6353 = vmatpush1.bf16.msra.mxu0 %v5629
    %6354 = vmatprep.subr.bf16.mxu0 %v5625
    %6355 = vmatpush1.bf16.msra.mxu0 %v5624
    %6356 = vmatprep.subr.bf16.mxu0 %v5620
    %6357 = vmatpush1.bf16.msra.mxu0 %v5619
    %6358 = vmatprep.subr.bf16.mxu0 %v5615
    %6359 = vmatpush1.bf16.msra.mxu0 %v5614
    %6360 = vmatprep.subr.bf16.mxu0 %v5610
    %6361 = vmatpush1.bf16.msra.mxu0 %v5609
    %6362 = vmatprep.subr.bf16.mxu0 0
    %6363 = vmatpush2.bf16.msra.mxu0 0
    %6364 = vmatprep.subr.bf16.mxu0 0
    %6365 = vmatpush2.bf16.msra.mxu0 0
    %6366 = vmatprep.subr.bf16.mxu0 0
    %6367 = vmatpush2.bf16.msra.mxu0 0
    %6368 = vmatprep.subr.bf16.mxu0 0
    %6369 = vmatpush2.bf16.msra.mxu0 0
    %6370 = vmatprep.subr.bf16.mxu0 0
    %6371 = vmatpush2.bf16.msra.mxu0 0
    %6372 = vmatprep.subr.bf16.mxu0 0
    %6373 = vmatpush2.bf16.msra.mxu0 0
    %6374 = vmatprep.subr.bf16.mxu0 0
    %6375 = vmatpush2.bf16.msra.mxu0 0
    %6376 = vmatprep.subr.bf16.mxu0 0
    %6377 = vmatpush2.bf16.msra.mxu0 0
    %6378 = vmatprep.mubr.bf16.mxu0 0
    %6379 = vmatmul.mubr.bf16.gmra.mxu0 %v4926
    %v6380 = vpop.f32.mrf.mxu0
    %v6381 = vadd.f32 %v6188, %v6380
    %v6382 = vpop.f32.mrf.mxu0
    %v6383 = vadd.f32 %v6190, %v6382
    %v6384 = vpop.f32.mrf.mxu0
    %v6385 = vadd.f32 %v6192, %v6384
    %v6386 = vpop.f32.mrf.mxu0
    %v6387 = vadd.f32 %v6194, %v6386
    %6388 = vmatprep.mubr.bf16.mxu0 0
    %6389 = vmatmul.mubr.bf16.gmra.mxu0 %v4929
    %v6390 = vpop.f32.mrf.mxu0
    %v6391 = vadd.f32 %v6198, %v6390
    %v6392 = vpop.f32.mrf.mxu0
    %v6393 = vadd.f32 %v6200, %v6392
    %v6394 = vpop.f32.mrf.mxu0
    %v6395 = vadd.f32 %v6202, %v6394
    %v6396 = vpop.f32.mrf.mxu0
    %v6397 = vadd.f32 %v6204, %v6396
    %6398 = vmatprep.mubr.bf16.mxu0 0
    %6399 = vmatmul.mubr.bf16.gmra.mxu0 %v4932
    %v6400 = vpop.f32.mrf.mxu0
    %v6401 = vadd.f32 %v6208, %v6400
    %v6402 = vpop.f32.mrf.mxu0
    %v6403 = vadd.f32 %v6210, %v6402
    %v6404 = vpop.f32.mrf.mxu0
    %v6405 = vadd.f32 %v6212, %v6404
    %v6406 = vpop.f32.mrf.mxu0
    %v6407 = vadd.f32 %v6214, %v6406
    %6408 = vmatprep.mubr.bf16.mxu0 0
    %6409 = vmatmul.mubr.bf16.gmra.mxu0 %v4935
    %v6410 = vpop.f32.mrf.mxu0
    %v6411 = vadd.f32 %v6218, %v6410
    %v6412 = vpop.f32.mrf.mxu0
    %v6413 = vadd.f32 %v6220, %v6412
    %v6414 = vpop.f32.mrf.mxu0
    %v6415 = vadd.f32 %v6222, %v6414
    %v6416 = vpop.f32.mrf.mxu0
    %v6417 = vadd.f32 %v6224, %v6416
    %6418 = vmatprep.mubr.bf16.mxu0 0
    %6419 = vmatmul.mubr.bf16.gmra.mxu0 %v4938
    %v6420 = vpop.f32.mrf.mxu0
    %v6421 = vadd.f32 %v6228, %v6420
    %v6422 = vpop.f32.mrf.mxu0
    %v6423 = vadd.f32 %v6230, %v6422
    %v6424 = vpop.f32.mrf.mxu0
    %v6425 = vadd.f32 %v6232, %v6424
    %v6426 = vpop.f32.mrf.mxu0
    %v6427 = vadd.f32 %v6234, %v6426
    %6428 = vmatprep.mubr.bf16.mxu0 0
    %6429 = vmatmul.mubr.bf16.gmra.mxu0 %v4941
    %v6430 = vpop.f32.mrf.mxu0
    %v6431 = vadd.f32 %v6238, %v6430
    %v6432 = vpop.f32.mrf.mxu0
    %v6433 = vadd.f32 %v6240, %v6432
    %v6434 = vpop.f32.mrf.mxu0
    %v6435 = vadd.f32 %v6242, %v6434
    %v6436 = vpop.f32.mrf.mxu0
    %v6437 = vadd.f32 %v6244, %v6436
    %6438 = vmatprep.mubr.bf16.mxu0 0
    %6439 = vmatmul.mubr.bf16.gmra.mxu0 %v4944
    %v6440 = vpop.f32.mrf.mxu0
    %v6441 = vadd.f32 %v6248, %v6440
    %v6442 = vpop.f32.mrf.mxu0
    %v6443 = vadd.f32 %v6250, %v6442
    %v6444 = vpop.f32.mrf.mxu0
    %v6445 = vadd.f32 %v6252, %v6444
    %v6446 = vpop.f32.mrf.mxu0
    %v6447 = vadd.f32 %v6254, %v6446
    %6448 = vmatprep.mubr.bf16.mxu0 0
    %6449 = vmatmul.mubr.bf16.gmra.mxu0 %v4947
    %v6450 = vpop.f32.mrf.mxu0
    %v6451 = vadd.f32 %v6258, %v6450
    %v6452 = vpop.f32.mrf.mxu0
    %v6453 = vadd.f32 %v6260, %v6452
    %v6454 = vpop.f32.mrf.mxu0
    %v6455 = vadd.f32 %v6262, %v6454
    %v6456 = vpop.f32.mrf.mxu0
    %v6457 = vadd.f32 %v6264, %v6456
    %6458 = vmatprep.mubr.bf16.mxu0 0
    %6459 = vmatmul.mubr.bf16.gmra.mxu0 %v4950
    %v6460 = vpop.f32.mrf.mxu0
    %v6461 = vadd.f32 %v6268, %v6460
    %v6462 = vpop.f32.mrf.mxu0
    %v6463 = vadd.f32 %v6270, %v6462
    %v6464 = vpop.f32.mrf.mxu0
    %v6465 = vadd.f32 %v6272, %v6464
    %v6466 = vpop.f32.mrf.mxu0
    %v6467 = vadd.f32 %v6274, %v6466
    %6468 = vmatprep.mubr.bf16.mxu0 0
    %6469 = vmatmul.mubr.bf16.gmra.mxu0 %v4953
    %v6470 = vpop.f32.mrf.mxu0
    %v6471 = vadd.f32 %v6278, %v6470
    %v6472 = vpop.f32.mrf.mxu0
    %v6473 = vadd.f32 %v6280, %v6472
    %v6474 = vpop.f32.mrf.mxu0
    %v6475 = vadd.f32 %v6282, %v6474
    %v6476 = vpop.f32.mrf.mxu0
    %v6477 = vadd.f32 %v6284, %v6476
    %6478 = vmatprep.mubr.bf16.mxu0 0
    %6479 = vmatmul.mubr.bf16.gmra.mxu0 %v4956
    %v6480 = vpop.f32.mrf.mxu0
    %v6481 = vadd.f32 %v6288, %v6480
    %v6482 = vpop.f32.mrf.mxu0
    %v6483 = vadd.f32 %v6290, %v6482
    %v6484 = vpop.f32.mrf.mxu0
    %v6485 = vadd.f32 %v6292, %v6484
    %v6486 = vpop.f32.mrf.mxu0
    %v6487 = vadd.f32 %v6294, %v6486
    %6488 = vmatprep.mubr.bf16.mxu0 0
    %6489 = vmatmul.mubr.bf16.gmra.mxu0 %v4959
    %v6490 = vpop.f32.mrf.mxu0
    %v6491 = vadd.f32 %v6298, %v6490
    %v6492 = vpop.f32.mrf.mxu0
    %v6493 = vadd.f32 %v6300, %v6492
    %v6494 = vpop.f32.mrf.mxu0
    %v6495 = vadd.f32 %v6302, %v6494
    %v6496 = vpop.f32.mrf.mxu0
    %v6497 = vadd.f32 %v6304, %v6496
    %6498 = vmatprep.mubr.bf16.mxu0 0
    %6499 = vmatmul.mubr.bf16.gmra.mxu0 %v4962
    %v6500 = vpop.f32.mrf.mxu0
    %v6501 = vadd.f32 %v6308, %v6500
    %v6502 = vpop.f32.mrf.mxu0
    %v6503 = vadd.f32 %v6310, %v6502
    %v6504 = vpop.f32.mrf.mxu0
    %v6505 = vadd.f32 %v6312, %v6504
    %v6506 = vpop.f32.mrf.mxu0
    %v6507 = vadd.f32 %v6314, %v6506
    %6508 = vmatprep.mubr.bf16.mxu0 0
    %6509 = vmatmul.mubr.bf16.gmra.mxu0 %v4965
    %v6510 = vpop.f32.mrf.mxu0
    %v6511 = vadd.f32 %v6318, %v6510
    %v6512 = vpop.f32.mrf.mxu0
    %v6513 = vadd.f32 %v6320, %v6512
    %v6514 = vpop.f32.mrf.mxu0
    %v6515 = vadd.f32 %v6322, %v6514
    %v6516 = vpop.f32.mrf.mxu0
    %v6517 = vadd.f32 %v6324, %v6516
    %6518 = vmatprep.mubr.bf16.mxu0 0
    %6519 = vmatmul.mubr.bf16.gmra.mxu0 %v4968
    %v6520 = vpop.f32.mrf.mxu0
    %v6521 = vadd.f32 %v6328, %v6520
    %v6522 = vpop.f32.mrf.mxu0
    %v6523 = vadd.f32 %v6330, %v6522
    %v6524 = vpop.f32.mrf.mxu0
    %v6525 = vadd.f32 %v6332, %v6524
    %v6526 = vpop.f32.mrf.mxu0
    %v6527 = vadd.f32 %v6334, %v6526
    %6528 = vmatprep.mubr.bf16.mxu0 0
    %6529 = vmatmul.mubr.bf16.gmra.mxu0 %v4971
    %v6530 = vpop.f32.mrf.mxu0
    %v6531 = vadd.f32 %v6338, %v6530
    %v6532 = vpop.f32.mrf.mxu0
    %v6533 = vadd.f32 %v6340, %v6532
    %v6534 = vpop.f32.mrf.mxu0
    %v6535 = vadd.f32 %v6342, %v6534
    %v6536 = vpop.f32.mrf.mxu0
    %v6537 = vadd.f32 %v6344, %v6536
    %6538 = vdwg.mxu0
    %6539 = vmatprep.subr.bf16.mxu0 0
    %6540 = vmatpush1.bf16.msra.mxu0 %v5566
    %6541 = vmatprep.subr.bf16.mxu0 0
    %6542 = vmatpush1.bf16.msra.mxu0 %v5561
    %6543 = vmatprep.subr.bf16.mxu0 0
    %6544 = vmatpush1.bf16.msra.mxu0 %v5556
    %6545 = vmatprep.subr.bf16.mxu0 0
    %6546 = vmatpush1.bf16.msra.mxu0 %v5551
    %6547 = vmatprep.subr.bf16.mxu0 0
    %6548 = vmatpush1.bf16.msra.mxu0 %v5546
    %6549 = vmatprep.subr.bf16.mxu0 0
    %6550 = vmatpush1.bf16.msra.mxu0 %v5541
    %6551 = vmatprep.subr.bf16.mxu0 0
    %6552 = vmatpush1.bf16.msra.mxu0 %v5536
    %6553 = vmatprep.subr.bf16.mxu0 0
    %6554 = vmatpush1.bf16.msra.mxu0 %v5531
    %6555 = vmatprep.subr.bf16.mxu0 0
    %6556 = vmatpush2.bf16.msra.mxu0 %v5606
    %6557 = vmatprep.subr.bf16.mxu0 0
    %6558 = vmatpush2.bf16.msra.mxu0 %v5601
    %6559 = vmatprep.subr.bf16.mxu0 0
    %6560 = vmatpush2.bf16.msra.mxu0 %v5596
    %6561 = vmatprep.subr.bf16.mxu0 0
    %6562 = vmatpush2.bf16.msra.mxu0 %v5591
    %6563 = vmatprep.subr.bf16.mxu0 0
    %6564 = vmatpush2.bf16.msra.mxu0 %v5586
    %6565 = vmatprep.subr.bf16.mxu0 0
    %6566 = vmatpush2.bf16.msra.mxu0 %v5581
    %6567 = vmatprep.subr.bf16.mxu0 0
    %6568 = vmatpush2.bf16.msra.mxu0 %v5576
    %6569 = vmatprep.subr.bf16.mxu0 0
    %6570 = vmatpush2.bf16.msra.mxu0 %v5571
    %6571 = vmatprep.mubr.bf16.mxu0 %v4925
    %6572 = vmatmul.mubr.bf16.gmra.mxu0 %v4924
    %v6573 = vpop.f32.mrf.mxu0
    %v6574 = vadd.f32 %v5137, %v6573
    %v6575 = vpop.f32.mrf.mxu0
    %v6576 = vpop.f32.mrf.mxu0
    %v6577 = vadd.f32 %v5137, %v6576
    %v6578 = vpop.f32.mrf.mxu0
    %6579 = vmatprep.mubr.bf16.mxu0 %v4928
    %6580 = vmatmul.mubr.bf16.gmra.mxu0 %v4927
    %v6581 = vpop.f32.mrf.mxu0
    %v6582 = vadd.f32 %v5137, %v6581
    %v6583 = vpop.f32.mrf.mxu0
    %v6584 = vpop.f32.mrf.mxu0
    %v6585 = vadd.f32 %v5137, %v6584
    %v6586 = vpop.f32.mrf.mxu0
    %6587 = vmatprep.mubr.bf16.mxu0 %v4931
    %6588 = vmatmul.mubr.bf16.gmra.mxu0 %v4930
    %v6589 = vpop.f32.mrf.mxu0
    %v6590 = vadd.f32 %v5137, %v6589
    %v6591 = vpop.f32.mrf.mxu0
    %v6592 = vpop.f32.mrf.mxu0
    %v6593 = vadd.f32 %v5137, %v6592
    %v6594 = vpop.f32.mrf.mxu0
    %6595 = vmatprep.mubr.bf16.mxu0 %v4934
    %6596 = vmatmul.mubr.bf16.gmra.mxu0 %v4933
    %v6597 = vpop.f32.mrf.mxu0
    %v6598 = vadd.f32 %v5137, %v6597
    %v6599 = vpop.f32.mrf.mxu0
    %v6600 = vpop.f32.mrf.mxu0
    %v6601 = vadd.f32 %v5137, %v6600
    %v6602 = vpop.f32.mrf.mxu0
    %6603 = vmatprep.mubr.bf16.mxu0 %v4937
    %6604 = vmatmul.mubr.bf16.gmra.mxu0 %v4936
    %v6605 = vpop.f32.mrf.mxu0
    %v6606 = vadd.f32 %v5137, %v6605
    %v6607 = vpop.f32.mrf.mxu0
    %v6608 = vpop.f32.mrf.mxu0
    %v6609 = vadd.f32 %v5137, %v6608
    %v6610 = vpop.f32.mrf.mxu0
    %6611 = vmatprep.mubr.bf16.mxu0 %v4940
    %6612 = vmatmul.mubr.bf16.gmra.mxu0 %v4939
    %v6613 = vpop.f32.mrf.mxu0
    %v6614 = vadd.f32 %v5137, %v6613
    %v6615 = vpop.f32.mrf.mxu0
    %v6616 = vpop.f32.mrf.mxu0
    %v6617 = vadd.f32 %v5137, %v6616
    %v6618 = vpop.f32.mrf.mxu0
    %6619 = vmatprep.mubr.bf16.mxu0 %v4943
    %6620 = vmatmul.mubr.bf16.gmra.mxu0 %v4942
    %v6621 = vpop.f32.mrf.mxu0
    %v6622 = vadd.f32 %v5137, %v6621
    %v6623 = vpop.f32.mrf.mxu0
    %v6624 = vpop.f32.mrf.mxu0
    %v6625 = vadd.f32 %v5137, %v6624
    %v6626 = vpop.f32.mrf.mxu0
    %6627 = vmatprep.mubr.bf16.mxu0 %v4946
    %6628 = vmatmul.mubr.bf16.gmra.mxu0 %v4945
    %v6629 = vpop.f32.mrf.mxu0
    %v6630 = vadd.f32 %v5137, %v6629
    %v6631 = vpop.f32.mrf.mxu0
    %v6632 = vpop.f32.mrf.mxu0
    %v6633 = vadd.f32 %v5137, %v6632
    %v6634 = vpop.f32.mrf.mxu0
    %6635 = vmatprep.mubr.bf16.mxu0 %v4949
    %6636 = vmatmul.mubr.bf16.gmra.mxu0 %v4948
    %v6637 = vpop.f32.mrf.mxu0
    %v6638 = vadd.f32 %v5137, %v6637
    %v6639 = vpop.f32.mrf.mxu0
    %v6640 = vpop.f32.mrf.mxu0
    %v6641 = vadd.f32 %v5137, %v6640
    %v6642 = vpop.f32.mrf.mxu0
    %6643 = vmatprep.mubr.bf16.mxu0 %v4952
    %6644 = vmatmul.mubr.bf16.gmra.mxu0 %v4951
    %v6645 = vpop.f32.mrf.mxu0
    %v6646 = vadd.f32 %v5137, %v6645
    %v6647 = vpop.f32.mrf.mxu0
    %v6648 = vpop.f32.mrf.mxu0
    %v6649 = vadd.f32 %v5137, %v6648
    %v6650 = vpop.f32.mrf.mxu0
    %6651 = vmatprep.mubr.bf16.mxu0 %v4955
    %6652 = vmatmul.mubr.bf16.gmra.mxu0 %v4954
    %v6653 = vpop.f32.mrf.mxu0
    %v6654 = vadd.f32 %v5137, %v6653
    %v6655 = vpop.f32.mrf.mxu0
    %v6656 = vpop.f32.mrf.mxu0
    %v6657 = vadd.f32 %v5137, %v6656
    %v6658 = vpop.f32.mrf.mxu0
    %6659 = vmatprep.mubr.bf16.mxu0 %v4958
    %6660 = vmatmul.mubr.bf16.gmra.mxu0 %v4957
    %v6661 = vpop.f32.mrf.mxu0
    %v6662 = vadd.f32 %v5137, %v6661
    %v6663 = vpop.f32.mrf.mxu0
    %v6664 = vpop.f32.mrf.mxu0
    %v6665 = vadd.f32 %v5137, %v6664
    %v6666 = vpop.f32.mrf.mxu0
    %6667 = vmatprep.mubr.bf16.mxu0 %v4961
    %6668 = vmatmul.mubr.bf16.gmra.mxu0 %v4960
    %v6669 = vpop.f32.mrf.mxu0
    %v6670 = vadd.f32 %v5137, %v6669
    %v6671 = vpop.f32.mrf.mxu0
    %v6672 = vpop.f32.mrf.mxu0
    %v6673 = vadd.f32 %v5137, %v6672
    %v6674 = vpop.f32.mrf.mxu0
    %6675 = vmatprep.mubr.bf16.mxu0 %v4964
    %6676 = vmatmul.mubr.bf16.gmra.mxu0 %v4963
    %v6677 = vpop.f32.mrf.mxu0
    %v6678 = vadd.f32 %v5137, %v6677
    %v6679 = vpop.f32.mrf.mxu0
    %v6680 = vpop.f32.mrf.mxu0
    %v6681 = vadd.f32 %v5137, %v6680
    %v6682 = vpop.f32.mrf.mxu0
    %6683 = vmatprep.mubr.bf16.mxu0 %v4967
    %6684 = vmatmul.mubr.bf16.gmra.mxu0 %v4966
    %v6685 = vpop.f32.mrf.mxu0
    %v6686 = vadd.f32 %v5137, %v6685
    %v6687 = vpop.f32.mrf.mxu0
    %v6688 = vpop.f32.mrf.mxu0
    %v6689 = vadd.f32 %v5137, %v6688
    %v6690 = vpop.f32.mrf.mxu0
    %6691 = vmatprep.mubr.bf16.mxu0 %v4970
    %6692 = vmatmul.mubr.bf16.gmra.mxu0 %v4969
    %v6693 = vpop.f32.mrf.mxu0
    %v6694 = vadd.f32 %v5137, %v6693
    %v6695 = vpop.f32.mrf.mxu0
    %v6696 = vpop.f32.mrf.mxu0
    %v6697 = vadd.f32 %v5137, %v6696
    %v6698 = vpop.f32.mrf.mxu0
    %6699 = vdwg.mxu0
    %6700 = vmatprep.subr.bf16.mxu0 0
    %6701 = vmatpush1.bf16.msra.mxu0 %v5646
    %6702 = vmatprep.subr.bf16.mxu0 0
    %6703 = vmatpush1.bf16.msra.mxu0 %v5641
    %6704 = vmatprep.subr.bf16.mxu0 0
    %6705 = vmatpush1.bf16.msra.mxu0 %v5636
    %6706 = vmatprep.subr.bf16.mxu0 0
    %6707 = vmatpush1.bf16.msra.mxu0 %v5631
    %6708 = vmatprep.subr.bf16.mxu0 0
    %6709 = vmatpush1.bf16.msra.mxu0 %v5626
    %6710 = vmatprep.subr.bf16.mxu0 0
    %6711 = vmatpush1.bf16.msra.mxu0 %v5621
    %6712 = vmatprep.subr.bf16.mxu0 0
    %6713 = vmatpush1.bf16.msra.mxu0 %v5616
    %6714 = vmatprep.subr.bf16.mxu0 0
    %6715 = vmatpush1.bf16.msra.mxu0 %v5611
    %6716 = vmatprep.subr.bf16.mxu0 0
    %6717 = vmatpush2.bf16.msra.mxu0 0
    %6718 = vmatprep.subr.bf16.mxu0 0
    %6719 = vmatpush2.bf16.msra.mxu0 0
    %6720 = vmatprep.subr.bf16.mxu0 0
    %6721 = vmatpush2.bf16.msra.mxu0 0
    %6722 = vmatprep.subr.bf16.mxu0 0
    %6723 = vmatpush2.bf16.msra.mxu0 0
    %6724 = vmatprep.subr.bf16.mxu0 0
    %6725 = vmatpush2.bf16.msra.mxu0 0
    %6726 = vmatprep.subr.bf16.mxu0 0
    %6727 = vmatpush2.bf16.msra.mxu0 0
    %6728 = vmatprep.subr.bf16.mxu0 0
    %6729 = vmatpush2.bf16.msra.mxu0 0
    %6730 = vmatprep.subr.bf16.mxu0 0
    %6731 = vmatpush2.bf16.msra.mxu0 0
    %6732 = vmatprep.mubr.bf16.mxu0 0
    %6733 = vmatmul.mubr.bf16.gmra.mxu0 %v4926
    %v6734 = vpop.f32.mrf.mxu0
    %v6735 = vadd.f32 %v6574, %v6734
    %v6736 = vpop.f32.mrf.mxu0
    %v6737 = vpop.f32.mrf.mxu0
    %v6738 = vadd.f32 %v6577, %v6737
    %v6739 = vpop.f32.mrf.mxu0
    %6740 = vmatprep.mubr.bf16.mxu0 0
    %6741 = vmatmul.mubr.bf16.gmra.mxu0 %v4929
    %v6742 = vpop.f32.mrf.mxu0
    %v6743 = vadd.f32 %v6582, %v6742
    %v6744 = vpop.f32.mrf.mxu0
    %v6745 = vpop.f32.mrf.mxu0
    %v6746 = vadd.f32 %v6585, %v6745
    %v6747 = vpop.f32.mrf.mxu0
    %6748 = vmatprep.mubr.bf16.mxu0 0
    %6749 = vmatmul.mubr.bf16.gmra.mxu0 %v4932
    %v6750 = vpop.f32.mrf.mxu0
    %v6751 = vadd.f32 %v6590, %v6750
    %v6752 = vpop.f32.mrf.mxu0
    %v6753 = vpop.f32.mrf.mxu0
    %v6754 = vadd.f32 %v6593, %v6753
    %v6755 = vpop.f32.mrf.mxu0
    %6756 = vmatprep.mubr.bf16.mxu0 0
    %6757 = vmatmul.mubr.bf16.gmra.mxu0 %v4935
    %v6758 = vpop.f32.mrf.mxu0
    %v6759 = vadd.f32 %v6598, %v6758
    %v6760 = vpop.f32.mrf.mxu0
    %v6761 = vpop.f32.mrf.mxu0
    %v6762 = vadd.f32 %v6601, %v6761
    %v6763 = vpop.f32.mrf.mxu0
    %6764 = vmatprep.mubr.bf16.mxu0 0
    %6765 = vmatmul.mubr.bf16.gmra.mxu0 %v4938
    %v6766 = vpop.f32.mrf.mxu0
    %v6767 = vadd.f32 %v6606, %v6766
    %v6768 = vpop.f32.mrf.mxu0
    %v6769 = vpop.f32.mrf.mxu0
    %v6770 = vadd.f32 %v6609, %v6769
    %v6771 = vpop.f32.mrf.mxu0
    %6772 = vmatprep.mubr.bf16.mxu0 0
    %6773 = vmatmul.mubr.bf16.gmra.mxu0 %v4941
    %v6774 = vpop.f32.mrf.mxu0
    %v6775 = vadd.f32 %v6614, %v6774
    %v6776 = vpop.f32.mrf.mxu0
    %v6777 = vpop.f32.mrf.mxu0
    %v6778 = vadd.f32 %v6617, %v6777
    %v6779 = vpop.f32.mrf.mxu0
    %6780 = vmatprep.mubr.bf16.mxu0 0
    %6781 = vmatmul.mubr.bf16.gmra.mxu0 %v4944
    %v6782 = vpop.f32.mrf.mxu0
    %v6783 = vadd.f32 %v6622, %v6782
    %v6784 = vpop.f32.mrf.mxu0
    %v6785 = vpop.f32.mrf.mxu0
    %v6786 = vadd.f32 %v6625, %v6785
    %v6787 = vpop.f32.mrf.mxu0
    %6788 = vmatprep.mubr.bf16.mxu0 0
    %6789 = vmatmul.mubr.bf16.gmra.mxu0 %v4947
    %v6790 = vpop.f32.mrf.mxu0
    %v6791 = vadd.f32 %v6630, %v6790
    %v6792 = vpop.f32.mrf.mxu0
    %v6793 = vpop.f32.mrf.mxu0
    %v6794 = vadd.f32 %v6633, %v6793
    %v6795 = vpop.f32.mrf.mxu0
    %6796 = vmatprep.mubr.bf16.mxu0 0
    %6797 = vmatmul.mubr.bf16.gmra.mxu0 %v4950
    %v6798 = vpop.f32.mrf.mxu0
    %v6799 = vadd.f32 %v6638, %v6798
    %v6800 = vpop.f32.mrf.mxu0
    %v6801 = vpop.f32.mrf.mxu0
    %v6802 = vadd.f32 %v6641, %v6801
    %v6803 = vpop.f32.mrf.mxu0
    %6804 = vmatprep.mubr.bf16.mxu0 0
    %6805 = vmatmul.mubr.bf16.gmra.mxu0 %v4953
    %v6806 = vpop.f32.mrf.mxu0
    %v6807 = vadd.f32 %v6646, %v6806
    %v6808 = vpop.f32.mrf.mxu0
    %v6809 = vpop.f32.mrf.mxu0
    %v6810 = vadd.f32 %v6649, %v6809
    %v6811 = vpop.f32.mrf.mxu0
    %6812 = vmatprep.mubr.bf16.mxu0 0
    %6813 = vmatmul.mubr.bf16.gmra.mxu0 %v4956
    %v6814 = vpop.f32.mrf.mxu0
    %v6815 = vadd.f32 %v6654, %v6814
    %v6816 = vpop.f32.mrf.mxu0
    %v6817 = vpop.f32.mrf.mxu0
    %v6818 = vadd.f32 %v6657, %v6817
    %v6819 = vpop.f32.mrf.mxu0
    %6820 = vmatprep.mubr.bf16.mxu0 0
    %6821 = vmatmul.mubr.bf16.gmra.mxu0 %v4959
    %v6822 = vpop.f32.mrf.mxu0
    %v6823 = vadd.f32 %v6662, %v6822
    %v6824 = vpop.f32.mrf.mxu0
    %v6825 = vpop.f32.mrf.mxu0
    %v6826 = vadd.f32 %v6665, %v6825
    %v6827 = vpop.f32.mrf.mxu0
    %6828 = vmatprep.mubr.bf16.mxu0 0
    %6829 = vmatmul.mubr.bf16.gmra.mxu0 %v4962
    %v6830 = vpop.f32.mrf.mxu0
    %v6831 = vadd.f32 %v6670, %v6830
    %v6832 = vpop.f32.mrf.mxu0
    %v6833 = vpop.f32.mrf.mxu0
    %v6834 = vadd.f32 %v6673, %v6833
    %v6835 = vpop.f32.mrf.mxu0
    %6836 = vmatprep.mubr.bf16.mxu0 0
    %6837 = vmatmul.mubr.bf16.gmra.mxu0 %v4965
    %v6838 = vpop.f32.mrf.mxu0
    %v6839 = vadd.f32 %v6678, %v6838
    %v6840 = vpop.f32.mrf.mxu0
    %v6841 = vpop.f32.mrf.mxu0
    %v6842 = vadd.f32 %v6681, %v6841
    %v6843 = vpop.f32.mrf.mxu0
    %6844 = vmatprep.mubr.bf16.mxu0 0
    %6845 = vmatmul.mubr.bf16.gmra.mxu0 %v4968
    %v6846 = vpop.f32.mrf.mxu0
    %v6847 = vadd.f32 %v6686, %v6846
    %v6848 = vpop.f32.mrf.mxu0
    %v6849 = vpop.f32.mrf.mxu0
    %v6850 = vadd.f32 %v6689, %v6849
    %v6851 = vpop.f32.mrf.mxu0
    %6852 = vmatprep.mubr.bf16.mxu0 0
    %6853 = vmatmul.mubr.bf16.gmra.mxu0 %v4971
    %v6854 = vpop.f32.mrf.mxu0
    %v6855 = vadd.f32 %v6694, %v6854
    %v6856 = vpop.f32.mrf.mxu0
    %v6857 = vpop.f32.mrf.mxu0
    %v6858 = vadd.f32 %v6697, %v6857
    %v6859 = vpop.f32.mrf.mxu0
    %6860 = vdwg.mxu0
    %6861 = vst [vmem:[#allocation16] sm:$0xff] %v5995
    %6862 = vst [vmem:[#allocation16 + $0x8] sm:$0xff] %v5997
    %6863 = vst [vmem:[#allocation16 + $0x10] sm:$0xff] %v6381
    %6864 = vst [vmem:[#allocation16 + $0x18] sm:$0xff] %v6383
    %6865 = vst [vmem:[#allocation16 + $0x20] sm:$0xff] %v6735
    %6866 = vst [vmem:[#allocation16 + $0x28] sm:$0xff] %v5999
    %6867 = vst [vmem:[#allocation16 + $0x30] sm:$0xff] %v6001
    %6868 = vst [vmem:[#allocation16 + $0x38] sm:$0xff] %v6385
    %6869 = vst [vmem:[#allocation16 + $0x40] sm:$0xff] %v6387
    %6870 = vst [vmem:[#allocation16 + $0x48] sm:$0xff] %v6738
    %6871 = vst [vmem:[#allocation16 + $0x50] sm:$0xff] %v6005
    %6872 = vst [vmem:[#allocation16 + $0x58] sm:$0xff] %v6007
    %6873 = vst [vmem:[#allocation16 + $0x60] sm:$0xff] %v6391
    %6874 = vst [vmem:[#allocation16 + $0x68] sm:$0xff] %v6393
    %6875 = vst [vmem:[#allocation16 + $0x70] sm:$0xff] %v6743
    %6876 = vst [vmem:[#allocation16 + $0x78] sm:$0xff] %v6009
    %6877 = vst [vmem:[#allocation16 + $0x80] sm:$0xff] %v6011
    %6878 = vst [vmem:[#allocation16 + $0x88] sm:$0xff] %v6395
    %6879 = vst [vmem:[#allocation16 + $0x90] sm:$0xff] %v6397
    %6880 = vst [vmem:[#allocation16 + $0x98] sm:$0xff] %v6746
    %6881 = vst [vmem:[#allocation16 + $0xa0] sm:$0xff] %v6015
    %6882 = vst [vmem:[#allocation16 + $0xa8] sm:$0xff] %v6017
    %6883 = vst [vmem:[#allocation16 + $0xb0] sm:$0xff] %v6401
    %6884 = vst [vmem:[#allocation16 + $0xb8] sm:$0xff] %v6403
    %6885 = vst [vmem:[#allocation16 + $0xc0] sm:$0xff] %v6751
    %6886 = vst [vmem:[#allocation16 + $0xc8] sm:$0xff] %v6019
    %6887 = vst [vmem:[#allocation16 + $0xd0] sm:$0xff] %v6021
    %6888 = vst [vmem:[#allocation16 + $0xd8] sm:$0xff] %v6405
    %6889 = vst [vmem:[#allocation16 + $0xe0] sm:$0xff] %v6407
    %6890 = vst [vmem:[#allocation16 + $0xe8] sm:$0xff] %v6754
    %6891 = vst [vmem:[#allocation16 + $0xf0] sm:$0xff] %v6025
    %6892 = vst [vmem:[#allocation16 + $0xf8] sm:$0xff] %v6027
    %6893 = vst [vmem:[#allocation16 + $0x100] sm:$0xff] %v6411
    %6894 = vst [vmem:[#allocation16 + $0x108] sm:$0xff] %v6413
    %6895 = vst [vmem:[#allocation16 + $0x110] sm:$0xff] %v6759
    %6896 = vst [vmem:[#allocation16 + $0x118] sm:$0xff] %v6029
    %6897 = vst [vmem:[#allocation16 + $0x120] sm:$0xff] %v6031
    %6898 = vst [vmem:[#allocation16 + $0x128] sm:$0xff] %v6415
    %6899 = vst [vmem:[#allocation16 + $0x130] sm:$0xff] %v6417
    %6900 = vst [vmem:[#allocation16 + $0x138] sm:$0xff] %v6762
    %6901 = vst [vmem:[#allocation16 + $0x140] sm:$0xff] %v6035
    %6902 = vst [vmem:[#allocation16 + $0x148] sm:$0xff] %v6037
    %6903 = vst [vmem:[#allocation16 + $0x150] sm:$0xff] %v6421
    %6904 = vst [vmem:[#allocation16 + $0x158] sm:$0xff] %v6423
    %6905 = vst [vmem:[#allocation16 + $0x160] sm:$0xff] %v6767
    %6906 = vst [vmem:[#allocation16 + $0x168] sm:$0xff] %v6039
    %6907 = vst [vmem:[#allocation16 + $0x170] sm:$0xff] %v6041
    %6908 = vst [vmem:[#allocation16 + $0x178] sm:$0xff] %v6425
    %6909 = vst [vmem:[#allocation16 + $0x180] sm:$0xff] %v6427
    %6910 = vst [vmem:[#allocation16 + $0x188] sm:$0xff] %v6770
    %6911 = vst [vmem:[#allocation16 + $0x190] sm:$0xff] %v6045
    %6912 = vst [vmem:[#allocation16 + $0x198] sm:$0xff] %v6047
    %6913 = vst [vmem:[#allocation16 + $0x1a0] sm:$0xff] %v6431
    %6914 = vst [vmem:[#allocation16 + $0x1a8] sm:$0xff] %v6433
    %6915 = vst [vmem:[#allocation16 + $0x1b0] sm:$0xff] %v6775
    %6916 = vst [vmem:[#allocation16 + $0x1b8] sm:$0xff] %v6049
    %6917 = vst [vmem:[#allocation16 + $0x1c0] sm:$0xff] %v6051
    %6918 = vst [vmem:[#allocation16 + $0x1c8] sm:$0xff] %v6435
    %6919 = vst [vmem:[#allocation16 + $0x1d0] sm:$0xff] %v6437
    %6920 = vst [vmem:[#allocation16 + $0x1d8] sm:$0xff] %v6778
    %6921 = vst [vmem:[#allocation16 + $0x1e0] sm:$0xff] %v6055
    %6922 = vst [vmem:[#allocation16 + $0x1e8] sm:$0xff] %v6057
    %6923 = vst [vmem:[#allocation16 + $0x1f0] sm:$0xff] %v6441
    %6924 = vst [vmem:[#allocation16 + $0x1f8] sm:$0xff] %v6443
    %6925 = vst [vmem:[#allocation16 + $0x200] sm:$0xff] %v6783
    %6926 = vst [vmem:[#allocation16 + $0x208] sm:$0xff] %v6059
    %6927 = vst [vmem:[#allocation16 + $0x210] sm:$0xff] %v6061
    %6928 = vst [vmem:[#allocation16 + $0x218] sm:$0xff] %v6445
    %6929 = vst [vmem:[#allocation16 + $0x220] sm:$0xff] %v6447
    %6930 = vst [vmem:[#allocation16 + $0x228] sm:$0xff] %v6786
    %6931 = vst [vmem:[#allocation16 + $0x230] sm:$0xff] %v6065
    %6932 = vst [vmem:[#allocation16 + $0x238] sm:$0xff] %v6067
    %6933 = vst [vmem:[#allocation16 + $0x240] sm:$0xff] %v6451
    %6934 = vst [vmem:[#allocation16 + $0x248] sm:$0xff] %v6453
    %6935 = vst [vmem:[#allocation16 + $0x250] sm:$0xff] %v6791
    %6936 = vst [vmem:[#allocation16 + $0x258] sm:$0xff] %v6069
    %6937 = vst [vmem:[#allocation16 + $0x260] sm:$0xff] %v6071
    %6938 = vst [vmem:[#allocation16 + $0x268] sm:$0xff] %v6455
    %6939 = vst [vmem:[#allocation16 + $0x270] sm:$0xff] %v6457
    %6940 = vst [vmem:[#allocation16 + $0x278] sm:$0xff] %v6794
    %6941 = vst [vmem:[#allocation16 + $0x280] sm:$0xff] %v6075
    %6942 = vst [vmem:[#allocation16 + $0x288] sm:$0xff] %v6077
    %6943 = vst [vmem:[#allocation16 + $0x290] sm:$0xff] %v6461
    %6944 = vst [vmem:[#allocation16 + $0x298] sm:$0xff] %v6463
    %6945 = vst [vmem:[#allocation16 + $0x2a0] sm:$0xff] %v6799
    %6946 = vst [vmem:[#allocation16 + $0x2a8] sm:$0xff] %v6079
    %6947 = vst [vmem:[#allocation16 + $0x2b0] sm:$0xff] %v6081
    %6948 = vst [vmem:[#allocation16 + $0x2b8] sm:$0xff] %v6465
    %6949 = vst [vmem:[#allocation16 + $0x2c0] sm:$0xff] %v6467
    %6950 = vst [vmem:[#allocation16 + $0x2c8] sm:$0xff] %v6802
    %6951 = vst [vmem:[#allocation16 + $0x2d0] sm:$0xff] %v6085
    %6952 = vst [vmem:[#allocation16 + $0x2d8] sm:$0xff] %v6087
    %6953 = vst [vmem:[#allocation16 + $0x2e0] sm:$0xff] %v6471
    %6954 = vst [vmem:[#allocation16 + $0x2e8] sm:$0xff] %v6473
    %6955 = vst [vmem:[#allocation16 + $0x2f0] sm:$0xff] %v6807
    %6956 = vst [vmem:[#allocation16 + $0x2f8] sm:$0xff] %v6089
    %6957 = vst [vmem:[#allocation16 + $0x300] sm:$0xff] %v6091
    %6958 = vst [vmem:[#allocation16 + $0x308] sm:$0xff] %v6475
    %6959 = vst [vmem:[#allocation16 + $0x310] sm:$0xff] %v6477
    %6960 = vst [vmem:[#allocation16 + $0x318] sm:$0xff] %v6810
    %6961 = vst [vmem:[#allocation16 + $0x320] sm:$0xff] %v6095
    %6962 = vst [vmem:[#allocation16 + $0x328] sm:$0xff] %v6097
    %6963 = vst [vmem:[#allocation16 + $0x330] sm:$0xff] %v6481
    %6964 = vst [vmem:[#allocation16 + $0x338] sm:$0xff] %v6483
    %6965 = vst [vmem:[#allocation16 + $0x340] sm:$0xff] %v6815
    %6966 = vst [vmem:[#allocation16 + $0x348] sm:$0xff] %v6099
    %6967 = vst [vmem:[#allocation16 + $0x350] sm:$0xff] %v6101
    %6968 = vst [vmem:[#allocation16 + $0x358] sm:$0xff] %v6485
    %6969 = vst [vmem:[#allocation16 + $0x360] sm:$0xff] %v6487
    %6970 = vst [vmem:[#allocation16 + $0x368] sm:$0xff] %v6818
    %6971 = vst [vmem:[#allocation16 + $0x370] sm:$0xff] %v6105
    %6972 = vst [vmem:[#allocation16 + $0x378] sm:$0xff] %v6107
    %6973 = vst [vmem:[#allocation16 + $0x380] sm:$0xff] %v6491
    %6974 = vst [vmem:[#allocation16 + $0x388] sm:$0xff] %v6493
    %6975 = vst [vmem:[#allocation16 + $0x390] sm:$0xff] %v6823
    %6976 = vst [vmem:[#allocation16 + $0x398] sm:$0xff] %v6109
    %6977 = vst [vmem:[#allocation16 + $0x3a0] sm:$0xff] %v6111
    %6978 = vst [vmem:[#allocation16 + $0x3a8] sm:$0xff] %v6495
    %6979 = vst [vmem:[#allocation16 + $0x3b0] sm:$0xff] %v6497
    %6980 = vst [vmem:[#allocation16 + $0x3b8] sm:$0xff] %v6826
    %6981 = vst [vmem:[#allocation16 + $0x3c0] sm:$0xff] %v6115
    %6982 = vst [vmem:[#allocation16 + $0x3c8] sm:$0xff] %v6117
    %6983 = vst [vmem:[#allocation16 + $0x3d0] sm:$0xff] %v6501
    %6984 = vst [vmem:[#allocation16 + $0x3d8] sm:$0xff] %v6503
    %6985 = vst [vmem:[#allocation16 + $0x3e0] sm:$0xff] %v6831
    %6986 = vst [vmem:[#allocation16 + $0x3e8] sm:$0xff] %v6119
    %6987 = vst [vmem:[#allocation16 + $0x3f0] sm:$0xff] %v6121
    %6988 = vst [vmem:[#allocation16 + $0x3f8] sm:$0xff] %v6505
    %6989 = vst [vmem:[#allocation16 + $0x400] sm:$0xff] %v6507
    %6990 = vst [vmem:[#allocation16 + $0x408] sm:$0xff] %v6834
    %6991 = vst [vmem:[#allocation16 + $0x410] sm:$0xff] %v6125
    %6992 = vst [vmem:[#allocation16 + $0x418] sm:$0xff] %v6127
    %6993 = vst [vmem:[#allocation16 + $0x420] sm:$0xff] %v6511
    %6994 = vst [vmem:[#allocation16 + $0x428] sm:$0xff] %v6513
    %6995 = vst [vmem:[#allocation16 + $0x430] sm:$0xff] %v6839
    %6996 = vst [vmem:[#allocation16 + $0x438] sm:$0xff] %v6129
    %6997 = vst [vmem:[#allocation16 + $0x440] sm:$0xff] %v6131
    %6998 = vst [vmem:[#allocation16 + $0x448] sm:$0xff] %v6515
    %6999 = vst [vmem:[#allocation16 + $0x450] sm:$0xff] %v6517
    %7000 = vst [vmem:[#allocation16 + $0x458] sm:$0xff] %v6842
    %7001 = vst [vmem:[#allocation16 + $0x460] sm:$0xff] %v6135
    %7002 = vst [vmem:[#allocation16 + $0x468] sm:$0xff] %v6137
    %7003 = vst [vmem:[#allocation16 + $0x470] sm:$0xff] %v6521
    %7004 = vst [vmem:[#allocation16 + $0x478] sm:$0xff] %v6523
    %7005 = vst [vmem:[#allocation16 + $0x480] sm:$0xff] %v6847
    %7006 = vst [vmem:[#allocation16 + $0x488] sm:$0xff] %v6139
    %7007 = vst [vmem:[#allocation16 + $0x490] sm:$0xff] %v6141
    %7008 = vst [vmem:[#allocation16 + $0x498] sm:$0xff] %v6525
    %7009 = vst [vmem:[#allocation16 + $0x4a0] sm:$0xff] %v6527
    %7010 = vst [vmem:[#allocation16 + $0x4a8] sm:$0xff] %v6850
    %7011 = vst [vmem:[#allocation16 + $0x4b0] sm:$0xff] %v6145
    %7012 = vst [vmem:[#allocation16 + $0x4b8] sm:$0xff] %v6147
    %7013 = vst [vmem:[#allocation16 + $0x4c0] sm:$0xff] %v6531
    %7014 = vst [vmem:[#allocation16 + $0x4c8] sm:$0xff] %v6533
    %7015 = vst [vmem:[#allocation16 + $0x4d0] sm:$0xff] %v6855
    %7016 = vst [vmem:[#allocation16 + $0x4d8] sm:$0xff] %v6149
    %7017 = vst [vmem:[#allocation16 + $0x4e0] sm:$0xff] %v6151
    %7018 = vst [vmem:[#allocation16 + $0x4e8] sm:$0xff] %v6535
    %7019 = vst [vmem:[#allocation16 + $0x4f0] sm:$0xff] %v6537
    %7020 = vst [vmem:[#allocation16 + $0x4f8] sm:$0xff] %v6858
    // Predicated region
    $region86: #{tpu_custom_call.1} parent=1 // pred_check
      _
    $region87: #{tpu_custom_call.1} parent=1 // pred_check_branch
      %7022 = sbr.rel (0) target = $region89
    $region88: #{tpu_custom_call.1} parent=1 // pred_region
      %s7024 = ssub.s32 20480, 20480
      %7025 = vsyncadd [#allocation4], %s7024
      %s7026 = sshll.u32 [#allocation16], 4
      %s7027 = int_to_ptr.vmem [resolvable:$true] %s7026
      %7032 = dma.vmem_to_hbm [thread:$0]  %s7027, 20480, %s13, [#allocation4], 640, 640, 40
    $region89: #{tpu_custom_call.1} parent=1 // pred_fallthru
      _
    // Predicated region
    $region90: #{tpu_custom_call.1} parent=1 // pred_check
      _
    $region91: #{tpu_custom_call.1} parent=1 // pred_check_branch
      %7034 = sbr.rel (0) target = $region93
    $region92: #{tpu_custom_call.1} parent=1 // pred_region
      %7035 = dma.done [#allocation4], 20480
    $region93: #{tpu_custom_call.1} parent=1 // pred_fallthru
      _
    %7036 = vsyncpa [#allocation3], 1
    %7037 = vsyncpa [#allocation6], 1
    %7038 = vsyncpa [#allocation9], 1
    %7039 = vsyncpa [#allocation12], 1
    %7040 = vsyncpa [#allocation15], 1
    %7041 = vsyncpa [#allocation4], 1

</llo_original>
